<compile_context>
chip_gen: v5e
topology: v5e:2x2
jax: 0.10.0
libtpu: 0.0.40
codegen_flags: <defaults>
</compile_context>

<pallas_src>
import functools
import math

import jax
import jax.numpy as jnp
from jax import lax
from jax.experimental import pallas as pl
from jax.experimental.pallas import tpu as pltpu

_BN_EPS = 1e-5
_EXPANSION = 1   # BasicBlock
_TL_MAX = 512    # target L-tile (rows); multiple of 16 for bf16 sublane packing


# ----------------------------------------------------------------------------
# Fully fused ResNet forward kernel (stem + all blocks + avgpool)
# ----------------------------------------------------------------------------
def _mask_rows(y, start, L):
    """Zero rows whose global index (start + row) falls outside [0, L)."""
    n = y.shape[0]
    pos = lax.broadcasted_iota(jnp.int32, (n, 1), 0) + start
    return jnp.where((pos >= 0) & (pos < L), y, 0.0)


def _resnet_kernel(*refs, TL, L, H, down_flags, pool):
    it = iter(refs)
    win_ref = next(it)                                    # (1, 1, TL+2H, 1) f32
    stem_w, stem_s, stem_b = next(it), next(it), next(it)
    blk_refs = []
    for has_down in down_flags:
        d = (next(it), next(it), next(it)) if has_down else None
        w1, s1, b1 = next(it), next(it), next(it)
        w2, s2, b2 = next(it), next(it), next(it)
        blk_refs.append((d, w1, s1, b1, w2, s2, b2))
    pmat_ref = next(it) if pool else None
    out_ref = next(it)

    base = pl.program_id(1) * TL
    start = base - H            # global row index of window row 0

    # --- stem: conv1 (k=1, 1 -> 64) + bn1 + relu; zero outside [0, L) -------
    xw = win_ref[0, 0].astype(jnp.float32)                # (TL+2H, 1)
    xs = jnp.maximum((xw * stem_w[...]) * stem_s[...] + stem_b[...], 0.0)
    cur = _mask_rows(xs, start, L).astype(jnp.bfloat16)   # (TL+2H, 64)

    n_blocks = len(blk_refs)
    for bi, (d, w1, s1, b1, w2, s2, b2) in enumerate(blk_refs):
        n = cur.shape[0]
        # conv1 (k=3, pad=1) + bn + relu; zero-mask (it is conv2's padded input)
        xc1 = jnp.concatenate([cur[0:n - 2], cur[1:n - 1], cur[2:n]], axis=-1)
        t = jnp.dot(xc1, w1[...], preferred_element_type=jnp.float32)
        t = jnp.maximum(t * s1[...] + b1[...], 0.0)
        t = _mask_rows(t, start + 1, L).astype(jnp.bfloat16)       # (n-2, C1)
        # conv2 (k=3, pad=1) + bn
        m = t.shape[0]
        xc2 = jnp.concatenate([t[0:m - 2], t[1:m - 1], t[2:m]], axis=-1)
        y = jnp.dot(xc2, w2[...], preferred_element_type=jnp.float32)
        y = y * s2[...] + b2[...]                                  # (n-4, C2)
        # residual (optional 1x1 downsample conv + bn), add, relu
        xin = cur[2:n - 2]
        if d is not None:
            dw, dsc, dbi = d
            r = jnp.dot(xin, dw[...], preferred_element_type=jnp.float32)
            r = r * dsc[...] + dbi[...]
        else:
            r = xin.astype(jnp.float32)
        y = jnp.maximum(y + r, 0.0)
        start += 2
        if bi != n_blocks - 1:
            # zero padding for the NEXT block's conv3x3 of this output
            cur = _mask_rows(y, start, L).astype(jnp.bfloat16)
        else:
            cur = y                                                # (TL, Cout) f32

    # --- fused AvgPool1d(2): pooled = P @ y with the (TL//2, TL) 0.5-matrix --
    if pool:
        cur = jnp.dot(pmat_ref[...], cur, preferred_element_type=jnp.float32)

    out_ref[0] = cur.astype(out_ref.dtype)


# ----------------------------------------------------------------------------
# Wrapper
# ----------------------------------------------------------------------------
def _choose_tile(L):
    """Largest L-tile <= _TL_MAX dividing L (multiple of 16 when tiling)."""
    if L <= _TL_MAX:
        return L
    t = (_TL_MAX // 16) * 16
    while t >= 16:
        if L % t == 0:
            return t
        t -= 16
    return L  # no clean divisor: fall back to a single tile


def _make_windows(x, TL, NT, H):
    """(B, NT, TL+2H, C) overlapping windows of each L-tile, zeros outside [0, L).
    The network input has C=1, so this tensor stays tiny; it replaces any
    padded-activation materialization."""
    B, L, C = x.shape
    offs = jnp.arange(NT)[:, None] * TL + (jnp.arange(TL + 2 * H)[None, :] - H)
    valid = (offs >= 0) & (offs < L)
    idx = jnp.clip(offs, 0, L - 1).reshape(-1)
    g = jnp.take(x, idx, axis=1)                           # (B, NT*(TL+2H), C)
    g = jnp.where(valid.reshape(1, -1, 1), g, jnp.zeros((), x.dtype))
    return g.reshape(B, NT, TL + 2 * H, C)


def resnet_forward(params, x_ncl):
    """x_ncl: (B, 1, L) in PyTorch NCL layout. Returns (B, 512 * (L // 2))."""
    x = jnp.transpose(x_ncl, (0, 2, 1)).astype(jnp.float32)   # (B, L, 1)
    B, L, Cin = x.shape
    blocks = [b for layer in params["layers"] for b in layer]
    n_blocks = len(blocks)
    H = 2 * n_blocks                     # 1 halo row per side per conv3x3
    TL = _choose_tile(L)
    NT = L // TL

    win = _make_windows(x, TL, NT, H)

    args = [win]
    in_specs = [pl.BlockSpec((1, 1, TL + 2 * H, Cin), lambda b, j: (b, j, 0, 0))]

    def add_const(a, dtype):             # VMEM-resident broadcast operand
        a = jnp.asarray(a, dtype)
        in_specs.append(pl.BlockSpec(a.shape, lambda b, j, nd=a.ndim: (0,) * nd))
        args.append(a)

    # stem
    add_const(params["conv1_w"][0].reshape(1, -1), jnp.float32)   # (1, 64)
    add_const(params["bn1_scale"].reshape(1, -1), jnp.float32)
    add_const(params["bn1_bias"].reshape(1, -1), jnp.float32)

    # blocks
    down_flags = []
    for blk in blocks:
        has_down = "down_w" in blk
        down_flags.append(has_down)
        if has_down:
            add_const(blk["down_w"][0], jnp.bfloat16)              # (Cin, Cout)
            add_const(blk["down_scale"].reshape(1, -1), jnp.float32)
            add_const(blk["down_bias"].reshape(1, -1), jnp.float32)
        _, cin_b, c1 = blk["w1"].shape
        add_const(blk["w1"].reshape(3 * cin_b, c1), jnp.bfloat16)  # im2col weight
        add_const(blk["s1"].reshape(1, -1), jnp.float32)
        add_const(blk["b1"].reshape(1, -1), jnp.float32)
        c2 = blk["w2"].shape[-1]
        add_const(blk["w2"].reshape(3 * c1, c2), jnp.bfloat16)
        add_const(blk["s2"].reshape(1, -1), jnp.float32)
        add_const(blk["b2"].reshape(1, -1), jnp.float32)

    # AvgPool1d(2) as a tiny 0.5-matrix (floor behaviour by construction)
    rows = jnp.arange(TL // 2)
    cols = jnp.arange(TL)
    pmat = (((cols[None, :] == 2 * rows[:, None]) |
             (cols[None, :] == 2 * rows[:, None] + 1)).astype(jnp.float32) * 0.5)
    add_const(pmat, jnp.float32)

    c_out = blocks[-1]["w2"].shape[-1]
    rows_out = TL // 2
    kernel = functools.partial(_resnet_kernel, TL=TL, L=L, H=H,
                               down_flags=tuple(down_flags), pool=True)
    y = pl.pallas_call(
        kernel,
        out_shape=jax.ShapeDtypeStruct((B, NT * rows_out, c_out), jnp.float32),
        grid=(B, NT),
        in_specs=in_specs,
        out_specs=pl.BlockSpec((1, rows_out, c_out), lambda b, j: (b, j, 0)),
        compiler_params=pltpu.CompilerParams(
            dimension_semantics=("parallel", "parallel"),
            vmem_limit_bytes=48 * 1024 * 1024),
    )(*args)

    y = jnp.transpose(y, (0, 2, 1))      # back to (B, C, L//2) for .view(B, -1)
    return y.reshape(B, -1)


# ----------------------------------------------------------------------------
# Parameters (deterministic, mirrors the PyTorch __init__ shapes & init)
# ----------------------------------------------------------------------------
def _bn_affine(c):
    gamma = jnp.ones((c,), jnp.float32)
    beta = jnp.zeros((c,), jnp.float32)
    running_mean = jnp.zeros((c,), jnp.float32)
    running_var = jnp.ones((c,), jnp.float32)
    scale = gamma / jnp.sqrt(running_var + _BN_EPS)
    bias = beta - running_mean * scale
    return scale, bias


def _conv_weight(key, k, cin, cout):
    # PyTorch: weight.normal_(0, sqrt(2 / (kernel_size * out_channels)))
    std = math.sqrt(2.0 / (k * cout))
    return jax.random.normal(key, (k, cin, cout), jnp.float32) * std


def make_params(key, layers=(1, 1, 1, 1)):
    keys = iter(jax.random.split(key, 64))
    params = {}
    params["conv1_w"] = _conv_weight(next(keys), 1, 1, 64)
    params["bn1_scale"], params["bn1_bias"] = _bn_affine(64)

    inplanes = 64
    all_layers = []
    for planes, nblocks in zip((64, 128, 256, 512), layers):
        blks = []
        for i in range(nblocks):
            blk = {}
            if i == 0 and inplanes != planes * _EXPANSION:
                blk["down_w"] = _conv_weight(next(keys), 1, inplanes,
                                             planes * _EXPANSION)
                blk["down_scale"], blk["down_bias"] = _bn_affine(planes * _EXPANSION)
            blk["w1"] = _conv_weight(next(keys), 3, inplanes, planes)
            blk["s1"], blk["b1"] = _bn_affine(planes)
            blk["w2"] = _conv_weight(next(keys), 3, planes, planes)
            blk["s2"], blk["b2"] = _bn_affine(planes)
            blks.append(blk)
            inplanes = planes * _EXPANSION
        all_layers.append(blks)
    params["layers"] = all_layers
    return params


if __name__ == "__main__":
    key = jax.random.PRNGKey(0)
    kp, kx = jax.random.split(key)

    # Small, module-consistent shapes: batch=2, in_channels=1, length=16.
    B, L = 2, 16
    params = make_params(kp, layers=(1, 1, 1, 1))
    x = jax.random.normal(kx, (B, 1, L), jnp.float32)

    fwd = jax.jit(resnet_forward)
    out = jax.block_until_ready(fwd(params, x))
    assert out.shape == (B, 512 * (L // 2)), out.shape
    assert jnp.all(jnp.isfinite(out))
    print("KERNEL_OK")
</pallas_src>

<mosaic_0001>
module attributes {stable_mosaic.version = 11 : i64} {
  func.func @_resnet_kernel(%arg0: i32, %arg1: i32, %arg2: memref<1x1x32x1xf32, #tpu.memory_space<vmem>>, %arg3: memref<1x64xf32, #tpu.memory_space<vmem>>, %arg4: memref<1x64xf32, #tpu.memory_space<vmem>>, %arg5: memref<1x64xf32, #tpu.memory_space<vmem>>, %arg6: memref<192x64xbf16, #tpu.memory_space<vmem>>, %arg7: memref<1x64xf32, #tpu.memory_space<vmem>>, %arg8: memref<1x64xf32, #tpu.memory_space<vmem>>, %arg9: memref<192x64xbf16, #tpu.memory_space<vmem>>, %arg10: memref<1x64xf32, #tpu.memory_space<vmem>>, %arg11: memref<1x64xf32, #tpu.memory_space<vmem>>, %arg12: memref<64x128xbf16, #tpu.memory_space<vmem>>, %arg13: memref<1x128xf32, #tpu.memory_space<vmem>>, %arg14: memref<1x128xf32, #tpu.memory_space<vmem>>, %arg15: memref<192x128xbf16, #tpu.memory_space<vmem>>, %arg16: memref<1x128xf32, #tpu.memory_space<vmem>>, %arg17: memref<1x128xf32, #tpu.memory_space<vmem>>, %arg18: memref<384x128xbf16, #tpu.memory_space<vmem>>, %arg19: memref<1x128xf32, #tpu.memory_space<vmem>>, %arg20: memref<1x128xf32, #tpu.memory_space<vmem>>, %arg21: memref<128x256xbf16, #tpu.memory_space<vmem>>, %arg22: memref<1x256xf32, #tpu.memory_space<vmem>>, %arg23: memref<1x256xf32, #tpu.memory_space<vmem>>, %arg24: memref<384x256xbf16, #tpu.memory_space<vmem>>, %arg25: memref<1x256xf32, #tpu.memory_space<vmem>>, %arg26: memref<1x256xf32, #tpu.memory_space<vmem>>, %arg27: memref<768x256xbf16, #tpu.memory_space<vmem>>, %arg28: memref<1x256xf32, #tpu.memory_space<vmem>>, %arg29: memref<1x256xf32, #tpu.memory_space<vmem>>, %arg30: memref<256x512xbf16, #tpu.memory_space<vmem>>, %arg31: memref<1x512xf32, #tpu.memory_space<vmem>>, %arg32: memref<1x512xf32, #tpu.memory_space<vmem>>, %arg33: memref<768x512xbf16, #tpu.memory_space<vmem>>, %arg34: memref<1x512xf32, #tpu.memory_space<vmem>>, %arg35: memref<1x512xf32, #tpu.memory_space<vmem>>, %arg36: memref<1536x512xbf16, #tpu.memory_space<vmem>>, %arg37: memref<1x512xf32, #tpu.memory_space<vmem>>, %arg38: memref<1x512xf32, #tpu.memory_space<vmem>>, %arg39: memref<8x16xf32, #tpu.memory_space<vmem>>, %arg40: memref<1x8x512xf32, #tpu.memory_space<vmem>>) attributes {dimension_semantics = [#tpu.dimension_semantics<parallel>, #tpu.dimension_semantics<parallel>], iteration_bounds = array<i64: 2, 1>, scalar_prefetch = 0 : i64, scratch_operands = 0 : i64, tpu.core_type = #tpu.core_type<tc>, window_params = [{transform_indices = @transform_0, window_bounds = array<i64: 1, 1, 32, 1>}, {pipeline_mode = #tpu.pipeline_mode<synchronous>, transform_indices = @transform_1, window_bounds = array<i64: 1, 64>}, {pipeline_mode = #tpu.pipeline_mode<synchronous>, transform_indices = @transform_2, window_bounds = array<i64: 1, 64>}, {pipeline_mode = #tpu.pipeline_mode<synchronous>, transform_indices = @transform_3, window_bounds = array<i64: 1, 64>}, {pipeline_mode = #tpu.pipeline_mode<synchronous>, transform_indices = @transform_4, window_bounds = array<i64: 192, 64>}, {pipeline_mode = #tpu.pipeline_mode<synchronous>, transform_indices = @transform_5, window_bounds = array<i64: 1, 64>}, {pipeline_mode = #tpu.pipeline_mode<synchronous>, transform_indices = @transform_6, window_bounds = array<i64: 1, 64>}, {pipeline_mode = #tpu.pipeline_mode<synchronous>, transform_indices = @transform_7, window_bounds = array<i64: 192, 64>}, {pipeline_mode = #tpu.pipeline_mode<synchronous>, transform_indices = @transform_8, window_bounds = array<i64: 1, 64>}, {pipeline_mode = #tpu.pipeline_mode<synchronous>, transform_indices = @transform_9, window_bounds = array<i64: 1, 64>}, {pipeline_mode = #tpu.pipeline_mode<synchronous>, transform_indices = @transform_10, window_bounds = array<i64: 64, 128>}, {pipeline_mode = #tpu.pipeline_mode<synchronous>, transform_indices = @transform_11, window_bounds = array<i64: 1, 128>}, {pipeline_mode = #tpu.pipeline_mode<synchronous>, transform_indices = @transform_12, window_bounds = array<i64: 1, 128>}, {pipeline_mode = #tpu.pipeline_mode<synchronous>, transform_indices = @transform_13, window_bounds = array<i64: 192, 128>}, {pipeline_mode = #tpu.pipeline_mode<synchronous>, transform_indices = @transform_14, window_bounds = array<i64: 1, 128>}, {pipeline_mode = #tpu.pipeline_mode<synchronous>, transform_indices = @transform_15, window_bounds = array<i64: 1, 128>}, {pipeline_mode = #tpu.pipeline_mode<synchronous>, transform_indices = @transform_16, window_bounds = array<i64: 384, 128>}, {pipeline_mode = #tpu.pipeline_mode<synchronous>, transform_indices = @transform_17, window_bounds = array<i64: 1, 128>}, {pipeline_mode = #tpu.pipeline_mode<synchronous>, transform_indices = @transform_18, window_bounds = array<i64: 1, 128>}, {pipeline_mode = #tpu.pipeline_mode<synchronous>, transform_indices = @transform_19, window_bounds = array<i64: 128, 256>}, {pipeline_mode = #tpu.pipeline_mode<synchronous>, transform_indices = @transform_20, window_bounds = array<i64: 1, 256>}, {pipeline_mode = #tpu.pipeline_mode<synchronous>, transform_indices = @transform_21, window_bounds = array<i64: 1, 256>}, {pipeline_mode = #tpu.pipeline_mode<synchronous>, transform_indices = @transform_22, window_bounds = array<i64: 384, 256>}, {pipeline_mode = #tpu.pipeline_mode<synchronous>, transform_indices = @transform_23, window_bounds = array<i64: 1, 256>}, {pipeline_mode = #tpu.pipeline_mode<synchronous>, transform_indices = @transform_24, window_bounds = array<i64: 1, 256>}, {pipeline_mode = #tpu.pipeline_mode<synchronous>, transform_indices = @transform_25, window_bounds = array<i64: 768, 256>}, {pipeline_mode = #tpu.pipeline_mode<synchronous>, transform_indices = @transform_26, window_bounds = array<i64: 1, 256>}, {pipeline_mode = #tpu.pipeline_mode<synchronous>, transform_indices = @transform_27, window_bounds = array<i64: 1, 256>}, {pipeline_mode = #tpu.pipeline_mode<synchronous>, transform_indices = @transform_28, window_bounds = array<i64: 256, 512>}, {pipeline_mode = #tpu.pipeline_mode<synchronous>, transform_indices = @transform_29, window_bounds = array<i64: 1, 512>}, {pipeline_mode = #tpu.pipeline_mode<synchronous>, transform_indices = @transform_30, window_bounds = array<i64: 1, 512>}, {pipeline_mode = #tpu.pipeline_mode<synchronous>, transform_indices = @transform_31, window_bounds = array<i64: 768, 512>}, {pipeline_mode = #tpu.pipeline_mode<synchronous>, transform_indices = @transform_32, window_bounds = array<i64: 1, 512>}, {pipeline_mode = #tpu.pipeline_mode<synchronous>, transform_indices = @transform_33, window_bounds = array<i64: 1, 512>}, {pipeline_mode = #tpu.pipeline_mode<synchronous>, transform_indices = @transform_34, window_bounds = array<i64: 1536, 512>}, {pipeline_mode = #tpu.pipeline_mode<synchronous>, transform_indices = @transform_35, window_bounds = array<i64: 1, 512>}, {pipeline_mode = #tpu.pipeline_mode<synchronous>, transform_indices = @transform_36, window_bounds = array<i64: 1, 512>}, {pipeline_mode = #tpu.pipeline_mode<synchronous>, transform_indices = @transform_37, window_bounds = array<i64: 8, 16>}, {transform_indices = @transform_38, window_bounds = array<i64: 1, 8, 512>}]} {
    %c16_i32 = arith.constant 16 : i32
    %0 = arith.muli %arg1, %c16_i32 : i32
    %c8_i32 = arith.constant 8 : i32
    %1 = arith.subi %0, %c8_i32 : i32
    %c0 = arith.constant 0 : index
    %c0_0 = arith.constant 0 : index
    %c0_1 = arith.constant 0 : index
    %c0_2 = arith.constant 0 : index
    %2 = vector.load %arg2[%c0, %c0_0, %c0_1, %c0_2] : memref<1x1x32x1xf32, #tpu.memory_space<vmem>>, vector<1x1x32x1xf32>
    %3 = vector.shape_cast %2 : vector<1x1x32x1xf32> to vector<32x1xf32>
    %c0_3 = arith.constant 0 : index
    %c0_4 = arith.constant 0 : index
    %4 = vector.load %arg3[%c0_3, %c0_4] : memref<1x64xf32, #tpu.memory_space<vmem>>, vector<1x64xf32>
    %5 = vector.broadcast %3 : vector<32x1xf32> to vector<32x64xf32>
    %6 = vector.broadcast %4 : vector<1x64xf32> to vector<32x64xf32>
    %7 = arith.mulf %5, %6 : vector<32x64xf32>
    %c0_5 = arith.constant 0 : index
    %c0_6 = arith.constant 0 : index
    %8 = vector.load %arg4[%c0_5, %c0_6] : memref<1x64xf32, #tpu.memory_space<vmem>>, vector<1x64xf32>
    %9 = vector.broadcast %8 : vector<1x64xf32> to vector<32x64xf32>
    %10 = arith.mulf %7, %9 : vector<32x64xf32>
    %c0_7 = arith.constant 0 : index
    %c0_8 = arith.constant 0 : index
    %11 = vector.load %arg5[%c0_7, %c0_8] : memref<1x64xf32, #tpu.memory_space<vmem>>, vector<1x64xf32>
    %12 = vector.broadcast %11 : vector<1x64xf32> to vector<32x64xf32>
    %13 = arith.addf %10, %12 : vector<32x64xf32>
    %cst = arith.constant 0.000000e+00 : f32
    %14 = vector.broadcast %cst : f32 to vector<32x64xf32>
    %15 = arith.maximumf %13, %14 : vector<32x64xf32>
    %16 = tpu.iota {dimensions = array<i32: 0>} : vector<32x1xi32>
    %17 = vector.broadcast %1 : i32 to vector<32x1xi32>
    %18 = arith.addi %16, %17 : vector<32x1xi32>
    %c0_i32 = arith.constant 0 : i32
    %19 = vector.broadcast %c0_i32 : i32 to vector<32x1xi32>
    %20 = arith.cmpi sge, %18, %19 : vector<32x1xi32>
    %c16_i32_9 = arith.constant 16 : i32
    %21 = vector.broadcast %c16_i32_9 : i32 to vector<32x1xi32>
    %22 = arith.cmpi slt, %18, %21 : vector<32x1xi32>
    %23 = arith.andi %20, %22 : vector<32x1xi1>
    %cst_10 = arith.constant 0.000000e+00 : f32
    %24 = vector.shape_cast %23 : vector<32x1xi1> to vector<32x1xi1>
    %25 = vector.broadcast %24 : vector<32x1xi1> to vector<32x64xi1>
    %26 = vector.broadcast %cst_10 : f32 to vector<32x64xf32>
    %27 = arith.select %25, %15, %26 : vector<32x64xi1>, vector<32x64xf32>
    %28 = arith.truncf %27 : vector<32x64xf32> to vector<32x64xbf16>
    %29 = vector.extract_strided_slice %28 {offsets = [0, 0], sizes = [30, 64], strides = [1, 1]} : vector<32x64xbf16> to vector<30x64xbf16>
    %30 = vector.extract_strided_slice %28 {offsets = [1, 0], sizes = [30, 64], strides = [1, 1]} : vector<32x64xbf16> to vector<30x64xbf16>
    %31 = vector.extract_strided_slice %28 {offsets = [2, 0], sizes = [30, 64], strides = [1, 1]} : vector<32x64xbf16> to vector<30x64xbf16>
    %32 = tpu.concatenate %29, %30, %31 in 1 : vector<30x64xbf16>, vector<30x64xbf16>, vector<30x64xbf16> -> vector<30x192xbf16>
    %c0_11 = arith.constant 0 : index
    %c0_12 = arith.constant 0 : index
    %33 = vector.load %arg6[%c0_11, %c0_12] : memref<192x64xbf16, #tpu.memory_space<vmem>>, vector<192x64xbf16>
    %cst_13 = arith.constant dense<0.000000e+00> : vector<30x64xf32>
    %34 = tpu.matmul %32, %33, %cst_13 {dimension_numbers = #tpu.dot_dimension_numbers<[1], [0], [0], [1], [0, 0, 1, 1], [], []>} : vector<30x192xbf16>, vector<192x64xbf16>, vector<30x64xf32> -> vector<30x64xf32>
    %c0_14 = arith.constant 0 : index
    %c0_15 = arith.constant 0 : index
    %35 = vector.load %arg7[%c0_14, %c0_15] : memref<1x64xf32, #tpu.memory_space<vmem>>, vector<1x64xf32>
    %36 = vector.broadcast %35 : vector<1x64xf32> to vector<30x64xf32>
    %37 = arith.mulf %34, %36 : vector<30x64xf32>
    %c0_16 = arith.constant 0 : index
    %c0_17 = arith.constant 0 : index
    %38 = vector.load %arg8[%c0_16, %c0_17] : memref<1x64xf32, #tpu.memory_space<vmem>>, vector<1x64xf32>
    %39 = vector.broadcast %38 : vector<1x64xf32> to vector<30x64xf32>
    %40 = arith.addf %37, %39 : vector<30x64xf32>
    %cst_18 = arith.constant 0.000000e+00 : f32
    %41 = vector.broadcast %cst_18 : f32 to vector<30x64xf32>
    %42 = arith.maximumf %40, %41 : vector<30x64xf32>
    %c1_i32 = arith.constant 1 : i32
    %43 = arith.addi %1, %c1_i32 : i32
    %44 = tpu.iota {dimensions = array<i32: 0>} : vector<30x1xi32>
    %45 = vector.broadcast %43 : i32 to vector<30x1xi32>
    %46 = arith.addi %44, %45 : vector<30x1xi32>
    %c0_i32_19 = arith.constant 0 : i32
    %47 = vector.broadcast %c0_i32_19 : i32 to vector<30x1xi32>
    %48 = arith.cmpi sge, %46, %47 : vector<30x1xi32>
    %c16_i32_20 = arith.constant 16 : i32
    %49 = vector.broadcast %c16_i32_20 : i32 to vector<30x1xi32>
    %50 = arith.cmpi slt, %46, %49 : vector<30x1xi32>
    %51 = arith.andi %48, %50 : vector<30x1xi1>
    %cst_21 = arith.constant 0.000000e+00 : f32
    %52 = vector.shape_cast %51 : vector<30x1xi1> to vector<30x1xi1>
    %53 = vector.broadcast %52 : vector<30x1xi1> to vector<30x64xi1>
    %54 = vector.broadcast %cst_21 : f32 to vector<30x64xf32>
    %55 = arith.select %53, %42, %54 : vector<30x64xi1>, vector<30x64xf32>
    %56 = arith.truncf %55 : vector<30x64xf32> to vector<30x64xbf16>
    %57 = vector.extract_strided_slice %56 {offsets = [0, 0], sizes = [28, 64], strides = [1, 1]} : vector<30x64xbf16> to vector<28x64xbf16>
    %58 = vector.extract_strided_slice %56 {offsets = [1, 0], sizes = [28, 64], strides = [1, 1]} : vector<30x64xbf16> to vector<28x64xbf16>
    %59 = vector.extract_strided_slice %56 {offsets = [2, 0], sizes = [28, 64], strides = [1, 1]} : vector<30x64xbf16> to vector<28x64xbf16>
    %60 = tpu.concatenate %57, %58, %59 in 1 : vector<28x64xbf16>, vector<28x64xbf16>, vector<28x64xbf16> -> vector<28x192xbf16>
    %c0_22 = arith.constant 0 : index
    %c0_23 = arith.constant 0 : index
    %61 = vector.load %arg9[%c0_22, %c0_23] : memref<192x64xbf16, #tpu.memory_space<vmem>>, vector<192x64xbf16>
    %cst_24 = arith.constant dense<0.000000e+00> : vector<28x64xf32>
    %62 = tpu.matmul %60, %61, %cst_24 {dimension_numbers = #tpu.dot_dimension_numbers<[1], [0], [0], [1], [0, 0, 1, 1], [], []>} : vector<28x192xbf16>, vector<192x64xbf16>, vector<28x64xf32> -> vector<28x64xf32>
    %c0_25 = arith.constant 0 : index
    %c0_26 = arith.constant 0 : index
    %63 = vector.load %arg10[%c0_25, %c0_26] : memref<1x64xf32, #tpu.memory_space<vmem>>, vector<1x64xf32>
    %64 = vector.broadcast %63 : vector<1x64xf32> to vector<28x64xf32>
    %65 = arith.mulf %62, %64 : vector<28x64xf32>
    %c0_27 = arith.constant 0 : index
    %c0_28 = arith.constant 0 : index
    %66 = vector.load %arg11[%c0_27, %c0_28] : memref<1x64xf32, #tpu.memory_space<vmem>>, vector<1x64xf32>
    %67 = vector.broadcast %66 : vector<1x64xf32> to vector<28x64xf32>
    %68 = arith.addf %65, %67 : vector<28x64xf32>
    %69 = vector.extract_strided_slice %28 {offsets = [2, 0], sizes = [28, 64], strides = [1, 1]} : vector<32x64xbf16> to vector<28x64xbf16>
    %70 = arith.extf %69 : vector<28x64xbf16> to vector<28x64xf32>
    %71 = arith.addf %68, %70 : vector<28x64xf32>
    %cst_29 = arith.constant 0.000000e+00 : f32
    %72 = vector.broadcast %cst_29 : f32 to vector<28x64xf32>
    %73 = arith.maximumf %71, %72 : vector<28x64xf32>
    %c2_i32 = arith.constant 2 : i32
    %74 = arith.addi %1, %c2_i32 : i32
    %75 = tpu.iota {dimensions = array<i32: 0>} : vector<28x1xi32>
    %76 = vector.broadcast %74 : i32 to vector<28x1xi32>
    %77 = arith.addi %75, %76 : vector<28x1xi32>
    %c0_i32_30 = arith.constant 0 : i32
    %78 = vector.broadcast %c0_i32_30 : i32 to vector<28x1xi32>
    %79 = arith.cmpi sge, %77, %78 : vector<28x1xi32>
    %c16_i32_31 = arith.constant 16 : i32
    %80 = vector.broadcast %c16_i32_31 : i32 to vector<28x1xi32>
    %81 = arith.cmpi slt, %77, %80 : vector<28x1xi32>
    %82 = arith.andi %79, %81 : vector<28x1xi1>
    %cst_32 = arith.constant 0.000000e+00 : f32
    %83 = vector.shape_cast %82 : vector<28x1xi1> to vector<28x1xi1>
    %84 = vector.broadcast %83 : vector<28x1xi1> to vector<28x64xi1>
    %85 = vector.broadcast %cst_32 : f32 to vector<28x64xf32>
    %86 = arith.select %84, %73, %85 : vector<28x64xi1>, vector<28x64xf32>
    %87 = arith.truncf %86 : vector<28x64xf32> to vector<28x64xbf16>
    %88 = vector.extract_strided_slice %87 {offsets = [0, 0], sizes = [26, 64], strides = [1, 1]} : vector<28x64xbf16> to vector<26x64xbf16>
    %89 = vector.extract_strided_slice %87 {offsets = [1, 0], sizes = [26, 64], strides = [1, 1]} : vector<28x64xbf16> to vector<26x64xbf16>
    %90 = vector.extract_strided_slice %87 {offsets = [2, 0], sizes = [26, 64], strides = [1, 1]} : vector<28x64xbf16> to vector<26x64xbf16>
    %91 = tpu.concatenate %88, %89, %90 in 1 : vector<26x64xbf16>, vector<26x64xbf16>, vector<26x64xbf16> -> vector<26x192xbf16>
    %c0_33 = arith.constant 0 : index
    %c0_34 = arith.constant 0 : index
    %92 = vector.load %arg15[%c0_33, %c0_34] : memref<192x128xbf16, #tpu.memory_space<vmem>>, vector<192x128xbf16>
    %cst_35 = arith.constant dense<0.000000e+00> : vector<26x128xf32>
    %93 = tpu.matmul %91, %92, %cst_35 {dimension_numbers = #tpu.dot_dimension_numbers<[1], [0], [0], [1], [0, 0, 1, 1], [], []>} : vector<26x192xbf16>, vector<192x128xbf16>, vector<26x128xf32> -> vector<26x128xf32>
    %c0_36 = arith.constant 0 : index
    %c0_37 = arith.constant 0 : index
    %94 = vector.load %arg16[%c0_36, %c0_37] : memref<1x128xf32, #tpu.memory_space<vmem>>, vector<1x128xf32>
    %95 = vector.broadcast %94 : vector<1x128xf32> to vector<26x128xf32>
    %96 = arith.mulf %93, %95 : vector<26x128xf32>
    %c0_38 = arith.constant 0 : index
    %c0_39 = arith.constant 0 : index
    %97 = vector.load %arg17[%c0_38, %c0_39] : memref<1x128xf32, #tpu.memory_space<vmem>>, vector<1x128xf32>
    %98 = vector.broadcast %97 : vector<1x128xf32> to vector<26x128xf32>
    %99 = arith.addf %96, %98 : vector<26x128xf32>
    %cst_40 = arith.constant 0.000000e+00 : f32
    %100 = vector.broadcast %cst_40 : f32 to vector<26x128xf32>
    %101 = arith.maximumf %99, %100 : vector<26x128xf32>
    %c1_i32_41 = arith.constant 1 : i32
    %102 = arith.addi %74, %c1_i32_41 : i32
    %103 = tpu.iota {dimensions = array<i32: 0>} : vector<26x1xi32>
    %104 = vector.broadcast %102 : i32 to vector<26x1xi32>
    %105 = arith.addi %103, %104 : vector<26x1xi32>
    %c0_i32_42 = arith.constant 0 : i32
    %106 = vector.broadcast %c0_i32_42 : i32 to vector<26x1xi32>
    %107 = arith.cmpi sge, %105, %106 : vector<26x1xi32>
    %c16_i32_43 = arith.constant 16 : i32
    %108 = vector.broadcast %c16_i32_43 : i32 to vector<26x1xi32>
    %109 = arith.cmpi slt, %105, %108 : vector<26x1xi32>
    %110 = arith.andi %107, %109 : vector<26x1xi1>
    %cst_44 = arith.constant 0.000000e+00 : f32
    %111 = vector.shape_cast %110 : vector<26x1xi1> to vector<26x1xi1>
    %112 = vector.broadcast %111 : vector<26x1xi1> to vector<26x128xi1>
    %113 = vector.broadcast %cst_44 : f32 to vector<26x128xf32>
    %114 = arith.select %112, %101, %113 : vector<26x128xi1>, vector<26x128xf32>
    %115 = arith.truncf %114 : vector<26x128xf32> to vector<26x128xbf16>
    %116 = vector.extract_strided_slice %115 {offsets = [0, 0], sizes = [24, 128], strides = [1, 1]} : vector<26x128xbf16> to vector<24x128xbf16>
    %117 = vector.extract_strided_slice %115 {offsets = [1, 0], sizes = [24, 128], strides = [1, 1]} : vector<26x128xbf16> to vector<24x128xbf16>
    %118 = vector.extract_strided_slice %115 {offsets = [2, 0], sizes = [24, 128], strides = [1, 1]} : vector<26x128xbf16> to vector<24x128xbf16>
    %119 = tpu.concatenate %116, %117, %118 in 1 : vector<24x128xbf16>, vector<24x128xbf16>, vector<24x128xbf16> -> vector<24x384xbf16>
    %c0_45 = arith.constant 0 : index
    %c0_46 = arith.constant 0 : index
    %120 = vector.load %arg18[%c0_45, %c0_46] : memref<384x128xbf16, #tpu.memory_space<vmem>>, vector<384x128xbf16>
    %cst_47 = arith.constant dense<0.000000e+00> : vector<24x128xf32>
    %121 = tpu.matmul %119, %120, %cst_47 {dimension_numbers = #tpu.dot_dimension_numbers<[1], [0], [0], [1], [0, 0, 1, 1], [], []>} : vector<24x384xbf16>, vector<384x128xbf16>, vector<24x128xf32> -> vector<24x128xf32>
    %c0_48 = arith.constant 0 : index
    %c0_49 = arith.constant 0 : index
    %122 = vector.load %arg19[%c0_48, %c0_49] : memref<1x128xf32, #tpu.memory_space<vmem>>, vector<1x128xf32>
    %123 = vector.broadcast %122 : vector<1x128xf32> to vector<24x128xf32>
    %124 = arith.mulf %121, %123 : vector<24x128xf32>
    %c0_50 = arith.constant 0 : index
    %c0_51 = arith.constant 0 : index
    %125 = vector.load %arg20[%c0_50, %c0_51] : memref<1x128xf32, #tpu.memory_space<vmem>>, vector<1x128xf32>
    %126 = vector.broadcast %125 : vector<1x128xf32> to vector<24x128xf32>
    %127 = arith.addf %124, %126 : vector<24x128xf32>
    %128 = vector.extract_strided_slice %87 {offsets = [2, 0], sizes = [24, 64], strides = [1, 1]} : vector<28x64xbf16> to vector<24x64xbf16>
    %c0_52 = arith.constant 0 : index
    %c0_53 = arith.constant 0 : index
    %129 = vector.load %arg12[%c0_52, %c0_53] : memref<64x128xbf16, #tpu.memory_space<vmem>>, vector<64x128xbf16>
    %cst_54 = arith.constant dense<0.000000e+00> : vector<24x128xf32>
    %130 = tpu.matmul %128, %129, %cst_54 {dimension_numbers = #tpu.dot_dimension_numbers<[1], [0], [0], [1], [0, 0, 1, 1], [], []>} : vector<24x64xbf16>, vector<64x128xbf16>, vector<24x128xf32> -> vector<24x128xf32>
    %c0_55 = arith.constant 0 : index
    %c0_56 = arith.constant 0 : index
    %131 = vector.load %arg13[%c0_55, %c0_56] : memref<1x128xf32, #tpu.memory_space<vmem>>, vector<1x128xf32>
    %132 = vector.broadcast %131 : vector<1x128xf32> to vector<24x128xf32>
    %133 = arith.mulf %130, %132 : vector<24x128xf32>
    %c0_57 = arith.constant 0 : index
    %c0_58 = arith.constant 0 : index
    %134 = vector.load %arg14[%c0_57, %c0_58] : memref<1x128xf32, #tpu.memory_space<vmem>>, vector<1x128xf32>
    %135 = vector.broadcast %134 : vector<1x128xf32> to vector<24x128xf32>
    %136 = arith.addf %133, %135 : vector<24x128xf32>
    %137 = arith.addf %127, %136 : vector<24x128xf32>
    %cst_59 = arith.constant 0.000000e+00 : f32
    %138 = vector.broadcast %cst_59 : f32 to vector<24x128xf32>
    %139 = arith.maximumf %137, %138 : vector<24x128xf32>
    %c2_i32_60 = arith.constant 2 : i32
    %140 = arith.addi %74, %c2_i32_60 : i32
    %141 = tpu.iota {dimensions = array<i32: 0>} : vector<24x1xi32>
    %142 = vector.broadcast %140 : i32 to vector<24x1xi32>
    %143 = arith.addi %141, %142 : vector<24x1xi32>
    %c0_i32_61 = arith.constant 0 : i32
    %144 = vector.broadcast %c0_i32_61 : i32 to vector<24x1xi32>
    %145 = arith.cmpi sge, %143, %144 : vector<24x1xi32>
    %c16_i32_62 = arith.constant 16 : i32
    %146 = vector.broadcast %c16_i32_62 : i32 to vector<24x1xi32>
    %147 = arith.cmpi slt, %143, %146 : vector<24x1xi32>
    %148 = arith.andi %145, %147 : vector<24x1xi1>
    %cst_63 = arith.constant 0.000000e+00 : f32
    %149 = vector.shape_cast %148 : vector<24x1xi1> to vector<24x1xi1>
    %150 = vector.broadcast %149 : vector<24x1xi1> to vector<24x128xi1>
    %151 = vector.broadcast %cst_63 : f32 to vector<24x128xf32>
    %152 = arith.select %150, %139, %151 : vector<24x128xi1>, vector<24x128xf32>
    %153 = arith.truncf %152 : vector<24x128xf32> to vector<24x128xbf16>
    %154 = vector.extract_strided_slice %153 {offsets = [0, 0], sizes = [22, 128], strides = [1, 1]} : vector<24x128xbf16> to vector<22x128xbf16>
    %155 = vector.extract_strided_slice %153 {offsets = [1, 0], sizes = [22, 128], strides = [1, 1]} : vector<24x128xbf16> to vector<22x128xbf16>
    %156 = vector.extract_strided_slice %153 {offsets = [2, 0], sizes = [22, 128], strides = [1, 1]} : vector<24x128xbf16> to vector<22x128xbf16>
    %157 = tpu.concatenate %154, %155, %156 in 1 : vector<22x128xbf16>, vector<22x128xbf16>, vector<22x128xbf16> -> vector<22x384xbf16>
    %c0_64 = arith.constant 0 : index
    %c0_65 = arith.constant 0 : index
    %158 = vector.load %arg24[%c0_64, %c0_65] : memref<384x256xbf16, #tpu.memory_space<vmem>>, vector<384x256xbf16>
    %cst_66 = arith.constant dense<0.000000e+00> : vector<22x256xf32>
    %159 = tpu.matmul %157, %158, %cst_66 {dimension_numbers = #tpu.dot_dimension_numbers<[1], [0], [0], [1], [0, 0, 1, 1], [], []>} : vector<22x384xbf16>, vector<384x256xbf16>, vector<22x256xf32> -> vector<22x256xf32>
    %c0_67 = arith.constant 0 : index
    %c0_68 = arith.constant 0 : index
    %160 = vector.load %arg25[%c0_67, %c0_68] : memref<1x256xf32, #tpu.memory_space<vmem>>, vector<1x256xf32>
    %161 = vector.broadcast %160 : vector<1x256xf32> to vector<22x256xf32>
    %162 = arith.mulf %159, %161 : vector<22x256xf32>
    %c0_69 = arith.constant 0 : index
    %c0_70 = arith.constant 0 : index
    %163 = vector.load %arg26[%c0_69, %c0_70] : memref<1x256xf32, #tpu.memory_space<vmem>>, vector<1x256xf32>
    %164 = vector.broadcast %163 : vector<1x256xf32> to vector<22x256xf32>
    %165 = arith.addf %162, %164 : vector<22x256xf32>
    %cst_71 = arith.constant 0.000000e+00 : f32
    %166 = vector.broadcast %cst_71 : f32 to vector<22x256xf32>
    %167 = arith.maximumf %165, %166 : vector<22x256xf32>
    %c1_i32_72 = arith.constant 1 : i32
    %168 = arith.addi %140, %c1_i32_72 : i32
    %169 = tpu.iota {dimensions = array<i32: 0>} : vector<22x1xi32>
    %170 = vector.broadcast %168 : i32 to vector<22x1xi32>
    %171 = arith.addi %169, %170 : vector<22x1xi32>
    %c0_i32_73 = arith.constant 0 : i32
    %172 = vector.broadcast %c0_i32_73 : i32 to vector<22x1xi32>
    %173 = arith.cmpi sge, %171, %172 : vector<22x1xi32>
    %c16_i32_74 = arith.constant 16 : i32
    %174 = vector.broadcast %c16_i32_74 : i32 to vector<22x1xi32>
    %175 = arith.cmpi slt, %171, %174 : vector<22x1xi32>
    %176 = arith.andi %173, %175 : vector<22x1xi1>
    %cst_75 = arith.constant 0.000000e+00 : f32
    %177 = vector.shape_cast %176 : vector<22x1xi1> to vector<22x1xi1>
    %178 = vector.broadcast %177 : vector<22x1xi1> to vector<22x256xi1>
    %179 = vector.broadcast %cst_75 : f32 to vector<22x256xf32>
    %180 = arith.select %178, %167, %179 : vector<22x256xi1>, vector<22x256xf32>
    %181 = arith.truncf %180 : vector<22x256xf32> to vector<22x256xbf16>
    %182 = vector.extract_strided_slice %181 {offsets = [0, 0], sizes = [20, 256], strides = [1, 1]} : vector<22x256xbf16> to vector<20x256xbf16>
    %183 = vector.extract_strided_slice %181 {offsets = [1, 0], sizes = [20, 256], strides = [1, 1]} : vector<22x256xbf16> to vector<20x256xbf16>
    %184 = vector.extract_strided_slice %181 {offsets = [2, 0], sizes = [20, 256], strides = [1, 1]} : vector<22x256xbf16> to vector<20x256xbf16>
    %185 = tpu.concatenate %182, %183, %184 in 1 : vector<20x256xbf16>, vector<20x256xbf16>, vector<20x256xbf16> -> vector<20x768xbf16>
    %c0_76 = arith.constant 0 : index
    %c0_77 = arith.constant 0 : index
    %186 = vector.load %arg27[%c0_76, %c0_77] : memref<768x256xbf16, #tpu.memory_space<vmem>>, vector<768x256xbf16>
    %cst_78 = arith.constant dense<0.000000e+00> : vector<20x256xf32>
    %187 = tpu.matmul %185, %186, %cst_78 {dimension_numbers = #tpu.dot_dimension_numbers<[1], [0], [0], [1], [0, 0, 1, 1], [], []>} : vector<20x768xbf16>, vector<768x256xbf16>, vector<20x256xf32> -> vector<20x256xf32>
    %c0_79 = arith.constant 0 : index
    %c0_80 = arith.constant 0 : index
    %188 = vector.load %arg28[%c0_79, %c0_80] : memref<1x256xf32, #tpu.memory_space<vmem>>, vector<1x256xf32>
    %189 = vector.broadcast %188 : vector<1x256xf32> to vector<20x256xf32>
    %190 = arith.mulf %187, %189 : vector<20x256xf32>
    %c0_81 = arith.constant 0 : index
    %c0_82 = arith.constant 0 : index
    %191 = vector.load %arg29[%c0_81, %c0_82] : memref<1x256xf32, #tpu.memory_space<vmem>>, vector<1x256xf32>
    %192 = vector.broadcast %191 : vector<1x256xf32> to vector<20x256xf32>
    %193 = arith.addf %190, %192 : vector<20x256xf32>
    %194 = vector.extract_strided_slice %153 {offsets = [2, 0], sizes = [20, 128], strides = [1, 1]} : vector<24x128xbf16> to vector<20x128xbf16>
    %c0_83 = arith.constant 0 : index
    %c0_84 = arith.constant 0 : index
    %195 = vector.load %arg21[%c0_83, %c0_84] : memref<128x256xbf16, #tpu.memory_space<vmem>>, vector<128x256xbf16>
    %cst_85 = arith.constant dense<0.000000e+00> : vector<20x256xf32>
    %196 = tpu.matmul %194, %195, %cst_85 {dimension_numbers = #tpu.dot_dimension_numbers<[1], [0], [0], [1], [0, 0, 1, 1], [], []>} : vector<20x128xbf16>, vector<128x256xbf16>, vector<20x256xf32> -> vector<20x256xf32>
    %c0_86 = arith.constant 0 : index
    %c0_87 = arith.constant 0 : index
    %197 = vector.load %arg22[%c0_86, %c0_87] : memref<1x256xf32, #tpu.memory_space<vmem>>, vector<1x256xf32>
    %198 = vector.broadcast %197 : vector<1x256xf32> to vector<20x256xf32>
    %199 = arith.mulf %196, %198 : vector<20x256xf32>
    %c0_88 = arith.constant 0 : index
    %c0_89 = arith.constant 0 : index
    %200 = vector.load %arg23[%c0_88, %c0_89] : memref<1x256xf32, #tpu.memory_space<vmem>>, vector<1x256xf32>
    %201 = vector.broadcast %200 : vector<1x256xf32> to vector<20x256xf32>
    %202 = arith.addf %199, %201 : vector<20x256xf32>
    %203 = arith.addf %193, %202 : vector<20x256xf32>
    %cst_90 = arith.constant 0.000000e+00 : f32
    %204 = vector.broadcast %cst_90 : f32 to vector<20x256xf32>
    %205 = arith.maximumf %203, %204 : vector<20x256xf32>
    %c2_i32_91 = arith.constant 2 : i32
    %206 = arith.addi %140, %c2_i32_91 : i32
    %207 = tpu.iota {dimensions = array<i32: 0>} : vector<20x1xi32>
    %208 = vector.broadcast %206 : i32 to vector<20x1xi32>
    %209 = arith.addi %207, %208 : vector<20x1xi32>
    %c0_i32_92 = arith.constant 0 : i32
    %210 = vector.broadcast %c0_i32_92 : i32 to vector<20x1xi32>
    %211 = arith.cmpi sge, %209, %210 : vector<20x1xi32>
    %c16_i32_93 = arith.constant 16 : i32
    %212 = vector.broadcast %c16_i32_93 : i32 to vector<20x1xi32>
    %213 = arith.cmpi slt, %209, %212 : vector<20x1xi32>
    %214 = arith.andi %211, %213 : vector<20x1xi1>
    %cst_94 = arith.constant 0.000000e+00 : f32
    %215 = vector.shape_cast %214 : vector<20x1xi1> to vector<20x1xi1>
    %216 = vector.broadcast %215 : vector<20x1xi1> to vector<20x256xi1>
    %217 = vector.broadcast %cst_94 : f32 to vector<20x256xf32>
    %218 = arith.select %216, %205, %217 : vector<20x256xi1>, vector<20x256xf32>
    %219 = arith.truncf %218 : vector<20x256xf32> to vector<20x256xbf16>
    %220 = vector.extract_strided_slice %219 {offsets = [0, 0], sizes = [18, 256], strides = [1, 1]} : vector<20x256xbf16> to vector<18x256xbf16>
    %221 = vector.extract_strided_slice %219 {offsets = [1, 0], sizes = [18, 256], strides = [1, 1]} : vector<20x256xbf16> to vector<18x256xbf16>
    %222 = vector.extract_strided_slice %219 {offsets = [2, 0], sizes = [18, 256], strides = [1, 1]} : vector<20x256xbf16> to vector<18x256xbf16>
    %223 = tpu.concatenate %220, %221, %222 in 1 : vector<18x256xbf16>, vector<18x256xbf16>, vector<18x256xbf16> -> vector<18x768xbf16>
    %c0_95 = arith.constant 0 : index
    %c0_96 = arith.constant 0 : index
    %224 = vector.load %arg33[%c0_95, %c0_96] : memref<768x512xbf16, #tpu.memory_space<vmem>>, vector<768x512xbf16>
    %cst_97 = arith.constant dense<0.000000e+00> : vector<18x512xf32>
    %225 = tpu.matmul %223, %224, %cst_97 {dimension_numbers = #tpu.dot_dimension_numbers<[1], [0], [0], [1], [0, 0, 1, 1], [], []>} : vector<18x768xbf16>, vector<768x512xbf16>, vector<18x512xf32> -> vector<18x512xf32>
    %c0_98 = arith.constant 0 : index
    %c0_99 = arith.constant 0 : index
    %226 = vector.load %arg34[%c0_98, %c0_99] : memref<1x512xf32, #tpu.memory_space<vmem>>, vector<1x512xf32>
    %227 = vector.broadcast %226 : vector<1x512xf32> to vector<18x512xf32>
    %228 = arith.mulf %225, %227 : vector<18x512xf32>
    %c0_100 = arith.constant 0 : index
    %c0_101 = arith.constant 0 : index
    %229 = vector.load %arg35[%c0_100, %c0_101] : memref<1x512xf32, #tpu.memory_space<vmem>>, vector<1x512xf32>
    %230 = vector.broadcast %229 : vector<1x512xf32> to vector<18x512xf32>
    %231 = arith.addf %228, %230 : vector<18x512xf32>
    %cst_102 = arith.constant 0.000000e+00 : f32
    %232 = vector.broadcast %cst_102 : f32 to vector<18x512xf32>
    %233 = arith.maximumf %231, %232 : vector<18x512xf32>
    %c1_i32_103 = arith.constant 1 : i32
    %234 = arith.addi %206, %c1_i32_103 : i32
    %235 = tpu.iota {dimensions = array<i32: 0>} : vector<18x1xi32>
    %236 = vector.broadcast %234 : i32 to vector<18x1xi32>
    %237 = arith.addi %235, %236 : vector<18x1xi32>
    %c0_i32_104 = arith.constant 0 : i32
    %238 = vector.broadcast %c0_i32_104 : i32 to vector<18x1xi32>
    %239 = arith.cmpi sge, %237, %238 : vector<18x1xi32>
    %c16_i32_105 = arith.constant 16 : i32
    %240 = vector.broadcast %c16_i32_105 : i32 to vector<18x1xi32>
    %241 = arith.cmpi slt, %237, %240 : vector<18x1xi32>
    %242 = arith.andi %239, %241 : vector<18x1xi1>
    %cst_106 = arith.constant 0.000000e+00 : f32
    %243 = vector.shape_cast %242 : vector<18x1xi1> to vector<18x1xi1>
    %244 = vector.broadcast %243 : vector<18x1xi1> to vector<18x512xi1>
    %245 = vector.broadcast %cst_106 : f32 to vector<18x512xf32>
    %246 = arith.select %244, %233, %245 : vector<18x512xi1>, vector<18x512xf32>
    %247 = arith.truncf %246 : vector<18x512xf32> to vector<18x512xbf16>
    %248 = vector.extract_strided_slice %247 {offsets = [0, 0], sizes = [16, 512], strides = [1, 1]} : vector<18x512xbf16> to vector<16x512xbf16>
    %249 = vector.extract_strided_slice %247 {offsets = [1, 0], sizes = [16, 512], strides = [1, 1]} : vector<18x512xbf16> to vector<16x512xbf16>
    %250 = vector.extract_strided_slice %247 {offsets = [2, 0], sizes = [16, 512], strides = [1, 1]} : vector<18x512xbf16> to vector<16x512xbf16>
    %251 = tpu.concatenate %248, %249, %250 in 1 : vector<16x512xbf16>, vector<16x512xbf16>, vector<16x512xbf16> -> vector<16x1536xbf16>
    %c0_107 = arith.constant 0 : index
    %c0_108 = arith.constant 0 : index
    %252 = vector.load %arg36[%c0_107, %c0_108] : memref<1536x512xbf16, #tpu.memory_space<vmem>>, vector<1536x512xbf16>
    %cst_109 = arith.constant dense<0.000000e+00> : vector<16x512xf32>
    %253 = tpu.matmul %251, %252, %cst_109 {dimension_numbers = #tpu.dot_dimension_numbers<[1], [0], [0], [1], [0, 0, 1, 1], [], []>} : vector<16x1536xbf16>, vector<1536x512xbf16>, vector<16x512xf32> -> vector<16x512xf32>
    %c0_110 = arith.constant 0 : index
    %c0_111 = arith.constant 0 : index
    %254 = vector.load %arg37[%c0_110, %c0_111] : memref<1x512xf32, #tpu.memory_space<vmem>>, vector<1x512xf32>
    %255 = vector.broadcast %254 : vector<1x512xf32> to vector<16x512xf32>
    %256 = arith.mulf %253, %255 : vector<16x512xf32>
    %c0_112 = arith.constant 0 : index
    %c0_113 = arith.constant 0 : index
    %257 = vector.load %arg38[%c0_112, %c0_113] : memref<1x512xf32, #tpu.memory_space<vmem>>, vector<1x512xf32>
    %258 = vector.broadcast %257 : vector<1x512xf32> to vector<16x512xf32>
    %259 = arith.addf %256, %258 : vector<16x512xf32>
    %260 = vector.extract_strided_slice %219 {offsets = [2, 0], sizes = [16, 256], strides = [1, 1]} : vector<20x256xbf16> to vector<16x256xbf16>
    %c0_114 = arith.constant 0 : index
    %c0_115 = arith.constant 0 : index
    %261 = vector.load %arg30[%c0_114, %c0_115] : memref<256x512xbf16, #tpu.memory_space<vmem>>, vector<256x512xbf16>
    %cst_116 = arith.constant dense<0.000000e+00> : vector<16x512xf32>
    %262 = tpu.matmul %260, %261, %cst_116 {dimension_numbers = #tpu.dot_dimension_numbers<[1], [0], [0], [1], [0, 0, 1, 1], [], []>} : vector<16x256xbf16>, vector<256x512xbf16>, vector<16x512xf32> -> vector<16x512xf32>
    %c0_117 = arith.constant 0 : index
    %c0_118 = arith.constant 0 : index
    %263 = vector.load %arg31[%c0_117, %c0_118] : memref<1x512xf32, #tpu.memory_space<vmem>>, vector<1x512xf32>
    %264 = vector.broadcast %263 : vector<1x512xf32> to vector<16x512xf32>
    %265 = arith.mulf %262, %264 : vector<16x512xf32>
    %c0_119 = arith.constant 0 : index
    %c0_120 = arith.constant 0 : index
    %266 = vector.load %arg32[%c0_119, %c0_120] : memref<1x512xf32, #tpu.memory_space<vmem>>, vector<1x512xf32>
    %267 = vector.broadcast %266 : vector<1x512xf32> to vector<16x512xf32>
    %268 = arith.addf %265, %267 : vector<16x512xf32>
    %269 = arith.addf %259, %268 : vector<16x512xf32>
    %cst_121 = arith.constant 0.000000e+00 : f32
    %270 = vector.broadcast %cst_121 : f32 to vector<16x512xf32>
    %271 = arith.maximumf %269, %270 : vector<16x512xf32>
    %c0_122 = arith.constant 0 : index
    %c0_123 = arith.constant 0 : index
    %272 = vector.load %arg39[%c0_122, %c0_123] : memref<8x16xf32, #tpu.memory_space<vmem>>, vector<8x16xf32>
    %cst_124 = arith.constant dense<0.000000e+00> : vector<8x512xf32>
    %273 = tpu.matmul %272, %271, %cst_124 {dimension_numbers = #tpu.dot_dimension_numbers<[1], [0], [0], [1], [0, 0, 1, 1], [], []>} : vector<8x16xf32>, vector<16x512xf32>, vector<8x512xf32> -> vector<8x512xf32>
    %c0_125 = arith.constant 0 : index
    %c0_126 = arith.constant 0 : index
    %c0_127 = arith.constant 0 : index
    %274 = vector.load %arg40[%c0_125, %c0_126, %c0_127] : memref<1x8x512xf32, #tpu.memory_space<vmem>>, vector<1x8x512xf32>
    %275 = vector.shape_cast %274 : vector<1x8x512xf32> to vector<8x512xf32>
    %276 = vector.shape_cast %273 : vector<8x512xf32> to vector<1x8x512xf32>
    tpu.vector_store %arg40[%c0_125, %c0_126, %c0_127], %276 {strides = array<i32>} : memref<1x8x512xf32, #tpu.memory_space<vmem>>, vector<1x8x512xf32>,
    return
  }
  func.func @transform_0(%arg0: i32, %arg1: i32) -> (i32, i32, i32, i32) {
    %c0_i32 = arith.constant 0 : i32
    %c0_i32_0 = arith.constant 0 : i32
    %c0_i32_1 = arith.constant 0 : i32
    return %arg0, %arg1, %c0_i32, %c0_i32_0 : i32, i32, i32, i32
  }
  func.func @transform_1(%arg0: i32, %arg1: i32) -> (i32, i32) {
    %c0_i32 = arith.constant 0 : i32
    %c0_i32_0 = arith.constant 0 : i32
    %c0_i32_1 = arith.constant 0 : i32
    return %c0_i32, %c0_i32_0 : i32, i32
  }
  func.func @transform_2(%arg0: i32, %arg1: i32) -> (i32, i32) {
    %c0_i32 = arith.constant 0 : i32
    %c0_i32_0 = arith.constant 0 : i32
    %c0_i32_1 = arith.constant 0 : i32
    return %c0_i32, %c0_i32_0 : i32, i32
  }
  func.func @transform_3(%arg0: i32, %arg1: i32) -> (i32, i32) {
    %c0_i32 = arith.constant 0 : i32
    %c0_i32_0 = arith.constant 0 : i32
    %c0_i32_1 = arith.constant 0 : i32
    return %c0_i32, %c0_i32_0 : i32, i32
  }
  func.func @transform_4(%arg0: i32, %arg1: i32) -> (i32, i32) {
    %c0_i32 = arith.constant 0 : i32
    %c0_i32_0 = arith.constant 0 : i32
    %c0_i32_1 = arith.constant 0 : i32
    return %c0_i32, %c0_i32_0 : i32, i32
  }
  func.func @transform_5(%arg0: i32, %arg1: i32) -> (i32, i32) {
    %c0_i32 = arith.constant 0 : i32
    %c0_i32_0 = arith.constant 0 : i32
    %c0_i32_1 = arith.constant 0 : i32
    return %c0_i32, %c0_i32_0 : i32, i32
  }
  func.func @transform_6(%arg0: i32, %arg1: i32) -> (i32, i32) {
    %c0_i32 = arith.constant 0 : i32
    %c0_i32_0 = arith.constant 0 : i32
    %c0_i32_1 = arith.constant 0 : i32
    return %c0_i32, %c0_i32_0 : i32, i32
  }
  func.func @transform_7(%arg0: i32, %arg1: i32) -> (i32, i32) {
    %c0_i32 = arith.constant 0 : i32
    %c0_i32_0 = arith.constant 0 : i32
    %c0_i32_1 = arith.constant 0 : i32
    return %c0_i32, %c0_i32_0 : i32, i32
  }
  func.func @transform_8(%arg0: i32, %arg1: i32) -> (i32, i32) {
    %c0_i32 = arith.constant 0 : i32
    %c0_i32_0 = arith.constant 0 : i32
    %c0_i32_1 = arith.constant 0 : i32
    return %c0_i32, %c0_i32_0 : i32, i32
  }
  func.func @transform_9(%arg0: i32, %arg1: i32) -> (i32, i32) {
    %c0_i32 = arith.constant 0 : i32
    %c0_i32_0 = arith.constant 0 : i32
    %c0_i32_1 = arith.constant 0 : i32
    return %c0_i32, %c0_i32_0 : i32, i32
  }
  func.func @transform_10(%arg0: i32, %arg1: i32) -> (i32, i32) {
    %c0_i32 = arith.constant 0 : i32
    %c0_i32_0 = arith.constant 0 : i32
    %c0_i32_1 = arith.constant 0 : i32
    return %c0_i32, %c0_i32_0 : i32, i32
  }
  func.func @transform_11(%arg0: i32, %arg1: i32) -> (i32, i32) {
    %c0_i32 = arith.constant 0 : i32
    %c0_i32_0 = arith.constant 0 : i32
    %c0_i32_1 = arith.constant 0 : i32
    return %c0_i32, %c0_i32_0 : i32, i32
  }
  func.func @transform_12(%arg0: i32, %arg1: i32) -> (i32, i32) {
    %c0_i32 = arith.constant 0 : i32
    %c0_i32_0 = arith.constant 0 : i32
    %c0_i32_1 = arith.constant 0 : i32
    return %c0_i32, %c0_i32_0 : i32, i32
  }
  func.func @transform_13(%arg0: i32, %arg1: i32) -> (i32, i32) {
    %c0_i32 = arith.constant 0 : i32
    %c0_i32_0 = arith.constant 0 : i32
    %c0_i32_1 = arith.constant 0 : i32
    return %c0_i32, %c0_i32_0 : i32, i32
  }
  func.func @transform_14(%arg0: i32, %arg1: i32) -> (i32, i32) {
    %c0_i32 = arith.constant 0 : i32
    %c0_i32_0 = arith.constant 0 : i32
    %c0_i32_1 = arith.constant 0 : i32
    return %c0_i32, %c0_i32_0 : i32, i32
  }
  func.func @transform_15(%arg0: i32, %arg1: i32) -> (i32, i32) {
    %c0_i32 = arith.constant 0 : i32
    %c0_i32_0 = arith.constant 0 : i32
    %c0_i32_1 = arith.constant 0 : i32
    return %c0_i32, %c0_i32_0 : i32, i32
  }
  func.func @transform_16(%arg0: i32, %arg1: i32) -> (i32, i32) {
    %c0_i32 = arith.constant 0 : i32
    %c0_i32_0 = arith.constant 0 : i32
    %c0_i32_1 = arith.constant 0 : i32
    return %c0_i32, %c0_i32_0 : i32, i32
  }
  func.func @transform_17(%arg0: i32, %arg1: i32) -> (i32, i32) {
    %c0_i32 = arith.constant 0 : i32
    %c0_i32_0 = arith.constant 0 : i32
    %c0_i32_1 = arith.constant 0 : i32
    return %c0_i32, %c0_i32_0 : i32, i32
  }
  func.func @transform_18(%arg0: i32, %arg1: i32) -> (i32, i32) {
    %c0_i32 = arith.constant 0 : i32
    %c0_i32_0 = arith.constant 0 : i32
    %c0_i32_1 = arith.constant 0 : i32
    return %c0_i32, %c0_i32_0 : i32, i32
  }
  func.func @transform_19(%arg0: i32, %arg1: i32) -> (i32, i32) {
    %c0_i32 = arith.constant 0 : i32
    %c0_i32_0 = arith.constant 0 : i32
    %c0_i32_1 = arith.constant 0 : i32
    return %c0_i32, %c0_i32_0 : i32, i32
  }
  func.func @transform_20(%arg0: i32, %arg1: i32) -> (i32, i32) {
    %c0_i32 = arith.constant 0 : i32
    %c0_i32_0 = arith.constant 0 : i32
    %c0_i32_1 = arith.constant 0 : i32
    return %c0_i32, %c0_i32_0 : i32, i32
  }
  func.func @transform_21(%arg0: i32, %arg1: i32) -> (i32, i32) {
    %c0_i32 = arith.constant 0 : i32
    %c0_i32_0 = arith.constant 0 : i32
    %c0_i32_1 = arith.constant 0 : i32
    return %c0_i32, %c0_i32_0 : i32, i32
  }
  func.func @transform_22(%arg0: i32, %arg1: i32) -> (i32, i32) {
    %c0_i32 = arith.constant 0 : i32
    %c0_i32_0 = arith.constant 0 : i32
    %c0_i32_1 = arith.constant 0 : i32
    return %c0_i32, %c0_i32_0 : i32, i32
  }
  func.func @transform_23(%arg0: i32, %arg1: i32) -> (i32, i32) {
    %c0_i32 = arith.constant 0 : i32
    %c0_i32_0 = arith.constant 0 : i32
    %c0_i32_1 = arith.constant 0 : i32
    return %c0_i32, %c0_i32_0 : i32, i32
  }
  func.func @transform_24(%arg0: i32, %arg1: i32) -> (i32, i32) {
    %c0_i32 = arith.constant 0 : i32
    %c0_i32_0 = arith.constant 0 : i32
    %c0_i32_1 = arith.constant 0 : i32
    return %c0_i32, %c0_i32_0 : i32, i32
  }
  func.func @transform_25(%arg0: i32, %arg1: i32) -> (i32, i32) {
    %c0_i32 = arith.constant 0 : i32
    %c0_i32_0 = arith.constant 0 : i32
    %c0_i32_1 = arith.constant 0 : i32
    return %c0_i32, %c0_i32_0 : i32, i32
  }
  func.func @transform_26(%arg0: i32, %arg1: i32) -> (i32, i32) {
    %c0_i32 = arith.constant 0 : i32
    %c0_i32_0 = arith.constant 0 : i32
    %c0_i32_1 = arith.constant 0 : i32
    return %c0_i32, %c0_i32_0 : i32, i32
  }
  func.func @transform_27(%arg0: i32, %arg1: i32) -> (i32, i32) {
    %c0_i32 = arith.constant 0 : i32
    %c0_i32_0 = arith.constant 0 : i32
    %c0_i32_1 = arith.constant 0 : i32
    return %c0_i32, %c0_i32_0 : i32, i32
  }
  func.func @transform_28(%arg0: i32, %arg1: i32) -> (i32, i32) {
    %c0_i32 = arith.constant 0 : i32
    %c0_i32_0 = arith.constant 0 : i32
    %c0_i32_1 = arith.constant 0 : i32
    return %c0_i32, %c0_i32_0 : i32, i32
  }
  func.func @transform_29(%arg0: i32, %arg1: i32) -> (i32, i32) {
    %c0_i32 = arith.constant 0 : i32
    %c0_i32_0 = arith.constant 0 : i32
    %c0_i32_1 = arith.constant 0 : i32
    return %c0_i32, %c0_i32_0 : i32, i32
  }
  func.func @transform_30(%arg0: i32, %arg1: i32) -> (i32, i32) {
    %c0_i32 = arith.constant 0 : i32
    %c0_i32_0 = arith.constant 0 : i32
    %c0_i32_1 = arith.constant 0 : i32
    return %c0_i32, %c0_i32_0 : i32, i32
  }
  func.func @transform_31(%arg0: i32, %arg1: i32) -> (i32, i32) {
    %c0_i32 = arith.constant 0 : i32
    %c0_i32_0 = arith.constant 0 : i32
    %c0_i32_1 = arith.constant 0 : i32
    return %c0_i32, %c0_i32_0 : i32, i32
  }
  func.func @transform_32(%arg0: i32, %arg1: i32) -> (i32, i32) {
    %c0_i32 = arith.constant 0 : i32
    %c0_i32_0 = arith.constant 0 : i32
    %c0_i32_1 = arith.constant 0 : i32
    return %c0_i32, %c0_i32_0 : i32, i32
  }
  func.func @transform_33(%arg0: i32, %arg1: i32) -> (i32, i32) {
    %c0_i32 = arith.constant 0 : i32
    %c0_i32_0 = arith.constant 0 : i32
    %c0_i32_1 = arith.constant 0 : i32
    return %c0_i32, %c0_i32_0 : i32, i32
  }
  func.func @transform_34(%arg0: i32, %arg1: i32) -> (i32, i32) {
    %c0_i32 = arith.constant 0 : i32
    %c0_i32_0 = arith.constant 0 : i32
    %c0_i32_1 = arith.constant 0 : i32
    return %c0_i32, %c0_i32_0 : i32, i32
  }
  func.func @transform_35(%arg0: i32, %arg1: i32) -> (i32, i32) {
    %c0_i32 = arith.constant 0 : i32
    %c0_i32_0 = arith.constant 0 : i32
    %c0_i32_1 = arith.constant 0 : i32
    return %c0_i32, %c0_i32_0 : i32, i32
  }
  func.func @transform_36(%arg0: i32, %arg1: i32) -> (i32, i32) {
    %c0_i32 = arith.constant 0 : i32
    %c0_i32_0 = arith.constant 0 : i32
    %c0_i32_1 = arith.constant 0 : i32
    return %c0_i32, %c0_i32_0 : i32, i32
  }
  func.func @transform_37(%arg0: i32, %arg1: i32) -> (i32, i32) {
    %c0_i32 = arith.constant 0 : i32
    %c0_i32_0 = arith.constant 0 : i32
    %c0_i32_1 = arith.constant 0 : i32
    return %c0_i32, %c0_i32_0 : i32, i32
  }
  func.func @transform_38(%arg0: i32, %arg1: i32) -> (i32, i32, i32) {
    %c0_i32 = arith.constant 0 : i32
    %c0_i32_0 = arith.constant 0 : i32
    return %arg0, %arg1, %c0_i32 : i32, i32, i32
  }
}

</mosaic_0001>

<llo_original>
// kernel: resnet_forward.1
$region0: #{resnet_forward.1}
  #allocation0 [shape = 'u32[]', space=smem, size = 0x4, offset = 0x4, fixed_abs, tag = 'smem constant byte address 0x4 - core index']
  #allocation1 [shape = 'u32[72,128]{1,0:T(1,128)}', space=vmem, size = 0x9000, scoped, tag = 'internal scratch']
  %s0 = inlined_call_operand.smem [shape: u32[39], index: -1, kind: input, shape index: {}]
  %s1 = sld [smem:[%s0]]
  %s2 = scalar_lea.smem %s0, 1
  %s3 = sld [smem:[%s2]]
  %s4 = scalar_lea.smem %s0, 2
  %s5 = sld [smem:[%s4]]
  %s6 = scalar_lea.smem %s0, 3
  %s7 = sld [smem:[%s6]]
  %s8 = scalar_lea.smem %s0, 4
  %s9 = sld [smem:[%s8]]
  %s10 = scalar_lea.smem %s0, 5
  %s11 = sld [smem:[%s10]]
  %s12 = scalar_lea.smem %s0, 6
  %s13 = sld [smem:[%s12]]
  %s14 = scalar_lea.smem %s0, 7
  %s15 = sld [smem:[%s14]]
  %s16 = scalar_lea.smem %s0, 8
  %s17 = sld [smem:[%s16]]
  %s18 = scalar_lea.smem %s0, 9
  %s19 = sld [smem:[%s18]]
  %s20 = scalar_lea.smem %s0, 10
  %s21 = sld [smem:[%s20]]
  %s22 = scalar_lea.smem %s0, 11
  %s23 = sld [smem:[%s22]]
  %s24 = scalar_lea.smem %s0, 12
  %s25 = sld [smem:[%s24]]
  %s26 = scalar_lea.smem %s0, 13
  %s27 = sld [smem:[%s26]]
  %s28 = scalar_lea.smem %s0, 14
  %s29 = sld [smem:[%s28]]
  %s30 = scalar_lea.smem %s0, 15
  %s31 = sld [smem:[%s30]]
  %s32 = scalar_lea.smem %s0, 16
  %s33 = sld [smem:[%s32]]
  %s34 = scalar_lea.smem %s0, 17
  %s35 = sld [smem:[%s34]]
  %s36 = scalar_lea.smem %s0, 18
  %s37 = sld [smem:[%s36]]
  %s38 = scalar_lea.smem %s0, 19
  %s39 = sld [smem:[%s38]]
  %s40 = scalar_lea.smem %s0, 20
  %s41 = sld [smem:[%s40]]
  %s42 = scalar_lea.smem %s0, 21
  %s43 = sld [smem:[%s42]]
  %s44 = scalar_lea.smem %s0, 22
  %s45 = sld [smem:[%s44]]
  %s46 = scalar_lea.smem %s0, 23
  %s47 = sld [smem:[%s46]]
  %s48 = scalar_lea.smem %s0, 24
  %s49 = sld [smem:[%s48]]
  %s50 = scalar_lea.smem %s0, 25
  %s51 = sld [smem:[%s50]]
  %s52 = scalar_lea.smem %s0, 26
  %s53 = sld [smem:[%s52]]
  %s54 = scalar_lea.smem %s0, 27
  %s55 = sld [smem:[%s54]]
  %s56 = scalar_lea.smem %s0, 28
  %s57 = sld [smem:[%s56]]
  %s58 = scalar_lea.smem %s0, 29
  %s59 = sld [smem:[%s58]]
  %s60 = scalar_lea.smem %s0, 30
  %s61 = sld [smem:[%s60]]
  %s62 = scalar_lea.smem %s0, 31
  %s63 = sld [smem:[%s62]]
  %s64 = scalar_lea.smem %s0, 32
  %s65 = sld [smem:[%s64]]
  %s66 = scalar_lea.smem %s0, 33
  %s67 = sld [smem:[%s66]]
  %s68 = scalar_lea.smem %s0, 34
  %s69 = sld [smem:[%s68]]
  %s70 = scalar_lea.smem %s0, 35
  %s71 = sld [smem:[%s70]]
  %s72 = scalar_lea.smem %s0, 36
  %s73 = sld [smem:[%s72]]
  %s74 = scalar_lea.smem %s0, 37
  %s75 = sld [smem:[%s74]]
  %s76 = scalar_lea.smem %s0, 38
  %s77 = sld [smem:[%s76]]
  %s78 = sld [smem:[#allocation0]]
  $region185: #{resnet_forward.1} parent=0
    _
  %s80 = ssub.s32 1, %s78
  %s81 = scalar_select 0, %s80, %s78
  loop: start=0, step=1, limit=4
  $region2: #{resnet_forward.1} parent=0 // loop_pre_header
    _
  $region3: #{resnet_forward.1} parent=0 // loop_header
    %s83 = sphi 0, %s87
    %p84 = scmp.ge.s32.totalorder %s83, 4
    %s90 = sphi 0, %s102
    %s91 = sphi 0, %s98
    %s92 = sphi 0, %s90
    %s93 = sphi 0, %s91
    %s94 = sphi 0, %s92
    %s95 = sphi 0, %s93
    %s107 = sphi 0, %s109
    %s110 = sphi 0, %s107
    %s111 = sphi 0, %s110
    %s127 = sphi 0, %s111
    %s131 = sphi 0, %s131
    %s133 = sphi 0, %s131
    %s134 = sphi 0, %s133
    %s148 = sphi 0, %s134
    %s152 = sphi 0, %s152
    %s154 = sphi 0, %s152
    %s155 = sphi 0, %s154
    %s169 = sphi 0, %s155
    %s173 = sphi 0, %s173
    %s175 = sphi 0, %s173
    %s176 = sphi 0, %s175
    %s190 = sphi 0, %s176
    %s194 = sphi 0, %s194
    %s196 = sphi 0, %s194
    %s197 = sphi 0, %s196
    %s211 = sphi 0, %s197
    %s215 = sphi 0, %s215
    %s217 = sphi 0, %s215
    %s218 = sphi 0, %s217
    %s232 = sphi 0, %s218
    %s236 = sphi 0, %s236
    %s238 = sphi 0, %s236
    %s239 = sphi 0, %s238
    %s253 = sphi 0, %s239
    %s257 = sphi 0, %s257
    %s259 = sphi 0, %s257
    %s260 = sphi 0, %s259
    %s274 = sphi 0, %s260
    %s278 = sphi 0, %s278
    %s280 = sphi 0, %s278
    %s281 = sphi 0, %s280
    %s295 = sphi 0, %s281
    %s299 = sphi 0, %s299
    %s301 = sphi 0, %s299
    %s302 = sphi 0, %s301
    %s316 = sphi 0, %s302
    %s320 = sphi 0, %s320
    %s322 = sphi 0, %s320
    %s323 = sphi 0, %s322
    %s337 = sphi 0, %s323
    %s341 = sphi 0, %s341
    %s343 = sphi 0, %s341
    %s344 = sphi 0, %s343
    %s358 = sphi 0, %s344
    %s362 = sphi 0, %s362
    %s364 = sphi 0, %s362
    %s365 = sphi 0, %s364
    %s379 = sphi 0, %s365
    %s383 = sphi 0, %s383
    %s385 = sphi 0, %s383
    %s386 = sphi 0, %s385
    %s400 = sphi 0, %s386
    %s404 = sphi 0, %s404
    %s406 = sphi 0, %s404
    %s407 = sphi 0, %s406
    %s421 = sphi 0, %s407
    %s425 = sphi 0, %s425
    %s427 = sphi 0, %s425
    %s428 = sphi 0, %s427
    %s442 = sphi 0, %s428
    %s446 = sphi 0, %s446
    %s448 = sphi 0, %s446
    %s449 = sphi 0, %s448
    %s463 = sphi 0, %s449
    %s467 = sphi 0, %s467
    %s469 = sphi 0, %s467
    %s470 = sphi 0, %s469
    %s484 = sphi 0, %s470
    %s488 = sphi 0, %s488
    %s490 = sphi 0, %s488
    %s491 = sphi 0, %s490
    %s505 = sphi 0, %s491
    %s509 = sphi 0, %s509
    %s511 = sphi 0, %s509
    %s512 = sphi 0, %s511
    %s526 = sphi 0, %s512
    %s530 = sphi 0, %s530
    %s532 = sphi 0, %s530
    %s533 = sphi 0, %s532
    %s547 = sphi 0, %s533
    %s551 = sphi 0, %s551
    %s553 = sphi 0, %s551
    %s554 = sphi 0, %s553
    %s568 = sphi 0, %s554
    %s572 = sphi 0, %s572
    %s574 = sphi 0, %s572
    %s575 = sphi 0, %s574
    %s589 = sphi 0, %s575
    %s593 = sphi 0, %s593
    %s595 = sphi 0, %s593
    %s596 = sphi 0, %s595
    %s610 = sphi 0, %s596
    %s614 = sphi 0, %s614
    %s616 = sphi 0, %s614
    %s617 = sphi 0, %s616
    %s631 = sphi 0, %s617
    %s635 = sphi 0, %s635
    %s637 = sphi 0, %s635
    %s638 = sphi 0, %s637
    %s652 = sphi 0, %s638
    %s656 = sphi 0, %s656
    %s658 = sphi 0, %s656
    %s659 = sphi 0, %s658
    %s673 = sphi 0, %s659
    %s677 = sphi 0, %s677
    %s679 = sphi 0, %s677
    %s680 = sphi 0, %s679
    %s694 = sphi 0, %s680
    %s698 = sphi 0, %s698
    %s700 = sphi 0, %s698
    %s701 = sphi 0, %s700
    %s715 = sphi 0, %s701
    %s719 = sphi 0, %s719
    %s721 = sphi 0, %s719
    %s722 = sphi 0, %s721
    %s736 = sphi 0, %s722
    %s740 = sphi 0, %s740
    %s742 = sphi 0, %s740
    %s743 = sphi 0, %s742
    %s757 = sphi 0, %s743
    %s761 = sphi 0, %s761
    %s763 = sphi 0, %s761
    %s764 = sphi 0, %s763
    %s778 = sphi 0, %s764
    %s782 = sphi 0, %s782
    %s784 = sphi 0, %s782
    %s785 = sphi 0, %s784
    %s799 = sphi 0, %s785
    %s803 = sphi 0, %s803
    %s805 = sphi 0, %s803
    %s806 = sphi 0, %s805
    %s820 = sphi 0, %s806
    %s824 = sphi 0, %s824
    %s826 = sphi 0, %s824
    %s827 = sphi 0, %s826
    %s841 = sphi 0, %s827
    %s845 = sphi 0, %s845
    %s847 = sphi 0, %s845
    %s848 = sphi 0, %s847
    %s862 = sphi 0, %s848
    %s866 = sphi 0, %s866
    %s868 = sphi 0, %s866
    %s869 = sphi 0, %s868
    %s883 = sphi 0, %s869
    %s887 = sphi 0, %s887
    %s889 = sphi 0, %s887
    %s890 = sphi 0, %s889
    %s904 = sphi 0, %s890
    %s912 = sphi 0, %s914
    %s915 = sphi 0, %s912
    %s916 = sphi 0, %s915
    %s932 = sphi 0, %s916
  $region4: #{resnet_forward.1} parent=0 // loop_header_branch
    %86 = sbr.rel (%p84) target = $region8
  $region5: #{resnet_forward.1} parent=0 // loop_body
    %s88 = ssub.s32 %s83, 1
    %s89 = ssub.s32 %s83, 2
    %s96 = sadd.s32 1, %s91
    %p97 = scmp.ge.s32.totalorder %s96, 1
    %s98 = scalar_select %p97, 0, %s96
    %s99 = sadd.s32 1, %s90
    %s100 = scalar_select %p97, %s99, %s90
    %p101 = scmp.ge.s32.totalorder %s100, 2
    %s102 = scalar_select %p101, 0, %s100
    %s103 = ssub.s32 %s90, %s102
    %s104 = ssub.s32 %s91, %s98
    %s105 = sor.u32 %s103, %s104
    %p106 = scmp.eq.s32.totalorder %s105, 0
    %s108 = sadd.s32 %s107, 1
    %s109 = scalar_select %p106, %s107, %s108
    %p112 = pneg %p106
    %p113 = scmp.eq.s32.totalorder %s83, 1
    %p114 = por %p112, %p113
    %p115 = scmp.ne.s32.totalorder %s107, %s110
    %p116 = scmp.eq.s32.totalorder %s83, 0
    %p117 = por %p115, %p116
    %p118 = scmp.ne.s32.totalorder %s107, %s110
    %p119 = scmp.eq.s32.totalorder %s88, 1
    %p120 = por %p118, %p119
    %p121 = scmp.ne.s32.totalorder %s110, %s111
    %p122 = scmp.eq.s32.totalorder %s88, 0
    %p123 = por %p121, %p122
    %p124 = scmp.ne.s32.totalorder %s110, %s111
    %p125 = scmp.eq.s32.totalorder %s89, 1
    %p126 = por %p124, %p125
    %p128 = scmp.ne.s32.totalorder %s111, %s127
    %p129 = scmp.eq.s32.totalorder %s89, 0
    %p130 = por %p128, %p129
    %s132 = sadd.s32 %s131, 1
    %p135 = scmp.eq.s32.totalorder %s83, 1
    %p136 = scmp.ne.s32.totalorder %s131, %s133
    %p137 = scmp.eq.s32.totalorder %s83, 0
    %p138 = por %p136, %p137
    %p139 = scmp.ne.s32.totalorder %s131, %s133
    %p140 = scmp.eq.s32.totalorder %s88, 1
    %p141 = por %p139, %p140
    %p142 = scmp.ne.s32.totalorder %s133, %s134
    %p143 = scmp.eq.s32.totalorder %s88, 0
    %p144 = por %p142, %p143
    %p145 = scmp.ne.s32.totalorder %s133, %s134
    %p146 = scmp.eq.s32.totalorder %s89, 1
    %p147 = por %p145, %p146
    %p149 = scmp.ne.s32.totalorder %s134, %s148
    %p150 = scmp.eq.s32.totalorder %s89, 0
    %p151 = por %p149, %p150
    %s153 = sadd.s32 %s152, 1
    %p156 = scmp.eq.s32.totalorder %s83, 1
    %p157 = scmp.ne.s32.totalorder %s152, %s154
    %p158 = scmp.eq.s32.totalorder %s83, 0
    %p159 = por %p157, %p158
    %p160 = scmp.ne.s32.totalorder %s152, %s154
    %p161 = scmp.eq.s32.totalorder %s88, 1
    %p162 = por %p160, %p161
    %p163 = scmp.ne.s32.totalorder %s154, %s155
    %p164 = scmp.eq.s32.totalorder %s88, 0
    %p165 = por %p163, %p164
    %p166 = scmp.ne.s32.totalorder %s154, %s155
    %p167 = scmp.eq.s32.totalorder %s89, 1
    %p168 = por %p166, %p167
    %p170 = scmp.ne.s32.totalorder %s155, %s169
    %p171 = scmp.eq.s32.totalorder %s89, 0
    %p172 = por %p170, %p171
    %s174 = sadd.s32 %s173, 1
    %p177 = scmp.eq.s32.totalorder %s83, 1
    %p178 = scmp.ne.s32.totalorder %s173, %s175
    %p179 = scmp.eq.s32.totalorder %s83, 0
    %p180 = por %p178, %p179
    %p181 = scmp.ne.s32.totalorder %s173, %s175
    %p182 = scmp.eq.s32.totalorder %s88, 1
    %p183 = por %p181, %p182
    %p184 = scmp.ne.s32.totalorder %s175, %s176
    %p185 = scmp.eq.s32.totalorder %s88, 0
    %p186 = por %p184, %p185
    %p187 = scmp.ne.s32.totalorder %s175, %s176
    %p188 = scmp.eq.s32.totalorder %s89, 1
    %p189 = por %p187, %p188
    %p191 = scmp.ne.s32.totalorder %s176, %s190
    %p192 = scmp.eq.s32.totalorder %s89, 0
    %p193 = por %p191, %p192
    %s195 = sadd.s32 %s194, 1
    %p198 = scmp.eq.s32.totalorder %s83, 1
    %p199 = scmp.ne.s32.totalorder %s194, %s196
    %p200 = scmp.eq.s32.totalorder %s83, 0
    %p201 = por %p199, %p200
    %p202 = scmp.ne.s32.totalorder %s194, %s196
    %p203 = scmp.eq.s32.totalorder %s88, 1
    %p204 = por %p202, %p203
    %p205 = scmp.ne.s32.totalorder %s196, %s197
    %p206 = scmp.eq.s32.totalorder %s88, 0
    %p207 = por %p205, %p206
    %p208 = scmp.ne.s32.totalorder %s196, %s197
    %p209 = scmp.eq.s32.totalorder %s89, 1
    %p210 = por %p208, %p209
    %p212 = scmp.ne.s32.totalorder %s197, %s211
    %p213 = scmp.eq.s32.totalorder %s89, 0
    %p214 = por %p212, %p213
    %s216 = sadd.s32 %s215, 1
    %p219 = scmp.eq.s32.totalorder %s83, 1
    %p220 = scmp.ne.s32.totalorder %s215, %s217
    %p221 = scmp.eq.s32.totalorder %s83, 0
    %p222 = por %p220, %p221
    %p223 = scmp.ne.s32.totalorder %s215, %s217
    %p224 = scmp.eq.s32.totalorder %s88, 1
    %p225 = por %p223, %p224
    %p226 = scmp.ne.s32.totalorder %s217, %s218
    %p227 = scmp.eq.s32.totalorder %s88, 0
    %p228 = por %p226, %p227
    %p229 = scmp.ne.s32.totalorder %s217, %s218
    %p230 = scmp.eq.s32.totalorder %s89, 1
    %p231 = por %p229, %p230
    %p233 = scmp.ne.s32.totalorder %s218, %s232
    %p234 = scmp.eq.s32.totalorder %s89, 0
    %p235 = por %p233, %p234
    %s237 = sadd.s32 %s236, 1
    %p240 = scmp.eq.s32.totalorder %s83, 1
    %p241 = scmp.ne.s32.totalorder %s236, %s238
    %p242 = scmp.eq.s32.totalorder %s83, 0
    %p243 = por %p241, %p242
    %p244 = scmp.ne.s32.totalorder %s236, %s238
    %p245 = scmp.eq.s32.totalorder %s88, 1
    %p246 = por %p244, %p245
    %p247 = scmp.ne.s32.totalorder %s238, %s239
    %p248 = scmp.eq.s32.totalorder %s88, 0
    %p249 = por %p247, %p248
    %p250 = scmp.ne.s32.totalorder %s238, %s239
    %p251 = scmp.eq.s32.totalorder %s89, 1
    %p252 = por %p250, %p251
    %p254 = scmp.ne.s32.totalorder %s239, %s253
    %p255 = scmp.eq.s32.totalorder %s89, 0
    %p256 = por %p254, %p255
    %s258 = sadd.s32 %s257, 1
    %p261 = scmp.eq.s32.totalorder %s83, 1
    %p262 = scmp.ne.s32.totalorder %s257, %s259
    %p263 = scmp.eq.s32.totalorder %s83, 0
    %p264 = por %p262, %p263
    %p265 = scmp.ne.s32.totalorder %s257, %s259
    %p266 = scmp.eq.s32.totalorder %s88, 1
    %p267 = por %p265, %p266
    %p268 = scmp.ne.s32.totalorder %s259, %s260
    %p269 = scmp.eq.s32.totalorder %s88, 0
    %p270 = por %p268, %p269
    %p271 = scmp.ne.s32.totalorder %s259, %s260
    %p272 = scmp.eq.s32.totalorder %s89, 1
    %p273 = por %p271, %p272
    %p275 = scmp.ne.s32.totalorder %s260, %s274
    %p276 = scmp.eq.s32.totalorder %s89, 0
    %p277 = por %p275, %p276
    %s279 = sadd.s32 %s278, 1
    %p282 = scmp.eq.s32.totalorder %s83, 1
    %p283 = scmp.ne.s32.totalorder %s278, %s280
    %p284 = scmp.eq.s32.totalorder %s83, 0
    %p285 = por %p283, %p284
    %p286 = scmp.ne.s32.totalorder %s278, %s280
    %p287 = scmp.eq.s32.totalorder %s88, 1
    %p288 = por %p286, %p287
    %p289 = scmp.ne.s32.totalorder %s280, %s281
    %p290 = scmp.eq.s32.totalorder %s88, 0
    %p291 = por %p289, %p290
    %p292 = scmp.ne.s32.totalorder %s280, %s281
    %p293 = scmp.eq.s32.totalorder %s89, 1
    %p294 = por %p292, %p293
    %p296 = scmp.ne.s32.totalorder %s281, %s295
    %p297 = scmp.eq.s32.totalorder %s89, 0
    %p298 = por %p296, %p297
    %s300 = sadd.s32 %s299, 1
    %p303 = scmp.eq.s32.totalorder %s83, 1
    %p304 = scmp.ne.s32.totalorder %s299, %s301
    %p305 = scmp.eq.s32.totalorder %s83, 0
    %p306 = por %p304, %p305
    %p307 = scmp.ne.s32.totalorder %s299, %s301
    %p308 = scmp.eq.s32.totalorder %s88, 1
    %p309 = por %p307, %p308
    %p310 = scmp.ne.s32.totalorder %s301, %s302
    %p311 = scmp.eq.s32.totalorder %s88, 0
    %p312 = por %p310, %p311
    %p313 = scmp.ne.s32.totalorder %s301, %s302
    %p314 = scmp.eq.s32.totalorder %s89, 1
    %p315 = por %p313, %p314
    %p317 = scmp.ne.s32.totalorder %s302, %s316
    %p318 = scmp.eq.s32.totalorder %s89, 0
    %p319 = por %p317, %p318
    %s321 = sadd.s32 %s320, 1
    %p324 = scmp.eq.s32.totalorder %s83, 1
    %p325 = scmp.ne.s32.totalorder %s320, %s322
    %p326 = scmp.eq.s32.totalorder %s83, 0
    %p327 = por %p325, %p326
    %p328 = scmp.ne.s32.totalorder %s320, %s322
    %p329 = scmp.eq.s32.totalorder %s88, 1
    %p330 = por %p328, %p329
    %p331 = scmp.ne.s32.totalorder %s322, %s323
    %p332 = scmp.eq.s32.totalorder %s88, 0
    %p333 = por %p331, %p332
    %p334 = scmp.ne.s32.totalorder %s322, %s323
    %p335 = scmp.eq.s32.totalorder %s89, 1
    %p336 = por %p334, %p335
    %p338 = scmp.ne.s32.totalorder %s323, %s337
    %p339 = scmp.eq.s32.totalorder %s89, 0
    %p340 = por %p338, %p339
    %s342 = sadd.s32 %s341, 1
    %p345 = scmp.eq.s32.totalorder %s83, 1
    %p346 = scmp.ne.s32.totalorder %s341, %s343
    %p347 = scmp.eq.s32.totalorder %s83, 0
    %p348 = por %p346, %p347
    %p349 = scmp.ne.s32.totalorder %s341, %s343
    %p350 = scmp.eq.s32.totalorder %s88, 1
    %p351 = por %p349, %p350
    %p352 = scmp.ne.s32.totalorder %s343, %s344
    %p353 = scmp.eq.s32.totalorder %s88, 0
    %p354 = por %p352, %p353
    %p355 = scmp.ne.s32.totalorder %s343, %s344
    %p356 = scmp.eq.s32.totalorder %s89, 1
    %p357 = por %p355, %p356
    %p359 = scmp.ne.s32.totalorder %s344, %s358
    %p360 = scmp.eq.s32.totalorder %s89, 0
    %p361 = por %p359, %p360
    %s363 = sadd.s32 %s362, 1
    %p366 = scmp.eq.s32.totalorder %s83, 1
    %p367 = scmp.ne.s32.totalorder %s362, %s364
    %p368 = scmp.eq.s32.totalorder %s83, 0
    %p369 = por %p367, %p368
    %p370 = scmp.ne.s32.totalorder %s362, %s364
    %p371 = scmp.eq.s32.totalorder %s88, 1
    %p372 = por %p370, %p371
    %p373 = scmp.ne.s32.totalorder %s364, %s365
    %p374 = scmp.eq.s32.totalorder %s88, 0
    %p375 = por %p373, %p374
    %p376 = scmp.ne.s32.totalorder %s364, %s365
    %p377 = scmp.eq.s32.totalorder %s89, 1
    %p378 = por %p376, %p377
    %p380 = scmp.ne.s32.totalorder %s365, %s379
    %p381 = scmp.eq.s32.totalorder %s89, 0
    %p382 = por %p380, %p381
    %s384 = sadd.s32 %s383, 1
    %p387 = scmp.eq.s32.totalorder %s83, 1
    %p388 = scmp.ne.s32.totalorder %s383, %s385
    %p389 = scmp.eq.s32.totalorder %s83, 0
    %p390 = por %p388, %p389
    %p391 = scmp.ne.s32.totalorder %s383, %s385
    %p392 = scmp.eq.s32.totalorder %s88, 1
    %p393 = por %p391, %p392
    %p394 = scmp.ne.s32.totalorder %s385, %s386
    %p395 = scmp.eq.s32.totalorder %s88, 0
    %p396 = por %p394, %p395
    %p397 = scmp.ne.s32.totalorder %s385, %s386
    %p398 = scmp.eq.s32.totalorder %s89, 1
    %p399 = por %p397, %p398
    %p401 = scmp.ne.s32.totalorder %s386, %s400
    %p402 = scmp.eq.s32.totalorder %s89, 0
    %p403 = por %p401, %p402
    %s405 = sadd.s32 %s404, 1
    %p408 = scmp.eq.s32.totalorder %s83, 1
    %p409 = scmp.ne.s32.totalorder %s404, %s406
    %p410 = scmp.eq.s32.totalorder %s83, 0
    %p411 = por %p409, %p410
    %p412 = scmp.ne.s32.totalorder %s404, %s406
    %p413 = scmp.eq.s32.totalorder %s88, 1
    %p414 = por %p412, %p413
    %p415 = scmp.ne.s32.totalorder %s406, %s407
    %p416 = scmp.eq.s32.totalorder %s88, 0
    %p417 = por %p415, %p416
    %p418 = scmp.ne.s32.totalorder %s406, %s407
    %p419 = scmp.eq.s32.totalorder %s89, 1
    %p420 = por %p418, %p419
    %p422 = scmp.ne.s32.totalorder %s407, %s421
    %p423 = scmp.eq.s32.totalorder %s89, 0
    %p424 = por %p422, %p423
    %s426 = sadd.s32 %s425, 1
    %p429 = scmp.eq.s32.totalorder %s83, 1
    %p430 = scmp.ne.s32.totalorder %s425, %s427
    %p431 = scmp.eq.s32.totalorder %s83, 0
    %p432 = por %p430, %p431
    %p433 = scmp.ne.s32.totalorder %s425, %s427
    %p434 = scmp.eq.s32.totalorder %s88, 1
    %p435 = por %p433, %p434
    %p436 = scmp.ne.s32.totalorder %s427, %s428
    %p437 = scmp.eq.s32.totalorder %s88, 0
    %p438 = por %p436, %p437
    %p439 = scmp.ne.s32.totalorder %s427, %s428
    %p440 = scmp.eq.s32.totalorder %s89, 1
    %p441 = por %p439, %p440
    %p443 = scmp.ne.s32.totalorder %s428, %s442
    %p444 = scmp.eq.s32.totalorder %s89, 0
    %p445 = por %p443, %p444
    %s447 = sadd.s32 %s446, 1
    %p450 = scmp.eq.s32.totalorder %s83, 1
    %p451 = scmp.ne.s32.totalorder %s446, %s448
    %p452 = scmp.eq.s32.totalorder %s83, 0
    %p453 = por %p451, %p452
    %p454 = scmp.ne.s32.totalorder %s446, %s448
    %p455 = scmp.eq.s32.totalorder %s88, 1
    %p456 = por %p454, %p455
    %p457 = scmp.ne.s32.totalorder %s448, %s449
    %p458 = scmp.eq.s32.totalorder %s88, 0
    %p459 = por %p457, %p458
    %p460 = scmp.ne.s32.totalorder %s448, %s449
    %p461 = scmp.eq.s32.totalorder %s89, 1
    %p462 = por %p460, %p461
    %p464 = scmp.ne.s32.totalorder %s449, %s463
    %p465 = scmp.eq.s32.totalorder %s89, 0
    %p466 = por %p464, %p465
    %s468 = sadd.s32 %s467, 1
    %p471 = scmp.eq.s32.totalorder %s83, 1
    %p472 = scmp.ne.s32.totalorder %s467, %s469
    %p473 = scmp.eq.s32.totalorder %s83, 0
    %p474 = por %p472, %p473
    %p475 = scmp.ne.s32.totalorder %s467, %s469
    %p476 = scmp.eq.s32.totalorder %s88, 1
    %p477 = por %p475, %p476
    %p478 = scmp.ne.s32.totalorder %s469, %s470
    %p479 = scmp.eq.s32.totalorder %s88, 0
    %p480 = por %p478, %p479
    %p481 = scmp.ne.s32.totalorder %s469, %s470
    %p482 = scmp.eq.s32.totalorder %s89, 1
    %p483 = por %p481, %p482
    %p485 = scmp.ne.s32.totalorder %s470, %s484
    %p486 = scmp.eq.s32.totalorder %s89, 0
    %p487 = por %p485, %p486
    %s489 = sadd.s32 %s488, 1
    %p492 = scmp.eq.s32.totalorder %s83, 1
    %p493 = scmp.ne.s32.totalorder %s488, %s490
    %p494 = scmp.eq.s32.totalorder %s83, 0
    %p495 = por %p493, %p494
    %p496 = scmp.ne.s32.totalorder %s488, %s490
    %p497 = scmp.eq.s32.totalorder %s88, 1
    %p498 = por %p496, %p497
    %p499 = scmp.ne.s32.totalorder %s490, %s491
    %p500 = scmp.eq.s32.totalorder %s88, 0
    %p501 = por %p499, %p500
    %p502 = scmp.ne.s32.totalorder %s490, %s491
    %p503 = scmp.eq.s32.totalorder %s89, 1
    %p504 = por %p502, %p503
    %p506 = scmp.ne.s32.totalorder %s491, %s505
    %p507 = scmp.eq.s32.totalorder %s89, 0
    %p508 = por %p506, %p507
    %s510 = sadd.s32 %s509, 1
    %p513 = scmp.eq.s32.totalorder %s83, 1
    %p514 = scmp.ne.s32.totalorder %s509, %s511
    %p515 = scmp.eq.s32.totalorder %s83, 0
    %p516 = por %p514, %p515
    %p517 = scmp.ne.s32.totalorder %s509, %s511
    %p518 = scmp.eq.s32.totalorder %s88, 1
    %p519 = por %p517, %p518
    %p520 = scmp.ne.s32.totalorder %s511, %s512
    %p521 = scmp.eq.s32.totalorder %s88, 0
    %p522 = por %p520, %p521
    %p523 = scmp.ne.s32.totalorder %s511, %s512
    %p524 = scmp.eq.s32.totalorder %s89, 1
    %p525 = por %p523, %p524
    %p527 = scmp.ne.s32.totalorder %s512, %s526
    %p528 = scmp.eq.s32.totalorder %s89, 0
    %p529 = por %p527, %p528
    %s531 = sadd.s32 %s530, 1
    %p534 = scmp.eq.s32.totalorder %s83, 1
    %p535 = scmp.ne.s32.totalorder %s530, %s532
    %p536 = scmp.eq.s32.totalorder %s83, 0
    %p537 = por %p535, %p536
    %p538 = scmp.ne.s32.totalorder %s530, %s532
    %p539 = scmp.eq.s32.totalorder %s88, 1
    %p540 = por %p538, %p539
    %p541 = scmp.ne.s32.totalorder %s532, %s533
    %p542 = scmp.eq.s32.totalorder %s88, 0
    %p543 = por %p541, %p542
    %p544 = scmp.ne.s32.totalorder %s532, %s533
    %p545 = scmp.eq.s32.totalorder %s89, 1
    %p546 = por %p544, %p545
    %p548 = scmp.ne.s32.totalorder %s533, %s547
    %p549 = scmp.eq.s32.totalorder %s89, 0
    %p550 = por %p548, %p549
    %s552 = sadd.s32 %s551, 1
    %p555 = scmp.eq.s32.totalorder %s83, 1
    %p556 = scmp.ne.s32.totalorder %s551, %s553
    %p557 = scmp.eq.s32.totalorder %s83, 0
    %p558 = por %p556, %p557
    %p559 = scmp.ne.s32.totalorder %s551, %s553
    %p560 = scmp.eq.s32.totalorder %s88, 1
    %p561 = por %p559, %p560
    %p562 = scmp.ne.s32.totalorder %s553, %s554
    %p563 = scmp.eq.s32.totalorder %s88, 0
    %p564 = por %p562, %p563
    %p565 = scmp.ne.s32.totalorder %s553, %s554
    %p566 = scmp.eq.s32.totalorder %s89, 1
    %p567 = por %p565, %p566
    %p569 = scmp.ne.s32.totalorder %s554, %s568
    %p570 = scmp.eq.s32.totalorder %s89, 0
    %p571 = por %p569, %p570
    %s573 = sadd.s32 %s572, 1
    %p576 = scmp.eq.s32.totalorder %s83, 1
    %p577 = scmp.ne.s32.totalorder %s572, %s574
    %p578 = scmp.eq.s32.totalorder %s83, 0
    %p579 = por %p577, %p578
    %p580 = scmp.ne.s32.totalorder %s572, %s574
    %p581 = scmp.eq.s32.totalorder %s88, 1
    %p582 = por %p580, %p581
    %p583 = scmp.ne.s32.totalorder %s574, %s575
    %p584 = scmp.eq.s32.totalorder %s88, 0
    %p585 = por %p583, %p584
    %p586 = scmp.ne.s32.totalorder %s574, %s575
    %p587 = scmp.eq.s32.totalorder %s89, 1
    %p588 = por %p586, %p587
    %p590 = scmp.ne.s32.totalorder %s575, %s589
    %p591 = scmp.eq.s32.totalorder %s89, 0
    %p592 = por %p590, %p591
    %s594 = sadd.s32 %s593, 1
    %p597 = scmp.eq.s32.totalorder %s83, 1
    %p598 = scmp.ne.s32.totalorder %s593, %s595
    %p599 = scmp.eq.s32.totalorder %s83, 0
    %p600 = por %p598, %p599
    %p601 = scmp.ne.s32.totalorder %s593, %s595
    %p602 = scmp.eq.s32.totalorder %s88, 1
    %p603 = por %p601, %p602
    %p604 = scmp.ne.s32.totalorder %s595, %s596
    %p605 = scmp.eq.s32.totalorder %s88, 0
    %p606 = por %p604, %p605
    %p607 = scmp.ne.s32.totalorder %s595, %s596
    %p608 = scmp.eq.s32.totalorder %s89, 1
    %p609 = por %p607, %p608
    %p611 = scmp.ne.s32.totalorder %s596, %s610
    %p612 = scmp.eq.s32.totalorder %s89, 0
    %p613 = por %p611, %p612
    %s615 = sadd.s32 %s614, 1
    %p618 = scmp.eq.s32.totalorder %s83, 1
    %p619 = scmp.ne.s32.totalorder %s614, %s616
    %p620 = scmp.eq.s32.totalorder %s83, 0
    %p621 = por %p619, %p620
    %p622 = scmp.ne.s32.totalorder %s614, %s616
    %p623 = scmp.eq.s32.totalorder %s88, 1
    %p624 = por %p622, %p623
    %p625 = scmp.ne.s32.totalorder %s616, %s617
    %p626 = scmp.eq.s32.totalorder %s88, 0
    %p627 = por %p625, %p626
    %p628 = scmp.ne.s32.totalorder %s616, %s617
    %p629 = scmp.eq.s32.totalorder %s89, 1
    %p630 = por %p628, %p629
    %p632 = scmp.ne.s32.totalorder %s617, %s631
    %p633 = scmp.eq.s32.totalorder %s89, 0
    %p634 = por %p632, %p633
    %s636 = sadd.s32 %s635, 1
    %p639 = scmp.eq.s32.totalorder %s83, 1
    %p640 = scmp.ne.s32.totalorder %s635, %s637
    %p641 = scmp.eq.s32.totalorder %s83, 0
    %p642 = por %p640, %p641
    %p643 = scmp.ne.s32.totalorder %s635, %s637
    %p644 = scmp.eq.s32.totalorder %s88, 1
    %p645 = por %p643, %p644
    %p646 = scmp.ne.s32.totalorder %s637, %s638
    %p647 = scmp.eq.s32.totalorder %s88, 0
    %p648 = por %p646, %p647
    %p649 = scmp.ne.s32.totalorder %s637, %s638
    %p650 = scmp.eq.s32.totalorder %s89, 1
    %p651 = por %p649, %p650
    %p653 = scmp.ne.s32.totalorder %s638, %s652
    %p654 = scmp.eq.s32.totalorder %s89, 0
    %p655 = por %p653, %p654
    %s657 = sadd.s32 %s656, 1
    %p660 = scmp.eq.s32.totalorder %s83, 1
    %p661 = scmp.ne.s32.totalorder %s656, %s658
    %p662 = scmp.eq.s32.totalorder %s83, 0
    %p663 = por %p661, %p662
    %p664 = scmp.ne.s32.totalorder %s656, %s658
    %p665 = scmp.eq.s32.totalorder %s88, 1
    %p666 = por %p664, %p665
    %p667 = scmp.ne.s32.totalorder %s658, %s659
    %p668 = scmp.eq.s32.totalorder %s88, 0
    %p669 = por %p667, %p668
    %p670 = scmp.ne.s32.totalorder %s658, %s659
    %p671 = scmp.eq.s32.totalorder %s89, 1
    %p672 = por %p670, %p671
    %p674 = scmp.ne.s32.totalorder %s659, %s673
    %p675 = scmp.eq.s32.totalorder %s89, 0
    %p676 = por %p674, %p675
    %s678 = sadd.s32 %s677, 1
    %p681 = scmp.eq.s32.totalorder %s83, 1
    %p682 = scmp.ne.s32.totalorder %s677, %s679
    %p683 = scmp.eq.s32.totalorder %s83, 0
    %p684 = por %p682, %p683
    %p685 = scmp.ne.s32.totalorder %s677, %s679
    %p686 = scmp.eq.s32.totalorder %s88, 1
    %p687 = por %p685, %p686
    %p688 = scmp.ne.s32.totalorder %s679, %s680
    %p689 = scmp.eq.s32.totalorder %s88, 0
    %p690 = por %p688, %p689
    %p691 = scmp.ne.s32.totalorder %s679, %s680
    %p692 = scmp.eq.s32.totalorder %s89, 1
    %p693 = por %p691, %p692
    %p695 = scmp.ne.s32.totalorder %s680, %s694
    %p696 = scmp.eq.s32.totalorder %s89, 0
    %p697 = por %p695, %p696
    %s699 = sadd.s32 %s698, 1
    %p702 = scmp.eq.s32.totalorder %s83, 1
    %p703 = scmp.ne.s32.totalorder %s698, %s700
    %p704 = scmp.eq.s32.totalorder %s83, 0
    %p705 = por %p703, %p704
    %p706 = scmp.ne.s32.totalorder %s698, %s700
    %p707 = scmp.eq.s32.totalorder %s88, 1
    %p708 = por %p706, %p707
    %p709 = scmp.ne.s32.totalorder %s700, %s701
    %p710 = scmp.eq.s32.totalorder %s88, 0
    %p711 = por %p709, %p710
    %p712 = scmp.ne.s32.totalorder %s700, %s701
    %p713 = scmp.eq.s32.totalorder %s89, 1
    %p714 = por %p712, %p713
    %p716 = scmp.ne.s32.totalorder %s701, %s715
    %p717 = scmp.eq.s32.totalorder %s89, 0
    %p718 = por %p716, %p717
    %s720 = sadd.s32 %s719, 1
    %p723 = scmp.eq.s32.totalorder %s83, 1
    %p724 = scmp.ne.s32.totalorder %s719, %s721
    %p725 = scmp.eq.s32.totalorder %s83, 0
    %p726 = por %p724, %p725
    %p727 = scmp.ne.s32.totalorder %s719, %s721
    %p728 = scmp.eq.s32.totalorder %s88, 1
    %p729 = por %p727, %p728
    %p730 = scmp.ne.s32.totalorder %s721, %s722
    %p731 = scmp.eq.s32.totalorder %s88, 0
    %p732 = por %p730, %p731
    %p733 = scmp.ne.s32.totalorder %s721, %s722
    %p734 = scmp.eq.s32.totalorder %s89, 1
    %p735 = por %p733, %p734
    %p737 = scmp.ne.s32.totalorder %s722, %s736
    %p738 = scmp.eq.s32.totalorder %s89, 0
    %p739 = por %p737, %p738
    %s741 = sadd.s32 %s740, 1
    %p744 = scmp.eq.s32.totalorder %s83, 1
    %p745 = scmp.ne.s32.totalorder %s740, %s742
    %p746 = scmp.eq.s32.totalorder %s83, 0
    %p747 = por %p745, %p746
    %p748 = scmp.ne.s32.totalorder %s740, %s742
    %p749 = scmp.eq.s32.totalorder %s88, 1
    %p750 = por %p748, %p749
    %p751 = scmp.ne.s32.totalorder %s742, %s743
    %p752 = scmp.eq.s32.totalorder %s88, 0
    %p753 = por %p751, %p752
    %p754 = scmp.ne.s32.totalorder %s742, %s743
    %p755 = scmp.eq.s32.totalorder %s89, 1
    %p756 = por %p754, %p755
    %p758 = scmp.ne.s32.totalorder %s743, %s757
    %p759 = scmp.eq.s32.totalorder %s89, 0
    %p760 = por %p758, %p759
    %s762 = sadd.s32 %s761, 1
    %p765 = scmp.eq.s32.totalorder %s83, 1
    %p766 = scmp.ne.s32.totalorder %s761, %s763
    %p767 = scmp.eq.s32.totalorder %s83, 0
    %p768 = por %p766, %p767
    %p769 = scmp.ne.s32.totalorder %s761, %s763
    %p770 = scmp.eq.s32.totalorder %s88, 1
    %p771 = por %p769, %p770
    %p772 = scmp.ne.s32.totalorder %s763, %s764
    %p773 = scmp.eq.s32.totalorder %s88, 0
    %p774 = por %p772, %p773
    %p775 = scmp.ne.s32.totalorder %s763, %s764
    %p776 = scmp.eq.s32.totalorder %s89, 1
    %p777 = por %p775, %p776
    %p779 = scmp.ne.s32.totalorder %s764, %s778
    %p780 = scmp.eq.s32.totalorder %s89, 0
    %p781 = por %p779, %p780
    %s783 = sadd.s32 %s782, 1
    %p786 = scmp.eq.s32.totalorder %s83, 1
    %p787 = scmp.ne.s32.totalorder %s782, %s784
    %p788 = scmp.eq.s32.totalorder %s83, 0
    %p789 = por %p787, %p788
    %p790 = scmp.ne.s32.totalorder %s782, %s784
    %p791 = scmp.eq.s32.totalorder %s88, 1
    %p792 = por %p790, %p791
    %p793 = scmp.ne.s32.totalorder %s784, %s785
    %p794 = scmp.eq.s32.totalorder %s88, 0
    %p795 = por %p793, %p794
    %p796 = scmp.ne.s32.totalorder %s784, %s785
    %p797 = scmp.eq.s32.totalorder %s89, 1
    %p798 = por %p796, %p797
    %p800 = scmp.ne.s32.totalorder %s785, %s799
    %p801 = scmp.eq.s32.totalorder %s89, 0
    %p802 = por %p800, %p801
    %s804 = sadd.s32 %s803, 1
    %p807 = scmp.eq.s32.totalorder %s83, 1
    %p808 = scmp.ne.s32.totalorder %s803, %s805
    %p809 = scmp.eq.s32.totalorder %s83, 0
    %p810 = por %p808, %p809
    %p811 = scmp.ne.s32.totalorder %s803, %s805
    %p812 = scmp.eq.s32.totalorder %s88, 1
    %p813 = por %p811, %p812
    %p814 = scmp.ne.s32.totalorder %s805, %s806
    %p815 = scmp.eq.s32.totalorder %s88, 0
    %p816 = por %p814, %p815
    %p817 = scmp.ne.s32.totalorder %s805, %s806
    %p818 = scmp.eq.s32.totalorder %s89, 1
    %p819 = por %p817, %p818
    %p821 = scmp.ne.s32.totalorder %s806, %s820
    %p822 = scmp.eq.s32.totalorder %s89, 0
    %p823 = por %p821, %p822
    %s825 = sadd.s32 %s824, 1
    %p828 = scmp.eq.s32.totalorder %s83, 1
    %p829 = scmp.ne.s32.totalorder %s824, %s826
    %p830 = scmp.eq.s32.totalorder %s83, 0
    %p831 = por %p829, %p830
    %p832 = scmp.ne.s32.totalorder %s824, %s826
    %p833 = scmp.eq.s32.totalorder %s88, 1
    %p834 = por %p832, %p833
    %p835 = scmp.ne.s32.totalorder %s826, %s827
    %p836 = scmp.eq.s32.totalorder %s88, 0
    %p837 = por %p835, %p836
    %p838 = scmp.ne.s32.totalorder %s826, %s827
    %p839 = scmp.eq.s32.totalorder %s89, 1
    %p840 = por %p838, %p839
    %p842 = scmp.ne.s32.totalorder %s827, %s841
    %p843 = scmp.eq.s32.totalorder %s89, 0
    %p844 = por %p842, %p843
    %s846 = sadd.s32 %s845, 1
    %p849 = scmp.eq.s32.totalorder %s83, 1
    %p850 = scmp.ne.s32.totalorder %s845, %s847
    %p851 = scmp.eq.s32.totalorder %s83, 0
    %p852 = por %p850, %p851
    %p853 = scmp.ne.s32.totalorder %s845, %s847
    %p854 = scmp.eq.s32.totalorder %s88, 1
    %p855 = por %p853, %p854
    %p856 = scmp.ne.s32.totalorder %s847, %s848
    %p857 = scmp.eq.s32.totalorder %s88, 0
    %p858 = por %p856, %p857
    %p859 = scmp.ne.s32.totalorder %s847, %s848
    %p860 = scmp.eq.s32.totalorder %s89, 1
    %p861 = por %p859, %p860
    %p863 = scmp.ne.s32.totalorder %s848, %s862
    %p864 = scmp.eq.s32.totalorder %s89, 0
    %p865 = por %p863, %p864
    %s867 = sadd.s32 %s866, 1
    %p870 = scmp.eq.s32.totalorder %s83, 1
    %p871 = scmp.ne.s32.totalorder %s866, %s868
    %p872 = scmp.eq.s32.totalorder %s83, 0
    %p873 = por %p871, %p872
    %p874 = scmp.ne.s32.totalorder %s866, %s868
    %p875 = scmp.eq.s32.totalorder %s88, 1
    %p876 = por %p874, %p875
    %p877 = scmp.ne.s32.totalorder %s868, %s869
    %p878 = scmp.eq.s32.totalorder %s88, 0
    %p879 = por %p877, %p878
    %p880 = scmp.ne.s32.totalorder %s868, %s869
    %p881 = scmp.eq.s32.totalorder %s89, 1
    %p882 = por %p880, %p881
    %p884 = scmp.ne.s32.totalorder %s869, %s883
    %p885 = scmp.eq.s32.totalorder %s89, 0
    %p886 = por %p884, %p885
    %s888 = sadd.s32 %s887, 1
    %p891 = scmp.eq.s32.totalorder %s83, 1
    %p892 = scmp.ne.s32.totalorder %s887, %s889
    %p893 = scmp.eq.s32.totalorder %s83, 0
    %p894 = por %p892, %p893
    %p895 = scmp.ne.s32.totalorder %s887, %s889
    %p896 = scmp.eq.s32.totalorder %s88, 1
    %p897 = por %p895, %p896
    %p898 = scmp.ne.s32.totalorder %s889, %s890
    %p899 = scmp.eq.s32.totalorder %s88, 0
    %p900 = por %p898, %p899
    %p901 = scmp.ne.s32.totalorder %s889, %s890
    %p902 = scmp.eq.s32.totalorder %s89, 1
    %p903 = por %p901, %p902
    %p905 = scmp.ne.s32.totalorder %s890, %s904
    %p906 = scmp.eq.s32.totalorder %s89, 0
    %p907 = por %p905, %p906
    %s908 = ssub.s32 %s90, %s102
    %s909 = ssub.s32 %s91, %s98
    %s910 = sor.u32 %s908, %s909
    %p911 = scmp.eq.s32.totalorder %s910, 0
    %s913 = sadd.s32 %s912, 1
    %s914 = scalar_select %p911, %s912, %s913
    %p917 = pneg %p911
    %p918 = scmp.eq.s32.totalorder %s83, 1
    %p919 = por %p917, %p918
    %p920 = scmp.ne.s32.totalorder %s912, %s915
    %p921 = scmp.eq.s32.totalorder %s83, 0
    %p922 = por %p920, %p921
    %p923 = scmp.ne.s32.totalorder %s912, %s915
    %p924 = scmp.eq.s32.totalorder %s88, 1
    %p925 = por %p923, %p924
    %p926 = scmp.ne.s32.totalorder %s915, %s916
    %p927 = scmp.eq.s32.totalorder %s88, 0
    %p928 = por %p926, %p927
    %p929 = scmp.ne.s32.totalorder %s915, %s916
    %p930 = scmp.eq.s32.totalorder %s89, 1
    %p931 = por %p929, %p930
    %p933 = scmp.ne.s32.totalorder %s916, %s932
    %p934 = scmp.eq.s32.totalorder %s89, 0
    %p935 = por %p933, %p934
    %p936 = scmp.le.s32.totalorder 1, %s83
    %p937 = scmp.lt.s32.totalorder %s83, 3
    %p938 = pnand %p936, %p937
    %p939 = pneg %p938
    // Predicated region
    $region9: #{resnet_forward.1} parent=5 // pred_check
      _
    $region10: #{resnet_forward.1} parent=5 // pred_check_branch
      %941 = sbr.rel (%p938) target = $region12
    $region11: #{resnet_forward.1} parent=5 // pred_region
      %s942 = ssub.s32 %s83, 1
      // Predicated region
      $region13: #{resnet_forward.1} parent=11 // pred_check
        %p943 = pneg %p144
      $region14: #{resnet_forward.1} parent=11 // pred_check_branch
        %945 = sbr.rel (%p943) target = $region16
      $region15: #{resnet_forward.1} parent=11 // pred_region
        _
      $region16: #{resnet_forward.1} parent=11 // pred_fallthru
        _
      // Predicated region
      $region17: #{resnet_forward.1} parent=11 // pred_check
        %p946 = pneg %p165
      $region18: #{resnet_forward.1} parent=11 // pred_check_branch
        %948 = sbr.rel (%p946) target = $region20
      $region19: #{resnet_forward.1} parent=11 // pred_region
        _
      $region20: #{resnet_forward.1} parent=11 // pred_fallthru
        _
      // Predicated region
      $region21: #{resnet_forward.1} parent=11 // pred_check
        %p949 = pneg %p186
      $region22: #{resnet_forward.1} parent=11 // pred_check_branch
        %951 = sbr.rel (%p949) target = $region24
      $region23: #{resnet_forward.1} parent=11 // pred_region
        _
      $region24: #{resnet_forward.1} parent=11 // pred_fallthru
        _
      // Predicated region
      $region25: #{resnet_forward.1} parent=11 // pred_check
        %p952 = pneg %p207
      $region26: #{resnet_forward.1} parent=11 // pred_check_branch
        %954 = sbr.rel (%p952) target = $region28
      $region27: #{resnet_forward.1} parent=11 // pred_region
        _
      $region28: #{resnet_forward.1} parent=11 // pred_fallthru
        _
      // Predicated region
      $region29: #{resnet_forward.1} parent=11 // pred_check
        %p955 = pneg %p228
      $region30: #{resnet_forward.1} parent=11 // pred_check_branch
        %957 = sbr.rel (%p955) target = $region32
      $region31: #{resnet_forward.1} parent=11 // pred_region
        _
      $region32: #{resnet_forward.1} parent=11 // pred_fallthru
        _
      // Predicated region
      $region33: #{resnet_forward.1} parent=11 // pred_check
        %p958 = pneg %p249
      $region34: #{resnet_forward.1} parent=11 // pred_check_branch
        %960 = sbr.rel (%p958) target = $region36
      $region35: #{resnet_forward.1} parent=11 // pred_region
        _
      $region36: #{resnet_forward.1} parent=11 // pred_fallthru
        _
      // Predicated region
      $region37: #{resnet_forward.1} parent=11 // pred_check
        %p961 = pneg %p270
      $region38: #{resnet_forward.1} parent=11 // pred_check_branch
        %963 = sbr.rel (%p961) target = $region40
      $region39: #{resnet_forward.1} parent=11 // pred_region
        _
      $region40: #{resnet_forward.1} parent=11 // pred_fallthru
        _
      // Predicated region
      $region41: #{resnet_forward.1} parent=11 // pred_check
        %p964 = pneg %p291
      $region42: #{resnet_forward.1} parent=11 // pred_check_branch
        %966 = sbr.rel (%p964) target = $region44
      $region43: #{resnet_forward.1} parent=11 // pred_region
        _
      $region44: #{resnet_forward.1} parent=11 // pred_fallthru
        _
      // Predicated region
      $region45: #{resnet_forward.1} parent=11 // pred_check
        %p967 = pneg %p312
      $region46: #{resnet_forward.1} parent=11 // pred_check_branch
        %969 = sbr.rel (%p967) target = $region48
      $region47: #{resnet_forward.1} parent=11 // pred_region
        _
      $region48: #{resnet_forward.1} parent=11 // pred_fallthru
        _
      // Predicated region
      $region49: #{resnet_forward.1} parent=11 // pred_check
        %p970 = pneg %p333
      $region50: #{resnet_forward.1} parent=11 // pred_check_branch
        %972 = sbr.rel (%p970) target = $region52
      $region51: #{resnet_forward.1} parent=11 // pred_region
        _
      $region52: #{resnet_forward.1} parent=11 // pred_fallthru
        _
      // Predicated region
      $region53: #{resnet_forward.1} parent=11 // pred_check
        %p973 = pneg %p354
      $region54: #{resnet_forward.1} parent=11 // pred_check_branch
        %975 = sbr.rel (%p973) target = $region56
      $region55: #{resnet_forward.1} parent=11 // pred_region
        _
      $region56: #{resnet_forward.1} parent=11 // pred_fallthru
        _
      // Predicated region
      $region57: #{resnet_forward.1} parent=11 // pred_check
        %p976 = pneg %p375
      $region58: #{resnet_forward.1} parent=11 // pred_check_branch
        %978 = sbr.rel (%p976) target = $region60
      $region59: #{resnet_forward.1} parent=11 // pred_region
        _
      $region60: #{resnet_forward.1} parent=11 // pred_fallthru
        _
      // Predicated region
      $region61: #{resnet_forward.1} parent=11 // pred_check
        %p979 = pneg %p396
      $region62: #{resnet_forward.1} parent=11 // pred_check_branch
        %981 = sbr.rel (%p979) target = $region64
      $region63: #{resnet_forward.1} parent=11 // pred_region
        _
      $region64: #{resnet_forward.1} parent=11 // pred_fallthru
        _
      // Predicated region
      $region65: #{resnet_forward.1} parent=11 // pred_check
        %p982 = pneg %p417
      $region66: #{resnet_forward.1} parent=11 // pred_check_branch
        %984 = sbr.rel (%p982) target = $region68
      $region67: #{resnet_forward.1} parent=11 // pred_region
        _
      $region68: #{resnet_forward.1} parent=11 // pred_fallthru
        _
      // Predicated region
      $region69: #{resnet_forward.1} parent=11 // pred_check
        %p985 = pneg %p438
      $region70: #{resnet_forward.1} parent=11 // pred_check_branch
        %987 = sbr.rel (%p985) target = $region72
      $region71: #{resnet_forward.1} parent=11 // pred_region
        _
      $region72: #{resnet_forward.1} parent=11 // pred_fallthru
        _
      // Predicated region
      $region73: #{resnet_forward.1} parent=11 // pred_check
        %p988 = pneg %p459
      $region74: #{resnet_forward.1} parent=11 // pred_check_branch
        %990 = sbr.rel (%p988) target = $region76
      $region75: #{resnet_forward.1} parent=11 // pred_region
        _
      $region76: #{resnet_forward.1} parent=11 // pred_fallthru
        _
      // Predicated region
      $region77: #{resnet_forward.1} parent=11 // pred_check
        %p991 = pneg %p480
      $region78: #{resnet_forward.1} parent=11 // pred_check_branch
        %993 = sbr.rel (%p991) target = $region80
      $region79: #{resnet_forward.1} parent=11 // pred_region
        _
      $region80: #{resnet_forward.1} parent=11 // pred_fallthru
        _
      // Predicated region
      $region81: #{resnet_forward.1} parent=11 // pred_check
        %p994 = pneg %p501
      $region82: #{resnet_forward.1} parent=11 // pred_check_branch
        %996 = sbr.rel (%p994) target = $region84
      $region83: #{resnet_forward.1} parent=11 // pred_region
        _
      $region84: #{resnet_forward.1} parent=11 // pred_fallthru
        _
      // Predicated region
      $region85: #{resnet_forward.1} parent=11 // pred_check
        %p997 = pneg %p522
      $region86: #{resnet_forward.1} parent=11 // pred_check_branch
        %999 = sbr.rel (%p997) target = $region88
      $region87: #{resnet_forward.1} parent=11 // pred_region
        _
      $region88: #{resnet_forward.1} parent=11 // pred_fallthru
        _
      // Predicated region
      $region89: #{resnet_forward.1} parent=11 // pred_check
        %p1000 = pneg %p543
      $region90: #{resnet_forward.1} parent=11 // pred_check_branch
        %1002 = sbr.rel (%p1000) target = $region92
      $region91: #{resnet_forward.1} parent=11 // pred_region
        _
      $region92: #{resnet_forward.1} parent=11 // pred_fallthru
        _
      // Predicated region
      $region93: #{resnet_forward.1} parent=11 // pred_check
        %p1003 = pneg %p564
      $region94: #{resnet_forward.1} parent=11 // pred_check_branch
        %1005 = sbr.rel (%p1003) target = $region96
      $region95: #{resnet_forward.1} parent=11 // pred_region
        _
      $region96: #{resnet_forward.1} parent=11 // pred_fallthru
        _
      // Predicated region
      $region97: #{resnet_forward.1} parent=11 // pred_check
        %p1006 = pneg %p585
      $region98: #{resnet_forward.1} parent=11 // pred_check_branch
        %1008 = sbr.rel (%p1006) target = $region100
      $region99: #{resnet_forward.1} parent=11 // pred_region
        _
      $region100: #{resnet_forward.1} parent=11 // pred_fallthru
        _
      // Predicated region
      $region101: #{resnet_forward.1} parent=11 // pred_check
        %p1009 = pneg %p606
      $region102: #{resnet_forward.1} parent=11 // pred_check_branch
        %1011 = sbr.rel (%p1009) target = $region104
      $region103: #{resnet_forward.1} parent=11 // pred_region
        _
      $region104: #{resnet_forward.1} parent=11 // pred_fallthru
        _
      // Predicated region
      $region105: #{resnet_forward.1} parent=11 // pred_check
        %p1012 = pneg %p627
      $region106: #{resnet_forward.1} parent=11 // pred_check_branch
        %1014 = sbr.rel (%p1012) target = $region108
      $region107: #{resnet_forward.1} parent=11 // pred_region
        _
      $region108: #{resnet_forward.1} parent=11 // pred_fallthru
        _
      // Predicated region
      $region109: #{resnet_forward.1} parent=11 // pred_check
        %p1015 = pneg %p648
      $region110: #{resnet_forward.1} parent=11 // pred_check_branch
        %1017 = sbr.rel (%p1015) target = $region112
      $region111: #{resnet_forward.1} parent=11 // pred_region
        _
      $region112: #{resnet_forward.1} parent=11 // pred_fallthru
        _
      // Predicated region
      $region113: #{resnet_forward.1} parent=11 // pred_check
        %p1018 = pneg %p669
      $region114: #{resnet_forward.1} parent=11 // pred_check_branch
        %1020 = sbr.rel (%p1018) target = $region116
      $region115: #{resnet_forward.1} parent=11 // pred_region
        _
      $region116: #{resnet_forward.1} parent=11 // pred_fallthru
        _
      // Predicated region
      $region117: #{resnet_forward.1} parent=11 // pred_check
        %p1021 = pneg %p690
      $region118: #{resnet_forward.1} parent=11 // pred_check_branch
        %1023 = sbr.rel (%p1021) target = $region120
      $region119: #{resnet_forward.1} parent=11 // pred_region
        _
      $region120: #{resnet_forward.1} parent=11 // pred_fallthru
        _
      // Predicated region
      $region121: #{resnet_forward.1} parent=11 // pred_check
        %p1024 = pneg %p711
      $region122: #{resnet_forward.1} parent=11 // pred_check_branch
        %1026 = sbr.rel (%p1024) target = $region124
      $region123: #{resnet_forward.1} parent=11 // pred_region
        _
      $region124: #{resnet_forward.1} parent=11 // pred_fallthru
        _
      // Predicated region
      $region125: #{resnet_forward.1} parent=11 // pred_check
        %p1027 = pneg %p732
      $region126: #{resnet_forward.1} parent=11 // pred_check_branch
        %1029 = sbr.rel (%p1027) target = $region128
      $region127: #{resnet_forward.1} parent=11 // pred_region
        _
      $region128: #{resnet_forward.1} parent=11 // pred_fallthru
        _
      // Predicated region
      $region129: #{resnet_forward.1} parent=11 // pred_check
        %p1030 = pneg %p753
      $region130: #{resnet_forward.1} parent=11 // pred_check_branch
        %1032 = sbr.rel (%p1030) target = $region132
      $region131: #{resnet_forward.1} parent=11 // pred_region
        _
      $region132: #{resnet_forward.1} parent=11 // pred_fallthru
        _
      // Predicated region
      $region133: #{resnet_forward.1} parent=11 // pred_check
        %p1033 = pneg %p774
      $region134: #{resnet_forward.1} parent=11 // pred_check_branch
        %1035 = sbr.rel (%p1033) target = $region136
      $region135: #{resnet_forward.1} parent=11 // pred_region
        _
      $region136: #{resnet_forward.1} parent=11 // pred_fallthru
        _
      // Predicated region
      $region137: #{resnet_forward.1} parent=11 // pred_check
        %p1036 = pneg %p795
      $region138: #{resnet_forward.1} parent=11 // pred_check_branch
        %1038 = sbr.rel (%p1036) target = $region140
      $region139: #{resnet_forward.1} parent=11 // pred_region
        _
      $region140: #{resnet_forward.1} parent=11 // pred_fallthru
        _
      // Predicated region
      $region141: #{resnet_forward.1} parent=11 // pred_check
        %p1039 = pneg %p816
      $region142: #{resnet_forward.1} parent=11 // pred_check_branch
        %1041 = sbr.rel (%p1039) target = $region144
      $region143: #{resnet_forward.1} parent=11 // pred_region
        _
      $region144: #{resnet_forward.1} parent=11 // pred_fallthru
        _
      // Predicated region
      $region145: #{resnet_forward.1} parent=11 // pred_check
        %p1042 = pneg %p837
      $region146: #{resnet_forward.1} parent=11 // pred_check_branch
        %1044 = sbr.rel (%p1042) target = $region148
      $region147: #{resnet_forward.1} parent=11 // pred_region
        _
      $region148: #{resnet_forward.1} parent=11 // pred_fallthru
        _
      // Predicated region
      $region149: #{resnet_forward.1} parent=11 // pred_check
        %p1045 = pneg %p858
      $region150: #{resnet_forward.1} parent=11 // pred_check_branch
        %1047 = sbr.rel (%p1045) target = $region152
      $region151: #{resnet_forward.1} parent=11 // pred_region
        _
      $region152: #{resnet_forward.1} parent=11 // pred_fallthru
        _
      // Predicated region
      $region153: #{resnet_forward.1} parent=11 // pred_check
        %p1048 = pneg %p879
      $region154: #{resnet_forward.1} parent=11 // pred_check_branch
        %1050 = sbr.rel (%p1048) target = $region156
      $region155: #{resnet_forward.1} parent=11 // pred_region
        _
      $region156: #{resnet_forward.1} parent=11 // pred_fallthru
        _
      // Predicated region
      $region157: #{resnet_forward.1} parent=11 // pred_check
        %p1051 = pneg %p900
      $region158: #{resnet_forward.1} parent=11 // pred_check_branch
        %1053 = sbr.rel (%p1051) target = $region160
      $region159: #{resnet_forward.1} parent=11 // pred_region
        _
      $region160: #{resnet_forward.1} parent=11 // pred_fallthru
        _
    $region12: #{resnet_forward.1} parent=5 // pred_fallthru
      _
    %p1054 = scmp.lt.s32.totalorder %s83, 2
    // Predicated region
    $region161: #{resnet_forward.1} parent=5 // pred_check
      %p1055 = pneg %p1054
    $region162: #{resnet_forward.1} parent=5 // pred_check_branch
      %1057 = sbr.rel (%p1055) target = $region164
    $region163: #{resnet_forward.1} parent=5 // pred_region
      // Predicated region
      $region165: #{resnet_forward.1} parent=163 // pred_check
        %p1058 = pneg %p117
      $region166: #{resnet_forward.1} parent=163 // pred_check_branch
        %1060 = sbr.rel (%p1058) target = $region168
      $region167: #{resnet_forward.1} parent=163 // pred_region
        %p1061 = scmp.lt.s32.totalorder %s90, 1
        %s1062 = scalar_select %p1061, %s90, 1
        %p1063 = scmp.lt.s32.totalorder %s91, 0
        %s1064 = scalar_select %p1063, %s91, 0
        %s1065 = smul.addr %s1064, 4
        %s1066 = smul.addr %s1062, 4
        %s1067 = sadd.s32 %s1065, %s1066
        %s1068 = smul.addr %s1067, 8
        %s1069 = scalar_lea.vmem %s1, %s1068
      $region168: #{resnet_forward.1} parent=163 // pred_fallthru
        _
    $region164: #{resnet_forward.1} parent=5 // pred_fallthru
      _
    %p1070 = scmp.le.s32.totalorder 1, %s83
    %p1071 = scmp.lt.s32.totalorder %s83, 3
    %p1072 = pnand %p1070, %p1071
    %p1073 = pneg %p1072
    // Predicated region
    $region169: #{resnet_forward.1} parent=5 // pred_check
      _
    $region170: #{resnet_forward.1} parent=5 // pred_check_branch
      %1075 = sbr.rel (%p1072) target = $region172
    $region171: #{resnet_forward.1} parent=5 // pred_region
      %s1076 = ssub.s32 %s83, 1
      %p1077 = scmp.lt.s32.totalorder %s92, 1
      %s1078 = scalar_select %p1077, %s92, 1
      %p1079 = scmp.lt.s32.totalorder %s93, 0
      %s1080 = scalar_select %p1079, %s93, 0
      %s1081 = smul.addr %s1080, 4
      %s1082 = smul.addr %s1078, 4
      %s1083 = sadd.s32 %s1081, %s1082
      %s1084 = smul.addr %s1083, 8
      %s1085 = scalar_lea.vmem %s1, %s1084
      %p1086 = pneg %p123
      %p1087 = pneg %p120
      %p1088 = pneg %p144
      %p1089 = pneg %p141
      %p1090 = pneg %p165
      %p1091 = pneg %p162
      %p1092 = pneg %p186
      %p1093 = pneg %p183
      %p1094 = pneg %p207
      %p1095 = pneg %p204
      %p1096 = pneg %p228
      %p1097 = pneg %p225
      %p1098 = pneg %p249
      %p1099 = pneg %p246
      %p1100 = pneg %p270
      %p1101 = pneg %p267
      %p1102 = pneg %p291
      %p1103 = pneg %p288
      %p1104 = pneg %p312
      %p1105 = pneg %p309
      %p1106 = pneg %p333
      %p1107 = pneg %p330
      %p1108 = pneg %p354
      %p1109 = pneg %p351
      %p1110 = pneg %p375
      %p1111 = pneg %p372
      %p1112 = pneg %p396
      %p1113 = pneg %p393
      %p1114 = pneg %p417
      %p1115 = pneg %p414
      %p1116 = pneg %p438
      %p1117 = pneg %p435
      %p1118 = pneg %p459
      %p1119 = pneg %p456
      %p1120 = pneg %p480
      %p1121 = pneg %p477
      %p1122 = pneg %p501
      %p1123 = pneg %p498
      %p1124 = pneg %p522
      %p1125 = pneg %p519
      %p1126 = pneg %p543
      %p1127 = pneg %p540
      %p1128 = pneg %p564
      %p1129 = pneg %p561
      %p1130 = pneg %p585
      %p1131 = pneg %p582
      %p1132 = pneg %p606
      %p1133 = pneg %p603
      %p1134 = pneg %p627
      %p1135 = pneg %p624
      %p1136 = pneg %p648
      %p1137 = pneg %p645
      %p1138 = pneg %p669
      %p1139 = pneg %p666
      %p1140 = pneg %p690
      %p1141 = pneg %p687
      %p1142 = pneg %p711
      %p1143 = pneg %p708
      %p1144 = pneg %p732
      %p1145 = pneg %p729
      %p1146 = pneg %p753
      %p1147 = pneg %p750
      %p1148 = pneg %p774
      %p1149 = pneg %p771
      %p1150 = pneg %p795
      %p1151 = pneg %p792
      %p1152 = pneg %p816
      %p1153 = pneg %p813
      %p1154 = pneg %p837
      %p1155 = pneg %p834
      %p1156 = pneg %p858
      %p1157 = pneg %p855
      %p1158 = pneg %p879
      %p1159 = pneg %p876
      %p1160 = pneg %p900
      %p1161 = pneg %p897
      %p1162 = pneg %p928
      %p1163 = pneg %p925
      %p1164 = scmp.lt.s32.totalorder %s92, 1
      %s1165 = scalar_select %p1164, %s92, 1
      %p1166 = scmp.lt.s32.totalorder %s93, 0
      %s1167 = scalar_select %p1166, %s93, 0
      %s1168 = smul.addr %s1167, 4
      %s1169 = smul.addr %s1165, 4
      %s1170 = sadd.s32 %s1168, %s1169
      %s1171 = smul.addr %s1170, 8
      %s1172 = scalar_lea.vmem %s77, %s1171
      %p1173 = scmp.lt.s32.totalorder %s92, 1
      %s1174 = scalar_select %p1173, %s92, 1
      %p1175 = scmp.lt.s32.totalorder %s93, 0
      %s1176 = scalar_select %p1175, %s93, 0
      %s1177 = smul.addr %s1176, 4
      %s1178 = smul.addr %s1174, 4
      %s1179 = sadd.s32 %s1177, %s1178
      %s1180 = smul.addr %s1179, 8
      %s1181 = scalar_lea.vmem %s1, %s1180
      %p1182 = scmp.lt.s32.totalorder %s92, 1
      %s1183 = scalar_select %p1182, %s92, 1
      %p1184 = scmp.lt.s32.totalorder %s93, 0
      %s1185 = scalar_select %p1184, %s93, 0
      %s1186 = smul.addr %s1185, 4
      %s1187 = smul.addr %s1183, 4
      %s1188 = sadd.s32 %s1186, %s1187
      %s1189 = smul.addr %s1188, 8
      %s1190 = scalar_lea.vmem %s77, %s1189
      %s1192 = smul.u32 %s93, 16
      %s1193 = ssub.s32 %s1192, 8
      %v1194 = vld [vmem:[%s1181] sm:$0xff]
      %v1195 = vld [vmem:[%s1181 + $0x8] sm:$0xff]
      %v1196 = vld [vmem:[%s1181 + $0x10] sm:$0xff]
      %v1197 = vld [vmem:[%s1181 + $0x18] sm:$0xff]
      %v1198 = vld [vmem:[%s3] sm:$0x1]
      %1200 = vset.pattern.permute.xlu0 0
      %1201 = vperm.xlu0 %1200, %v1194
      %v1202 = vpop.permute.xlu0 %1201
      %1205 = vset.pattern.permute.xlu0 0
      %1206 = vperm.xlu0 %1205, %v1195
      %v1207 = vpop.permute.xlu0 %1206
      %1210 = vset.pattern.permute.xlu0 0
      %1211 = vperm.xlu0 %1210, %v1196
      %v1212 = vpop.permute.xlu0 %1211
      %1215 = vset.pattern.permute.xlu0 0
      %1216 = vperm.xlu0 %1215, %v1197
      %v1217 = vpop.permute.xlu0 %1216
      %v1220 = vperm.slane %v1198, 0
      %v1222 = vmul.f32 %v1202, %v1220
      %v1223 = vmul.f32 %v1207, %v1220
      %v1224 = vmul.f32 %v1212, %v1220
      %v1225 = vmul.f32 %v1217, %v1220
      %v1226 = vld [vmem:[%s5] sm:$0x1]
      %v1228 = vperm.slane %v1226, 0
      %v1230 = vmul.f32 %v1222, %v1228
      %v1231 = vmul.f32 %v1223, %v1228
      %v1232 = vmul.f32 %v1224, %v1228
      %v1233 = vmul.f32 %v1225, %v1228
      %v1234 = vld [vmem:[%s7] sm:$0x1]
      %v1236 = vperm.slane %v1234, 0
      %v1238 = vadd.f32 %v1230, %v1236
      %v1239 = vadd.f32 %v1231, %v1236
      %v1240 = vadd.f32 %v1232, %v1236
      %v1241 = vadd.f32 %v1233, %v1236
      %v1242 = vmax.f32 %v1238, 0.0
      %v1243 = vmax.f32 %v1239, 0.0
      %v1244 = vmax.f32 %v1240, 0.0
      %v1245 = vmax.f32 %v1241, 0.0
      %v1246 = vlaneseq
      %v1247 = vshrl.u32 %v1246, 7
      %v1248 = vadd.s32 %v1247, 8
      %v1249 = vadd.s32 %v1247, 16
      %v1250 = vadd.s32 %v1247, 24
      %v1251 = vstv %s1193
      %v1252 = vadd.s32 %v1247, %v1251
      %v1253 = vadd.s32 %v1248, %v1251
      %v1254 = vadd.s32 %v1249, %v1251
      %v1255 = vadd.s32 %v1250, %v1251
      %vm1256 = vcmp.ge.s32.totalorder %v1252, 0
      %vm1257 = vcmp.ge.s32.totalorder %v1253, 0
      %vm1258 = vcmp.ge.s32.totalorder %v1254, 0
      %vm1259 = vcmp.ge.s32.totalorder %v1255, 0
      %vm1260 = vcmp.lt.s32.totalorder %v1252, 16
      %vm1261 = vcmp.lt.s32.totalorder %v1253, 16
      %vm1262 = vcmp.lt.s32.totalorder %v1254, 16
      %vm1263 = vcmp.lt.s32.totalorder %v1255, 16
      %vm1264 = vmand %vm1256, %vm1260
      %vm1265 = vmand %vm1257, %vm1261
      %vm1266 = vmand %vm1258, %vm1262
      %vm1267 = vmand %vm1259, %vm1263
      %v1268 = vsel %vm1264, 1, 0
      %v1269 = vsel %vm1265, 1, 0
      %v1270 = vsel %vm1266, 1, 0
      %v1271 = vsel %vm1267, 1, 0
      %vm1272 = vcmp.eq.s32.totalorder %v1268, 1
      %vm1273 = vcmp.eq.s32.totalorder %v1269, 1
      %vm1274 = vcmp.eq.s32.totalorder %v1270, 1
      %vm1275 = vcmp.eq.s32.totalorder %v1271, 1
      %v1276 = vsel %vm1272, %v1242, 0.0
      %v1277 = vsel %vm1273, %v1243, 0.0
      %v1278 = vsel %vm1274, %v1244, 0.0
      %v1279 = vsel %vm1275, %v1245, 0.0
      %v1280 = vpack.c.bf16 %v1276, %v1276
      %v1281 = vpack.c.bf16 %v1277, %v1277
      %v1282 = vpack.c.bf16 %v1278, %v1278
      %v1283 = vpack.c.bf16 %v1279, %v1279
      %v1288 = vunpack.c.l.b16 %v1280
      %v1289 = vunpack.c.l.b16 %v1281
      %v1290 = vunpack.c.l.b16 %v1282
      %v1291 = vunpack.c.l.b16 %v1283
      %v1292 = vpack.c.b16 %v1289, %v1288
      %v1293 = vpack.c.b16 %v1291, %v1290
      %vm1294 = vsmask.f32 7424
      %v1296 = vshrl.u32 %v1292, 16
      %v1298 = vshll.u32 %v1292, 16
      %v1300 = vrot.slane %v1298, 1
      %v1301 = vor.u32 %v1296, %v1300
      %v1303 = vshll.u32 %v1293, 16
      %v1305 = vrot.slane %v1303, 1
      %v1306 = vsel %vm1294, %v1301, %v1305
      %v1307 = vshrl.u32 %v1293, 16
      %v1309 = vor.u32 %v1307, %v1305
      %1310 = vrot.lane.b32.xlu0 %v1306, 64
      %v1311 = vpop.permute.xlu0 %1310
      %1312 = vrot.lane.b32.xlu0 %v1309, 64
      %v1313 = vpop.permute.xlu0 %1312
      %vm1314 = vcmask 1046528
      %v1315 = vrot.slane %v1292, 1
      %v1316 = vrot.slane %v1293, 1
      %v1317 = vsel %vm1314, %v1315, %v1316
      %vm1318 = vcmask 523264
      %v1320 = vsel %vm1318, %v1292, %v1311
      %v1323 = vsel %vm1318, %v1293, %v1313
      %v1325 = vld [vmem:[%s9] sm:$0xf]
      %v1326 = vld [vmem:[%s9 + $0x4] sm:$0xf]
      %v1327 = vld [vmem:[%s9 + $0x8] sm:$0xf]
      %v1328 = vld [vmem:[%s9 + $0xc] sm:$0xf]
      %v1329 = vld [vmem:[%s9 + $0x10] sm:$0xf]
      %v1330 = vld [vmem:[%s9 + $0x14] sm:$0xf]
      %v1331 = vld [vmem:[%s9 + $0x18] sm:$0xf]
      %v1332 = vld [vmem:[%s9 + $0x1c] sm:$0xf]
      %v1333 = vld [vmem:[%s9 + $0x20] sm:$0xf]
      %v1334 = vld [vmem:[%s9 + $0x24] sm:$0xf]
      %v1335 = vld [vmem:[%s9 + $0x28] sm:$0xf]
      %v1336 = vld [vmem:[%s9 + $0x2c] sm:$0xf]
      %v1337 = vld [vmem:[%s9 + $0x30] sm:$0xf]
      %v1338 = vld [vmem:[%s9 + $0x34] sm:$0xf]
      %v1339 = vld [vmem:[%s9 + $0x38] sm:$0xf]
      %v1340 = vld [vmem:[%s9 + $0x3c] sm:$0xf]
      %v1341 = vld [vmem:[%s9 + $0x40] sm:$0xf]
      %v1342 = vld [vmem:[%s9 + $0x44] sm:$0xf]
      %v1343 = vld [vmem:[%s9 + $0x48] sm:$0xf]
      %v1344 = vld [vmem:[%s9 + $0x4c] sm:$0xf]
      %v1345 = vld [vmem:[%s9 + $0x50] sm:$0xf]
      %v1346 = vld [vmem:[%s9 + $0x54] sm:$0xf]
      %v1347 = vld [vmem:[%s9 + $0x58] sm:$0xf]
      %v1348 = vld [vmem:[%s9 + $0x5c] sm:$0xf]
      %v1373 = vunpack.c.l.b16 %v1325
      %v1374 = vunpack.c.l.b16 %v1326
      %v1375 = vunpack.c.l.b16 %v1327
      %v1376 = vunpack.c.l.b16 %v1328
      %v1377 = vunpack.c.l.b16 %v1329
      %v1378 = vunpack.c.l.b16 %v1330
      %v1379 = vunpack.c.l.b16 %v1331
      %v1380 = vunpack.c.l.b16 %v1332
      %v1381 = vunpack.c.l.b16 %v1333
      %v1382 = vunpack.c.l.b16 %v1334
      %v1383 = vunpack.c.l.b16 %v1335
      %v1384 = vunpack.c.l.b16 %v1336
      %v1385 = vunpack.c.l.b16 %v1337
      %v1386 = vunpack.c.l.b16 %v1338
      %v1387 = vunpack.c.l.b16 %v1339
      %v1388 = vunpack.c.l.b16 %v1340
      %v1389 = vunpack.c.l.b16 %v1341
      %v1390 = vunpack.c.l.b16 %v1342
      %v1391 = vunpack.c.l.b16 %v1343
      %v1392 = vunpack.c.l.b16 %v1344
      %v1393 = vunpack.c.l.b16 %v1345
      %v1394 = vunpack.c.l.b16 %v1346
      %v1395 = vunpack.c.l.b16 %v1347
      %v1396 = vunpack.c.l.b16 %v1348
      %v1397 = vpack.c.b16 %v1374, %v1373
      %v1398 = vpack.c.b16 %v1376, %v1375
      %v1399 = vpack.c.b16 %v1378, %v1377
      %v1400 = vpack.c.b16 %v1380, %v1379
      %v1401 = vpack.c.b16 %v1382, %v1381
      %v1402 = vpack.c.b16 %v1384, %v1383
      %v1403 = vpack.c.b16 %v1386, %v1385
      %v1404 = vpack.c.b16 %v1388, %v1387
      %v1405 = vpack.c.b16 %v1390, %v1389
      %v1406 = vpack.c.b16 %v1392, %v1391
      %v1407 = vpack.c.b16 %v1394, %v1393
      %v1408 = vpack.c.b16 %v1396, %v1395
      %v1422 = vsel %vm1318, %v1317, 0
      %v1425 = vsel %vm1318, %v1316, 0
      %1427 = vmatpush.bf16.msra.mxu0 %v1404
      %1428 = vmatpush.bf16.msra.mxu0 %v1403
      %1429 = vmatpush.bf16.msra.mxu0 %v1402
      %1430 = vmatpush.bf16.msra.mxu0 %v1401
      %1431 = vmatpush.bf16.msra.mxu0 %v1400
      %1432 = vmatpush.bf16.msra.mxu0 %v1399
      %1433 = vmatpush.bf16.msra.mxu0 %v1398
      %1434 = vmatpush.bf16.msra.mxu0 %v1397
      %1435 = vmatmul.bf16.gmra.mxu0 %v1320
      %v1436 = vpop.f32.mrf.mxu0
      %v1437 = vadd.f32 0.0, %v1436
      %v1438 = vpop.f32.mrf.mxu0
      %v1439 = vadd.f32 0.0, %v1438
      %1440 = vmatmul.bf16.gmra.mxu0 %v1323
      %v1441 = vpop.f32.mrf.mxu0
      %v1442 = vadd.f32 0.0, %v1441
      %v1443 = vpop.f32.mrf.mxu0
      %v1444 = vadd.f32 0.0, %v1443
      %1445 = vdwg.mxu0
      %1446 = vmatpush.bf16.msra.mxu0 0
      %1447 = vmatpush.bf16.msra.mxu0 0
      %1448 = vmatpush.bf16.msra.mxu0 0
      %1449 = vmatpush.bf16.msra.mxu0 0
      %1450 = vmatpush.bf16.msra.mxu0 %v1408
      %1451 = vmatpush.bf16.msra.mxu0 %v1407
      %1452 = vmatpush.bf16.msra.mxu0 %v1406
      %1453 = vmatpush.bf16.msra.mxu0 %v1405
      %1454 = vmatmul.bf16.gmra.mxu0 %v1422
      %v1455 = vpop.f32.mrf.mxu0
      %v1456 = vadd.f32 %v1437, %v1455
      %v1457 = vpop.f32.mrf.mxu0
      %v1458 = vadd.f32 %v1439, %v1457
      %1459 = vmatmul.bf16.gmra.mxu0 %v1425
      %v1460 = vpop.f32.mrf.mxu0
      %v1461 = vadd.f32 %v1442, %v1460
      %v1462 = vpop.f32.mrf.mxu0
      %v1463 = vadd.f32 %v1444, %v1462
      %1464 = vdwg.mxu0
      %v1465 = vld [vmem:[%s11] sm:$0x1]
      %v1467 = vperm.slane %v1465, 0
      %v1469 = vmul.f32 %v1456, %v1467
      %v1470 = vmul.f32 %v1458, %v1467
      %v1471 = vmul.f32 %v1461, %v1467
      %v1472 = vmul.f32 %v1463, %v1467
      %v1473 = vld [vmem:[%s13] sm:$0x1]
      %v1475 = vperm.slane %v1473, 0
      %v1477 = vadd.f32 %v1469, %v1475
      %v1478 = vadd.f32 %v1470, %v1475
      %v1479 = vadd.f32 %v1471, %v1475
      %v1480 = vadd.f32 %v1472, %v1475
      %v1481 = vmax.f32 %v1477, 0.0
      %v1482 = vmax.f32 %v1478, 0.0
      %v1483 = vmax.f32 %v1479, 0.0
      %v1484 = vmax.f32 %v1480, 0.0
      %s1485 = sadd.s32 %s1192, 4294967289
      %v1486 = vstv %s1485
      %v1487 = vadd.s32 %v1247, %v1486
      %v1488 = vadd.s32 %v1248, %v1486
      %v1489 = vadd.s32 %v1249, %v1486
      %v1490 = vadd.s32 %v1250, %v1486
      %vm1491 = vcmp.ge.s32.totalorder %v1487, 0
      %vm1492 = vcmp.ge.s32.totalorder %v1488, 0
      %vm1493 = vcmp.ge.s32.totalorder %v1489, 0
      %vm1494 = vcmp.ge.s32.totalorder %v1490, 0
      %vm1495 = vcmp.lt.s32.totalorder %v1487, 16
      %vm1496 = vcmp.lt.s32.totalorder %v1488, 16
      %vm1497 = vcmp.lt.s32.totalorder %v1489, 16
      %vm1498 = vcmp.lt.s32.totalorder %v1490, 16
      %vm1499 = vmand %vm1491, %vm1495
      %vm1500 = vmand %vm1492, %vm1496
      %vm1501 = vmand %vm1493, %vm1497
      %vm1502 = vmand %vm1494, %vm1498
      %v1503 = vsel %vm1499, 1, 0
      %v1504 = vsel %vm1500, 1, 0
      %v1505 = vsel %vm1501, 1, 0
      %v1506 = vsel %vm1502, 1, 0
      %vm1507 = vcmp.eq.s32.totalorder %v1503, 1
      %vm1508 = vcmp.eq.s32.totalorder %v1504, 1
      %vm1509 = vcmp.eq.s32.totalorder %v1505, 1
      %vm1510 = vcmp.eq.s32.totalorder %v1506, 1
      %v1511 = vsel %vm1507, %v1481, 0.0
      %v1512 = vsel %vm1508, %v1482, 0.0
      %v1513 = vsel %vm1509, %v1483, 0.0
      %v1514 = vsel %vm1510, %v1484, 0.0
      %v1515 = vpack.c.bf16 %v1511, %v1511
      %v1516 = vpack.c.bf16 %v1512, %v1512
      %v1517 = vpack.c.bf16 %v1513, %v1513
      %v1518 = vpack.c.bf16 %v1514, %v1514
      %v1523 = vunpack.c.l.b16 %v1515
      %v1524 = vunpack.c.l.b16 %v1516
      %v1525 = vunpack.c.l.b16 %v1517
      %v1526 = vunpack.c.l.b16 %v1518
      %v1527 = vpack.c.b16 %v1524, %v1523
      %v1528 = vpack.c.b16 %v1526, %v1525
      %v1530 = vshrl.u32 %v1527, 16
      %v1532 = vshll.u32 %v1527, 16
      %v1534 = vrot.slane %v1532, 1
      %v1535 = vor.u32 %v1530, %v1534
      %v1537 = vshll.u32 %v1528, 16
      %v1539 = vrot.slane %v1537, 1
      %v1540 = vsel %vm1294, %v1535, %v1539
      %v1541 = vshrl.u32 %v1528, 16
      %v1543 = vor.u32 %v1541, %v1539
      %1544 = vrot.lane.b32.xlu0 %v1540, 64
      %v1545 = vpop.permute.xlu0 %1544
      %1546 = vrot.lane.b32.xlu0 %v1543, 64
      %v1547 = vpop.permute.xlu0 %1546
      %v1548 = vrot.slane %v1527, 1
      %v1549 = vrot.slane %v1528, 1
      %v1550 = vsel %vm1314, %v1548, %v1549
      %v1552 = vsel %vm1318, %v1527, %v1545
      %v1555 = vsel %vm1318, %v1528, %v1547
      %v1557 = vld [vmem:[%s15] sm:$0xf]
      %v1558 = vld [vmem:[%s15 + $0x4] sm:$0xf]
      %v1559 = vld [vmem:[%s15 + $0x8] sm:$0xf]
      %v1560 = vld [vmem:[%s15 + $0xc] sm:$0xf]
      %v1561 = vld [vmem:[%s15 + $0x10] sm:$0xf]
      %v1562 = vld [vmem:[%s15 + $0x14] sm:$0xf]
      %v1563 = vld [vmem:[%s15 + $0x18] sm:$0xf]
      %v1564 = vld [vmem:[%s15 + $0x1c] sm:$0xf]
      %v1565 = vld [vmem:[%s15 + $0x20] sm:$0xf]
      %v1566 = vld [vmem:[%s15 + $0x24] sm:$0xf]
      %v1567 = vld [vmem:[%s15 + $0x28] sm:$0xf]
      %v1568 = vld [vmem:[%s15 + $0x2c] sm:$0xf]
      %v1569 = vld [vmem:[%s15 + $0x30] sm:$0xf]
      %v1570 = vld [vmem:[%s15 + $0x34] sm:$0xf]
      %v1571 = vld [vmem:[%s15 + $0x38] sm:$0xf]
      %v1572 = vld [vmem:[%s15 + $0x3c] sm:$0xf]
      %v1573 = vld [vmem:[%s15 + $0x40] sm:$0xf]
      %v1574 = vld [vmem:[%s15 + $0x44] sm:$0xf]
      %v1575 = vld [vmem:[%s15 + $0x48] sm:$0xf]
      %v1576 = vld [vmem:[%s15 + $0x4c] sm:$0xf]
      %v1577 = vld [vmem:[%s15 + $0x50] sm:$0xf]
      %v1578 = vld [vmem:[%s15 + $0x54] sm:$0xf]
      %v1579 = vld [vmem:[%s15 + $0x58] sm:$0xf]
      %v1580 = vld [vmem:[%s15 + $0x5c] sm:$0xf]
      %v1605 = vunpack.c.l.b16 %v1557
      %v1606 = vunpack.c.l.b16 %v1558
      %v1607 = vunpack.c.l.b16 %v1559
      %v1608 = vunpack.c.l.b16 %v1560
      %v1609 = vunpack.c.l.b16 %v1561
      %v1610 = vunpack.c.l.b16 %v1562
      %v1611 = vunpack.c.l.b16 %v1563
      %v1612 = vunpack.c.l.b16 %v1564
      %v1613 = vunpack.c.l.b16 %v1565
      %v1614 = vunpack.c.l.b16 %v1566
      %v1615 = vunpack.c.l.b16 %v1567
      %v1616 = vunpack.c.l.b16 %v1568
      %v1617 = vunpack.c.l.b16 %v1569
      %v1618 = vunpack.c.l.b16 %v1570
      %v1619 = vunpack.c.l.b16 %v1571
      %v1620 = vunpack.c.l.b16 %v1572
      %v1621 = vunpack.c.l.b16 %v1573
      %v1622 = vunpack.c.l.b16 %v1574
      %v1623 = vunpack.c.l.b16 %v1575
      %v1624 = vunpack.c.l.b16 %v1576
      %v1625 = vunpack.c.l.b16 %v1577
      %v1626 = vunpack.c.l.b16 %v1578
      %v1627 = vunpack.c.l.b16 %v1579
      %v1628 = vunpack.c.l.b16 %v1580
      %v1629 = vpack.c.b16 %v1606, %v1605
      %v1630 = vpack.c.b16 %v1608, %v1607
      %v1631 = vpack.c.b16 %v1610, %v1609
      %v1632 = vpack.c.b16 %v1612, %v1611
      %v1633 = vpack.c.b16 %v1614, %v1613
      %v1634 = vpack.c.b16 %v1616, %v1615
      %v1635 = vpack.c.b16 %v1618, %v1617
      %v1636 = vpack.c.b16 %v1620, %v1619
      %v1637 = vpack.c.b16 %v1622, %v1621
      %v1638 = vpack.c.b16 %v1624, %v1623
      %v1639 = vpack.c.b16 %v1626, %v1625
      %v1640 = vpack.c.b16 %v1628, %v1627
      %v1654 = vsel %vm1318, %v1550, 0
      %v1657 = vsel %vm1318, %v1549, 0
      %1659 = vmatpush.bf16.msra.mxu0 %v1636
      %1660 = vmatpush.bf16.msra.mxu0 %v1635
      %1661 = vmatpush.bf16.msra.mxu0 %v1634
      %1662 = vmatpush.bf16.msra.mxu0 %v1633
      %1663 = vmatpush.bf16.msra.mxu0 %v1632
      %1664 = vmatpush.bf16.msra.mxu0 %v1631
      %1665 = vmatpush.bf16.msra.mxu0 %v1630
      %1666 = vmatpush.bf16.msra.mxu0 %v1629
      %1667 = vmatmul.bf16.gmra.mxu0 %v1552
      %v1668 = vpop.f32.mrf.mxu0
      %v1669 = vadd.f32 0.0, %v1668
      %v1670 = vpop.f32.mrf.mxu0
      %v1671 = vadd.f32 0.0, %v1670
      %1672 = vmatmul.bf16.gmra.mxu0 %v1555
      %v1673 = vpop.f32.mrf.mxu0
      %v1674 = vadd.f32 0.0, %v1673
      %v1675 = vpop.f32.mrf.mxu0
      %v1676 = vadd.f32 0.0, %v1675
      %1677 = vdwg.mxu0
      %1678 = vmatpush.bf16.msra.mxu0 0
      %1679 = vmatpush.bf16.msra.mxu0 0
      %1680 = vmatpush.bf16.msra.mxu0 0
      %1681 = vmatpush.bf16.msra.mxu0 0
      %1682 = vmatpush.bf16.msra.mxu0 %v1640
      %1683 = vmatpush.bf16.msra.mxu0 %v1639
      %1684 = vmatpush.bf16.msra.mxu0 %v1638
      %1685 = vmatpush.bf16.msra.mxu0 %v1637
      %1686 = vmatmul.bf16.gmra.mxu0 %v1654
      %v1687 = vpop.f32.mrf.mxu0
      %v1688 = vadd.f32 %v1669, %v1687
      %v1689 = vpop.f32.mrf.mxu0
      %v1690 = vadd.f32 %v1671, %v1689
      %1691 = vmatmul.bf16.gmra.mxu0 %v1657
      %v1692 = vpop.f32.mrf.mxu0
      %v1693 = vadd.f32 %v1674, %v1692
      %v1694 = vpop.f32.mrf.mxu0
      %v1695 = vadd.f32 %v1676, %v1694
      %1696 = vdwg.mxu0
      %v1697 = vld [vmem:[%s17] sm:$0x1]
      %v1699 = vperm.slane %v1697, 0
      %v1701 = vmul.f32 %v1688, %v1699
      %v1702 = vmul.f32 %v1690, %v1699
      %v1703 = vmul.f32 %v1693, %v1699
      %v1704 = vmul.f32 %v1695, %v1699
      %v1705 = vld [vmem:[%s19] sm:$0x1]
      %v1707 = vperm.slane %v1705, 0
      %v1709 = vadd.f32 %v1701, %v1707
      %v1710 = vadd.f32 %v1702, %v1707
      %v1711 = vadd.f32 %v1703, %v1707
      %v1712 = vadd.f32 %v1704, %v1707
      %v1713 = vunpack.c.l.bf16 %v1280
      %v1714 = vunpack.c.l.bf16 %v1281
      %v1715 = vunpack.c.l.bf16 %v1282
      %v1716 = vunpack.c.l.bf16 %v1283
      %vm1721 = vcmask 1045504
      %v1722 = vrot.slane %v1713, 2
      %v1723 = vrot.slane %v1714, 2
      %v1724 = vsel %vm1721, %v1722, %v1723
      %v1725 = vrot.slane %v1715, 2
      %v1726 = vsel %vm1721, %v1723, %v1725
      %v1727 = vrot.slane %v1716, 2
      %v1728 = vsel %vm1721, %v1725, %v1727
      %v1733 = vadd.f32 %v1709, %v1724
      %v1734 = vadd.f32 %v1710, %v1726
      %v1735 = vadd.f32 %v1711, %v1728
      %v1736 = vadd.f32 %v1712, %v1727
      %v1737 = vmax.f32 %v1733, 0.0
      %v1738 = vmax.f32 %v1734, 0.0
      %v1739 = vmax.f32 %v1735, 0.0
      %v1740 = vmax.f32 %v1736, 0.0
      %s1741 = sadd.s32 %s1192, 4294967290
      %v1742 = vstv %s1741
      %v1743 = vadd.s32 %v1247, %v1742
      %v1744 = vadd.s32 %v1248, %v1742
      %v1745 = vadd.s32 %v1249, %v1742
      %v1746 = vadd.s32 %v1250, %v1742
      %vm1747 = vcmp.ge.s32.totalorder %v1743, 0
      %vm1748 = vcmp.ge.s32.totalorder %v1744, 0
      %vm1749 = vcmp.ge.s32.totalorder %v1745, 0
      %vm1750 = vcmp.ge.s32.totalorder %v1746, 0
      %vm1751 = vcmp.lt.s32.totalorder %v1743, 16
      %vm1752 = vcmp.lt.s32.totalorder %v1744, 16
      %vm1753 = vcmp.lt.s32.totalorder %v1745, 16
      %vm1754 = vcmp.lt.s32.totalorder %v1746, 16
      %vm1755 = vmand %vm1747, %vm1751
      %vm1756 = vmand %vm1748, %vm1752
      %vm1757 = vmand %vm1749, %vm1753
      %vm1758 = vmand %vm1750, %vm1754
      %v1759 = vsel %vm1755, 1, 0
      %v1760 = vsel %vm1756, 1, 0
      %v1761 = vsel %vm1757, 1, 0
      %v1762 = vsel %vm1758, 1, 0
      %vm1763 = vcmp.eq.s32.totalorder %v1759, 1
      %vm1764 = vcmp.eq.s32.totalorder %v1760, 1
      %vm1765 = vcmp.eq.s32.totalorder %v1761, 1
      %vm1766 = vcmp.eq.s32.totalorder %v1762, 1
      %v1767 = vsel %vm1763, %v1737, 0.0
      %v1768 = vsel %vm1764, %v1738, 0.0
      %v1769 = vsel %vm1765, %v1739, 0.0
      %v1770 = vsel %vm1766, %v1740, 0.0
      %v1771 = vpack.c.bf16 %v1767, %v1767
      %v1772 = vpack.c.bf16 %v1768, %v1768
      %v1773 = vpack.c.bf16 %v1769, %v1769
      %v1774 = vpack.c.bf16 %v1770, %v1770
      %v1779 = vunpack.c.l.b16 %v1771
      %v1780 = vunpack.c.l.b16 %v1772
      %v1781 = vunpack.c.l.b16 %v1773
      %v1782 = vunpack.c.l.b16 %v1774
      %v1783 = vpack.c.b16 %v1780, %v1779
      %v1784 = vpack.c.b16 %v1782, %v1781
      %v1786 = vshrl.u32 %v1783, 16
      %v1788 = vshll.u32 %v1783, 16
      %v1790 = vrot.slane %v1788, 1
      %v1791 = vor.u32 %v1786, %v1790
      %v1793 = vshll.u32 %v1784, 16
      %v1795 = vrot.slane %v1793, 1
      %v1796 = vsel %vm1294, %v1791, %v1795
      %v1797 = vshrl.u32 %v1784, 16
      %v1799 = vor.u32 %v1797, %v1795
      %1800 = vrot.lane.b32.xlu0 %v1796, 64
      %v1801 = vpop.permute.xlu0 %1800
      %1802 = vrot.lane.b32.xlu0 %v1799, 64
      %v1803 = vpop.permute.xlu0 %1802
      %v1804 = vrot.slane %v1783, 1
      %v1805 = vrot.slane %v1784, 1
      %v1806 = vsel %vm1314, %v1804, %v1805
      %v1808 = vsel %vm1318, %v1783, %v1801
      %v1811 = vsel %vm1318, %v1784, %v1803
      %v1813 = vld [vmem:[%s27] sm:$0xf]
      %v1814 = vld [vmem:[%s27 + $0x4] sm:$0xf]
      %v1815 = vld [vmem:[%s27 + $0x8] sm:$0xf]
      %v1816 = vld [vmem:[%s27 + $0xc] sm:$0xf]
      %v1817 = vld [vmem:[%s27 + $0x10] sm:$0xf]
      %v1818 = vld [vmem:[%s27 + $0x14] sm:$0xf]
      %v1819 = vld [vmem:[%s27 + $0x18] sm:$0xf]
      %v1820 = vld [vmem:[%s27 + $0x1c] sm:$0xf]
      %v1821 = vld [vmem:[%s27 + $0x20] sm:$0xf]
      %v1822 = vld [vmem:[%s27 + $0x24] sm:$0xf]
      %v1823 = vld [vmem:[%s27 + $0x28] sm:$0xf]
      %v1824 = vld [vmem:[%s27 + $0x2c] sm:$0xf]
      %v1825 = vld [vmem:[%s27 + $0x30] sm:$0xf]
      %v1826 = vld [vmem:[%s27 + $0x34] sm:$0xf]
      %v1827 = vld [vmem:[%s27 + $0x38] sm:$0xf]
      %v1828 = vld [vmem:[%s27 + $0x3c] sm:$0xf]
      %v1829 = vld [vmem:[%s27 + $0x40] sm:$0xf]
      %v1830 = vld [vmem:[%s27 + $0x44] sm:$0xf]
      %v1831 = vld [vmem:[%s27 + $0x48] sm:$0xf]
      %v1832 = vld [vmem:[%s27 + $0x4c] sm:$0xf]
      %v1833 = vld [vmem:[%s27 + $0x50] sm:$0xf]
      %v1834 = vld [vmem:[%s27 + $0x54] sm:$0xf]
      %v1835 = vld [vmem:[%s27 + $0x58] sm:$0xf]
      %v1836 = vld [vmem:[%s27 + $0x5c] sm:$0xf]
      %v1861 = vunpack.c.l.b16 %v1813
      %v1862 = vunpack.c.l.b16 %v1814
      %v1863 = vunpack.c.l.b16 %v1815
      %v1864 = vunpack.c.l.b16 %v1816
      %v1865 = vunpack.c.l.b16 %v1817
      %v1866 = vunpack.c.l.b16 %v1818
      %v1867 = vunpack.c.l.b16 %v1819
      %v1868 = vunpack.c.l.b16 %v1820
      %v1869 = vunpack.c.l.b16 %v1821
      %v1870 = vunpack.c.l.b16 %v1822
      %v1871 = vunpack.c.l.b16 %v1823
      %v1872 = vunpack.c.l.b16 %v1824
      %v1873 = vunpack.c.l.b16 %v1825
      %v1874 = vunpack.c.l.b16 %v1826
      %v1875 = vunpack.c.l.b16 %v1827
      %v1876 = vunpack.c.l.b16 %v1828
      %v1877 = vunpack.c.l.b16 %v1829
      %v1878 = vunpack.c.l.b16 %v1830
      %v1879 = vunpack.c.l.b16 %v1831
      %v1880 = vunpack.c.l.b16 %v1832
      %v1881 = vunpack.c.l.b16 %v1833
      %v1882 = vunpack.c.l.b16 %v1834
      %v1883 = vunpack.c.l.b16 %v1835
      %v1884 = vunpack.c.l.b16 %v1836
      %v1885 = vpack.c.b16 %v1862, %v1861
      %v1886 = vpack.c.b16 %v1864, %v1863
      %v1887 = vpack.c.b16 %v1866, %v1865
      %v1888 = vpack.c.b16 %v1868, %v1867
      %v1889 = vpack.c.b16 %v1870, %v1869
      %v1890 = vpack.c.b16 %v1872, %v1871
      %v1891 = vpack.c.b16 %v1874, %v1873
      %v1892 = vpack.c.b16 %v1876, %v1875
      %v1893 = vpack.c.b16 %v1878, %v1877
      %v1894 = vpack.c.b16 %v1880, %v1879
      %v1895 = vpack.c.b16 %v1882, %v1881
      %v1896 = vpack.c.b16 %v1884, %v1883
      %v1910 = vsel %vm1318, %v1806, 0
      %v1913 = vsel %vm1318, %v1805, 0
      %1915 = vmatpush.bf16.msra.mxu0 %v1892
      %1916 = vmatpush.bf16.msra.mxu0 %v1891
      %1917 = vmatpush.bf16.msra.mxu0 %v1890
      %1918 = vmatpush.bf16.msra.mxu0 %v1889
      %1919 = vmatpush.bf16.msra.mxu0 %v1888
      %1920 = vmatpush.bf16.msra.mxu0 %v1887
      %1921 = vmatpush.bf16.msra.mxu0 %v1886
      %1922 = vmatpush.bf16.msra.mxu0 %v1885
      %1923 = vmatmul.bf16.gmra.mxu0 %v1808
      %v1924 = vpop.f32.mrf.mxu0
      %v1925 = vadd.f32 0.0, %v1924
      %v1926 = vpop.f32.mrf.mxu0
      %v1927 = vadd.f32 0.0, %v1926
      %1928 = vmatmul.bf16.gmra.mxu0 %v1811
      %v1929 = vpop.f32.mrf.mxu0
      %v1930 = vadd.f32 0.0, %v1929
      %v1931 = vpop.f32.mrf.mxu0
      %v1932 = vadd.f32 0.0, %v1931
      %1933 = vdwg.mxu0
      %1934 = vmatpush.bf16.msra.mxu0 0
      %1935 = vmatpush.bf16.msra.mxu0 0
      %1936 = vmatpush.bf16.msra.mxu0 0
      %1937 = vmatpush.bf16.msra.mxu0 0
      %1938 = vmatpush.bf16.msra.mxu0 %v1896
      %1939 = vmatpush.bf16.msra.mxu0 %v1895
      %1940 = vmatpush.bf16.msra.mxu0 %v1894
      %1941 = vmatpush.bf16.msra.mxu0 %v1893
      %1942 = vmatmul.bf16.gmra.mxu0 %v1910
      %v1943 = vpop.f32.mrf.mxu0
      %v1944 = vadd.f32 %v1925, %v1943
      %v1945 = vpop.f32.mrf.mxu0
      %v1946 = vadd.f32 %v1927, %v1945
      %1947 = vmatmul.bf16.gmra.mxu0 %v1913
      %v1948 = vpop.f32.mrf.mxu0
      %v1949 = vadd.f32 %v1930, %v1948
      %v1950 = vpop.f32.mrf.mxu0
      %v1951 = vadd.f32 %v1932, %v1950
      %1952 = vdwg.mxu0
      %v1953 = vld [vmem:[%s29] sm:$0x1]
      %v1955 = vperm.slane %v1953, 0
      %v1957 = vmul.f32 %v1944, %v1955
      %v1958 = vmul.f32 %v1946, %v1955
      %v1959 = vmul.f32 %v1949, %v1955
      %v1960 = vmul.f32 %v1951, %v1955
      %v1961 = vld [vmem:[%s31] sm:$0x1]
      %v1963 = vperm.slane %v1961, 0
      %v1965 = vadd.f32 %v1957, %v1963
      %v1966 = vadd.f32 %v1958, %v1963
      %v1967 = vadd.f32 %v1959, %v1963
      %v1968 = vadd.f32 %v1960, %v1963
      %v1969 = vmax.f32 %v1965, 0.0
      %v1970 = vmax.f32 %v1966, 0.0
      %v1971 = vmax.f32 %v1967, 0.0
      %v1972 = vmax.f32 %v1968, 0.0
      %s1973 = sadd.s32 %s1192, 4294967291
      %v1974 = vstv %s1973
      %v1975 = vadd.s32 %v1247, %v1974
      %v1976 = vadd.s32 %v1248, %v1974
      %v1977 = vadd.s32 %v1249, %v1974
      %v1978 = vadd.s32 %v1250, %v1974
      %vm1979 = vcmp.ge.s32.totalorder %v1975, 0
      %vm1980 = vcmp.ge.s32.totalorder %v1976, 0
      %vm1981 = vcmp.ge.s32.totalorder %v1977, 0
      %vm1982 = vcmp.ge.s32.totalorder %v1978, 0
      %vm1983 = vcmp.lt.s32.totalorder %v1975, 16
      %vm1984 = vcmp.lt.s32.totalorder %v1976, 16
      %vm1985 = vcmp.lt.s32.totalorder %v1977, 16
      %vm1986 = vcmp.lt.s32.totalorder %v1978, 16
      %vm1987 = vmand %vm1979, %vm1983
      %vm1988 = vmand %vm1980, %vm1984
      %vm1989 = vmand %vm1981, %vm1985
      %vm1990 = vmand %vm1982, %vm1986
      %v1991 = vsel %vm1987, 1, 0
      %v1992 = vsel %vm1988, 1, 0
      %v1993 = vsel %vm1989, 1, 0
      %v1994 = vsel %vm1990, 1, 0
      %vm1995 = vcmp.eq.s32.totalorder %v1991, 1
      %vm1996 = vcmp.eq.s32.totalorder %v1992, 1
      %vm1997 = vcmp.eq.s32.totalorder %v1993, 1
      %vm1998 = vcmp.eq.s32.totalorder %v1994, 1
      %v1999 = vsel %vm1995, %v1969, 0.0
      %v2000 = vsel %vm1996, %v1970, 0.0
      %v2001 = vsel %vm1997, %v1971, 0.0
      %v2002 = vsel %vm1998, %v1972, 0.0
      %v2003 = vpack.c.bf16 %v1999, %v1999
      %v2004 = vpack.c.bf16 %v2000, %v2000
      %v2005 = vpack.c.bf16 %v2001, %v2001
      %v2006 = vpack.c.bf16 %v2002, %v2002
      %v2010 = vunpack.c.l.b16 %v2003
      %v2011 = vunpack.c.l.b16 %v2004
      %v2012 = vunpack.c.l.b16 %v2005
      %v2013 = vpack.c.b16 %v2011, %v2010
      %v2014 = vpack.c.b16 %v2012, %v2012
      %v2018 = vunpack.c.l.b16 %v2006
      %v2019 = vpack.c.b16 %v2018, %v2012
      %v2021 = vshrl.u32 %v2013, 16
      %v2023 = vshll.u32 %v2013, 16
      %v2025 = vrot.slane %v2023, 1
      %v2026 = vor.u32 %v2021, %v2025
      %v2028 = vshll.u32 %v2019, 16
      %v2030 = vrot.slane %v2028, 1
      %v2031 = vsel %vm1294, %v2026, %v2030
      %v2032 = vshrl.u32 %v2019, 16
      %v2034 = vor.u32 %v2032, %v2030
      %v2037 = vrot.slane %v2013, 1
      %v2038 = vrot.slane %v2019, 1
      %v2039 = vsel %vm1314, %v2037, %v2038
      %v2042 = vld [vmem:[%s33] sm:$0xf]
      %v2043 = vld [vmem:[%s33 + $0x4] sm:$0xf]
      %v2044 = vld [vmem:[%s33 + $0x8] sm:$0xf]
      %v2045 = vld [vmem:[%s33 + $0xc] sm:$0xf]
      %v2046 = vld [vmem:[%s33 + $0x10] sm:$0xf]
      %v2047 = vld [vmem:[%s33 + $0x14] sm:$0xf]
      %v2048 = vld [vmem:[%s33 + $0x18] sm:$0xf]
      %v2049 = vld [vmem:[%s33 + $0x1c] sm:$0xf]
      %v2050 = vld [vmem:[%s33 + $0x20] sm:$0xf]
      %v2051 = vld [vmem:[%s33 + $0x24] sm:$0xf]
      %v2052 = vld [vmem:[%s33 + $0x28] sm:$0xf]
      %v2053 = vld [vmem:[%s33 + $0x2c] sm:$0xf]
      %v2054 = vld [vmem:[%s33 + $0x30] sm:$0xf]
      %v2055 = vld [vmem:[%s33 + $0x34] sm:$0xf]
      %v2056 = vld [vmem:[%s33 + $0x38] sm:$0xf]
      %v2057 = vld [vmem:[%s33 + $0x3c] sm:$0xf]
      %v2058 = vld [vmem:[%s33 + $0x40] sm:$0xf]
      %v2059 = vld [vmem:[%s33 + $0x44] sm:$0xf]
      %v2060 = vld [vmem:[%s33 + $0x48] sm:$0xf]
      %v2061 = vld [vmem:[%s33 + $0x4c] sm:$0xf]
      %v2062 = vld [vmem:[%s33 + $0x50] sm:$0xf]
      %v2063 = vld [vmem:[%s33 + $0x54] sm:$0xf]
      %v2064 = vld [vmem:[%s33 + $0x58] sm:$0xf]
      %v2065 = vld [vmem:[%s33 + $0x5c] sm:$0xf]
      %v2066 = vld [vmem:[%s33 + $0x60] sm:$0xf]
      %v2067 = vld [vmem:[%s33 + $0x64] sm:$0xf]
      %v2068 = vld [vmem:[%s33 + $0x68] sm:$0xf]
      %v2069 = vld [vmem:[%s33 + $0x6c] sm:$0xf]
      %v2070 = vld [vmem:[%s33 + $0x70] sm:$0xf]
      %v2071 = vld [vmem:[%s33 + $0x74] sm:$0xf]
      %v2072 = vld [vmem:[%s33 + $0x78] sm:$0xf]
      %v2073 = vld [vmem:[%s33 + $0x7c] sm:$0xf]
      %v2074 = vld [vmem:[%s33 + $0x80] sm:$0xf]
      %v2075 = vld [vmem:[%s33 + $0x84] sm:$0xf]
      %v2076 = vld [vmem:[%s33 + $0x88] sm:$0xf]
      %v2077 = vld [vmem:[%s33 + $0x8c] sm:$0xf]
      %v2078 = vld [vmem:[%s33 + $0x90] sm:$0xf]
      %v2079 = vld [vmem:[%s33 + $0x94] sm:$0xf]
      %v2080 = vld [vmem:[%s33 + $0x98] sm:$0xf]
      %v2081 = vld [vmem:[%s33 + $0x9c] sm:$0xf]
      %v2082 = vld [vmem:[%s33 + $0xa0] sm:$0xf]
      %v2083 = vld [vmem:[%s33 + $0xa4] sm:$0xf]
      %v2084 = vld [vmem:[%s33 + $0xa8] sm:$0xf]
      %v2085 = vld [vmem:[%s33 + $0xac] sm:$0xf]
      %v2086 = vld [vmem:[%s33 + $0xb0] sm:$0xf]
      %v2087 = vld [vmem:[%s33 + $0xb4] sm:$0xf]
      %v2088 = vld [vmem:[%s33 + $0xb8] sm:$0xf]
      %v2089 = vld [vmem:[%s33 + $0xbc] sm:$0xf]
      %v2138 = vunpack.c.l.b16 %v2042
      %v2139 = vunpack.c.l.b16 %v2043
      %v2140 = vunpack.c.l.b16 %v2044
      %v2141 = vunpack.c.l.b16 %v2045
      %v2142 = vunpack.c.l.b16 %v2046
      %v2143 = vunpack.c.l.b16 %v2047
      %v2144 = vunpack.c.l.b16 %v2048
      %v2145 = vunpack.c.l.b16 %v2049
      %v2146 = vunpack.c.l.b16 %v2050
      %v2147 = vunpack.c.l.b16 %v2051
      %v2148 = vunpack.c.l.b16 %v2052
      %v2149 = vunpack.c.l.b16 %v2053
      %v2150 = vunpack.c.l.b16 %v2054
      %v2151 = vunpack.c.l.b16 %v2055
      %v2152 = vunpack.c.l.b16 %v2056
      %v2153 = vunpack.c.l.b16 %v2057
      %v2154 = vunpack.c.l.b16 %v2058
      %v2155 = vunpack.c.l.b16 %v2059
      %v2156 = vunpack.c.l.b16 %v2060
      %v2157 = vunpack.c.l.b16 %v2061
      %v2158 = vunpack.c.l.b16 %v2062
      %v2159 = vunpack.c.l.b16 %v2063
      %v2160 = vunpack.c.l.b16 %v2064
      %v2161 = vunpack.c.l.b16 %v2065
      %v2162 = vunpack.c.l.b16 %v2066
      %v2163 = vunpack.c.l.b16 %v2067
      %v2164 = vunpack.c.l.b16 %v2068
      %v2165 = vunpack.c.l.b16 %v2069
      %v2166 = vunpack.c.l.b16 %v2070
      %v2167 = vunpack.c.l.b16 %v2071
      %v2168 = vunpack.c.l.b16 %v2072
      %v2169 = vunpack.c.l.b16 %v2073
      %v2170 = vunpack.c.l.b16 %v2074
      %v2171 = vunpack.c.l.b16 %v2075
      %v2172 = vunpack.c.l.b16 %v2076
      %v2173 = vunpack.c.l.b16 %v2077
      %v2174 = vunpack.c.l.b16 %v2078
      %v2175 = vunpack.c.l.b16 %v2079
      %v2176 = vunpack.c.l.b16 %v2080
      %v2177 = vunpack.c.l.b16 %v2081
      %v2178 = vunpack.c.l.b16 %v2082
      %v2179 = vunpack.c.l.b16 %v2083
      %v2180 = vunpack.c.l.b16 %v2084
      %v2181 = vunpack.c.l.b16 %v2085
      %v2182 = vunpack.c.l.b16 %v2086
      %v2183 = vunpack.c.l.b16 %v2087
      %v2184 = vunpack.c.l.b16 %v2088
      %v2185 = vunpack.c.l.b16 %v2089
      %v2186 = vpack.c.b16 %v2139, %v2138
      %v2187 = vpack.c.b16 %v2141, %v2140
      %v2188 = vpack.c.b16 %v2143, %v2142
      %v2189 = vpack.c.b16 %v2145, %v2144
      %v2190 = vpack.c.b16 %v2147, %v2146
      %v2191 = vpack.c.b16 %v2149, %v2148
      %v2192 = vpack.c.b16 %v2151, %v2150
      %v2193 = vpack.c.b16 %v2153, %v2152
      %v2194 = vpack.c.b16 %v2155, %v2154
      %v2195 = vpack.c.b16 %v2157, %v2156
      %v2196 = vpack.c.b16 %v2159, %v2158
      %v2197 = vpack.c.b16 %v2161, %v2160
      %v2198 = vpack.c.b16 %v2163, %v2162
      %v2199 = vpack.c.b16 %v2165, %v2164
      %v2200 = vpack.c.b16 %v2167, %v2166
      %v2201 = vpack.c.b16 %v2169, %v2168
      %v2202 = vpack.c.b16 %v2171, %v2170
      %v2203 = vpack.c.b16 %v2173, %v2172
      %v2204 = vpack.c.b16 %v2175, %v2174
      %v2205 = vpack.c.b16 %v2177, %v2176
      %v2206 = vpack.c.b16 %v2179, %v2178
      %v2207 = vpack.c.b16 %v2181, %v2180
      %v2208 = vpack.c.b16 %v2183, %v2182
      %v2209 = vpack.c.b16 %v2185, %v2184
      %2234 = vmatpush.bf16.msra.mxu0 %v2193
      %2235 = vmatpush.bf16.msra.mxu0 %v2192
      %2236 = vmatpush.bf16.msra.mxu0 %v2191
      %2237 = vmatpush.bf16.msra.mxu0 %v2190
      %2238 = vmatpush.bf16.msra.mxu0 %v2189
      %2239 = vmatpush.bf16.msra.mxu0 %v2188
      %2240 = vmatpush.bf16.msra.mxu0 %v2187
      %2241 = vmatpush.bf16.msra.mxu0 %v2186
      %2242 = vmatmul.bf16.gmra.mxu0 %v2013
      %v2243 = vpop.f32.mrf.mxu0
      %v2244 = vadd.f32 0.0, %v2243
      %v2245 = vpop.f32.mrf.mxu0
      %v2246 = vadd.f32 0.0, %v2245
      %2247 = vmatmul.bf16.gmra.mxu0 %v2014
      %v2248 = vpop.f32.mrf.mxu0
      %v2249 = vadd.f32 0.0, %v2248
      %v2250 = vpop.f32.mrf.mxu0
      %2251 = vdwg.mxu0
      %2252 = vmatpush.bf16.msra.mxu0 %v2201
      %2253 = vmatpush.bf16.msra.mxu0 %v2200
      %2254 = vmatpush.bf16.msra.mxu0 %v2199
      %2255 = vmatpush.bf16.msra.mxu0 %v2198
      %2256 = vmatpush.bf16.msra.mxu0 %v2197
      %2257 = vmatpush.bf16.msra.mxu0 %v2196
      %2258 = vmatpush.bf16.msra.mxu0 %v2195
      %2259 = vmatpush.bf16.msra.mxu0 %v2194
      %2260 = vmatmul.bf16.gmra.mxu0 %v2031
      %v2261 = vpop.f32.mrf.mxu0
      %v2262 = vadd.f32 %v2244, %v2261
      %v2263 = vpop.f32.mrf.mxu0
      %v2264 = vadd.f32 %v2246, %v2263
      %2265 = vmatmul.bf16.gmra.mxu0 %v2034
      %v2266 = vpop.f32.mrf.mxu0
      %v2267 = vadd.f32 %v2249, %v2266
      %v2268 = vpop.f32.mrf.mxu0
      %2269 = vdwg.mxu0
      %2270 = vmatpush.bf16.msra.mxu0 %v2209
      %2271 = vmatpush.bf16.msra.mxu0 %v2208
      %2272 = vmatpush.bf16.msra.mxu0 %v2207
      %2273 = vmatpush.bf16.msra.mxu0 %v2206
      %2274 = vmatpush.bf16.msra.mxu0 %v2205
      %2275 = vmatpush.bf16.msra.mxu0 %v2204
      %2276 = vmatpush.bf16.msra.mxu0 %v2203
      %2277 = vmatpush.bf16.msra.mxu0 %v2202
      %2278 = vmatmul.bf16.gmra.mxu0 %v2039
      %v2279 = vpop.f32.mrf.mxu0
      %v2280 = vadd.f32 %v2262, %v2279
      %v2281 = vpop.f32.mrf.mxu0
      %v2282 = vadd.f32 %v2264, %v2281
      %2283 = vmatmul.bf16.gmra.mxu0 %v2038
      %v2284 = vpop.f32.mrf.mxu0
      %v2285 = vadd.f32 %v2267, %v2284
      %v2286 = vpop.f32.mrf.mxu0
      %2287 = vdwg.mxu0
      %v2288 = vld [vmem:[%s35] sm:$0x1]
      %v2290 = vperm.slane %v2288, 0
      %v2292 = vmul.f32 %v2280, %v2290
      %v2293 = vmul.f32 %v2282, %v2290
      %v2294 = vmul.f32 %v2285, %v2290
      %v2295 = vld [vmem:[%s37] sm:$0x1]
      %v2297 = vperm.slane %v2295, 0
      %v2299 = vadd.f32 %v2292, %v2297
      %v2300 = vadd.f32 %v2293, %v2297
      %v2301 = vadd.f32 %v2294, %v2297
      %v2302 = vld [vmem:[%s21] sm:$0xf]
      %v2303 = vld [vmem:[%s21 + $0x4] sm:$0xf]
      %v2304 = vld [vmem:[%s21 + $0x8] sm:$0xf]
      %v2305 = vld [vmem:[%s21 + $0xc] sm:$0xf]
      %v2306 = vld [vmem:[%s21 + $0x10] sm:$0xf]
      %v2307 = vld [vmem:[%s21 + $0x14] sm:$0xf]
      %v2308 = vld [vmem:[%s21 + $0x18] sm:$0xf]
      %v2309 = vld [vmem:[%s21 + $0x1c] sm:$0xf]
      %v2318 = vunpack.c.l.b16 %v2302
      %v2319 = vunpack.c.l.b16 %v2303
      %v2320 = vunpack.c.l.b16 %v2304
      %v2321 = vunpack.c.l.b16 %v2305
      %v2322 = vunpack.c.l.b16 %v2306
      %v2323 = vunpack.c.l.b16 %v2307
      %v2324 = vunpack.c.l.b16 %v2308
      %v2325 = vunpack.c.l.b16 %v2309
      %v2326 = vpack.c.b16 %v2319, %v2318
      %v2327 = vpack.c.b16 %v2321, %v2320
      %v2328 = vpack.c.b16 %v2323, %v2322
      %v2329 = vpack.c.b16 %v2325, %v2324
      %2334 = vmatpush.bf16.msra.mxu0 0
      %2335 = vmatpush.bf16.msra.mxu0 0
      %2336 = vmatpush.bf16.msra.mxu0 0
      %2337 = vmatpush.bf16.msra.mxu0 0
      %2338 = vmatpush.bf16.msra.mxu0 %v2329
      %2339 = vmatpush.bf16.msra.mxu0 %v2328
      %2340 = vmatpush.bf16.msra.mxu0 %v2327
      %2341 = vmatpush.bf16.msra.mxu0 %v2326
      %2342 = vmatmul.bf16.gmra.mxu0 %v1910
      %v2343 = vpop.f32.mrf.mxu0
      %v2344 = vadd.f32 0.0, %v2343
      %v2345 = vpop.f32.mrf.mxu0
      %v2346 = vadd.f32 0.0, %v2345
      %2347 = vmatmul.bf16.gmra.mxu0 %v1913
      %v2348 = vpop.f32.mrf.mxu0
      %v2349 = vadd.f32 0.0, %v2348
      %v2350 = vpop.f32.mrf.mxu0
      %2351 = vdwg.mxu0
      %v2352 = vld [vmem:[%s23] sm:$0x1]
      %v2354 = vperm.slane %v2352, 0
      %v2356 = vmul.f32 %v2344, %v2354
      %v2357 = vmul.f32 %v2346, %v2354
      %v2358 = vmul.f32 %v2349, %v2354
      %v2359 = vld [vmem:[%s25] sm:$0x1]
      %v2361 = vperm.slane %v2359, 0
      %v2363 = vadd.f32 %v2356, %v2361
      %v2364 = vadd.f32 %v2357, %v2361
      %v2365 = vadd.f32 %v2358, %v2361
      %v2366 = vadd.f32 %v2299, %v2363
      %v2367 = vadd.f32 %v2300, %v2364
      %v2368 = vadd.f32 %v2301, %v2365
      %v2369 = vmax.f32 %v2366, 0.0
      %v2370 = vmax.f32 %v2367, 0.0
      %v2371 = vmax.f32 %v2368, 0.0
      %s2372 = sadd.s32 %s1192, 4294967292
      %v2373 = vstv %s2372
      %v2374 = vadd.s32 %v1247, %v2373
      %v2375 = vadd.s32 %v1248, %v2373
      %v2376 = vadd.s32 %v1249, %v2373
      %vm2377 = vcmp.ge.s32.totalorder %v2374, 0
      %vm2378 = vcmp.ge.s32.totalorder %v2375, 0
      %vm2379 = vcmp.ge.s32.totalorder %v2376, 0
      %vm2380 = vcmp.lt.s32.totalorder %v2374, 16
      %vm2381 = vcmp.lt.s32.totalorder %v2375, 16
      %vm2382 = vcmp.lt.s32.totalorder %v2376, 16
      %vm2383 = vmand %vm2377, %vm2380
      %vm2384 = vmand %vm2378, %vm2381
      %vm2385 = vmand %vm2379, %vm2382
      %v2386 = vsel %vm2383, 1, 0
      %v2387 = vsel %vm2384, 1, 0
      %v2388 = vsel %vm2385, 1, 0
      %vm2389 = vcmp.eq.s32.totalorder %v2386, 1
      %vm2390 = vcmp.eq.s32.totalorder %v2387, 1
      %vm2391 = vcmp.eq.s32.totalorder %v2388, 1
      %v2392 = vsel %vm2389, %v2369, 0.0
      %v2393 = vsel %vm2390, %v2370, 0.0
      %v2394 = vsel %vm2391, %v2371, 0.0
      %v2395 = vpack.c.bf16 %v2392, %v2392
      %v2396 = vpack.c.bf16 %v2393, %v2393
      %v2397 = vpack.c.bf16 %v2394, %v2394
      %v2401 = vunpack.c.l.b16 %v2395
      %v2402 = vunpack.c.l.b16 %v2396
      %v2403 = vunpack.c.l.b16 %v2397
      %v2404 = vpack.c.b16 %v2402, %v2401
      %v2405 = vpack.c.b16 %v2403, %v2403
      %v2409 = vshrl.u32 %v2404, 16
      %v2411 = vshll.u32 %v2404, 16
      %v2413 = vrot.slane %v2411, 1
      %v2414 = vor.u32 %v2409, %v2413
      %v2416 = vshll.u32 %v2405, 16
      %v2418 = vrot.slane %v2416, 1
      %v2419 = vsel %vm1294, %v2414, %v2418
      %v2420 = vshrl.u32 %v2405, 16
      %v2422 = vor.u32 %v2420, %v2418
      %v2425 = vrot.slane %v2404, 1
      %v2426 = vrot.slane %v2405, 1
      %v2427 = vsel %vm1314, %v2425, %v2426
      %v2430 = vld [vmem:[%s45] sm:$0xff]
      %v2431 = vld [vmem:[%s45 + $0x8] sm:$0xff]
      %v2432 = vld [vmem:[%s45 + $0x10] sm:$0xff]
      %v2433 = vld [vmem:[%s45 + $0x18] sm:$0xff]
      %v2434 = vld [vmem:[%s45 + $0x20] sm:$0xff]
      %v2435 = vld [vmem:[%s45 + $0x28] sm:$0xff]
      %v2436 = vld [vmem:[%s45 + $0x30] sm:$0xff]
      %v2437 = vld [vmem:[%s45 + $0x38] sm:$0xff]
      %v2438 = vld [vmem:[%s45 + $0x40] sm:$0xff]
      %v2439 = vld [vmem:[%s45 + $0x48] sm:$0xff]
      %v2440 = vld [vmem:[%s45 + $0x50] sm:$0xff]
      %v2441 = vld [vmem:[%s45 + $0x58] sm:$0xff]
      %v2442 = vld [vmem:[%s45 + $0x60] sm:$0xff]
      %v2443 = vld [vmem:[%s45 + $0x68] sm:$0xff]
      %v2444 = vld [vmem:[%s45 + $0x70] sm:$0xff]
      %v2445 = vld [vmem:[%s45 + $0x78] sm:$0xff]
      %v2446 = vld [vmem:[%s45 + $0x80] sm:$0xff]
      %v2447 = vld [vmem:[%s45 + $0x88] sm:$0xff]
      %v2448 = vld [vmem:[%s45 + $0x90] sm:$0xff]
      %v2449 = vld [vmem:[%s45 + $0x98] sm:$0xff]
      %v2450 = vld [vmem:[%s45 + $0xa0] sm:$0xff]
      %v2451 = vld [vmem:[%s45 + $0xa8] sm:$0xff]
      %v2452 = vld [vmem:[%s45 + $0xb0] sm:$0xff]
      %v2453 = vld [vmem:[%s45 + $0xb8] sm:$0xff]
      %v2454 = vld [vmem:[%s45 + $0xc0] sm:$0xff]
      %v2455 = vld [vmem:[%s45 + $0xc8] sm:$0xff]
      %v2456 = vld [vmem:[%s45 + $0xd0] sm:$0xff]
      %v2457 = vld [vmem:[%s45 + $0xd8] sm:$0xff]
      %v2458 = vld [vmem:[%s45 + $0xe0] sm:$0xff]
      %v2459 = vld [vmem:[%s45 + $0xe8] sm:$0xff]
      %v2460 = vld [vmem:[%s45 + $0xf0] sm:$0xff]
      %v2461 = vld [vmem:[%s45 + $0xf8] sm:$0xff]
      %v2462 = vld [vmem:[%s45 + $0x100] sm:$0xff]
      %v2463 = vld [vmem:[%s45 + $0x108] sm:$0xff]
      %v2464 = vld [vmem:[%s45 + $0x110] sm:$0xff]
      %v2465 = vld [vmem:[%s45 + $0x118] sm:$0xff]
      %v2466 = vld [vmem:[%s45 + $0x120] sm:$0xff]
      %v2467 = vld [vmem:[%s45 + $0x128] sm:$0xff]
      %v2468 = vld [vmem:[%s45 + $0x130] sm:$0xff]
      %v2469 = vld [vmem:[%s45 + $0x138] sm:$0xff]
      %v2470 = vld [vmem:[%s45 + $0x140] sm:$0xff]
      %v2471 = vld [vmem:[%s45 + $0x148] sm:$0xff]
      %v2472 = vld [vmem:[%s45 + $0x150] sm:$0xff]
      %v2473 = vld [vmem:[%s45 + $0x158] sm:$0xff]
      %v2474 = vld [vmem:[%s45 + $0x160] sm:$0xff]
      %v2475 = vld [vmem:[%s45 + $0x168] sm:$0xff]
      %v2476 = vld [vmem:[%s45 + $0x170] sm:$0xff]
      %v2477 = vld [vmem:[%s45 + $0x178] sm:$0xff]
      %v2526 = vunpack.c.l.b16 %v2430
      %v2527 = vunpack.c.h.b16 %v2430
      %v2528 = vunpack.c.l.b16 %v2431
      %v2529 = vunpack.c.h.b16 %v2431
      %v2530 = vunpack.c.l.b16 %v2432
      %v2531 = vunpack.c.h.b16 %v2432
      %v2532 = vunpack.c.l.b16 %v2433
      %v2533 = vunpack.c.h.b16 %v2433
      %v2534 = vunpack.c.l.b16 %v2434
      %v2535 = vunpack.c.h.b16 %v2434
      %v2536 = vunpack.c.l.b16 %v2435
      %v2537 = vunpack.c.h.b16 %v2435
      %v2538 = vunpack.c.l.b16 %v2436
      %v2539 = vunpack.c.h.b16 %v2436
      %v2540 = vunpack.c.l.b16 %v2437
      %v2541 = vunpack.c.h.b16 %v2437
      %v2542 = vunpack.c.l.b16 %v2438
      %v2543 = vunpack.c.h.b16 %v2438
      %v2544 = vunpack.c.l.b16 %v2439
      %v2545 = vunpack.c.h.b16 %v2439
      %v2546 = vunpack.c.l.b16 %v2440
      %v2547 = vunpack.c.h.b16 %v2440
      %v2548 = vunpack.c.l.b16 %v2441
      %v2549 = vunpack.c.h.b16 %v2441
      %v2550 = vunpack.c.l.b16 %v2442
      %v2551 = vunpack.c.h.b16 %v2442
      %v2552 = vunpack.c.l.b16 %v2443
      %v2553 = vunpack.c.h.b16 %v2443
      %v2554 = vunpack.c.l.b16 %v2444
      %v2555 = vunpack.c.h.b16 %v2444
      %v2556 = vunpack.c.l.b16 %v2445
      %v2557 = vunpack.c.h.b16 %v2445
      %v2558 = vunpack.c.l.b16 %v2446
      %v2559 = vunpack.c.h.b16 %v2446
      %v2560 = vunpack.c.l.b16 %v2447
      %v2561 = vunpack.c.h.b16 %v2447
      %v2562 = vunpack.c.l.b16 %v2448
      %v2563 = vunpack.c.h.b16 %v2448
      %v2564 = vunpack.c.l.b16 %v2449
      %v2565 = vunpack.c.h.b16 %v2449
      %v2566 = vunpack.c.l.b16 %v2450
      %v2567 = vunpack.c.h.b16 %v2450
      %v2568 = vunpack.c.l.b16 %v2451
      %v2569 = vunpack.c.h.b16 %v2451
      %v2570 = vunpack.c.l.b16 %v2452
      %v2571 = vunpack.c.h.b16 %v2452
      %v2572 = vunpack.c.l.b16 %v2453
      %v2573 = vunpack.c.h.b16 %v2453
      %v2574 = vunpack.c.l.b16 %v2454
      %v2575 = vunpack.c.h.b16 %v2454
      %v2576 = vunpack.c.l.b16 %v2455
      %v2577 = vunpack.c.h.b16 %v2455
      %v2578 = vunpack.c.l.b16 %v2456
      %v2579 = vunpack.c.h.b16 %v2456
      %v2580 = vunpack.c.l.b16 %v2457
      %v2581 = vunpack.c.h.b16 %v2457
      %v2582 = vunpack.c.l.b16 %v2458
      %v2583 = vunpack.c.h.b16 %v2458
      %v2584 = vunpack.c.l.b16 %v2459
      %v2585 = vunpack.c.h.b16 %v2459
      %v2586 = vunpack.c.l.b16 %v2460
      %v2587 = vunpack.c.h.b16 %v2460
      %v2588 = vunpack.c.l.b16 %v2461
      %v2589 = vunpack.c.h.b16 %v2461
      %v2590 = vunpack.c.l.b16 %v2462
      %v2591 = vunpack.c.h.b16 %v2462
      %v2592 = vunpack.c.l.b16 %v2463
      %v2593 = vunpack.c.h.b16 %v2463
      %v2594 = vunpack.c.l.b16 %v2464
      %v2595 = vunpack.c.h.b16 %v2464
      %v2596 = vunpack.c.l.b16 %v2465
      %v2597 = vunpack.c.h.b16 %v2465
      %v2598 = vunpack.c.l.b16 %v2466
      %v2599 = vunpack.c.h.b16 %v2466
      %v2600 = vunpack.c.l.b16 %v2467
      %v2601 = vunpack.c.h.b16 %v2467
      %v2602 = vunpack.c.l.b16 %v2468
      %v2603 = vunpack.c.h.b16 %v2468
      %v2604 = vunpack.c.l.b16 %v2469
      %v2605 = vunpack.c.h.b16 %v2469
      %v2606 = vunpack.c.l.b16 %v2470
      %v2607 = vunpack.c.h.b16 %v2470
      %v2608 = vunpack.c.l.b16 %v2471
      %v2609 = vunpack.c.h.b16 %v2471
      %v2610 = vunpack.c.l.b16 %v2472
      %v2611 = vunpack.c.h.b16 %v2472
      %v2612 = vunpack.c.l.b16 %v2473
      %v2613 = vunpack.c.h.b16 %v2473
      %v2614 = vunpack.c.l.b16 %v2474
      %v2615 = vunpack.c.h.b16 %v2474
      %v2616 = vunpack.c.l.b16 %v2475
      %v2617 = vunpack.c.h.b16 %v2475
      %v2618 = vunpack.c.l.b16 %v2476
      %v2619 = vunpack.c.h.b16 %v2476
      %v2620 = vunpack.c.l.b16 %v2477
      %v2621 = vunpack.c.h.b16 %v2477
      %v2622 = vpack.c.b16 %v2528, %v2526
      %v2623 = vpack.c.b16 %v2529, %v2527
      %v2624 = vpack.c.b16 %v2532, %v2530
      %v2625 = vpack.c.b16 %v2533, %v2531
      %v2626 = vpack.c.b16 %v2536, %v2534
      %v2627 = vpack.c.b16 %v2537, %v2535
      %v2628 = vpack.c.b16 %v2540, %v2538
      %v2629 = vpack.c.b16 %v2541, %v2539
      %v2630 = vpack.c.b16 %v2544, %v2542
      %v2631 = vpack.c.b16 %v2545, %v2543
      %v2632 = vpack.c.b16 %v2548, %v2546
      %v2633 = vpack.c.b16 %v2549, %v2547
      %v2634 = vpack.c.b16 %v2552, %v2550
      %v2635 = vpack.c.b16 %v2553, %v2551
      %v2636 = vpack.c.b16 %v2556, %v2554
      %v2637 = vpack.c.b16 %v2557, %v2555
      %v2638 = vpack.c.b16 %v2560, %v2558
      %v2639 = vpack.c.b16 %v2561, %v2559
      %v2640 = vpack.c.b16 %v2564, %v2562
      %v2641 = vpack.c.b16 %v2565, %v2563
      %v2642 = vpack.c.b16 %v2568, %v2566
      %v2643 = vpack.c.b16 %v2569, %v2567
      %v2644 = vpack.c.b16 %v2572, %v2570
      %v2645 = vpack.c.b16 %v2573, %v2571
      %v2646 = vpack.c.b16 %v2576, %v2574
      %v2647 = vpack.c.b16 %v2577, %v2575
      %v2648 = vpack.c.b16 %v2580, %v2578
      %v2649 = vpack.c.b16 %v2581, %v2579
      %v2650 = vpack.c.b16 %v2584, %v2582
      %v2651 = vpack.c.b16 %v2585, %v2583
      %v2652 = vpack.c.b16 %v2588, %v2586
      %v2653 = vpack.c.b16 %v2589, %v2587
      %v2654 = vpack.c.b16 %v2592, %v2590
      %v2655 = vpack.c.b16 %v2593, %v2591
      %v2656 = vpack.c.b16 %v2596, %v2594
      %v2657 = vpack.c.b16 %v2597, %v2595
      %v2658 = vpack.c.b16 %v2600, %v2598
      %v2659 = vpack.c.b16 %v2601, %v2599
      %v2660 = vpack.c.b16 %v2604, %v2602
      %v2661 = vpack.c.b16 %v2605, %v2603
      %v2662 = vpack.c.b16 %v2608, %v2606
      %v2663 = vpack.c.b16 %v2609, %v2607
      %v2664 = vpack.c.b16 %v2612, %v2610
      %v2665 = vpack.c.b16 %v2613, %v2611
      %v2666 = vpack.c.b16 %v2616, %v2614
      %v2667 = vpack.c.b16 %v2617, %v2615
      %v2668 = vpack.c.b16 %v2620, %v2618
      %v2669 = vpack.c.b16 %v2621, %v2619
      %2718 = vmatpush.bf16.msra.mxu0 %v2636
      %2719 = vmatpush.bf16.msra.mxu0 %v2634
      %2720 = vmatpush.bf16.msra.mxu0 %v2632
      %2721 = vmatpush.bf16.msra.mxu0 %v2630
      %2722 = vmatpush.bf16.msra.mxu0 %v2628
      %2723 = vmatpush.bf16.msra.mxu0 %v2626
      %2724 = vmatpush.bf16.msra.mxu0 %v2624
      %2725 = vmatpush.bf16.msra.mxu0 %v2622
      %2726 = vmatmul.bf16.gmra.mxu0 %v2404
      %v2727 = vpop.f32.mrf.mxu0
      %v2728 = vadd.f32 0.0, %v2727
      %v2729 = vpop.f32.mrf.mxu0
      %v2730 = vadd.f32 0.0, %v2729
      %2731 = vmatmul.bf16.gmra.mxu0 %v2405
      %v2732 = vpop.f32.mrf.mxu0
      %v2733 = vadd.f32 0.0, %v2732
      %v2734 = vpop.f32.mrf.mxu0
      %2735 = vdwg.mxu0
      %2736 = vmatpush.bf16.msra.mxu0 %v2652
      %2737 = vmatpush.bf16.msra.mxu0 %v2650
      %2738 = vmatpush.bf16.msra.mxu0 %v2648
      %2739 = vmatpush.bf16.msra.mxu0 %v2646
      %2740 = vmatpush.bf16.msra.mxu0 %v2644
      %2741 = vmatpush.bf16.msra.mxu0 %v2642
      %2742 = vmatpush.bf16.msra.mxu0 %v2640
      %2743 = vmatpush.bf16.msra.mxu0 %v2638
      %2744 = vmatmul.bf16.gmra.mxu0 %v2419
      %v2745 = vpop.f32.mrf.mxu0
      %v2746 = vadd.f32 %v2728, %v2745
      %v2747 = vpop.f32.mrf.mxu0
      %v2748 = vadd.f32 %v2730, %v2747
      %2749 = vmatmul.bf16.gmra.mxu0 %v2422
      %v2750 = vpop.f32.mrf.mxu0
      %v2751 = vadd.f32 %v2733, %v2750
      %v2752 = vpop.f32.mrf.mxu0
      %2753 = vdwg.mxu0
      %2754 = vmatpush.bf16.msra.mxu0 %v2668
      %2755 = vmatpush.bf16.msra.mxu0 %v2666
      %2756 = vmatpush.bf16.msra.mxu0 %v2664
      %2757 = vmatpush.bf16.msra.mxu0 %v2662
      %2758 = vmatpush.bf16.msra.mxu0 %v2660
      %2759 = vmatpush.bf16.msra.mxu0 %v2658
      %2760 = vmatpush.bf16.msra.mxu0 %v2656
      %2761 = vmatpush.bf16.msra.mxu0 %v2654
      %2762 = vmatmul.bf16.gmra.mxu0 %v2427
      %v2763 = vpop.f32.mrf.mxu0
      %v2764 = vadd.f32 %v2746, %v2763
      %v2765 = vpop.f32.mrf.mxu0
      %v2766 = vadd.f32 %v2748, %v2765
      %2767 = vmatmul.bf16.gmra.mxu0 %v2426
      %v2768 = vpop.f32.mrf.mxu0
      %v2769 = vadd.f32 %v2751, %v2768
      %v2770 = vpop.f32.mrf.mxu0
      %2771 = vdwg.mxu0
      %2772 = vmatpush.bf16.msra.mxu0 %v2637
      %2773 = vmatpush.bf16.msra.mxu0 %v2635
      %2774 = vmatpush.bf16.msra.mxu0 %v2633
      %2775 = vmatpush.bf16.msra.mxu0 %v2631
      %2776 = vmatpush.bf16.msra.mxu0 %v2629
      %2777 = vmatpush.bf16.msra.mxu0 %v2627
      %2778 = vmatpush.bf16.msra.mxu0 %v2625
      %2779 = vmatpush.bf16.msra.mxu0 %v2623
      %2780 = vmatmul.bf16.gmra.mxu0 %v2404
      %v2781 = vpop.f32.mrf.mxu0
      %v2782 = vadd.f32 0.0, %v2781
      %v2783 = vpop.f32.mrf.mxu0
      %v2784 = vadd.f32 0.0, %v2783
      %2785 = vmatmul.bf16.gmra.mxu0 %v2405
      %v2786 = vpop.f32.mrf.mxu0
      %v2787 = vadd.f32 0.0, %v2786
      %v2788 = vpop.f32.mrf.mxu0
      %2789 = vdwg.mxu0
      %2790 = vmatpush.bf16.msra.mxu0 %v2653
      %2791 = vmatpush.bf16.msra.mxu0 %v2651
      %2792 = vmatpush.bf16.msra.mxu0 %v2649
      %2793 = vmatpush.bf16.msra.mxu0 %v2647
      %2794 = vmatpush.bf16.msra.mxu0 %v2645
      %2795 = vmatpush.bf16.msra.mxu0 %v2643
      %2796 = vmatpush.bf16.msra.mxu0 %v2641
      %2797 = vmatpush.bf16.msra.mxu0 %v2639
      %2798 = vmatmul.bf16.gmra.mxu0 %v2419
      %v2799 = vpop.f32.mrf.mxu0
      %v2800 = vadd.f32 %v2782, %v2799
      %v2801 = vpop.f32.mrf.mxu0
      %v2802 = vadd.f32 %v2784, %v2801
      %2803 = vmatmul.bf16.gmra.mxu0 %v2422
      %v2804 = vpop.f32.mrf.mxu0
      %v2805 = vadd.f32 %v2787, %v2804
      %v2806 = vpop.f32.mrf.mxu0
      %2807 = vdwg.mxu0
      %2808 = vmatpush.bf16.msra.mxu0 %v2669
      %2809 = vmatpush.bf16.msra.mxu0 %v2667
      %2810 = vmatpush.bf16.msra.mxu0 %v2665
      %2811 = vmatpush.bf16.msra.mxu0 %v2663
      %2812 = vmatpush.bf16.msra.mxu0 %v2661
      %2813 = vmatpush.bf16.msra.mxu0 %v2659
      %2814 = vmatpush.bf16.msra.mxu0 %v2657
      %2815 = vmatpush.bf16.msra.mxu0 %v2655
      %2816 = vmatmul.bf16.gmra.mxu0 %v2427
      %v2817 = vpop.f32.mrf.mxu0
      %v2818 = vadd.f32 %v2800, %v2817
      %v2819 = vpop.f32.mrf.mxu0
      %v2820 = vadd.f32 %v2802, %v2819
      %2821 = vmatmul.bf16.gmra.mxu0 %v2426
      %v2822 = vpop.f32.mrf.mxu0
      %v2823 = vadd.f32 %v2805, %v2822
      %v2824 = vpop.f32.mrf.mxu0
      %2825 = vdwg.mxu0
      %v2826 = vld [vmem:[%s47] sm:$0x3]
      %v2828 = vperm.slane %v2826, 0
      %v2829 = vperm.slane %v2826, 1
      %v2832 = vmul.f32 %v2764, %v2828
      %v2833 = vmul.f32 %v2818, %v2829
      %v2834 = vmul.f32 %v2766, %v2828
      %v2835 = vmul.f32 %v2820, %v2829
      %v2836 = vmul.f32 %v2769, %v2828
      %v2837 = vmul.f32 %v2823, %v2829
      %v2838 = vld [vmem:[%s49] sm:$0x3]
      %v2840 = vperm.slane %v2838, 0
      %v2841 = vperm.slane %v2838, 1
      %v2844 = vadd.f32 %v2832, %v2840
      %v2845 = vadd.f32 %v2833, %v2841
      %v2846 = vadd.f32 %v2834, %v2840
      %v2847 = vadd.f32 %v2835, %v2841
      %v2848 = vadd.f32 %v2836, %v2840
      %v2849 = vadd.f32 %v2837, %v2841
      %v2850 = vmax.f32 %v2844, 0.0
      %v2851 = vmax.f32 %v2845, 0.0
      %v2852 = vmax.f32 %v2846, 0.0
      %v2853 = vmax.f32 %v2847, 0.0
      %v2854 = vmax.f32 %v2848, 0.0
      %v2855 = vmax.f32 %v2849, 0.0
      %s2856 = sadd.s32 %s1192, 4294967293
      %v2857 = vstv %s2856
      %v2858 = vadd.s32 %v1247, %v2857
      %v2859 = vadd.s32 %v1248, %v2857
      %v2860 = vadd.s32 %v1249, %v2857
      %vm2861 = vcmp.ge.s32.totalorder %v2858, 0
      %vm2862 = vcmp.ge.s32.totalorder %v2859, 0
      %vm2863 = vcmp.ge.s32.totalorder %v2860, 0
      %vm2864 = vcmp.lt.s32.totalorder %v2858, 16
      %vm2865 = vcmp.lt.s32.totalorder %v2859, 16
      %vm2866 = vcmp.lt.s32.totalorder %v2860, 16
      %vm2867 = vmand %vm2861, %vm2864
      %vm2868 = vmand %vm2862, %vm2865
      %vm2869 = vmand %vm2863, %vm2866
      %v2870 = vsel %vm2867, 1, 0
      %v2871 = vsel %vm2868, 1, 0
      %v2872 = vsel %vm2869, 1, 0
      %vm2873 = vcmp.eq.s32.totalorder %v2870, 1
      %vm2874 = vcmp.eq.s32.totalorder %v2871, 1
      %vm2875 = vcmp.eq.s32.totalorder %v2872, 1
      %v2876 = vsel %vm2873, %v2850, 0.0
      %v2877 = vsel %vm2873, %v2851, 0.0
      %v2878 = vsel %vm2874, %v2852, 0.0
      %v2879 = vsel %vm2874, %v2853, 0.0
      %v2880 = vsel %vm2875, %v2854, 0.0
      %v2881 = vsel %vm2875, %v2855, 0.0
      %v2882 = vpack.c.bf16 %v2877, %v2876
      %v2883 = vpack.c.bf16 %v2879, %v2878
      %v2884 = vpack.c.bf16 %v2881, %v2880
      %v2888 = vunpack.c.l.b16 %v2882
      %v2889 = vunpack.c.h.b16 %v2882
      %v2890 = vunpack.c.l.b16 %v2883
      %v2891 = vunpack.c.h.b16 %v2883
      %v2892 = vunpack.c.l.b16 %v2884
      %v2893 = vunpack.c.h.b16 %v2884
      %v2894 = vpack.c.b16 %v2890, %v2888
      %v2895 = vpack.c.b16 %v2891, %v2889
      %v2896 = vpack.c.b16 %v2892, %v2892
      %v2897 = vpack.c.b16 %v2893, %v2893
      %v2903 = vshrl.u32 %v2894, 16
      %v2905 = vshll.u32 %v2894, 16
      %v2907 = vrot.slane %v2905, 1
      %v2908 = vor.u32 %v2903, %v2907
      %v2910 = vshll.u32 %v2896, 16
      %v2912 = vrot.slane %v2910, 1
      %v2913 = vsel %vm1294, %v2908, %v2912
      %v2915 = vshrl.u32 %v2895, 16
      %v2917 = vshll.u32 %v2895, 16
      %v2919 = vrot.slane %v2917, 1
      %v2920 = vor.u32 %v2915, %v2919
      %v2922 = vshll.u32 %v2897, 16
      %v2924 = vrot.slane %v2922, 1
      %v2925 = vsel %vm1294, %v2920, %v2924
      %v2926 = vshrl.u32 %v2896, 16
      %v2928 = vor.u32 %v2926, %v2912
      %v2929 = vshrl.u32 %v2897, 16
      %v2931 = vor.u32 %v2929, %v2924
      %v2936 = vrot.slane %v2894, 1
      %v2937 = vrot.slane %v2896, 1
      %v2938 = vsel %vm1314, %v2936, %v2937
      %v2939 = vrot.slane %v2895, 1
      %v2940 = vrot.slane %v2897, 1
      %v2941 = vsel %vm1314, %v2939, %v2940
      %v2946 = vld [vmem:[%s51] sm:$0xff]
      %v2947 = vld [vmem:[%s51 + $0x8] sm:$0xff]
      %v2948 = vld [vmem:[%s51 + $0x10] sm:$0xff]
      %v2949 = vld [vmem:[%s51 + $0x18] sm:$0xff]
      %v2950 = vld [vmem:[%s51 + $0x20] sm:$0xff]
      %v2951 = vld [vmem:[%s51 + $0x28] sm:$0xff]
      %v2952 = vld [vmem:[%s51 + $0x30] sm:$0xff]
      %v2953 = vld [vmem:[%s51 + $0x38] sm:$0xff]
      %v2954 = vld [vmem:[%s51 + $0x40] sm:$0xff]
      %v2955 = vld [vmem:[%s51 + $0x48] sm:$0xff]
      %v2956 = vld [vmem:[%s51 + $0x50] sm:$0xff]
      %v2957 = vld [vmem:[%s51 + $0x58] sm:$0xff]
      %v2958 = vld [vmem:[%s51 + $0x60] sm:$0xff]
      %v2959 = vld [vmem:[%s51 + $0x68] sm:$0xff]
      %v2960 = vld [vmem:[%s51 + $0x70] sm:$0xff]
      %v2961 = vld [vmem:[%s51 + $0x78] sm:$0xff]
      %v2962 = vld [vmem:[%s51 + $0x80] sm:$0xff]
      %v2963 = vld [vmem:[%s51 + $0x88] sm:$0xff]
      %v2964 = vld [vmem:[%s51 + $0x90] sm:$0xff]
      %v2965 = vld [vmem:[%s51 + $0x98] sm:$0xff]
      %v2966 = vld [vmem:[%s51 + $0xa0] sm:$0xff]
      %v2967 = vld [vmem:[%s51 + $0xa8] sm:$0xff]
      %v2968 = vld [vmem:[%s51 + $0xb0] sm:$0xff]
      %v2969 = vld [vmem:[%s51 + $0xb8] sm:$0xff]
      %v2970 = vld [vmem:[%s51 + $0xc0] sm:$0xff]
      %v2971 = vld [vmem:[%s51 + $0xc8] sm:$0xff]
      %v2972 = vld [vmem:[%s51 + $0xd0] sm:$0xff]
      %v2973 = vld [vmem:[%s51 + $0xd8] sm:$0xff]
      %v2974 = vld [vmem:[%s51 + $0xe0] sm:$0xff]
      %v2975 = vld [vmem:[%s51 + $0xe8] sm:$0xff]
      %v2976 = vld [vmem:[%s51 + $0xf0] sm:$0xff]
      %v2977 = vld [vmem:[%s51 + $0xf8] sm:$0xff]
      %v2978 = vld [vmem:[%s51 + $0x100] sm:$0xff]
      %v2979 = vld [vmem:[%s51 + $0x108] sm:$0xff]
      %v2980 = vld [vmem:[%s51 + $0x110] sm:$0xff]
      %v2981 = vld [vmem:[%s51 + $0x118] sm:$0xff]
      %v2982 = vld [vmem:[%s51 + $0x120] sm:$0xff]
      %v2983 = vld [vmem:[%s51 + $0x128] sm:$0xff]
      %v2984 = vld [vmem:[%s51 + $0x130] sm:$0xff]
      %v2985 = vld [vmem:[%s51 + $0x138] sm:$0xff]
      %v2986 = vld [vmem:[%s51 + $0x140] sm:$0xff]
      %v2987 = vld [vmem:[%s51 + $0x148] sm:$0xff]
      %v2988 = vld [vmem:[%s51 + $0x150] sm:$0xff]
      %v2989 = vld [vmem:[%s51 + $0x158] sm:$0xff]
      %v2990 = vld [vmem:[%s51 + $0x160] sm:$0xff]
      %v2991 = vld [vmem:[%s51 + $0x168] sm:$0xff]
      %v2992 = vld [vmem:[%s51 + $0x170] sm:$0xff]
      %v2993 = vld [vmem:[%s51 + $0x178] sm:$0xff]
      %v2994 = vld [vmem:[%s51 + $0x180] sm:$0xff]
      %v2995 = vld [vmem:[%s51 + $0x188] sm:$0xff]
      %v2996 = vld [vmem:[%s51 + $0x190] sm:$0xff]
      %v2997 = vld [vmem:[%s51 + $0x198] sm:$0xff]
      %v2998 = vld [vmem:[%s51 + $0x1a0] sm:$0xff]
      %v2999 = vld [vmem:[%s51 + $0x1a8] sm:$0xff]
      %v3000 = vld [vmem:[%s51 + $0x1b0] sm:$0xff]
      %v3001 = vld [vmem:[%s51 + $0x1b8] sm:$0xff]
      %v3002 = vld [vmem:[%s51 + $0x1c0] sm:$0xff]
      %v3003 = vld [vmem:[%s51 + $0x1c8] sm:$0xff]
      %v3004 = vld [vmem:[%s51 + $0x1d0] sm:$0xff]
      %v3005 = vld [vmem:[%s51 + $0x1d8] sm:$0xff]
      %v3006 = vld [vmem:[%s51 + $0x1e0] sm:$0xff]
      %v3007 = vld [vmem:[%s51 + $0x1e8] sm:$0xff]
      %v3008 = vld [vmem:[%s51 + $0x1f0] sm:$0xff]
      %v3009 = vld [vmem:[%s51 + $0x1f8] sm:$0xff]
      %v3010 = vld [vmem:[%s51 + $0x200] sm:$0xff]
      %v3011 = vld [vmem:[%s51 + $0x208] sm:$0xff]
      %v3012 = vld [vmem:[%s51 + $0x210] sm:$0xff]
      %v3013 = vld [vmem:[%s51 + $0x218] sm:$0xff]
      %v3014 = vld [vmem:[%s51 + $0x220] sm:$0xff]
      %v3015 = vld [vmem:[%s51 + $0x228] sm:$0xff]
      %v3016 = vld [vmem:[%s51 + $0x230] sm:$0xff]
      %v3017 = vld [vmem:[%s51 + $0x238] sm:$0xff]
      %v3018 = vld [vmem:[%s51 + $0x240] sm:$0xff]
      %v3019 = vld [vmem:[%s51 + $0x248] sm:$0xff]
      %v3020 = vld [vmem:[%s51 + $0x250] sm:$0xff]
      %v3021 = vld [vmem:[%s51 + $0x258] sm:$0xff]
      %v3022 = vld [vmem:[%s51 + $0x260] sm:$0xff]
      %v3023 = vld [vmem:[%s51 + $0x268] sm:$0xff]
      %v3024 = vld [vmem:[%s51 + $0x270] sm:$0xff]
      %v3025 = vld [vmem:[%s51 + $0x278] sm:$0xff]
      %v3026 = vld [vmem:[%s51 + $0x280] sm:$0xff]
      %v3027 = vld [vmem:[%s51 + $0x288] sm:$0xff]
      %v3028 = vld [vmem:[%s51 + $0x290] sm:$0xff]
      %v3029 = vld [vmem:[%s51 + $0x298] sm:$0xff]
      %v3030 = vld [vmem:[%s51 + $0x2a0] sm:$0xff]
      %v3031 = vld [vmem:[%s51 + $0x2a8] sm:$0xff]
      %v3032 = vld [vmem:[%s51 + $0x2b0] sm:$0xff]
      %v3033 = vld [vmem:[%s51 + $0x2b8] sm:$0xff]
      %v3034 = vld [vmem:[%s51 + $0x2c0] sm:$0xff]
      %v3035 = vld [vmem:[%s51 + $0x2c8] sm:$0xff]
      %v3036 = vld [vmem:[%s51 + $0x2d0] sm:$0xff]
      %v3037 = vld [vmem:[%s51 + $0x2d8] sm:$0xff]
      %v3038 = vld [vmem:[%s51 + $0x2e0] sm:$0xff]
      %v3039 = vld [vmem:[%s51 + $0x2e8] sm:$0xff]
      %v3040 = vld [vmem:[%s51 + $0x2f0] sm:$0xff]
      %v3041 = vld [vmem:[%s51 + $0x2f8] sm:$0xff]
      %v3138 = vunpack.c.l.b16 %v2946
      %v3139 = vunpack.c.h.b16 %v2946
      %v3140 = vunpack.c.l.b16 %v2947
      %v3141 = vunpack.c.h.b16 %v2947
      %v3142 = vunpack.c.l.b16 %v2948
      %v3143 = vunpack.c.h.b16 %v2948
      %v3144 = vunpack.c.l.b16 %v2949
      %v3145 = vunpack.c.h.b16 %v2949
      %v3146 = vunpack.c.l.b16 %v2950
      %v3147 = vunpack.c.h.b16 %v2950
      %v3148 = vunpack.c.l.b16 %v2951
      %v3149 = vunpack.c.h.b16 %v2951
      %v3150 = vunpack.c.l.b16 %v2952
      %v3151 = vunpack.c.h.b16 %v2952
      %v3152 = vunpack.c.l.b16 %v2953
      %v3153 = vunpack.c.h.b16 %v2953
      %v3154 = vunpack.c.l.b16 %v2954
      %v3155 = vunpack.c.h.b16 %v2954
      %v3156 = vunpack.c.l.b16 %v2955
      %v3157 = vunpack.c.h.b16 %v2955
      %v3158 = vunpack.c.l.b16 %v2956
      %v3159 = vunpack.c.h.b16 %v2956
      %v3160 = vunpack.c.l.b16 %v2957
      %v3161 = vunpack.c.h.b16 %v2957
      %v3162 = vunpack.c.l.b16 %v2958
      %v3163 = vunpack.c.h.b16 %v2958
      %v3164 = vunpack.c.l.b16 %v2959
      %v3165 = vunpack.c.h.b16 %v2959
      %v3166 = vunpack.c.l.b16 %v2960
      %v3167 = vunpack.c.h.b16 %v2960
      %v3168 = vunpack.c.l.b16 %v2961
      %v3169 = vunpack.c.h.b16 %v2961
      %v3170 = vunpack.c.l.b16 %v2962
      %v3171 = vunpack.c.h.b16 %v2962
      %v3172 = vunpack.c.l.b16 %v2963
      %v3173 = vunpack.c.h.b16 %v2963
      %v3174 = vunpack.c.l.b16 %v2964
      %v3175 = vunpack.c.h.b16 %v2964
      %v3176 = vunpack.c.l.b16 %v2965
      %v3177 = vunpack.c.h.b16 %v2965
      %v3178 = vunpack.c.l.b16 %v2966
      %v3179 = vunpack.c.h.b16 %v2966
      %v3180 = vunpack.c.l.b16 %v2967
      %v3181 = vunpack.c.h.b16 %v2967
      %v3182 = vunpack.c.l.b16 %v2968
      %v3183 = vunpack.c.h.b16 %v2968
      %v3184 = vunpack.c.l.b16 %v2969
      %v3185 = vunpack.c.h.b16 %v2969
      %v3186 = vunpack.c.l.b16 %v2970
      %v3187 = vunpack.c.h.b16 %v2970
      %v3188 = vunpack.c.l.b16 %v2971
      %v3189 = vunpack.c.h.b16 %v2971
      %v3190 = vunpack.c.l.b16 %v2972
      %v3191 = vunpack.c.h.b16 %v2972
      %v3192 = vunpack.c.l.b16 %v2973
      %v3193 = vunpack.c.h.b16 %v2973
      %v3194 = vunpack.c.l.b16 %v2974
      %v3195 = vunpack.c.h.b16 %v2974
      %v3196 = vunpack.c.l.b16 %v2975
      %v3197 = vunpack.c.h.b16 %v2975
      %v3198 = vunpack.c.l.b16 %v2976
      %v3199 = vunpack.c.h.b16 %v2976
      %v3200 = vunpack.c.l.b16 %v2977
      %v3201 = vunpack.c.h.b16 %v2977
      %v3202 = vunpack.c.l.b16 %v2978
      %v3203 = vunpack.c.h.b16 %v2978
      %v3204 = vunpack.c.l.b16 %v2979
      %v3205 = vunpack.c.h.b16 %v2979
      %v3206 = vunpack.c.l.b16 %v2980
      %v3207 = vunpack.c.h.b16 %v2980
      %v3208 = vunpack.c.l.b16 %v2981
      %v3209 = vunpack.c.h.b16 %v2981
      %v3210 = vunpack.c.l.b16 %v2982
      %v3211 = vunpack.c.h.b16 %v2982
      %v3212 = vunpack.c.l.b16 %v2983
      %v3213 = vunpack.c.h.b16 %v2983
      %v3214 = vunpack.c.l.b16 %v2984
      %v3215 = vunpack.c.h.b16 %v2984
      %v3216 = vunpack.c.l.b16 %v2985
      %v3217 = vunpack.c.h.b16 %v2985
      %v3218 = vunpack.c.l.b16 %v2986
      %v3219 = vunpack.c.h.b16 %v2986
      %v3220 = vunpack.c.l.b16 %v2987
      %v3221 = vunpack.c.h.b16 %v2987
      %v3222 = vunpack.c.l.b16 %v2988
      %v3223 = vunpack.c.h.b16 %v2988
      %v3224 = vunpack.c.l.b16 %v2989
      %v3225 = vunpack.c.h.b16 %v2989
      %v3226 = vunpack.c.l.b16 %v2990
      %v3227 = vunpack.c.h.b16 %v2990
      %v3228 = vunpack.c.l.b16 %v2991
      %v3229 = vunpack.c.h.b16 %v2991
      %v3230 = vunpack.c.l.b16 %v2992
      %v3231 = vunpack.c.h.b16 %v2992
      %v3232 = vunpack.c.l.b16 %v2993
      %v3233 = vunpack.c.h.b16 %v2993
      %v3234 = vunpack.c.l.b16 %v2994
      %v3235 = vunpack.c.h.b16 %v2994
      %v3236 = vunpack.c.l.b16 %v2995
      %v3237 = vunpack.c.h.b16 %v2995
      %v3238 = vunpack.c.l.b16 %v2996
      %v3239 = vunpack.c.h.b16 %v2996
      %v3240 = vunpack.c.l.b16 %v2997
      %v3241 = vunpack.c.h.b16 %v2997
      %v3242 = vunpack.c.l.b16 %v2998
      %v3243 = vunpack.c.h.b16 %v2998
      %v3244 = vunpack.c.l.b16 %v2999
      %v3245 = vunpack.c.h.b16 %v2999
      %v3246 = vunpack.c.l.b16 %v3000
      %v3247 = vunpack.c.h.b16 %v3000
      %v3248 = vunpack.c.l.b16 %v3001
      %v3249 = vunpack.c.h.b16 %v3001
      %v3250 = vunpack.c.l.b16 %v3002
      %v3251 = vunpack.c.h.b16 %v3002
      %v3252 = vunpack.c.l.b16 %v3003
      %v3253 = vunpack.c.h.b16 %v3003
      %v3254 = vunpack.c.l.b16 %v3004
      %v3255 = vunpack.c.h.b16 %v3004
      %v3256 = vunpack.c.l.b16 %v3005
      %v3257 = vunpack.c.h.b16 %v3005
      %v3258 = vunpack.c.l.b16 %v3006
      %v3259 = vunpack.c.h.b16 %v3006
      %v3260 = vunpack.c.l.b16 %v3007
      %v3261 = vunpack.c.h.b16 %v3007
      %v3262 = vunpack.c.l.b16 %v3008
      %v3263 = vunpack.c.h.b16 %v3008
      %v3264 = vunpack.c.l.b16 %v3009
      %v3265 = vunpack.c.h.b16 %v3009
      %v3266 = vunpack.c.l.b16 %v3010
      %v3267 = vunpack.c.h.b16 %v3010
      %v3268 = vunpack.c.l.b16 %v3011
      %v3269 = vunpack.c.h.b16 %v3011
      %v3270 = vunpack.c.l.b16 %v3012
      %v3271 = vunpack.c.h.b16 %v3012
      %v3272 = vunpack.c.l.b16 %v3013
      %v3273 = vunpack.c.h.b16 %v3013
      %v3274 = vunpack.c.l.b16 %v3014
      %v3275 = vunpack.c.h.b16 %v3014
      %v3276 = vunpack.c.l.b16 %v3015
      %v3277 = vunpack.c.h.b16 %v3015
      %v3278 = vunpack.c.l.b16 %v3016
      %v3279 = vunpack.c.h.b16 %v3016
      %v3280 = vunpack.c.l.b16 %v3017
      %v3281 = vunpack.c.h.b16 %v3017
      %v3282 = vunpack.c.l.b16 %v3018
      %v3283 = vunpack.c.h.b16 %v3018
      %v3284 = vunpack.c.l.b16 %v3019
      %v3285 = vunpack.c.h.b16 %v3019
      %v3286 = vunpack.c.l.b16 %v3020
      %v3287 = vunpack.c.h.b16 %v3020
      %v3288 = vunpack.c.l.b16 %v3021
      %v3289 = vunpack.c.h.b16 %v3021
      %v3290 = vunpack.c.l.b16 %v3022
      %v3291 = vunpack.c.h.b16 %v3022
      %v3292 = vunpack.c.l.b16 %v3023
      %v3293 = vunpack.c.h.b16 %v3023
      %v3294 = vunpack.c.l.b16 %v3024
      %v3295 = vunpack.c.h.b16 %v3024
      %v3296 = vunpack.c.l.b16 %v3025
      %v3297 = vunpack.c.h.b16 %v3025
      %v3298 = vunpack.c.l.b16 %v3026
      %v3299 = vunpack.c.h.b16 %v3026
      %v3300 = vunpack.c.l.b16 %v3027
      %v3301 = vunpack.c.h.b16 %v3027
      %v3302 = vunpack.c.l.b16 %v3028
      %v3303 = vunpack.c.h.b16 %v3028
      %v3304 = vunpack.c.l.b16 %v3029
      %v3305 = vunpack.c.h.b16 %v3029
      %v3306 = vunpack.c.l.b16 %v3030
      %v3307 = vunpack.c.h.b16 %v3030
      %v3308 = vunpack.c.l.b16 %v3031
      %v3309 = vunpack.c.h.b16 %v3031
      %v3310 = vunpack.c.l.b16 %v3032
      %v3311 = vunpack.c.h.b16 %v3032
      %v3312 = vunpack.c.l.b16 %v3033
      %v3313 = vunpack.c.h.b16 %v3033
      %v3314 = vunpack.c.l.b16 %v3034
      %v3315 = vunpack.c.h.b16 %v3034
      %v3316 = vunpack.c.l.b16 %v3035
      %v3317 = vunpack.c.h.b16 %v3035
      %v3318 = vunpack.c.l.b16 %v3036
      %v3319 = vunpack.c.h.b16 %v3036
      %v3320 = vunpack.c.l.b16 %v3037
      %v3321 = vunpack.c.h.b16 %v3037
      %v3322 = vunpack.c.l.b16 %v3038
      %v3323 = vunpack.c.h.b16 %v3038
      %v3324 = vunpack.c.l.b16 %v3039
      %v3325 = vunpack.c.h.b16 %v3039
      %v3326 = vunpack.c.l.b16 %v3040
      %v3327 = vunpack.c.h.b16 %v3040
      %v3328 = vunpack.c.l.b16 %v3041
      %v3329 = vunpack.c.h.b16 %v3041
      %v3330 = vpack.c.b16 %v3140, %v3138
      %v3331 = vpack.c.b16 %v3141, %v3139
      %v3332 = vpack.c.b16 %v3144, %v3142
      %v3333 = vpack.c.b16 %v3145, %v3143
      %v3334 = vpack.c.b16 %v3148, %v3146
      %v3335 = vpack.c.b16 %v3149, %v3147
      %v3336 = vpack.c.b16 %v3152, %v3150
      %v3337 = vpack.c.b16 %v3153, %v3151
      %v3338 = vpack.c.b16 %v3156, %v3154
      %v3339 = vpack.c.b16 %v3157, %v3155
      %v3340 = vpack.c.b16 %v3160, %v3158
      %v3341 = vpack.c.b16 %v3161, %v3159
      %v3342 = vpack.c.b16 %v3164, %v3162
      %v3343 = vpack.c.b16 %v3165, %v3163
      %v3344 = vpack.c.b16 %v3168, %v3166
      %v3345 = vpack.c.b16 %v3169, %v3167
      %v3346 = vpack.c.b16 %v3172, %v3170
      %v3347 = vpack.c.b16 %v3173, %v3171
      %v3348 = vpack.c.b16 %v3176, %v3174
      %v3349 = vpack.c.b16 %v3177, %v3175
      %v3350 = vpack.c.b16 %v3180, %v3178
      %v3351 = vpack.c.b16 %v3181, %v3179
      %v3352 = vpack.c.b16 %v3184, %v3182
      %v3353 = vpack.c.b16 %v3185, %v3183
      %v3354 = vpack.c.b16 %v3188, %v3186
      %v3355 = vpack.c.b16 %v3189, %v3187
      %v3356 = vpack.c.b16 %v3192, %v3190
      %v3357 = vpack.c.b16 %v3193, %v3191
      %v3358 = vpack.c.b16 %v3196, %v3194
      %v3359 = vpack.c.b16 %v3197, %v3195
      %v3360 = vpack.c.b16 %v3200, %v3198
      %v3361 = vpack.c.b16 %v3201, %v3199
      %v3362 = vpack.c.b16 %v3204, %v3202
      %v3363 = vpack.c.b16 %v3205, %v3203
      %v3364 = vpack.c.b16 %v3208, %v3206
      %v3365 = vpack.c.b16 %v3209, %v3207
      %v3366 = vpack.c.b16 %v3212, %v3210
      %v3367 = vpack.c.b16 %v3213, %v3211
      %v3368 = vpack.c.b16 %v3216, %v3214
      %v3369 = vpack.c.b16 %v3217, %v3215
      %v3370 = vpack.c.b16 %v3220, %v3218
      %v3371 = vpack.c.b16 %v3221, %v3219
      %v3372 = vpack.c.b16 %v3224, %v3222
      %v3373 = vpack.c.b16 %v3225, %v3223
      %v3374 = vpack.c.b16 %v3228, %v3226
      %v3375 = vpack.c.b16 %v3229, %v3227
      %v3376 = vpack.c.b16 %v3232, %v3230
      %v3377 = vpack.c.b16 %v3233, %v3231
      %v3378 = vpack.c.b16 %v3236, %v3234
      %v3379 = vpack.c.b16 %v3237, %v3235
      %v3380 = vpack.c.b16 %v3240, %v3238
      %v3381 = vpack.c.b16 %v3241, %v3239
      %v3382 = vpack.c.b16 %v3244, %v3242
      %v3383 = vpack.c.b16 %v3245, %v3243
      %v3384 = vpack.c.b16 %v3248, %v3246
      %v3385 = vpack.c.b16 %v3249, %v3247
      %v3386 = vpack.c.b16 %v3252, %v3250
      %v3387 = vpack.c.b16 %v3253, %v3251
      %v3388 = vpack.c.b16 %v3256, %v3254
      %v3389 = vpack.c.b16 %v3257, %v3255
      %v3390 = vpack.c.b16 %v3260, %v3258
      %v3391 = vpack.c.b16 %v3261, %v3259
      %v3392 = vpack.c.b16 %v3264, %v3262
      %v3393 = vpack.c.b16 %v3265, %v3263
      %v3394 = vpack.c.b16 %v3268, %v3266
      %v3395 = vpack.c.b16 %v3269, %v3267
      %v3396 = vpack.c.b16 %v3272, %v3270
      %v3397 = vpack.c.b16 %v3273, %v3271
      %v3398 = vpack.c.b16 %v3276, %v3274
      %v3399 = vpack.c.b16 %v3277, %v3275
      %v3400 = vpack.c.b16 %v3280, %v3278
      %v3401 = vpack.c.b16 %v3281, %v3279
      %v3402 = vpack.c.b16 %v3284, %v3282
      %v3403 = vpack.c.b16 %v3285, %v3283
      %v3404 = vpack.c.b16 %v3288, %v3286
      %v3405 = vpack.c.b16 %v3289, %v3287
      %v3406 = vpack.c.b16 %v3292, %v3290
      %v3407 = vpack.c.b16 %v3293, %v3291
      %v3408 = vpack.c.b16 %v3296, %v3294
      %v3409 = vpack.c.b16 %v3297, %v3295
      %v3410 = vpack.c.b16 %v3300, %v3298
      %v3411 = vpack.c.b16 %v3301, %v3299
      %v3412 = vpack.c.b16 %v3304, %v3302
      %v3413 = vpack.c.b16 %v3305, %v3303
      %v3414 = vpack.c.b16 %v3308, %v3306
      %v3415 = vpack.c.b16 %v3309, %v3307
      %v3416 = vpack.c.b16 %v3312, %v3310
      %v3417 = vpack.c.b16 %v3313, %v3311
      %v3418 = vpack.c.b16 %v3316, %v3314
      %v3419 = vpack.c.b16 %v3317, %v3315
      %v3420 = vpack.c.b16 %v3320, %v3318
      %v3421 = vpack.c.b16 %v3321, %v3319
      %v3422 = vpack.c.b16 %v3324, %v3322
      %v3423 = vpack.c.b16 %v3325, %v3323
      %v3424 = vpack.c.b16 %v3328, %v3326
      %v3425 = vpack.c.b16 %v3329, %v3327
      %3522 = vmatpush.bf16.msra.mxu0 %v3344
      %3523 = vmatpush.bf16.msra.mxu0 %v3342
      %3524 = vmatpush.bf16.msra.mxu0 %v3340
      %3525 = vmatpush.bf16.msra.mxu0 %v3338
      %3526 = vmatpush.bf16.msra.mxu0 %v3336
      %3527 = vmatpush.bf16.msra.mxu0 %v3334
      %3528 = vmatpush.bf16.msra.mxu0 %v3332
      %3529 = vmatpush.bf16.msra.mxu0 %v3330
      %3530 = vmatmul.bf16.gmra.mxu0 %v2894
      %v3531 = vpop.f32.mrf.mxu0
      %v3532 = vadd.f32 0.0, %v3531
      %v3533 = vpop.f32.mrf.mxu0
      %v3534 = vadd.f32 0.0, %v3533
      %3535 = vmatmul.bf16.gmra.mxu0 %v2896
      %v3536 = vpop.f32.mrf.mxu0
      %v3537 = vadd.f32 0.0, %v3536
      %v3538 = vpop.f32.mrf.mxu0
      %3539 = vdwg.mxu0
      %3540 = vmatpush.bf16.msra.mxu0 %v3360
      %3541 = vmatpush.bf16.msra.mxu0 %v3358
      %3542 = vmatpush.bf16.msra.mxu0 %v3356
      %3543 = vmatpush.bf16.msra.mxu0 %v3354
      %3544 = vmatpush.bf16.msra.mxu0 %v3352
      %3545 = vmatpush.bf16.msra.mxu0 %v3350
      %3546 = vmatpush.bf16.msra.mxu0 %v3348
      %3547 = vmatpush.bf16.msra.mxu0 %v3346
      %3548 = vmatmul.bf16.gmra.mxu0 %v2895
      %v3549 = vpop.f32.mrf.mxu0
      %v3550 = vadd.f32 %v3532, %v3549
      %v3551 = vpop.f32.mrf.mxu0
      %v3552 = vadd.f32 %v3534, %v3551
      %3553 = vmatmul.bf16.gmra.mxu0 %v2897
      %v3554 = vpop.f32.mrf.mxu0
      %v3555 = vadd.f32 %v3537, %v3554
      %v3556 = vpop.f32.mrf.mxu0
      %3557 = vdwg.mxu0
      %3558 = vmatpush.bf16.msra.mxu0 %v3376
      %3559 = vmatpush.bf16.msra.mxu0 %v3374
      %3560 = vmatpush.bf16.msra.mxu0 %v3372
      %3561 = vmatpush.bf16.msra.mxu0 %v3370
      %3562 = vmatpush.bf16.msra.mxu0 %v3368
      %3563 = vmatpush.bf16.msra.mxu0 %v3366
      %3564 = vmatpush.bf16.msra.mxu0 %v3364
      %3565 = vmatpush.bf16.msra.mxu0 %v3362
      %3566 = vmatmul.bf16.gmra.mxu0 %v2913
      %v3567 = vpop.f32.mrf.mxu0
      %v3568 = vadd.f32 %v3550, %v3567
      %v3569 = vpop.f32.mrf.mxu0
      %v3570 = vadd.f32 %v3552, %v3569
      %3571 = vmatmul.bf16.gmra.mxu0 %v2928
      %v3572 = vpop.f32.mrf.mxu0
      %v3573 = vadd.f32 %v3555, %v3572
      %v3574 = vpop.f32.mrf.mxu0
      %3575 = vdwg.mxu0
      %3576 = vmatpush.bf16.msra.mxu0 %v3392
      %3577 = vmatpush.bf16.msra.mxu0 %v3390
      %3578 = vmatpush.bf16.msra.mxu0 %v3388
      %3579 = vmatpush.bf16.msra.mxu0 %v3386
      %3580 = vmatpush.bf16.msra.mxu0 %v3384
      %3581 = vmatpush.bf16.msra.mxu0 %v3382
      %3582 = vmatpush.bf16.msra.mxu0 %v3380
      %3583 = vmatpush.bf16.msra.mxu0 %v3378
      %3584 = vmatmul.bf16.gmra.mxu0 %v2925
      %v3585 = vpop.f32.mrf.mxu0
      %v3586 = vadd.f32 %v3568, %v3585
      %v3587 = vpop.f32.mrf.mxu0
      %v3588 = vadd.f32 %v3570, %v3587
      %3589 = vmatmul.bf16.gmra.mxu0 %v2931
      %v3590 = vpop.f32.mrf.mxu0
      %v3591 = vadd.f32 %v3573, %v3590
      %v3592 = vpop.f32.mrf.mxu0
      %3593 = vdwg.mxu0
      %3594 = vmatpush.bf16.msra.mxu0 %v3408
      %3595 = vmatpush.bf16.msra.mxu0 %v3406
      %3596 = vmatpush.bf16.msra.mxu0 %v3404
      %3597 = vmatpush.bf16.msra.mxu0 %v3402
      %3598 = vmatpush.bf16.msra.mxu0 %v3400
      %3599 = vmatpush.bf16.msra.mxu0 %v3398
      %3600 = vmatpush.bf16.msra.mxu0 %v3396
      %3601 = vmatpush.bf16.msra.mxu0 %v3394
      %3602 = vmatmul.bf16.gmra.mxu0 %v2938
      %v3603 = vpop.f32.mrf.mxu0
      %v3604 = vadd.f32 %v3586, %v3603
      %v3605 = vpop.f32.mrf.mxu0
      %v3606 = vadd.f32 %v3588, %v3605
      %3607 = vmatmul.bf16.gmra.mxu0 %v2937
      %v3608 = vpop.f32.mrf.mxu0
      %v3609 = vadd.f32 %v3591, %v3608
      %v3610 = vpop.f32.mrf.mxu0
      %3611 = vdwg.mxu0
      %3612 = vmatpush.bf16.msra.mxu0 %v3424
      %3613 = vmatpush.bf16.msra.mxu0 %v3422
      %3614 = vmatpush.bf16.msra.mxu0 %v3420
      %3615 = vmatpush.bf16.msra.mxu0 %v3418
      %3616 = vmatpush.bf16.msra.mxu0 %v3416
      %3617 = vmatpush.bf16.msra.mxu0 %v3414
      %3618 = vmatpush.bf16.msra.mxu0 %v3412
      %3619 = vmatpush.bf16.msra.mxu0 %v3410
      %3620 = vmatmul.bf16.gmra.mxu0 %v2941
      %v3621 = vpop.f32.mrf.mxu0
      %v3622 = vadd.f32 %v3604, %v3621
      %v3623 = vpop.f32.mrf.mxu0
      %v3624 = vadd.f32 %v3606, %v3623
      %3625 = vmatmul.bf16.gmra.mxu0 %v2940
      %v3626 = vpop.f32.mrf.mxu0
      %v3627 = vadd.f32 %v3609, %v3626
      %v3628 = vpop.f32.mrf.mxu0
      %3629 = vdwg.mxu0
      %3630 = vmatpush.bf16.msra.mxu0 %v3345
      %3631 = vmatpush.bf16.msra.mxu0 %v3343
      %3632 = vmatpush.bf16.msra.mxu0 %v3341
      %3633 = vmatpush.bf16.msra.mxu0 %v3339
      %3634 = vmatpush.bf16.msra.mxu0 %v3337
      %3635 = vmatpush.bf16.msra.mxu0 %v3335
      %3636 = vmatpush.bf16.msra.mxu0 %v3333
      %3637 = vmatpush.bf16.msra.mxu0 %v3331
      %3638 = vmatmul.bf16.gmra.mxu0 %v2894
      %v3639 = vpop.f32.mrf.mxu0
      %v3640 = vadd.f32 0.0, %v3639
      %v3641 = vpop.f32.mrf.mxu0
      %v3642 = vadd.f32 0.0, %v3641
      %3643 = vmatmul.bf16.gmra.mxu0 %v2896
      %v3644 = vpop.f32.mrf.mxu0
      %v3645 = vadd.f32 0.0, %v3644
      %v3646 = vpop.f32.mrf.mxu0
      %3647 = vdwg.mxu0
      %3648 = vmatpush.bf16.msra.mxu0 %v3361
      %3649 = vmatpush.bf16.msra.mxu0 %v3359
      %3650 = vmatpush.bf16.msra.mxu0 %v3357
      %3651 = vmatpush.bf16.msra.mxu0 %v3355
      %3652 = vmatpush.bf16.msra.mxu0 %v3353
      %3653 = vmatpush.bf16.msra.mxu0 %v3351
      %3654 = vmatpush.bf16.msra.mxu0 %v3349
      %3655 = vmatpush.bf16.msra.mxu0 %v3347
      %3656 = vmatmul.bf16.gmra.mxu0 %v2895
      %v3657 = vpop.f32.mrf.mxu0
      %v3658 = vadd.f32 %v3640, %v3657
      %v3659 = vpop.f32.mrf.mxu0
      %v3660 = vadd.f32 %v3642, %v3659
      %3661 = vmatmul.bf16.gmra.mxu0 %v2897
      %v3662 = vpop.f32.mrf.mxu0
      %v3663 = vadd.f32 %v3645, %v3662
      %v3664 = vpop.f32.mrf.mxu0
      %3665 = vdwg.mxu0
      %3666 = vmatpush.bf16.msra.mxu0 %v3377
      %3667 = vmatpush.bf16.msra.mxu0 %v3375
      %3668 = vmatpush.bf16.msra.mxu0 %v3373
      %3669 = vmatpush.bf16.msra.mxu0 %v3371
      %3670 = vmatpush.bf16.msra.mxu0 %v3369
      %3671 = vmatpush.bf16.msra.mxu0 %v3367
      %3672 = vmatpush.bf16.msra.mxu0 %v3365
      %3673 = vmatpush.bf16.msra.mxu0 %v3363
      %3674 = vmatmul.bf16.gmra.mxu0 %v2913
      %v3675 = vpop.f32.mrf.mxu0
      %v3676 = vadd.f32 %v3658, %v3675
      %v3677 = vpop.f32.mrf.mxu0
      %v3678 = vadd.f32 %v3660, %v3677
      %3679 = vmatmul.bf16.gmra.mxu0 %v2928
      %v3680 = vpop.f32.mrf.mxu0
      %v3681 = vadd.f32 %v3663, %v3680
      %v3682 = vpop.f32.mrf.mxu0
      %3683 = vdwg.mxu0
      %3684 = vmatpush.bf16.msra.mxu0 %v3393
      %3685 = vmatpush.bf16.msra.mxu0 %v3391
      %3686 = vmatpush.bf16.msra.mxu0 %v3389
      %3687 = vmatpush.bf16.msra.mxu0 %v3387
      %3688 = vmatpush.bf16.msra.mxu0 %v3385
      %3689 = vmatpush.bf16.msra.mxu0 %v3383
      %3690 = vmatpush.bf16.msra.mxu0 %v3381
      %3691 = vmatpush.bf16.msra.mxu0 %v3379
      %3692 = vmatmul.bf16.gmra.mxu0 %v2925
      %v3693 = vpop.f32.mrf.mxu0
      %v3694 = vadd.f32 %v3676, %v3693
      %v3695 = vpop.f32.mrf.mxu0
      %v3696 = vadd.f32 %v3678, %v3695
      %3697 = vmatmul.bf16.gmra.mxu0 %v2931
      %v3698 = vpop.f32.mrf.mxu0
      %v3699 = vadd.f32 %v3681, %v3698
      %v3700 = vpop.f32.mrf.mxu0
      %3701 = vdwg.mxu0
      %3702 = vmatpush.bf16.msra.mxu0 %v3409
      %3703 = vmatpush.bf16.msra.mxu0 %v3407
      %3704 = vmatpush.bf16.msra.mxu0 %v3405
      %3705 = vmatpush.bf16.msra.mxu0 %v3403
      %3706 = vmatpush.bf16.msra.mxu0 %v3401
      %3707 = vmatpush.bf16.msra.mxu0 %v3399
      %3708 = vmatpush.bf16.msra.mxu0 %v3397
      %3709 = vmatpush.bf16.msra.mxu0 %v3395
      %3710 = vmatmul.bf16.gmra.mxu0 %v2938
      %v3711 = vpop.f32.mrf.mxu0
      %v3712 = vadd.f32 %v3694, %v3711
      %v3713 = vpop.f32.mrf.mxu0
      %v3714 = vadd.f32 %v3696, %v3713
      %3715 = vmatmul.bf16.gmra.mxu0 %v2937
      %v3716 = vpop.f32.mrf.mxu0
      %v3717 = vadd.f32 %v3699, %v3716
      %v3718 = vpop.f32.mrf.mxu0
      %3719 = vdwg.mxu0
      %3720 = vmatpush.bf16.msra.mxu0 %v3425
      %3721 = vmatpush.bf16.msra.mxu0 %v3423
      %3722 = vmatpush.bf16.msra.mxu0 %v3421
      %3723 = vmatpush.bf16.msra.mxu0 %v3419
      %3724 = vmatpush.bf16.msra.mxu0 %v3417
      %3725 = vmatpush.bf16.msra.mxu0 %v3415
      %3726 = vmatpush.bf16.msra.mxu0 %v3413
      %3727 = vmatpush.bf16.msra.mxu0 %v3411
      %3728 = vmatmul.bf16.gmra.mxu0 %v2941
      %v3729 = vpop.f32.mrf.mxu0
      %v3730 = vadd.f32 %v3712, %v3729
      %v3731 = vpop.f32.mrf.mxu0
      %v3732 = vadd.f32 %v3714, %v3731
      %3733 = vmatmul.bf16.gmra.mxu0 %v2940
      %v3734 = vpop.f32.mrf.mxu0
      %v3735 = vadd.f32 %v3717, %v3734
      %v3736 = vpop.f32.mrf.mxu0
      %3737 = vdwg.mxu0
      %v3738 = vld [vmem:[%s53] sm:$0x3]
      %v3740 = vperm.slane %v3738, 0
      %v3741 = vperm.slane %v3738, 1
      %v3744 = vmul.f32 %v3622, %v3740
      %v3745 = vmul.f32 %v3730, %v3741
      %v3746 = vmul.f32 %v3624, %v3740
      %v3747 = vmul.f32 %v3732, %v3741
      %v3748 = vmul.f32 %v3627, %v3740
      %v3749 = vmul.f32 %v3735, %v3741
      %v3750 = vld [vmem:[%s55] sm:$0x3]
      %v3752 = vperm.slane %v3750, 0
      %v3753 = vperm.slane %v3750, 1
      %v3756 = vadd.f32 %v3744, %v3752
      %v3757 = vadd.f32 %v3745, %v3753
      %v3758 = vadd.f32 %v3746, %v3752
      %v3759 = vadd.f32 %v3747, %v3753
      %v3760 = vadd.f32 %v3748, %v3752
      %v3761 = vadd.f32 %v3749, %v3753
      %v3762 = vld [vmem:[%s39] sm:$0xff]
      %v3763 = vld [vmem:[%s39 + $0x8] sm:$0xff]
      %v3764 = vld [vmem:[%s39 + $0x10] sm:$0xff]
      %v3765 = vld [vmem:[%s39 + $0x18] sm:$0xff]
      %v3766 = vld [vmem:[%s39 + $0x20] sm:$0xff]
      %v3767 = vld [vmem:[%s39 + $0x28] sm:$0xff]
      %v3768 = vld [vmem:[%s39 + $0x30] sm:$0xff]
      %v3769 = vld [vmem:[%s39 + $0x38] sm:$0xff]
      %v3770 = vld [vmem:[%s39 + $0x40] sm:$0xff]
      %v3771 = vld [vmem:[%s39 + $0x48] sm:$0xff]
      %v3772 = vld [vmem:[%s39 + $0x50] sm:$0xff]
      %v3773 = vld [vmem:[%s39 + $0x58] sm:$0xff]
      %v3774 = vld [vmem:[%s39 + $0x60] sm:$0xff]
      %v3775 = vld [vmem:[%s39 + $0x68] sm:$0xff]
      %v3776 = vld [vmem:[%s39 + $0x70] sm:$0xff]
      %v3777 = vld [vmem:[%s39 + $0x78] sm:$0xff]
      %v3794 = vunpack.c.l.b16 %v3762
      %v3795 = vunpack.c.h.b16 %v3762
      %v3796 = vunpack.c.l.b16 %v3763
      %v3797 = vunpack.c.h.b16 %v3763
      %v3798 = vunpack.c.l.b16 %v3764
      %v3799 = vunpack.c.h.b16 %v3764
      %v3800 = vunpack.c.l.b16 %v3765
      %v3801 = vunpack.c.h.b16 %v3765
      %v3802 = vunpack.c.l.b16 %v3766
      %v3803 = vunpack.c.h.b16 %v3766
      %v3804 = vunpack.c.l.b16 %v3767
      %v3805 = vunpack.c.h.b16 %v3767
      %v3806 = vunpack.c.l.b16 %v3768
      %v3807 = vunpack.c.h.b16 %v3768
      %v3808 = vunpack.c.l.b16 %v3769
      %v3809 = vunpack.c.h.b16 %v3769
      %v3810 = vunpack.c.l.b16 %v3770
      %v3811 = vunpack.c.h.b16 %v3770
      %v3812 = vunpack.c.l.b16 %v3771
      %v3813 = vunpack.c.h.b16 %v3771
      %v3814 = vunpack.c.l.b16 %v3772
      %v3815 = vunpack.c.h.b16 %v3772
      %v3816 = vunpack.c.l.b16 %v3773
      %v3817 = vunpack.c.h.b16 %v3773
      %v3818 = vunpack.c.l.b16 %v3774
      %v3819 = vunpack.c.h.b16 %v3774
      %v3820 = vunpack.c.l.b16 %v3775
      %v3821 = vunpack.c.h.b16 %v3775
      %v3822 = vunpack.c.l.b16 %v3776
      %v3823 = vunpack.c.h.b16 %v3776
      %v3824 = vunpack.c.l.b16 %v3777
      %v3825 = vunpack.c.h.b16 %v3777
      %v3826 = vpack.c.b16 %v3796, %v3794
      %v3827 = vpack.c.b16 %v3797, %v3795
      %v3828 = vpack.c.b16 %v3800, %v3798
      %v3829 = vpack.c.b16 %v3801, %v3799
      %v3830 = vpack.c.b16 %v3804, %v3802
      %v3831 = vpack.c.b16 %v3805, %v3803
      %v3832 = vpack.c.b16 %v3808, %v3806
      %v3833 = vpack.c.b16 %v3809, %v3807
      %v3834 = vpack.c.b16 %v3812, %v3810
      %v3835 = vpack.c.b16 %v3813, %v3811
      %v3836 = vpack.c.b16 %v3816, %v3814
      %v3837 = vpack.c.b16 %v3817, %v3815
      %v3838 = vpack.c.b16 %v3820, %v3818
      %v3839 = vpack.c.b16 %v3821, %v3819
      %v3840 = vpack.c.b16 %v3824, %v3822
      %v3841 = vpack.c.b16 %v3825, %v3823
      %3858 = vmatpush.bf16.msra.mxu0 %v3840
      %3859 = vmatpush.bf16.msra.mxu0 %v3838
      %3860 = vmatpush.bf16.msra.mxu0 %v3836
      %3861 = vmatpush.bf16.msra.mxu0 %v3834
      %3862 = vmatpush.bf16.msra.mxu0 %v3832
      %3863 = vmatpush.bf16.msra.mxu0 %v3830
      %3864 = vmatpush.bf16.msra.mxu0 %v3828
      %3865 = vmatpush.bf16.msra.mxu0 %v3826
      %3866 = vmatmul.bf16.gmra.mxu0 %v2427
      %v3867 = vpop.f32.mrf.mxu0
      %v3868 = vadd.f32 0.0, %v3867
      %v3869 = vpop.f32.mrf.mxu0
      %v3870 = vadd.f32 0.0, %v3869
      %3871 = vmatmul.bf16.gmra.mxu0 %v2426
      %v3872 = vpop.f32.mrf.mxu0
      %v3873 = vadd.f32 0.0, %v3872
      %v3874 = vpop.f32.mrf.mxu0
      %3875 = vdwg.mxu0
      %3876 = vmatpush.bf16.msra.mxu0 %v3841
      %3877 = vmatpush.bf16.msra.mxu0 %v3839
      %3878 = vmatpush.bf16.msra.mxu0 %v3837
      %3879 = vmatpush.bf16.msra.mxu0 %v3835
      %3880 = vmatpush.bf16.msra.mxu0 %v3833
      %3881 = vmatpush.bf16.msra.mxu0 %v3831
      %3882 = vmatpush.bf16.msra.mxu0 %v3829
      %3883 = vmatpush.bf16.msra.mxu0 %v3827
      %3884 = vmatmul.bf16.gmra.mxu0 %v2427
      %v3885 = vpop.f32.mrf.mxu0
      %v3886 = vadd.f32 0.0, %v3885
      %v3887 = vpop.f32.mrf.mxu0
      %v3888 = vadd.f32 0.0, %v3887
      %3889 = vmatmul.bf16.gmra.mxu0 %v2426
      %v3890 = vpop.f32.mrf.mxu0
      %v3891 = vadd.f32 0.0, %v3890
      %v3892 = vpop.f32.mrf.mxu0
      %3893 = vdwg.mxu0
      %v3894 = vld [vmem:[%s41] sm:$0x3]
      %v3896 = vperm.slane %v3894, 0
      %v3897 = vperm.slane %v3894, 1
      %v3900 = vmul.f32 %v3868, %v3896
      %v3901 = vmul.f32 %v3886, %v3897
      %v3902 = vmul.f32 %v3870, %v3896
      %v3903 = vmul.f32 %v3888, %v3897
      %v3904 = vmul.f32 %v3873, %v3896
      %v3905 = vmul.f32 %v3891, %v3897
      %v3906 = vld [vmem:[%s43] sm:$0x3]
      %v3908 = vperm.slane %v3906, 0
      %v3909 = vperm.slane %v3906, 1
      %v3912 = vadd.f32 %v3900, %v3908
      %v3913 = vadd.f32 %v3901, %v3909
      %v3914 = vadd.f32 %v3902, %v3908
      %v3915 = vadd.f32 %v3903, %v3909
      %v3916 = vadd.f32 %v3904, %v3908
      %v3917 = vadd.f32 %v3905, %v3909
      %v3918 = vadd.f32 %v3756, %v3912
      %v3919 = vadd.f32 %v3757, %v3913
      %v3920 = vadd.f32 %v3758, %v3914
      %v3921 = vadd.f32 %v3759, %v3915
      %v3922 = vadd.f32 %v3760, %v3916
      %v3923 = vadd.f32 %v3761, %v3917
      %v3924 = vmax.f32 %v3918, 0.0
      %v3925 = vmax.f32 %v3919, 0.0
      %v3926 = vmax.f32 %v3920, 0.0
      %v3927 = vmax.f32 %v3921, 0.0
      %v3928 = vmax.f32 %v3922, 0.0
      %v3929 = vmax.f32 %v3923, 0.0
      %s3930 = sadd.s32 %s1192, 4294967294
      %v3931 = vstv %s3930
      %v3932 = vadd.s32 %v1247, %v3931
      %v3933 = vadd.s32 %v1248, %v3931
      %v3934 = vadd.s32 %v1249, %v3931
      %vm3935 = vcmp.ge.s32.totalorder %v3932, 0
      %vm3936 = vcmp.ge.s32.totalorder %v3933, 0
      %vm3937 = vcmp.ge.s32.totalorder %v3934, 0
      %vm3938 = vcmp.lt.s32.totalorder %v3932, 16
      %vm3939 = vcmp.lt.s32.totalorder %v3933, 16
      %vm3940 = vcmp.lt.s32.totalorder %v3934, 16
      %vm3941 = vmand %vm3935, %vm3938
      %vm3942 = vmand %vm3936, %vm3939
      %vm3943 = vmand %vm3937, %vm3940
      %v3944 = vsel %vm3941, 1, 0
      %v3945 = vsel %vm3942, 1, 0
      %v3946 = vsel %vm3943, 1, 0
      %vm3947 = vcmp.eq.s32.totalorder %v3944, 1
      %vm3948 = vcmp.eq.s32.totalorder %v3945, 1
      %vm3949 = vcmp.eq.s32.totalorder %v3946, 1
      %v3950 = vsel %vm3947, %v3924, 0.0
      %v3951 = vsel %vm3947, %v3925, 0.0
      %v3952 = vsel %vm3948, %v3926, 0.0
      %v3953 = vsel %vm3948, %v3927, 0.0
      %v3954 = vsel %vm3949, %v3928, 0.0
      %v3955 = vsel %vm3949, %v3929, 0.0
      %v3956 = vpack.c.bf16 %v3951, %v3950
      %v3957 = vpack.c.bf16 %v3953, %v3952
      %v3958 = vpack.c.bf16 %v3955, %v3954
      %v3962 = vunpack.c.l.b16 %v3956
      %v3963 = vunpack.c.h.b16 %v3956
      %v3964 = vunpack.c.l.b16 %v3957
      %v3965 = vunpack.c.h.b16 %v3957
      %v3966 = vunpack.c.l.b16 %v3958
      %v3967 = vunpack.c.h.b16 %v3958
      %v3968 = vpack.c.b16 %v3964, %v3962
      %v3969 = vpack.c.b16 %v3965, %v3963
      %v3970 = vpack.c.b16 %v3966, %v3966
      %v3971 = vpack.c.b16 %v3967, %v3967
      %v3977 = vshrl.u32 %v3968, 16
      %v3979 = vshll.u32 %v3968, 16
      %v3981 = vrot.slane %v3979, 1
      %v3982 = vor.u32 %v3977, %v3981
      %v3984 = vshll.u32 %v3970, 16
      %v3986 = vrot.slane %v3984, 1
      %v3987 = vsel %vm1294, %v3982, %v3986
      %v3989 = vshrl.u32 %v3969, 16
      %v3991 = vshll.u32 %v3969, 16
      %v3993 = vrot.slane %v3991, 1
      %v3994 = vor.u32 %v3989, %v3993
      %v3996 = vshll.u32 %v3971, 16
      %v3998 = vrot.slane %v3996, 1
      %v3999 = vsel %vm1294, %v3994, %v3998
      %v4000 = vshrl.u32 %v3970, 16
      %v4002 = vor.u32 %v4000, %v3986
      %v4003 = vshrl.u32 %v3971, 16
      %v4005 = vor.u32 %v4003, %v3998
      %v4010 = vrot.slane %v3968, 1
      %v4011 = vrot.slane %v3970, 1
      %v4012 = vsel %vm1314, %v4010, %v4011
      %v4013 = vrot.slane %v3969, 1
      %v4014 = vrot.slane %v3971, 1
      %v4015 = vsel %vm1314, %v4013, %v4014
      %v4020 = vld [vmem:[%s63] sm:$0xff]
      %v4021 = vld [vmem:[%s63 + $0x8] sm:$0xff]
      %v4022 = vld [vmem:[%s63 + $0x10] sm:$0xff]
      %v4023 = vld [vmem:[%s63 + $0x18] sm:$0xff]
      %v4024 = vld [vmem:[%s63 + $0x20] sm:$0xff]
      %v4025 = vld [vmem:[%s63 + $0x28] sm:$0xff]
      %v4026 = vld [vmem:[%s63 + $0x30] sm:$0xff]
      %v4027 = vld [vmem:[%s63 + $0x38] sm:$0xff]
      %v4028 = vld [vmem:[%s63 + $0x40] sm:$0xff]
      %v4029 = vld [vmem:[%s63 + $0x48] sm:$0xff]
      %v4030 = vld [vmem:[%s63 + $0x50] sm:$0xff]
      %v4031 = vld [vmem:[%s63 + $0x58] sm:$0xff]
      %v4032 = vld [vmem:[%s63 + $0x60] sm:$0xff]
      %v4033 = vld [vmem:[%s63 + $0x68] sm:$0xff]
      %v4034 = vld [vmem:[%s63 + $0x70] sm:$0xff]
      %v4035 = vld [vmem:[%s63 + $0x78] sm:$0xff]
      %v4036 = vld [vmem:[%s63 + $0x80] sm:$0xff]
      %v4037 = vld [vmem:[%s63 + $0x88] sm:$0xff]
      %v4038 = vld [vmem:[%s63 + $0x90] sm:$0xff]
      %v4039 = vld [vmem:[%s63 + $0x98] sm:$0xff]
      %v4040 = vld [vmem:[%s63 + $0xa0] sm:$0xff]
      %v4041 = vld [vmem:[%s63 + $0xa8] sm:$0xff]
      %v4042 = vld [vmem:[%s63 + $0xb0] sm:$0xff]
      %v4043 = vld [vmem:[%s63 + $0xb8] sm:$0xff]
      %v4044 = vld [vmem:[%s63 + $0xc0] sm:$0xff]
      %v4045 = vld [vmem:[%s63 + $0xc8] sm:$0xff]
      %v4046 = vld [vmem:[%s63 + $0xd0] sm:$0xff]
      %v4047 = vld [vmem:[%s63 + $0xd8] sm:$0xff]
      %v4048 = vld [vmem:[%s63 + $0xe0] sm:$0xff]
      %v4049 = vld [vmem:[%s63 + $0xe8] sm:$0xff]
      %v4050 = vld [vmem:[%s63 + $0xf0] sm:$0xff]
      %v4051 = vld [vmem:[%s63 + $0xf8] sm:$0xff]
      %v4052 = vld [vmem:[%s63 + $0x100] sm:$0xff]
      %v4053 = vld [vmem:[%s63 + $0x108] sm:$0xff]
      %v4054 = vld [vmem:[%s63 + $0x110] sm:$0xff]
      %v4055 = vld [vmem:[%s63 + $0x118] sm:$0xff]
      %v4056 = vld [vmem:[%s63 + $0x120] sm:$0xff]
      %v4057 = vld [vmem:[%s63 + $0x128] sm:$0xff]
      %v4058 = vld [vmem:[%s63 + $0x130] sm:$0xff]
      %v4059 = vld [vmem:[%s63 + $0x138] sm:$0xff]
      %v4060 = vld [vmem:[%s63 + $0x140] sm:$0xff]
      %v4061 = vld [vmem:[%s63 + $0x148] sm:$0xff]
      %v4062 = vld [vmem:[%s63 + $0x150] sm:$0xff]
      %v4063 = vld [vmem:[%s63 + $0x158] sm:$0xff]
      %v4064 = vld [vmem:[%s63 + $0x160] sm:$0xff]
      %v4065 = vld [vmem:[%s63 + $0x168] sm:$0xff]
      %v4066 = vld [vmem:[%s63 + $0x170] sm:$0xff]
      %v4067 = vld [vmem:[%s63 + $0x178] sm:$0xff]
      %v4068 = vld [vmem:[%s63 + $0x180] sm:$0xff]
      %v4069 = vld [vmem:[%s63 + $0x188] sm:$0xff]
      %v4070 = vld [vmem:[%s63 + $0x190] sm:$0xff]
      %v4071 = vld [vmem:[%s63 + $0x198] sm:$0xff]
      %v4072 = vld [vmem:[%s63 + $0x1a0] sm:$0xff]
      %v4073 = vld [vmem:[%s63 + $0x1a8] sm:$0xff]
      %v4074 = vld [vmem:[%s63 + $0x1b0] sm:$0xff]
      %v4075 = vld [vmem:[%s63 + $0x1b8] sm:$0xff]
      %v4076 = vld [vmem:[%s63 + $0x1c0] sm:$0xff]
      %v4077 = vld [vmem:[%s63 + $0x1c8] sm:$0xff]
      %v4078 = vld [vmem:[%s63 + $0x1d0] sm:$0xff]
      %v4079 = vld [vmem:[%s63 + $0x1d8] sm:$0xff]
      %v4080 = vld [vmem:[%s63 + $0x1e0] sm:$0xff]
      %v4081 = vld [vmem:[%s63 + $0x1e8] sm:$0xff]
      %v4082 = vld [vmem:[%s63 + $0x1f0] sm:$0xff]
      %v4083 = vld [vmem:[%s63 + $0x1f8] sm:$0xff]
      %v4084 = vld [vmem:[%s63 + $0x200] sm:$0xff]
      %v4085 = vld [vmem:[%s63 + $0x208] sm:$0xff]
      %v4086 = vld [vmem:[%s63 + $0x210] sm:$0xff]
      %v4087 = vld [vmem:[%s63 + $0x218] sm:$0xff]
      %v4088 = vld [vmem:[%s63 + $0x220] sm:$0xff]
      %v4089 = vld [vmem:[%s63 + $0x228] sm:$0xff]
      %v4090 = vld [vmem:[%s63 + $0x230] sm:$0xff]
      %v4091 = vld [vmem:[%s63 + $0x238] sm:$0xff]
      %v4092 = vld [vmem:[%s63 + $0x240] sm:$0xff]
      %v4093 = vld [vmem:[%s63 + $0x248] sm:$0xff]
      %v4094 = vld [vmem:[%s63 + $0x250] sm:$0xff]
      %v4095 = vld [vmem:[%s63 + $0x258] sm:$0xff]
      %v4096 = vld [vmem:[%s63 + $0x260] sm:$0xff]
      %v4097 = vld [vmem:[%s63 + $0x268] sm:$0xff]
      %v4098 = vld [vmem:[%s63 + $0x270] sm:$0xff]
      %v4099 = vld [vmem:[%s63 + $0x278] sm:$0xff]
      %v4100 = vld [vmem:[%s63 + $0x280] sm:$0xff]
      %v4101 = vld [vmem:[%s63 + $0x288] sm:$0xff]
      %v4102 = vld [vmem:[%s63 + $0x290] sm:$0xff]
      %v4103 = vld [vmem:[%s63 + $0x298] sm:$0xff]
      %v4104 = vld [vmem:[%s63 + $0x2a0] sm:$0xff]
      %v4105 = vld [vmem:[%s63 + $0x2a8] sm:$0xff]
      %v4106 = vld [vmem:[%s63 + $0x2b0] sm:$0xff]
      %v4107 = vld [vmem:[%s63 + $0x2b8] sm:$0xff]
      %v4108 = vld [vmem:[%s63 + $0x2c0] sm:$0xff]
      %v4109 = vld [vmem:[%s63 + $0x2c8] sm:$0xff]
      %v4110 = vld [vmem:[%s63 + $0x2d0] sm:$0xff]
      %v4111 = vld [vmem:[%s63 + $0x2d8] sm:$0xff]
      %v4112 = vld [vmem:[%s63 + $0x2e0] sm:$0xff]
      %v4113 = vld [vmem:[%s63 + $0x2e8] sm:$0xff]
      %v4114 = vld [vmem:[%s63 + $0x2f0] sm:$0xff]
      %v4115 = vld [vmem:[%s63 + $0x2f8] sm:$0xff]
      %v4116 = vld [vmem:[%s63 + $0x300] sm:$0xff]
      %v4117 = vld [vmem:[%s63 + $0x308] sm:$0xff]
      %v4118 = vld [vmem:[%s63 + $0x310] sm:$0xff]
      %v4119 = vld [vmem:[%s63 + $0x318] sm:$0xff]
      %v4120 = vld [vmem:[%s63 + $0x320] sm:$0xff]
      %v4121 = vld [vmem:[%s63 + $0x328] sm:$0xff]
      %v4122 = vld [vmem:[%s63 + $0x330] sm:$0xff]
      %v4123 = vld [vmem:[%s63 + $0x338] sm:$0xff]
      %v4124 = vld [vmem:[%s63 + $0x340] sm:$0xff]
      %v4125 = vld [vmem:[%s63 + $0x348] sm:$0xff]
      %v4126 = vld [vmem:[%s63 + $0x350] sm:$0xff]
      %v4127 = vld [vmem:[%s63 + $0x358] sm:$0xff]
      %v4128 = vld [vmem:[%s63 + $0x360] sm:$0xff]
      %v4129 = vld [vmem:[%s63 + $0x368] sm:$0xff]
      %v4130 = vld [vmem:[%s63 + $0x370] sm:$0xff]
      %v4131 = vld [vmem:[%s63 + $0x378] sm:$0xff]
      %v4132 = vld [vmem:[%s63 + $0x380] sm:$0xff]
      %v4133 = vld [vmem:[%s63 + $0x388] sm:$0xff]
      %v4134 = vld [vmem:[%s63 + $0x390] sm:$0xff]
      %v4135 = vld [vmem:[%s63 + $0x398] sm:$0xff]
      %v4136 = vld [vmem:[%s63 + $0x3a0] sm:$0xff]
      %v4137 = vld [vmem:[%s63 + $0x3a8] sm:$0xff]
      %v4138 = vld [vmem:[%s63 + $0x3b0] sm:$0xff]
      %v4139 = vld [vmem:[%s63 + $0x3b8] sm:$0xff]
      %v4140 = vld [vmem:[%s63 + $0x3c0] sm:$0xff]
      %v4141 = vld [vmem:[%s63 + $0x3c8] sm:$0xff]
      %v4142 = vld [vmem:[%s63 + $0x3d0] sm:$0xff]
      %v4143 = vld [vmem:[%s63 + $0x3d8] sm:$0xff]
      %v4144 = vld [vmem:[%s63 + $0x3e0] sm:$0xff]
      %v4145 = vld [vmem:[%s63 + $0x3e8] sm:$0xff]
      %v4146 = vld [vmem:[%s63 + $0x3f0] sm:$0xff]
      %v4147 = vld [vmem:[%s63 + $0x3f8] sm:$0xff]
      %v4148 = vld [vmem:[%s63 + $0x400] sm:$0xff]
      %v4149 = vld [vmem:[%s63 + $0x408] sm:$0xff]
      %v4150 = vld [vmem:[%s63 + $0x410] sm:$0xff]
      %v4151 = vld [vmem:[%s63 + $0x418] sm:$0xff]
      %v4152 = vld [vmem:[%s63 + $0x420] sm:$0xff]
      %v4153 = vld [vmem:[%s63 + $0x428] sm:$0xff]
      %v4154 = vld [vmem:[%s63 + $0x430] sm:$0xff]
      %v4155 = vld [vmem:[%s63 + $0x438] sm:$0xff]
      %v4156 = vld [vmem:[%s63 + $0x440] sm:$0xff]
      %v4157 = vld [vmem:[%s63 + $0x448] sm:$0xff]
      %v4158 = vld [vmem:[%s63 + $0x450] sm:$0xff]
      %v4159 = vld [vmem:[%s63 + $0x458] sm:$0xff]
      %v4160 = vld [vmem:[%s63 + $0x460] sm:$0xff]
      %v4161 = vld [vmem:[%s63 + $0x468] sm:$0xff]
      %v4162 = vld [vmem:[%s63 + $0x470] sm:$0xff]
      %v4163 = vld [vmem:[%s63 + $0x478] sm:$0xff]
      %v4164 = vld [vmem:[%s63 + $0x480] sm:$0xff]
      %v4165 = vld [vmem:[%s63 + $0x488] sm:$0xff]
      %v4166 = vld [vmem:[%s63 + $0x490] sm:$0xff]
      %v4167 = vld [vmem:[%s63 + $0x498] sm:$0xff]
      %v4168 = vld [vmem:[%s63 + $0x4a0] sm:$0xff]
      %v4169 = vld [vmem:[%s63 + $0x4a8] sm:$0xff]
      %v4170 = vld [vmem:[%s63 + $0x4b0] sm:$0xff]
      %v4171 = vld [vmem:[%s63 + $0x4b8] sm:$0xff]
      %v4172 = vld [vmem:[%s63 + $0x4c0] sm:$0xff]
      %v4173 = vld [vmem:[%s63 + $0x4c8] sm:$0xff]
      %v4174 = vld [vmem:[%s63 + $0x4d0] sm:$0xff]
      %v4175 = vld [vmem:[%s63 + $0x4d8] sm:$0xff]
      %v4176 = vld [vmem:[%s63 + $0x4e0] sm:$0xff]
      %v4177 = vld [vmem:[%s63 + $0x4e8] sm:$0xff]
      %v4178 = vld [vmem:[%s63 + $0x4f0] sm:$0xff]
      %v4179 = vld [vmem:[%s63 + $0x4f8] sm:$0xff]
      %v4180 = vld [vmem:[%s63 + $0x500] sm:$0xff]
      %v4181 = vld [vmem:[%s63 + $0x508] sm:$0xff]
      %v4182 = vld [vmem:[%s63 + $0x510] sm:$0xff]
      %v4183 = vld [vmem:[%s63 + $0x518] sm:$0xff]
      %v4184 = vld [vmem:[%s63 + $0x520] sm:$0xff]
      %v4185 = vld [vmem:[%s63 + $0x528] sm:$0xff]
      %v4186 = vld [vmem:[%s63 + $0x530] sm:$0xff]
      %v4187 = vld [vmem:[%s63 + $0x538] sm:$0xff]
      %v4188 = vld [vmem:[%s63 + $0x540] sm:$0xff]
      %v4189 = vld [vmem:[%s63 + $0x548] sm:$0xff]
      %v4190 = vld [vmem:[%s63 + $0x550] sm:$0xff]
      %v4191 = vld [vmem:[%s63 + $0x558] sm:$0xff]
      %v4192 = vld [vmem:[%s63 + $0x560] sm:$0xff]
      %v4193 = vld [vmem:[%s63 + $0x568] sm:$0xff]
      %v4194 = vld [vmem:[%s63 + $0x570] sm:$0xff]
      %v4195 = vld [vmem:[%s63 + $0x578] sm:$0xff]
      %v4196 = vld [vmem:[%s63 + $0x580] sm:$0xff]
      %v4197 = vld [vmem:[%s63 + $0x588] sm:$0xff]
      %v4198 = vld [vmem:[%s63 + $0x590] sm:$0xff]
      %v4199 = vld [vmem:[%s63 + $0x598] sm:$0xff]
      %v4200 = vld [vmem:[%s63 + $0x5a0] sm:$0xff]
      %v4201 = vld [vmem:[%s63 + $0x5a8] sm:$0xff]
      %v4202 = vld [vmem:[%s63 + $0x5b0] sm:$0xff]
      %v4203 = vld [vmem:[%s63 + $0x5b8] sm:$0xff]
      %v4204 = vld [vmem:[%s63 + $0x5c0] sm:$0xff]
      %v4205 = vld [vmem:[%s63 + $0x5c8] sm:$0xff]
      %v4206 = vld [vmem:[%s63 + $0x5d0] sm:$0xff]
      %v4207 = vld [vmem:[%s63 + $0x5d8] sm:$0xff]
      %v4208 = vld [vmem:[%s63 + $0x5e0] sm:$0xff]
      %v4209 = vld [vmem:[%s63 + $0x5e8] sm:$0xff]
      %v4210 = vld [vmem:[%s63 + $0x5f0] sm:$0xff]
      %v4211 = vld [vmem:[%s63 + $0x5f8] sm:$0xff]
      %v4404 = vunpack.c.l.b16 %v4020
      %v4405 = vunpack.c.h.b16 %v4020
      %v4406 = vunpack.c.l.b16 %v4021
      %v4407 = vunpack.c.h.b16 %v4021
      %v4408 = vunpack.c.l.b16 %v4022
      %v4409 = vunpack.c.h.b16 %v4022
      %v4410 = vunpack.c.l.b16 %v4023
      %v4411 = vunpack.c.h.b16 %v4023
      %v4412 = vunpack.c.l.b16 %v4024
      %v4413 = vunpack.c.h.b16 %v4024
      %v4414 = vunpack.c.l.b16 %v4025
      %v4415 = vunpack.c.h.b16 %v4025
      %v4416 = vunpack.c.l.b16 %v4026
      %v4417 = vunpack.c.h.b16 %v4026
      %v4418 = vunpack.c.l.b16 %v4027
      %v4419 = vunpack.c.h.b16 %v4027
      %v4420 = vunpack.c.l.b16 %v4028
      %v4421 = vunpack.c.h.b16 %v4028
      %v4422 = vunpack.c.l.b16 %v4029
      %v4423 = vunpack.c.h.b16 %v4029
      %v4424 = vunpack.c.l.b16 %v4030
      %v4425 = vunpack.c.h.b16 %v4030
      %v4426 = vunpack.c.l.b16 %v4031
      %v4427 = vunpack.c.h.b16 %v4031
      %v4428 = vunpack.c.l.b16 %v4032
      %v4429 = vunpack.c.h.b16 %v4032
      %v4430 = vunpack.c.l.b16 %v4033
      %v4431 = vunpack.c.h.b16 %v4033
      %v4432 = vunpack.c.l.b16 %v4034
      %v4433 = vunpack.c.h.b16 %v4034
      %v4434 = vunpack.c.l.b16 %v4035
      %v4435 = vunpack.c.h.b16 %v4035
      %v4436 = vunpack.c.l.b16 %v4036
      %v4437 = vunpack.c.h.b16 %v4036
      %v4438 = vunpack.c.l.b16 %v4037
      %v4439 = vunpack.c.h.b16 %v4037
      %v4440 = vunpack.c.l.b16 %v4038
      %v4441 = vunpack.c.h.b16 %v4038
      %v4442 = vunpack.c.l.b16 %v4039
      %v4443 = vunpack.c.h.b16 %v4039
      %v4444 = vunpack.c.l.b16 %v4040
      %v4445 = vunpack.c.h.b16 %v4040
      %v4446 = vunpack.c.l.b16 %v4041
      %v4447 = vunpack.c.h.b16 %v4041
      %v4448 = vunpack.c.l.b16 %v4042
      %v4449 = vunpack.c.h.b16 %v4042
      %v4450 = vunpack.c.l.b16 %v4043
      %v4451 = vunpack.c.h.b16 %v4043
      %v4452 = vunpack.c.l.b16 %v4044
      %v4453 = vunpack.c.h.b16 %v4044
      %v4454 = vunpack.c.l.b16 %v4045
      %v4455 = vunpack.c.h.b16 %v4045
      %v4456 = vunpack.c.l.b16 %v4046
      %v4457 = vunpack.c.h.b16 %v4046
      %v4458 = vunpack.c.l.b16 %v4047
      %v4459 = vunpack.c.h.b16 %v4047
      %v4460 = vunpack.c.l.b16 %v4048
      %v4461 = vunpack.c.h.b16 %v4048
      %v4462 = vunpack.c.l.b16 %v4049
      %v4463 = vunpack.c.h.b16 %v4049
      %v4464 = vunpack.c.l.b16 %v4050
      %v4465 = vunpack.c.h.b16 %v4050
      %v4466 = vunpack.c.l.b16 %v4051
      %v4467 = vunpack.c.h.b16 %v4051
      %v4468 = vunpack.c.l.b16 %v4052
      %v4469 = vunpack.c.h.b16 %v4052
      %v4470 = vunpack.c.l.b16 %v4053
      %v4471 = vunpack.c.h.b16 %v4053
      %v4472 = vunpack.c.l.b16 %v4054
      %v4473 = vunpack.c.h.b16 %v4054
      %v4474 = vunpack.c.l.b16 %v4055
      %v4475 = vunpack.c.h.b16 %v4055
      %v4476 = vunpack.c.l.b16 %v4056
      %v4477 = vunpack.c.h.b16 %v4056
      %v4478 = vunpack.c.l.b16 %v4057
      %v4479 = vunpack.c.h.b16 %v4057
      %v4480 = vunpack.c.l.b16 %v4058
      %v4481 = vunpack.c.h.b16 %v4058
      %v4482 = vunpack.c.l.b16 %v4059
      %v4483 = vunpack.c.h.b16 %v4059
      %v4484 = vunpack.c.l.b16 %v4060
      %v4485 = vunpack.c.h.b16 %v4060
      %v4486 = vunpack.c.l.b16 %v4061
      %v4487 = vunpack.c.h.b16 %v4061
      %v4488 = vunpack.c.l.b16 %v4062
      %v4489 = vunpack.c.h.b16 %v4062
      %v4490 = vunpack.c.l.b16 %v4063
      %v4491 = vunpack.c.h.b16 %v4063
      %v4492 = vunpack.c.l.b16 %v4064
      %v4493 = vunpack.c.h.b16 %v4064
      %v4494 = vunpack.c.l.b16 %v4065
      %v4495 = vunpack.c.h.b16 %v4065
      %v4496 = vunpack.c.l.b16 %v4066
      %v4497 = vunpack.c.h.b16 %v4066
      %v4498 = vunpack.c.l.b16 %v4067
      %v4499 = vunpack.c.h.b16 %v4067
      %v4500 = vunpack.c.l.b16 %v4068
      %v4501 = vunpack.c.h.b16 %v4068
      %v4502 = vunpack.c.l.b16 %v4069
      %v4503 = vunpack.c.h.b16 %v4069
      %v4504 = vunpack.c.l.b16 %v4070
      %v4505 = vunpack.c.h.b16 %v4070
      %v4506 = vunpack.c.l.b16 %v4071
      %v4507 = vunpack.c.h.b16 %v4071
      %v4508 = vunpack.c.l.b16 %v4072
      %v4509 = vunpack.c.h.b16 %v4072
      %v4510 = vunpack.c.l.b16 %v4073
      %v4511 = vunpack.c.h.b16 %v4073
      %v4512 = vunpack.c.l.b16 %v4074
      %v4513 = vunpack.c.h.b16 %v4074
      %v4514 = vunpack.c.l.b16 %v4075
      %v4515 = vunpack.c.h.b16 %v4075
      %v4516 = vunpack.c.l.b16 %v4076
      %v4517 = vunpack.c.h.b16 %v4076
      %v4518 = vunpack.c.l.b16 %v4077
      %v4519 = vunpack.c.h.b16 %v4077
      %v4520 = vunpack.c.l.b16 %v4078
      %v4521 = vunpack.c.h.b16 %v4078
      %v4522 = vunpack.c.l.b16 %v4079
      %v4523 = vunpack.c.h.b16 %v4079
      %v4524 = vunpack.c.l.b16 %v4080
      %v4525 = vunpack.c.h.b16 %v4080
      %v4526 = vunpack.c.l.b16 %v4081
      %v4527 = vunpack.c.h.b16 %v4081
      %v4528 = vunpack.c.l.b16 %v4082
      %v4529 = vunpack.c.h.b16 %v4082
      %v4530 = vunpack.c.l.b16 %v4083
      %v4531 = vunpack.c.h.b16 %v4083
      %v4532 = vunpack.c.l.b16 %v4084
      %v4533 = vunpack.c.h.b16 %v4084
      %v4534 = vunpack.c.l.b16 %v4085
      %v4535 = vunpack.c.h.b16 %v4085
      %v4536 = vunpack.c.l.b16 %v4086
      %v4537 = vunpack.c.h.b16 %v4086
      %v4538 = vunpack.c.l.b16 %v4087
      %v4539 = vunpack.c.h.b16 %v4087
      %v4540 = vunpack.c.l.b16 %v4088
      %v4541 = vunpack.c.h.b16 %v4088
      %v4542 = vunpack.c.l.b16 %v4089
      %v4543 = vunpack.c.h.b16 %v4089
      %v4544 = vunpack.c.l.b16 %v4090
      %v4545 = vunpack.c.h.b16 %v4090
      %v4546 = vunpack.c.l.b16 %v4091
      %v4547 = vunpack.c.h.b16 %v4091
      %v4548 = vunpack.c.l.b16 %v4092
      %v4549 = vunpack.c.h.b16 %v4092
      %v4550 = vunpack.c.l.b16 %v4093
      %v4551 = vunpack.c.h.b16 %v4093
      %v4552 = vunpack.c.l.b16 %v4094
      %v4553 = vunpack.c.h.b16 %v4094
      %v4554 = vunpack.c.l.b16 %v4095
      %v4555 = vunpack.c.h.b16 %v4095
      %v4556 = vunpack.c.l.b16 %v4096
      %v4557 = vunpack.c.h.b16 %v4096
      %v4558 = vunpack.c.l.b16 %v4097
      %v4559 = vunpack.c.h.b16 %v4097
      %v4560 = vunpack.c.l.b16 %v4098
      %v4561 = vunpack.c.h.b16 %v4098
      %v4562 = vunpack.c.l.b16 %v4099
      %v4563 = vunpack.c.h.b16 %v4099
      %v4564 = vunpack.c.l.b16 %v4100
      %v4565 = vunpack.c.h.b16 %v4100
      %v4566 = vunpack.c.l.b16 %v4101
      %v4567 = vunpack.c.h.b16 %v4101
      %v4568 = vunpack.c.l.b16 %v4102
      %v4569 = vunpack.c.h.b16 %v4102
      %v4570 = vunpack.c.l.b16 %v4103
      %v4571 = vunpack.c.h.b16 %v4103
      %v4572 = vunpack.c.l.b16 %v4104
      %v4573 = vunpack.c.h.b16 %v4104
      %v4574 = vunpack.c.l.b16 %v4105
      %v4575 = vunpack.c.h.b16 %v4105
      %v4576 = vunpack.c.l.b16 %v4106
      %v4577 = vunpack.c.h.b16 %v4106
      %v4578 = vunpack.c.l.b16 %v4107
      %v4579 = vunpack.c.h.b16 %v4107
      %v4580 = vunpack.c.l.b16 %v4108
      %v4581 = vunpack.c.h.b16 %v4108
      %v4582 = vunpack.c.l.b16 %v4109
      %v4583 = vunpack.c.h.b16 %v4109
      %v4584 = vunpack.c.l.b16 %v4110
      %v4585 = vunpack.c.h.b16 %v4110
      %v4586 = vunpack.c.l.b16 %v4111
      %v4587 = vunpack.c.h.b16 %v4111
      %v4588 = vunpack.c.l.b16 %v4112
      %v4589 = vunpack.c.h.b16 %v4112
      %v4590 = vunpack.c.l.b16 %v4113
      %v4591 = vunpack.c.h.b16 %v4113
      %v4592 = vunpack.c.l.b16 %v4114
      %v4593 = vunpack.c.h.b16 %v4114
      %v4594 = vunpack.c.l.b16 %v4115
      %v4595 = vunpack.c.h.b16 %v4115
      %v4596 = vunpack.c.l.b16 %v4116
      %v4597 = vunpack.c.h.b16 %v4116
      %v4598 = vunpack.c.l.b16 %v4117
      %v4599 = vunpack.c.h.b16 %v4117
      %v4600 = vunpack.c.l.b16 %v4118
      %v4601 = vunpack.c.h.b16 %v4118
      %v4602 = vunpack.c.l.b16 %v4119
      %v4603 = vunpack.c.h.b16 %v4119
      %v4604 = vunpack.c.l.b16 %v4120
      %v4605 = vunpack.c.h.b16 %v4120
      %v4606 = vunpack.c.l.b16 %v4121
      %v4607 = vunpack.c.h.b16 %v4121
      %v4608 = vunpack.c.l.b16 %v4122
      %v4609 = vunpack.c.h.b16 %v4122
      %v4610 = vunpack.c.l.b16 %v4123
      %v4611 = vunpack.c.h.b16 %v4123
      %v4612 = vunpack.c.l.b16 %v4124
      %v4613 = vunpack.c.h.b16 %v4124
      %v4614 = vunpack.c.l.b16 %v4125
      %v4615 = vunpack.c.h.b16 %v4125
      %v4616 = vunpack.c.l.b16 %v4126
      %v4617 = vunpack.c.h.b16 %v4126
      %v4618 = vunpack.c.l.b16 %v4127
      %v4619 = vunpack.c.h.b16 %v4127
      %v4620 = vunpack.c.l.b16 %v4128
      %v4621 = vunpack.c.h.b16 %v4128
      %v4622 = vunpack.c.l.b16 %v4129
      %v4623 = vunpack.c.h.b16 %v4129
      %v4624 = vunpack.c.l.b16 %v4130
      %v4625 = vunpack.c.h.b16 %v4130
      %v4626 = vunpack.c.l.b16 %v4131
      %v4627 = vunpack.c.h.b16 %v4131
      %v4628 = vunpack.c.l.b16 %v4132
      %v4629 = vunpack.c.h.b16 %v4132
      %v4630 = vunpack.c.l.b16 %v4133
      %v4631 = vunpack.c.h.b16 %v4133
      %v4632 = vunpack.c.l.b16 %v4134
      %v4633 = vunpack.c.h.b16 %v4134
      %v4634 = vunpack.c.l.b16 %v4135
      %v4635 = vunpack.c.h.b16 %v4135
      %v4636 = vunpack.c.l.b16 %v4136
      %v4637 = vunpack.c.h.b16 %v4136
      %v4638 = vunpack.c.l.b16 %v4137
      %v4639 = vunpack.c.h.b16 %v4137
      %v4640 = vunpack.c.l.b16 %v4138
      %v4641 = vunpack.c.h.b16 %v4138
      %v4642 = vunpack.c.l.b16 %v4139
      %v4643 = vunpack.c.h.b16 %v4139
      %v4644 = vunpack.c.l.b16 %v4140
      %v4645 = vunpack.c.h.b16 %v4140
      %v4646 = vunpack.c.l.b16 %v4141
      %v4647 = vunpack.c.h.b16 %v4141
      %v4648 = vunpack.c.l.b16 %v4142
      %v4649 = vunpack.c.h.b16 %v4142
      %v4650 = vunpack.c.l.b16 %v4143
      %v4651 = vunpack.c.h.b16 %v4143
      %v4652 = vunpack.c.l.b16 %v4144
      %v4653 = vunpack.c.h.b16 %v4144
      %v4654 = vunpack.c.l.b16 %v4145
      %v4655 = vunpack.c.h.b16 %v4145
      %v4656 = vunpack.c.l.b16 %v4146
      %v4657 = vunpack.c.h.b16 %v4146
      %v4658 = vunpack.c.l.b16 %v4147
      %v4659 = vunpack.c.h.b16 %v4147
      %v4660 = vunpack.c.l.b16 %v4148
      %v4661 = vunpack.c.h.b16 %v4148
      %v4662 = vunpack.c.l.b16 %v4149
      %v4663 = vunpack.c.h.b16 %v4149
      %v4664 = vunpack.c.l.b16 %v4150
      %v4665 = vunpack.c.h.b16 %v4150
      %v4666 = vunpack.c.l.b16 %v4151
      %v4667 = vunpack.c.h.b16 %v4151
      %v4668 = vunpack.c.l.b16 %v4152
      %v4669 = vunpack.c.h.b16 %v4152
      %v4670 = vunpack.c.l.b16 %v4153
      %v4671 = vunpack.c.h.b16 %v4153
      %v4672 = vunpack.c.l.b16 %v4154
      %v4673 = vunpack.c.h.b16 %v4154
      %v4674 = vunpack.c.l.b16 %v4155
      %v4675 = vunpack.c.h.b16 %v4155
      %v4676 = vunpack.c.l.b16 %v4156
      %v4677 = vunpack.c.h.b16 %v4156
      %v4678 = vunpack.c.l.b16 %v4157
      %v4679 = vunpack.c.h.b16 %v4157
      %v4680 = vunpack.c.l.b16 %v4158
      %v4681 = vunpack.c.h.b16 %v4158
      %v4682 = vunpack.c.l.b16 %v4159
      %v4683 = vunpack.c.h.b16 %v4159
      %v4684 = vunpack.c.l.b16 %v4160
      %v4685 = vunpack.c.h.b16 %v4160
      %v4686 = vunpack.c.l.b16 %v4161
      %v4687 = vunpack.c.h.b16 %v4161
      %v4688 = vunpack.c.l.b16 %v4162
      %v4689 = vunpack.c.h.b16 %v4162
      %v4690 = vunpack.c.l.b16 %v4163
      %v4691 = vunpack.c.h.b16 %v4163
      %v4692 = vunpack.c.l.b16 %v4164
      %v4693 = vunpack.c.h.b16 %v4164
      %v4694 = vunpack.c.l.b16 %v4165
      %v4695 = vunpack.c.h.b16 %v4165
      %v4696 = vunpack.c.l.b16 %v4166
      %v4697 = vunpack.c.h.b16 %v4166
      %v4698 = vunpack.c.l.b16 %v4167
      %v4699 = vunpack.c.h.b16 %v4167
      %v4700 = vunpack.c.l.b16 %v4168
      %v4701 = vunpack.c.h.b16 %v4168
      %v4702 = vunpack.c.l.b16 %v4169
      %v4703 = vunpack.c.h.b16 %v4169
      %v4704 = vunpack.c.l.b16 %v4170
      %v4705 = vunpack.c.h.b16 %v4170
      %v4706 = vunpack.c.l.b16 %v4171
      %v4707 = vunpack.c.h.b16 %v4171
      %v4708 = vunpack.c.l.b16 %v4172
      %v4709 = vunpack.c.h.b16 %v4172
      %v4710 = vunpack.c.l.b16 %v4173
      %v4711 = vunpack.c.h.b16 %v4173
      %v4712 = vunpack.c.l.b16 %v4174
      %v4713 = vunpack.c.h.b16 %v4174
      %v4714 = vunpack.c.l.b16 %v4175
      %v4715 = vunpack.c.h.b16 %v4175
      %v4716 = vunpack.c.l.b16 %v4176
      %v4717 = vunpack.c.h.b16 %v4176
      %v4718 = vunpack.c.l.b16 %v4177
      %v4719 = vunpack.c.h.b16 %v4177
      %v4720 = vunpack.c.l.b16 %v4178
      %v4721 = vunpack.c.h.b16 %v4178
      %v4722 = vunpack.c.l.b16 %v4179
      %v4723 = vunpack.c.h.b16 %v4179
      %v4724 = vunpack.c.l.b16 %v4180
      %v4725 = vunpack.c.h.b16 %v4180
      %v4726 = vunpack.c.l.b16 %v4181
      %v4727 = vunpack.c.h.b16 %v4181
      %v4728 = vunpack.c.l.b16 %v4182
      %v4729 = vunpack.c.h.b16 %v4182
      %v4730 = vunpack.c.l.b16 %v4183
      %v4731 = vunpack.c.h.b16 %v4183
      %v4732 = vunpack.c.l.b16 %v4184
      %v4733 = vunpack.c.h.b16 %v4184
      %v4734 = vunpack.c.l.b16 %v4185
      %v4735 = vunpack.c.h.b16 %v4185
      %v4736 = vunpack.c.l.b16 %v4186
      %v4737 = vunpack.c.h.b16 %v4186
      %v4738 = vunpack.c.l.b16 %v4187
      %v4739 = vunpack.c.h.b16 %v4187
      %v4740 = vunpack.c.l.b16 %v4188
      %v4741 = vunpack.c.h.b16 %v4188
      %v4742 = vunpack.c.l.b16 %v4189
      %v4743 = vunpack.c.h.b16 %v4189
      %v4744 = vunpack.c.l.b16 %v4190
      %v4745 = vunpack.c.h.b16 %v4190
      %v4746 = vunpack.c.l.b16 %v4191
      %v4747 = vunpack.c.h.b16 %v4191
      %v4748 = vunpack.c.l.b16 %v4192
      %v4749 = vunpack.c.h.b16 %v4192
      %v4750 = vunpack.c.l.b16 %v4193
      %v4751 = vunpack.c.h.b16 %v4193
      %v4752 = vunpack.c.l.b16 %v4194
      %v4753 = vunpack.c.h.b16 %v4194
      %v4754 = vunpack.c.l.b16 %v4195
      %v4755 = vunpack.c.h.b16 %v4195
      %v4756 = vunpack.c.l.b16 %v4196
      %v4757 = vunpack.c.h.b16 %v4196
      %v4758 = vunpack.c.l.b16 %v4197
      %v4759 = vunpack.c.h.b16 %v4197
      %v4760 = vunpack.c.l.b16 %v4198
      %v4761 = vunpack.c.h.b16 %v4198
      %v4762 = vunpack.c.l.b16 %v4199
      %v4763 = vunpack.c.h.b16 %v4199
      %v4764 = vunpack.c.l.b16 %v4200
      %v4765 = vunpack.c.h.b16 %v4200
      %v4766 = vunpack.c.l.b16 %v4201
      %v4767 = vunpack.c.h.b16 %v4201
      %v4768 = vunpack.c.l.b16 %v4202
      %v4769 = vunpack.c.h.b16 %v4202
      %v4770 = vunpack.c.l.b16 %v4203
      %v4771 = vunpack.c.h.b16 %v4203
      %v4772 = vunpack.c.l.b16 %v4204
      %v4773 = vunpack.c.h.b16 %v4204
      %v4774 = vunpack.c.l.b16 %v4205
      %v4775 = vunpack.c.h.b16 %v4205
      %v4776 = vunpack.c.l.b16 %v4206
      %v4777 = vunpack.c.h.b16 %v4206
      %v4778 = vunpack.c.l.b16 %v4207
      %v4779 = vunpack.c.h.b16 %v4207
      %v4780 = vunpack.c.l.b16 %v4208
      %v4781 = vunpack.c.h.b16 %v4208
      %v4782 = vunpack.c.l.b16 %v4209
      %v4783 = vunpack.c.h.b16 %v4209
      %v4784 = vunpack.c.l.b16 %v4210
      %v4785 = vunpack.c.h.b16 %v4210
      %v4786 = vunpack.c.l.b16 %v4211
      %v4787 = vunpack.c.h.b16 %v4211
      %v4788 = vpack.c.b16 %v4408, %v4404
      %v4789 = vpack.c.b16 %v4409, %v4405
      %v4790 = vpack.c.b16 %v4410, %v4406
      %v4791 = vpack.c.b16 %v4411, %v4407
      %v4792 = vpack.c.b16 %v4416, %v4412
      %v4793 = vpack.c.b16 %v4417, %v4413
      %v4794 = vpack.c.b16 %v4418, %v4414
      %v4795 = vpack.c.b16 %v4419, %v4415
      %v4796 = vpack.c.b16 %v4424, %v4420
      %v4797 = vpack.c.b16 %v4425, %v4421
      %v4798 = vpack.c.b16 %v4426, %v4422
      %v4799 = vpack.c.b16 %v4427, %v4423
      %v4800 = vpack.c.b16 %v4432, %v4428
      %v4801 = vpack.c.b16 %v4433, %v4429
      %v4802 = vpack.c.b16 %v4434, %v4430
      %v4803 = vpack.c.b16 %v4435, %v4431
      %v4804 = vpack.c.b16 %v4440, %v4436
      %v4805 = vpack.c.b16 %v4441, %v4437
      %v4806 = vpack.c.b16 %v4442, %v4438
      %v4807 = vpack.c.b16 %v4443, %v4439
      %v4808 = vpack.c.b16 %v4448, %v4444
      %v4809 = vpack.c.b16 %v4449, %v4445
      %v4810 = vpack.c.b16 %v4450, %v4446
      %v4811 = vpack.c.b16 %v4451, %v4447
      %v4812 = vpack.c.b16 %v4456, %v4452
      %v4813 = vpack.c.b16 %v4457, %v4453
      %v4814 = vpack.c.b16 %v4458, %v4454
      %v4815 = vpack.c.b16 %v4459, %v4455
      %v4816 = vpack.c.b16 %v4464, %v4460
      %v4817 = vpack.c.b16 %v4465, %v4461
      %v4818 = vpack.c.b16 %v4466, %v4462
      %v4819 = vpack.c.b16 %v4467, %v4463
      %v4820 = vpack.c.b16 %v4472, %v4468
      %v4821 = vpack.c.b16 %v4473, %v4469
      %v4822 = vpack.c.b16 %v4474, %v4470
      %v4823 = vpack.c.b16 %v4475, %v4471
      %v4824 = vpack.c.b16 %v4480, %v4476
      %v4825 = vpack.c.b16 %v4481, %v4477
      %v4826 = vpack.c.b16 %v4482, %v4478
      %v4827 = vpack.c.b16 %v4483, %v4479
      %v4828 = vpack.c.b16 %v4488, %v4484
      %v4829 = vpack.c.b16 %v4489, %v4485
      %v4830 = vpack.c.b16 %v4490, %v4486
      %v4831 = vpack.c.b16 %v4491, %v4487
      %v4832 = vpack.c.b16 %v4496, %v4492
      %v4833 = vpack.c.b16 %v4497, %v4493
      %v4834 = vpack.c.b16 %v4498, %v4494
      %v4835 = vpack.c.b16 %v4499, %v4495
      %v4836 = vpack.c.b16 %v4504, %v4500
      %v4837 = vpack.c.b16 %v4505, %v4501
      %v4838 = vpack.c.b16 %v4506, %v4502
      %v4839 = vpack.c.b16 %v4507, %v4503
      %v4840 = vpack.c.b16 %v4512, %v4508
      %v4841 = vpack.c.b16 %v4513, %v4509
      %v4842 = vpack.c.b16 %v4514, %v4510
      %v4843 = vpack.c.b16 %v4515, %v4511
      %v4844 = vpack.c.b16 %v4520, %v4516
      %v4845 = vpack.c.b16 %v4521, %v4517
      %v4846 = vpack.c.b16 %v4522, %v4518
      %v4847 = vpack.c.b16 %v4523, %v4519
      %v4848 = vpack.c.b16 %v4528, %v4524
      %v4849 = vpack.c.b16 %v4529, %v4525
      %v4850 = vpack.c.b16 %v4530, %v4526
      %v4851 = vpack.c.b16 %v4531, %v4527
      %v4852 = vpack.c.b16 %v4536, %v4532
      %v4853 = vpack.c.b16 %v4537, %v4533
      %v4854 = vpack.c.b16 %v4538, %v4534
      %v4855 = vpack.c.b16 %v4539, %v4535
      %v4856 = vpack.c.b16 %v4544, %v4540
      %v4857 = vpack.c.b16 %v4545, %v4541
      %v4858 = vpack.c.b16 %v4546, %v4542
      %v4859 = vpack.c.b16 %v4547, %v4543
      %v4860 = vpack.c.b16 %v4552, %v4548
      %v4861 = vpack.c.b16 %v4553, %v4549
      %v4862 = vpack.c.b16 %v4554, %v4550
      %v4863 = vpack.c.b16 %v4555, %v4551
      %v4864 = vpack.c.b16 %v4560, %v4556
      %v4865 = vpack.c.b16 %v4561, %v4557
      %v4866 = vpack.c.b16 %v4562, %v4558
      %v4867 = vpack.c.b16 %v4563, %v4559
      %v4868 = vpack.c.b16 %v4568, %v4564
      %v4869 = vpack.c.b16 %v4569, %v4565
      %v4870 = vpack.c.b16 %v4570, %v4566
      %v4871 = vpack.c.b16 %v4571, %v4567
      %v4872 = vpack.c.b16 %v4576, %v4572
      %v4873 = vpack.c.b16 %v4577, %v4573
      %v4874 = vpack.c.b16 %v4578, %v4574
      %v4875 = vpack.c.b16 %v4579, %v4575
      %v4876 = vpack.c.b16 %v4584, %v4580
      %v4877 = vpack.c.b16 %v4585, %v4581
      %v4878 = vpack.c.b16 %v4586, %v4582
      %v4879 = vpack.c.b16 %v4587, %v4583
      %v4880 = vpack.c.b16 %v4592, %v4588
      %v4881 = vpack.c.b16 %v4593, %v4589
      %v4882 = vpack.c.b16 %v4594, %v4590
      %v4883 = vpack.c.b16 %v4595, %v4591
      %v4884 = vpack.c.b16 %v4600, %v4596
      %v4885 = vpack.c.b16 %v4601, %v4597
      %v4886 = vpack.c.b16 %v4602, %v4598
      %v4887 = vpack.c.b16 %v4603, %v4599
      %v4888 = vpack.c.b16 %v4608, %v4604
      %v4889 = vpack.c.b16 %v4609, %v4605
      %v4890 = vpack.c.b16 %v4610, %v4606
      %v4891 = vpack.c.b16 %v4611, %v4607
      %v4892 = vpack.c.b16 %v4616, %v4612
      %v4893 = vpack.c.b16 %v4617, %v4613
      %v4894 = vpack.c.b16 %v4618, %v4614
      %v4895 = vpack.c.b16 %v4619, %v4615
      %v4896 = vpack.c.b16 %v4624, %v4620
      %v4897 = vpack.c.b16 %v4625, %v4621
      %v4898 = vpack.c.b16 %v4626, %v4622
      %v4899 = vpack.c.b16 %v4627, %v4623
      %v4900 = vpack.c.b16 %v4632, %v4628
      %v4901 = vpack.c.b16 %v4633, %v4629
      %v4902 = vpack.c.b16 %v4634, %v4630
      %v4903 = vpack.c.b16 %v4635, %v4631
      %v4904 = vpack.c.b16 %v4640, %v4636
      %v4905 = vpack.c.b16 %v4641, %v4637
      %v4906 = vpack.c.b16 %v4642, %v4638
      %v4907 = vpack.c.b16 %v4643, %v4639
      %v4908 = vpack.c.b16 %v4648, %v4644
      %v4909 = vpack.c.b16 %v4649, %v4645
      %v4910 = vpack.c.b16 %v4650, %v4646
      %v4911 = vpack.c.b16 %v4651, %v4647
      %v4912 = vpack.c.b16 %v4656, %v4652
      %v4913 = vpack.c.b16 %v4657, %v4653
      %v4914 = vpack.c.b16 %v4658, %v4654
      %v4915 = vpack.c.b16 %v4659, %v4655
      %v4916 = vpack.c.b16 %v4664, %v4660
      %v4917 = vpack.c.b16 %v4665, %v4661
      %v4918 = vpack.c.b16 %v4666, %v4662
      %v4919 = vpack.c.b16 %v4667, %v4663
      %v4920 = vpack.c.b16 %v4672, %v4668
      %v4921 = vpack.c.b16 %v4673, %v4669
      %v4922 = vpack.c.b16 %v4674, %v4670
      %v4923 = vpack.c.b16 %v4675, %v4671
      %v4924 = vpack.c.b16 %v4680, %v4676
      %v4925 = vpack.c.b16 %v4681, %v4677
      %v4926 = vpack.c.b16 %v4682, %v4678
      %v4927 = vpack.c.b16 %v4683, %v4679
      %v4928 = vpack.c.b16 %v4688, %v4684
      %v4929 = vpack.c.b16 %v4689, %v4685
      %v4930 = vpack.c.b16 %v4690, %v4686
      %v4931 = vpack.c.b16 %v4691, %v4687
      %v4932 = vpack.c.b16 %v4696, %v4692
      %v4933 = vpack.c.b16 %v4697, %v4693
      %v4934 = vpack.c.b16 %v4698, %v4694
      %v4935 = vpack.c.b16 %v4699, %v4695
      %v4936 = vpack.c.b16 %v4704, %v4700
      %v4937 = vpack.c.b16 %v4705, %v4701
      %v4938 = vpack.c.b16 %v4706, %v4702
      %v4939 = vpack.c.b16 %v4707, %v4703
      %v4940 = vpack.c.b16 %v4712, %v4708
      %v4941 = vpack.c.b16 %v4713, %v4709
      %v4942 = vpack.c.b16 %v4714, %v4710
      %v4943 = vpack.c.b16 %v4715, %v4711
      %v4944 = vpack.c.b16 %v4720, %v4716
      %v4945 = vpack.c.b16 %v4721, %v4717
      %v4946 = vpack.c.b16 %v4722, %v4718
      %v4947 = vpack.c.b16 %v4723, %v4719
      %v4948 = vpack.c.b16 %v4728, %v4724
      %v4949 = vpack.c.b16 %v4729, %v4725
      %v4950 = vpack.c.b16 %v4730, %v4726
      %v4951 = vpack.c.b16 %v4731, %v4727
      %v4952 = vpack.c.b16 %v4736, %v4732
      %v4953 = vpack.c.b16 %v4737, %v4733
      %v4954 = vpack.c.b16 %v4738, %v4734
      %v4955 = vpack.c.b16 %v4739, %v4735
      %v4956 = vpack.c.b16 %v4744, %v4740
      %v4957 = vpack.c.b16 %v4745, %v4741
      %v4958 = vpack.c.b16 %v4746, %v4742
      %v4959 = vpack.c.b16 %v4747, %v4743
      %v4960 = vpack.c.b16 %v4752, %v4748
      %v4961 = vpack.c.b16 %v4753, %v4749
      %v4962 = vpack.c.b16 %v4754, %v4750
      %v4963 = vpack.c.b16 %v4755, %v4751
      %v4964 = vpack.c.b16 %v4760, %v4756
      %v4965 = vpack.c.b16 %v4761, %v4757
      %v4966 = vpack.c.b16 %v4762, %v4758
      %v4967 = vpack.c.b16 %v4763, %v4759
      %v4968 = vpack.c.b16 %v4768, %v4764
      %v4969 = vpack.c.b16 %v4769, %v4765
      %v4970 = vpack.c.b16 %v4770, %v4766
      %v4971 = vpack.c.b16 %v4771, %v4767
      %v4972 = vpack.c.b16 %v4776, %v4772
      %v4973 = vpack.c.b16 %v4777, %v4773
      %v4974 = vpack.c.b16 %v4778, %v4774
      %v4975 = vpack.c.b16 %v4779, %v4775
      %v4976 = vpack.c.b16 %v4784, %v4780
      %v4977 = vpack.c.b16 %v4785, %v4781
      %v4978 = vpack.c.b16 %v4786, %v4782
      %v4979 = vpack.c.b16 %v4787, %v4783
      %5172 = vmatpush.bf16.msra.mxu0 %v4816
      %5173 = vmatpush.bf16.msra.mxu0 %v4812
      %5174 = vmatpush.bf16.msra.mxu0 %v4808
      %5175 = vmatpush.bf16.msra.mxu0 %v4804
      %5176 = vmatpush.bf16.msra.mxu0 %v4800
      %5177 = vmatpush.bf16.msra.mxu0 %v4796
      %5178 = vmatpush.bf16.msra.mxu0 %v4792
      %5179 = vmatpush.bf16.msra.mxu0 %v4788
      %5180 = vmatmul.bf16.gmra.mxu0 %v3968
      %v5181 = vpop.f32.mrf.mxu0
      %v5182 = vadd.f32 0.0, %v5181
      %v5183 = vpop.f32.mrf.mxu0
      %v5184 = vadd.f32 0.0, %v5183
      %5185 = vmatmul.bf16.gmra.mxu0 %v3970
      %v5186 = vpop.f32.mrf.mxu0
      %v5187 = vadd.f32 0.0, %v5186
      %v5188 = vpop.f32.mrf.mxu0
      %5189 = vdwg.mxu0
      %5190 = vmatpush.bf16.msra.mxu0 %v4848
      %5191 = vmatpush.bf16.msra.mxu0 %v4844
      %5192 = vmatpush.bf16.msra.mxu0 %v4840
      %5193 = vmatpush.bf16.msra.mxu0 %v4836
      %5194 = vmatpush.bf16.msra.mxu0 %v4832
      %5195 = vmatpush.bf16.msra.mxu0 %v4828
      %5196 = vmatpush.bf16.msra.mxu0 %v4824
      %5197 = vmatpush.bf16.msra.mxu0 %v4820
      %5198 = vmatmul.bf16.gmra.mxu0 %v3969
      %v5199 = vpop.f32.mrf.mxu0
      %v5200 = vadd.f32 %v5182, %v5199
      %v5201 = vpop.f32.mrf.mxu0
      %v5202 = vadd.f32 %v5184, %v5201
      %5203 = vmatmul.bf16.gmra.mxu0 %v3971
      %v5204 = vpop.f32.mrf.mxu0
      %v5205 = vadd.f32 %v5187, %v5204
      %v5206 = vpop.f32.mrf.mxu0
      %5207 = vdwg.mxu0
      %5208 = vmatpush.bf16.msra.mxu0 %v4880
      %5209 = vmatpush.bf16.msra.mxu0 %v4876
      %5210 = vmatpush.bf16.msra.mxu0 %v4872
      %5211 = vmatpush.bf16.msra.mxu0 %v4868
      %5212 = vmatpush.bf16.msra.mxu0 %v4864
      %5213 = vmatpush.bf16.msra.mxu0 %v4860
      %5214 = vmatpush.bf16.msra.mxu0 %v4856
      %5215 = vmatpush.bf16.msra.mxu0 %v4852
      %5216 = vmatmul.bf16.gmra.mxu0 %v3987
      %v5217 = vpop.f32.mrf.mxu0
      %v5218 = vadd.f32 %v5200, %v5217
      %v5219 = vpop.f32.mrf.mxu0
      %v5220 = vadd.f32 %v5202, %v5219
      %5221 = vmatmul.bf16.gmra.mxu0 %v4002
      %v5222 = vpop.f32.mrf.mxu0
      %v5223 = vadd.f32 %v5205, %v5222
      %v5224 = vpop.f32.mrf.mxu0
      %5225 = vdwg.mxu0
      %5226 = vmatpush.bf16.msra.mxu0 %v4912
      %5227 = vmatpush.bf16.msra.mxu0 %v4908
      %5228 = vmatpush.bf16.msra.mxu0 %v4904
      %5229 = vmatpush.bf16.msra.mxu0 %v4900
      %5230 = vmatpush.bf16.msra.mxu0 %v4896
      %5231 = vmatpush.bf16.msra.mxu0 %v4892
      %5232 = vmatpush.bf16.msra.mxu0 %v4888
      %5233 = vmatpush.bf16.msra.mxu0 %v4884
      %5234 = vmatmul.bf16.gmra.mxu0 %v3999
      %v5235 = vpop.f32.mrf.mxu0
      %v5236 = vadd.f32 %v5218, %v5235
      %v5237 = vpop.f32.mrf.mxu0
      %v5238 = vadd.f32 %v5220, %v5237
      %5239 = vmatmul.bf16.gmra.mxu0 %v4005
      %v5240 = vpop.f32.mrf.mxu0
      %v5241 = vadd.f32 %v5223, %v5240
      %v5242 = vpop.f32.mrf.mxu0
      %5243 = vdwg.mxu0
      %5244 = vmatpush.bf16.msra.mxu0 %v4944
      %5245 = vmatpush.bf16.msra.mxu0 %v4940
      %5246 = vmatpush.bf16.msra.mxu0 %v4936
      %5247 = vmatpush.bf16.msra.mxu0 %v4932
      %5248 = vmatpush.bf16.msra.mxu0 %v4928
      %5249 = vmatpush.bf16.msra.mxu0 %v4924
      %5250 = vmatpush.bf16.msra.mxu0 %v4920
      %5251 = vmatpush.bf16.msra.mxu0 %v4916
      %5252 = vmatmul.bf16.gmra.mxu0 %v4012
      %v5253 = vpop.f32.mrf.mxu0
      %v5254 = vadd.f32 %v5236, %v5253
      %v5255 = vpop.f32.mrf.mxu0
      %v5256 = vadd.f32 %v5238, %v5255
      %5257 = vmatmul.bf16.gmra.mxu0 %v4011
      %v5258 = vpop.f32.mrf.mxu0
      %v5259 = vadd.f32 %v5241, %v5258
      %v5260 = vpop.f32.mrf.mxu0
      %5261 = vdwg.mxu0
      %5262 = vmatpush.bf16.msra.mxu0 %v4976
      %5263 = vmatpush.bf16.msra.mxu0 %v4972
      %5264 = vmatpush.bf16.msra.mxu0 %v4968
      %5265 = vmatpush.bf16.msra.mxu0 %v4964
      %5266 = vmatpush.bf16.msra.mxu0 %v4960
      %5267 = vmatpush.bf16.msra.mxu0 %v4956
      %5268 = vmatpush.bf16.msra.mxu0 %v4952
      %5269 = vmatpush.bf16.msra.mxu0 %v4948
      %5270 = vmatmul.bf16.gmra.mxu0 %v4015
      %v5271 = vpop.f32.mrf.mxu0
      %v5272 = vadd.f32 %v5254, %v5271
      %v5273 = vpop.f32.mrf.mxu0
      %v5274 = vadd.f32 %v5256, %v5273
      %5275 = vmatmul.bf16.gmra.mxu0 %v4014
      %v5276 = vpop.f32.mrf.mxu0
      %v5277 = vadd.f32 %v5259, %v5276
      %v5278 = vpop.f32.mrf.mxu0
      %5279 = vdwg.mxu0
      %5280 = vmatpush.bf16.msra.mxu0 %v4817
      %5281 = vmatpush.bf16.msra.mxu0 %v4813
      %5282 = vmatpush.bf16.msra.mxu0 %v4809
      %5283 = vmatpush.bf16.msra.mxu0 %v4805
      %5284 = vmatpush.bf16.msra.mxu0 %v4801
      %5285 = vmatpush.bf16.msra.mxu0 %v4797
      %5286 = vmatpush.bf16.msra.mxu0 %v4793
      %5287 = vmatpush.bf16.msra.mxu0 %v4789
      %5288 = vmatmul.bf16.gmra.mxu0 %v3968
      %v5289 = vpop.f32.mrf.mxu0
      %v5290 = vadd.f32 0.0, %v5289
      %v5291 = vpop.f32.mrf.mxu0
      %v5292 = vadd.f32 0.0, %v5291
      %5293 = vmatmul.bf16.gmra.mxu0 %v3970
      %v5294 = vpop.f32.mrf.mxu0
      %v5295 = vadd.f32 0.0, %v5294
      %v5296 = vpop.f32.mrf.mxu0
      %5297 = vdwg.mxu0
      %5298 = vmatpush.bf16.msra.mxu0 %v4849
      %5299 = vmatpush.bf16.msra.mxu0 %v4845
      %5300 = vmatpush.bf16.msra.mxu0 %v4841
      %5301 = vmatpush.bf16.msra.mxu0 %v4837
      %5302 = vmatpush.bf16.msra.mxu0 %v4833
      %5303 = vmatpush.bf16.msra.mxu0 %v4829
      %5304 = vmatpush.bf16.msra.mxu0 %v4825
      %5305 = vmatpush.bf16.msra.mxu0 %v4821
      %5306 = vmatmul.bf16.gmra.mxu0 %v3969
      %v5307 = vpop.f32.mrf.mxu0
      %v5308 = vadd.f32 %v5290, %v5307
      %v5309 = vpop.f32.mrf.mxu0
      %v5310 = vadd.f32 %v5292, %v5309
      %5311 = vmatmul.bf16.gmra.mxu0 %v3971
      %v5312 = vpop.f32.mrf.mxu0
      %v5313 = vadd.f32 %v5295, %v5312
      %v5314 = vpop.f32.mrf.mxu0
      %5315 = vdwg.mxu0
      %5316 = vmatpush.bf16.msra.mxu0 %v4881
      %5317 = vmatpush.bf16.msra.mxu0 %v4877
      %5318 = vmatpush.bf16.msra.mxu0 %v4873
      %5319 = vmatpush.bf16.msra.mxu0 %v4869
      %5320 = vmatpush.bf16.msra.mxu0 %v4865
      %5321 = vmatpush.bf16.msra.mxu0 %v4861
      %5322 = vmatpush.bf16.msra.mxu0 %v4857
      %5323 = vmatpush.bf16.msra.mxu0 %v4853
      %5324 = vmatmul.bf16.gmra.mxu0 %v3987
      %v5325 = vpop.f32.mrf.mxu0
      %v5326 = vadd.f32 %v5308, %v5325
      %v5327 = vpop.f32.mrf.mxu0
      %v5328 = vadd.f32 %v5310, %v5327
      %5329 = vmatmul.bf16.gmra.mxu0 %v4002
      %v5330 = vpop.f32.mrf.mxu0
      %v5331 = vadd.f32 %v5313, %v5330
      %v5332 = vpop.f32.mrf.mxu0
      %5333 = vdwg.mxu0
      %5334 = vmatpush.bf16.msra.mxu0 %v4913
      %5335 = vmatpush.bf16.msra.mxu0 %v4909
      %5336 = vmatpush.bf16.msra.mxu0 %v4905
      %5337 = vmatpush.bf16.msra.mxu0 %v4901
      %5338 = vmatpush.bf16.msra.mxu0 %v4897
      %5339 = vmatpush.bf16.msra.mxu0 %v4893
      %5340 = vmatpush.bf16.msra.mxu0 %v4889
      %5341 = vmatpush.bf16.msra.mxu0 %v4885
      %5342 = vmatmul.bf16.gmra.mxu0 %v3999
      %v5343 = vpop.f32.mrf.mxu0
      %v5344 = vadd.f32 %v5326, %v5343
      %v5345 = vpop.f32.mrf.mxu0
      %v5346 = vadd.f32 %v5328, %v5345
      %5347 = vmatmul.bf16.gmra.mxu0 %v4005
      %v5348 = vpop.f32.mrf.mxu0
      %v5349 = vadd.f32 %v5331, %v5348
      %v5350 = vpop.f32.mrf.mxu0
      %5351 = vdwg.mxu0
      %5352 = vmatpush.bf16.msra.mxu0 %v4945
      %5353 = vmatpush.bf16.msra.mxu0 %v4941
      %5354 = vmatpush.bf16.msra.mxu0 %v4937
      %5355 = vmatpush.bf16.msra.mxu0 %v4933
      %5356 = vmatpush.bf16.msra.mxu0 %v4929
      %5357 = vmatpush.bf16.msra.mxu0 %v4925
      %5358 = vmatpush.bf16.msra.mxu0 %v4921
      %5359 = vmatpush.bf16.msra.mxu0 %v4917
      %5360 = vmatmul.bf16.gmra.mxu0 %v4012
      %v5361 = vpop.f32.mrf.mxu0
      %v5362 = vadd.f32 %v5344, %v5361
      %v5363 = vpop.f32.mrf.mxu0
      %v5364 = vadd.f32 %v5346, %v5363
      %5365 = vmatmul.bf16.gmra.mxu0 %v4011
      %v5366 = vpop.f32.mrf.mxu0
      %v5367 = vadd.f32 %v5349, %v5366
      %v5368 = vpop.f32.mrf.mxu0
      %5369 = vdwg.mxu0
      %5370 = vmatpush.bf16.msra.mxu0 %v4977
      %5371 = vmatpush.bf16.msra.mxu0 %v4973
      %5372 = vmatpush.bf16.msra.mxu0 %v4969
      %5373 = vmatpush.bf16.msra.mxu0 %v4965
      %5374 = vmatpush.bf16.msra.mxu0 %v4961
      %5375 = vmatpush.bf16.msra.mxu0 %v4957
      %5376 = vmatpush.bf16.msra.mxu0 %v4953
      %5377 = vmatpush.bf16.msra.mxu0 %v4949
      %5378 = vmatmul.bf16.gmra.mxu0 %v4015
      %v5379 = vpop.f32.mrf.mxu0
      %v5380 = vadd.f32 %v5362, %v5379
      %v5381 = vpop.f32.mrf.mxu0
      %v5382 = vadd.f32 %v5364, %v5381
      %5383 = vmatmul.bf16.gmra.mxu0 %v4014
      %v5384 = vpop.f32.mrf.mxu0
      %v5385 = vadd.f32 %v5367, %v5384
      %v5386 = vpop.f32.mrf.mxu0
      %5387 = vdwg.mxu0
      %5388 = vmatpush.bf16.msra.mxu0 %v4818
      %5389 = vmatpush.bf16.msra.mxu0 %v4814
      %5390 = vmatpush.bf16.msra.mxu0 %v4810
      %5391 = vmatpush.bf16.msra.mxu0 %v4806
      %5392 = vmatpush.bf16.msra.mxu0 %v4802
      %5393 = vmatpush.bf16.msra.mxu0 %v4798
      %5394 = vmatpush.bf16.msra.mxu0 %v4794
      %5395 = vmatpush.bf16.msra.mxu0 %v4790
      %5396 = vmatmul.bf16.gmra.mxu0 %v3968
      %v5397 = vpop.f32.mrf.mxu0
      %v5398 = vadd.f32 0.0, %v5397
      %v5399 = vpop.f32.mrf.mxu0
      %v5400 = vadd.f32 0.0, %v5399
      %5401 = vmatmul.bf16.gmra.mxu0 %v3970
      %v5402 = vpop.f32.mrf.mxu0
      %v5403 = vadd.f32 0.0, %v5402
      %v5404 = vpop.f32.mrf.mxu0
      %5405 = vdwg.mxu0
      %5406 = vmatpush.bf16.msra.mxu0 %v4850
      %5407 = vmatpush.bf16.msra.mxu0 %v4846
      %5408 = vmatpush.bf16.msra.mxu0 %v4842
      %5409 = vmatpush.bf16.msra.mxu0 %v4838
      %5410 = vmatpush.bf16.msra.mxu0 %v4834
      %5411 = vmatpush.bf16.msra.mxu0 %v4830
      %5412 = vmatpush.bf16.msra.mxu0 %v4826
      %5413 = vmatpush.bf16.msra.mxu0 %v4822
      %5414 = vmatmul.bf16.gmra.mxu0 %v3969
      %v5415 = vpop.f32.mrf.mxu0
      %v5416 = vadd.f32 %v5398, %v5415
      %v5417 = vpop.f32.mrf.mxu0
      %v5418 = vadd.f32 %v5400, %v5417
      %5419 = vmatmul.bf16.gmra.mxu0 %v3971
      %v5420 = vpop.f32.mrf.mxu0
      %v5421 = vadd.f32 %v5403, %v5420
      %v5422 = vpop.f32.mrf.mxu0
      %5423 = vdwg.mxu0
      %5424 = vmatpush.bf16.msra.mxu0 %v4882
      %5425 = vmatpush.bf16.msra.mxu0 %v4878
      %5426 = vmatpush.bf16.msra.mxu0 %v4874
      %5427 = vmatpush.bf16.msra.mxu0 %v4870
      %5428 = vmatpush.bf16.msra.mxu0 %v4866
      %5429 = vmatpush.bf16.msra.mxu0 %v4862
      %5430 = vmatpush.bf16.msra.mxu0 %v4858
      %5431 = vmatpush.bf16.msra.mxu0 %v4854
      %5432 = vmatmul.bf16.gmra.mxu0 %v3987
      %v5433 = vpop.f32.mrf.mxu0
      %v5434 = vadd.f32 %v5416, %v5433
      %v5435 = vpop.f32.mrf.mxu0
      %v5436 = vadd.f32 %v5418, %v5435
      %5437 = vmatmul.bf16.gmra.mxu0 %v4002
      %v5438 = vpop.f32.mrf.mxu0
      %v5439 = vadd.f32 %v5421, %v5438
      %v5440 = vpop.f32.mrf.mxu0
      %5441 = vdwg.mxu0
      %5442 = vmatpush.bf16.msra.mxu0 %v4914
      %5443 = vmatpush.bf16.msra.mxu0 %v4910
      %5444 = vmatpush.bf16.msra.mxu0 %v4906
      %5445 = vmatpush.bf16.msra.mxu0 %v4902
      %5446 = vmatpush.bf16.msra.mxu0 %v4898
      %5447 = vmatpush.bf16.msra.mxu0 %v4894
      %5448 = vmatpush.bf16.msra.mxu0 %v4890
      %5449 = vmatpush.bf16.msra.mxu0 %v4886
      %5450 = vmatmul.bf16.gmra.mxu0 %v3999
      %v5451 = vpop.f32.mrf.mxu0
      %v5452 = vadd.f32 %v5434, %v5451
      %v5453 = vpop.f32.mrf.mxu0
      %v5454 = vadd.f32 %v5436, %v5453
      %5455 = vmatmul.bf16.gmra.mxu0 %v4005
      %v5456 = vpop.f32.mrf.mxu0
      %v5457 = vadd.f32 %v5439, %v5456
      %v5458 = vpop.f32.mrf.mxu0
      %5459 = vdwg.mxu0
      %5460 = vmatpush.bf16.msra.mxu0 %v4946
      %5461 = vmatpush.bf16.msra.mxu0 %v4942
      %5462 = vmatpush.bf16.msra.mxu0 %v4938
      %5463 = vmatpush.bf16.msra.mxu0 %v4934
      %5464 = vmatpush.bf16.msra.mxu0 %v4930
      %5465 = vmatpush.bf16.msra.mxu0 %v4926
      %5466 = vmatpush.bf16.msra.mxu0 %v4922
      %5467 = vmatpush.bf16.msra.mxu0 %v4918
      %5468 = vmatmul.bf16.gmra.mxu0 %v4012
      %v5469 = vpop.f32.mrf.mxu0
      %v5470 = vadd.f32 %v5452, %v5469
      %v5471 = vpop.f32.mrf.mxu0
      %v5472 = vadd.f32 %v5454, %v5471
      %5473 = vmatmul.bf16.gmra.mxu0 %v4011
      %v5474 = vpop.f32.mrf.mxu0
      %v5475 = vadd.f32 %v5457, %v5474
      %v5476 = vpop.f32.mrf.mxu0
      %5477 = vdwg.mxu0
      %5478 = vmatpush.bf16.msra.mxu0 %v4978
      %5479 = vmatpush.bf16.msra.mxu0 %v4974
      %5480 = vmatpush.bf16.msra.mxu0 %v4970
      %5481 = vmatpush.bf16.msra.mxu0 %v4966
      %5482 = vmatpush.bf16.msra.mxu0 %v4962
      %5483 = vmatpush.bf16.msra.mxu0 %v4958
      %5484 = vmatpush.bf16.msra.mxu0 %v4954
      %5485 = vmatpush.bf16.msra.mxu0 %v4950
      %5486 = vmatmul.bf16.gmra.mxu0 %v4015
      %v5487 = vpop.f32.mrf.mxu0
      %v5488 = vadd.f32 %v5470, %v5487
      %v5489 = vpop.f32.mrf.mxu0
      %v5490 = vadd.f32 %v5472, %v5489
      %5491 = vmatmul.bf16.gmra.mxu0 %v4014
      %v5492 = vpop.f32.mrf.mxu0
      %v5493 = vadd.f32 %v5475, %v5492
      %v5494 = vpop.f32.mrf.mxu0
      %5495 = vdwg.mxu0
      %5496 = vmatpush.bf16.msra.mxu0 %v4819
      %5497 = vmatpush.bf16.msra.mxu0 %v4815
      %5498 = vmatpush.bf16.msra.mxu0 %v4811
      %5499 = vmatpush.bf16.msra.mxu0 %v4807
      %5500 = vmatpush.bf16.msra.mxu0 %v4803
      %5501 = vmatpush.bf16.msra.mxu0 %v4799
      %5502 = vmatpush.bf16.msra.mxu0 %v4795
      %5503 = vmatpush.bf16.msra.mxu0 %v4791
      %5504 = vmatmul.bf16.gmra.mxu0 %v3968
      %v5505 = vpop.f32.mrf.mxu0
      %v5506 = vadd.f32 0.0, %v5505
      %v5507 = vpop.f32.mrf.mxu0
      %v5508 = vadd.f32 0.0, %v5507
      %5509 = vmatmul.bf16.gmra.mxu0 %v3970
      %v5510 = vpop.f32.mrf.mxu0
      %v5511 = vadd.f32 0.0, %v5510
      %v5512 = vpop.f32.mrf.mxu0
      %5513 = vdwg.mxu0
      %5514 = vmatpush.bf16.msra.mxu0 %v4851
      %5515 = vmatpush.bf16.msra.mxu0 %v4847
      %5516 = vmatpush.bf16.msra.mxu0 %v4843
      %5517 = vmatpush.bf16.msra.mxu0 %v4839
      %5518 = vmatpush.bf16.msra.mxu0 %v4835
      %5519 = vmatpush.bf16.msra.mxu0 %v4831
      %5520 = vmatpush.bf16.msra.mxu0 %v4827
      %5521 = vmatpush.bf16.msra.mxu0 %v4823
      %5522 = vmatmul.bf16.gmra.mxu0 %v3969
      %v5523 = vpop.f32.mrf.mxu0
      %v5524 = vadd.f32 %v5506, %v5523
      %v5525 = vpop.f32.mrf.mxu0
      %v5526 = vadd.f32 %v5508, %v5525
      %5527 = vmatmul.bf16.gmra.mxu0 %v3971
      %v5528 = vpop.f32.mrf.mxu0
      %v5529 = vadd.f32 %v5511, %v5528
      %v5530 = vpop.f32.mrf.mxu0
      %5531 = vdwg.mxu0
      %5532 = vmatpush.bf16.msra.mxu0 %v4883
      %5533 = vmatpush.bf16.msra.mxu0 %v4879
      %5534 = vmatpush.bf16.msra.mxu0 %v4875
      %5535 = vmatpush.bf16.msra.mxu0 %v4871
      %5536 = vmatpush.bf16.msra.mxu0 %v4867
      %5537 = vmatpush.bf16.msra.mxu0 %v4863
      %5538 = vmatpush.bf16.msra.mxu0 %v4859
      %5539 = vmatpush.bf16.msra.mxu0 %v4855
      %5540 = vmatmul.bf16.gmra.mxu0 %v3987
      %v5541 = vpop.f32.mrf.mxu0
      %v5542 = vadd.f32 %v5524, %v5541
      %v5543 = vpop.f32.mrf.mxu0
      %v5544 = vadd.f32 %v5526, %v5543
      %5545 = vmatmul.bf16.gmra.mxu0 %v4002
      %v5546 = vpop.f32.mrf.mxu0
      %v5547 = vadd.f32 %v5529, %v5546
      %v5548 = vpop.f32.mrf.mxu0
      %5549 = vdwg.mxu0
      %5550 = vmatpush.bf16.msra.mxu0 %v4915
      %5551 = vmatpush.bf16.msra.mxu0 %v4911
      %5552 = vmatpush.bf16.msra.mxu0 %v4907
      %5553 = vmatpush.bf16.msra.mxu0 %v4903
      %5554 = vmatpush.bf16.msra.mxu0 %v4899
      %5555 = vmatpush.bf16.msra.mxu0 %v4895
      %5556 = vmatpush.bf16.msra.mxu0 %v4891
      %5557 = vmatpush.bf16.msra.mxu0 %v4887
      %5558 = vmatmul.bf16.gmra.mxu0 %v3999
      %v5559 = vpop.f32.mrf.mxu0
      %v5560 = vadd.f32 %v5542, %v5559
      %v5561 = vpop.f32.mrf.mxu0
      %v5562 = vadd.f32 %v5544, %v5561
      %5563 = vmatmul.bf16.gmra.mxu0 %v4005
      %v5564 = vpop.f32.mrf.mxu0
      %v5565 = vadd.f32 %v5547, %v5564
      %v5566 = vpop.f32.mrf.mxu0
      %5567 = vdwg.mxu0
      %5568 = vmatpush.bf16.msra.mxu0 %v4947
      %5569 = vmatpush.bf16.msra.mxu0 %v4943
      %5570 = vmatpush.bf16.msra.mxu0 %v4939
      %5571 = vmatpush.bf16.msra.mxu0 %v4935
      %5572 = vmatpush.bf16.msra.mxu0 %v4931
      %5573 = vmatpush.bf16.msra.mxu0 %v4927
      %5574 = vmatpush.bf16.msra.mxu0 %v4923
      %5575 = vmatpush.bf16.msra.mxu0 %v4919
      %5576 = vmatmul.bf16.gmra.mxu0 %v4012
      %v5577 = vpop.f32.mrf.mxu0
      %v5578 = vadd.f32 %v5560, %v5577
      %v5579 = vpop.f32.mrf.mxu0
      %v5580 = vadd.f32 %v5562, %v5579
      %5581 = vmatmul.bf16.gmra.mxu0 %v4011
      %v5582 = vpop.f32.mrf.mxu0
      %v5583 = vadd.f32 %v5565, %v5582
      %v5584 = vpop.f32.mrf.mxu0
      %5585 = vdwg.mxu0
      %5586 = vmatpush.bf16.msra.mxu0 %v4979
      %5587 = vmatpush.bf16.msra.mxu0 %v4975
      %5588 = vmatpush.bf16.msra.mxu0 %v4971
      %5589 = vmatpush.bf16.msra.mxu0 %v4967
      %5590 = vmatpush.bf16.msra.mxu0 %v4963
      %5591 = vmatpush.bf16.msra.mxu0 %v4959
      %5592 = vmatpush.bf16.msra.mxu0 %v4955
      %5593 = vmatpush.bf16.msra.mxu0 %v4951
      %5594 = vmatmul.bf16.gmra.mxu0 %v4015
      %v5595 = vpop.f32.mrf.mxu0
      %v5596 = vadd.f32 %v5578, %v5595
      %v5597 = vpop.f32.mrf.mxu0
      %v5598 = vadd.f32 %v5580, %v5597
      %5599 = vmatmul.bf16.gmra.mxu0 %v4014
      %v5600 = vpop.f32.mrf.mxu0
      %v5601 = vadd.f32 %v5583, %v5600
      %v5602 = vpop.f32.mrf.mxu0
      %5603 = vdwg.mxu0
      %v5604 = vld [vmem:[%s65] sm:$0xf]
      %v5606 = vperm.slane %v5604, 0
      %v5607 = vperm.slane %v5604, 1
      %v5608 = vperm.slane %v5604, 2
      %v5609 = vperm.slane %v5604, 3
      %v5614 = vmul.f32 %v5272, %v5606
      %v5615 = vmul.f32 %v5380, %v5607
      %v5616 = vmul.f32 %v5488, %v5608
      %v5617 = vmul.f32 %v5596, %v5609
      %v5618 = vmul.f32 %v5274, %v5606
      %v5619 = vmul.f32 %v5382, %v5607
      %v5620 = vmul.f32 %v5490, %v5608
      %v5621 = vmul.f32 %v5598, %v5609
      %v5622 = vmul.f32 %v5277, %v5606
      %v5623 = vmul.f32 %v5385, %v5607
      %v5624 = vmul.f32 %v5493, %v5608
      %v5625 = vmul.f32 %v5601, %v5609
      %v5626 = vld [vmem:[%s67] sm:$0xf]
      %v5628 = vperm.slane %v5626, 0
      %v5629 = vperm.slane %v5626, 1
      %v5630 = vperm.slane %v5626, 2
      %v5631 = vperm.slane %v5626, 3
      %v5636 = vadd.f32 %v5614, %v5628
      %v5637 = vadd.f32 %v5615, %v5629
      %v5638 = vadd.f32 %v5616, %v5630
      %v5639 = vadd.f32 %v5617, %v5631
      %v5640 = vadd.f32 %v5618, %v5628
      %v5641 = vadd.f32 %v5619, %v5629
      %v5642 = vadd.f32 %v5620, %v5630
      %v5643 = vadd.f32 %v5621, %v5631
      %v5644 = vadd.f32 %v5622, %v5628
      %v5645 = vadd.f32 %v5623, %v5629
      %v5646 = vadd.f32 %v5624, %v5630
      %v5647 = vadd.f32 %v5625, %v5631
      %v5648 = vmax.f32 %v5636, 0.0
      %v5649 = vmax.f32 %v5637, 0.0
      %v5650 = vmax.f32 %v5638, 0.0
      %v5651 = vmax.f32 %v5639, 0.0
      %v5652 = vmax.f32 %v5640, 0.0
      %v5653 = vmax.f32 %v5641, 0.0
      %v5654 = vmax.f32 %v5642, 0.0
      %v5655 = vmax.f32 %v5643, 0.0
      %v5656 = vmax.f32 %v5644, 0.0
      %v5657 = vmax.f32 %v5645, 0.0
      %v5658 = vmax.f32 %v5646, 0.0
      %v5659 = vmax.f32 %v5647, 0.0
      %s5660 = sadd.s32 %s1192, 4294967295
      %v5661 = vstv %s5660
      %v5662 = vadd.s32 %v1247, %v5661
      %v5663 = vadd.s32 %v1248, %v5661
      %v5664 = vadd.s32 %v1249, %v5661
      %vm5665 = vcmp.ge.s32.totalorder %v5662, 0
      %vm5666 = vcmp.ge.s32.totalorder %v5663, 0
      %vm5667 = vcmp.ge.s32.totalorder %v5664, 0
      %vm5668 = vcmp.lt.s32.totalorder %v5662, 16
      %vm5669 = vcmp.lt.s32.totalorder %v5663, 16
      %vm5670 = vcmp.lt.s32.totalorder %v5664, 16
      %vm5671 = vmand %vm5665, %vm5668
      %vm5672 = vmand %vm5666, %vm5669
      %vm5673 = vmand %vm5667, %vm5670
      %v5674 = vsel %vm5671, 1, 0
      %v5675 = vsel %vm5672, 1, 0
      %v5676 = vsel %vm5673, 1, 0
      %vm5677 = vcmp.eq.s32.totalorder %v5674, 1
      %vm5678 = vcmp.eq.s32.totalorder %v5675, 1
      %vm5679 = vcmp.eq.s32.totalorder %v5676, 1
      %v5680 = vsel %vm5677, %v5648, 0.0
      %v5681 = vsel %vm5677, %v5649, 0.0
      %v5682 = vsel %vm5677, %v5650, 0.0
      %v5683 = vsel %vm5677, %v5651, 0.0
      %v5684 = vsel %vm5678, %v5652, 0.0
      %v5685 = vsel %vm5678, %v5653, 0.0
      %v5686 = vsel %vm5678, %v5654, 0.0
      %v5687 = vsel %vm5678, %v5655, 0.0
      %v5688 = vsel %vm5679, %v5656, 0.0
      %v5689 = vsel %vm5679, %v5657, 0.0
      %v5690 = vsel %vm5679, %v5658, 0.0
      %v5691 = vsel %vm5679, %v5659, 0.0
      %v5692 = vpack.c.bf16 %v5681, %v5680
      %v5693 = vpack.c.bf16 %v5683, %v5682
      %v5694 = vpack.c.bf16 %v5685, %v5684
      %v5695 = vpack.c.bf16 %v5687, %v5686
      %v5696 = vpack.c.bf16 %v5689, %v5688
      %v5697 = vpack.c.bf16 %v5691, %v5690
      %v5702 = vunpack.c.l.b16 %v5692
      %v5703 = vunpack.c.h.b16 %v5692
      %v5704 = vunpack.c.l.b16 %v5693
      %v5705 = vunpack.c.h.b16 %v5693
      %v5706 = vunpack.c.l.b16 %v5694
      %v5707 = vunpack.c.h.b16 %v5694
      %v5708 = vunpack.c.l.b16 %v5695
      %v5709 = vunpack.c.h.b16 %v5695
      %v5710 = vpack.c.b16 %v5706, %v5702
      %v5711 = vpack.c.b16 %v5707, %v5703
      %v5712 = vpack.c.b16 %v5708, %v5704
      %v5713 = vpack.c.b16 %v5709, %v5705
      %v5720 = vunpack.c.l.b16 %v5696
      %v5721 = vunpack.c.h.b16 %v5696
      %v5722 = vunpack.c.l.b16 %v5697
      %v5723 = vunpack.c.h.b16 %v5697
      %v5724 = vpack.c.b16 %v5720, %v5720
      %v5725 = vpack.c.b16 %v5721, %v5721
      %v5726 = vpack.c.b16 %v5722, %v5722
      %v5727 = vpack.c.b16 %v5723, %v5723
      %v5729 = vshrl.u32 %v5710, 16
      %v5731 = vshll.u32 %v5710, 16
      %v5733 = vrot.slane %v5731, 1
      %v5734 = vor.u32 %v5729, %v5733
      %v5736 = vshll.u32 %v5724, 16
      %v5738 = vrot.slane %v5736, 1
      %v5739 = vsel %vm1294, %v5734, %v5738
      %v5741 = vshrl.u32 %v5711, 16
      %v5743 = vshll.u32 %v5711, 16
      %v5745 = vrot.slane %v5743, 1
      %v5746 = vor.u32 %v5741, %v5745
      %v5748 = vshll.u32 %v5725, 16
      %v5750 = vrot.slane %v5748, 1
      %v5751 = vsel %vm1294, %v5746, %v5750
      %v5753 = vshrl.u32 %v5712, 16
      %v5755 = vshll.u32 %v5712, 16
      %v5757 = vrot.slane %v5755, 1
      %v5758 = vor.u32 %v5753, %v5757
      %v5760 = vshll.u32 %v5726, 16
      %v5762 = vrot.slane %v5760, 1
      %v5763 = vsel %vm1294, %v5758, %v5762
      %v5765 = vshrl.u32 %v5713, 16
      %v5767 = vshll.u32 %v5713, 16
      %v5769 = vrot.slane %v5767, 1
      %v5770 = vor.u32 %v5765, %v5769
      %v5772 = vshll.u32 %v5727, 16
      %v5774 = vrot.slane %v5772, 1
      %v5775 = vsel %vm1294, %v5770, %v5774
      %v5780 = vrot.slane %v5710, 1
      %v5781 = vrot.slane %v5724, 1
      %v5782 = vsel %vm1314, %v5780, %v5781
      %v5783 = vrot.slane %v5711, 1
      %v5784 = vrot.slane %v5725, 1
      %v5785 = vsel %vm1314, %v5783, %v5784
      %v5786 = vrot.slane %v5712, 1
      %v5787 = vrot.slane %v5726, 1
      %v5788 = vsel %vm1314, %v5786, %v5787
      %v5789 = vrot.slane %v5713, 1
      %v5790 = vrot.slane %v5727, 1
      %v5791 = vsel %vm1314, %v5789, %v5790
      %v5796 = vld [vmem:[%s69] sm:$0xff]
      %v5797 = vld [vmem:[%s69 + $0x8] sm:$0xff]
      %v5798 = vld [vmem:[%s69 + $0x10] sm:$0xff]
      %v5799 = vld [vmem:[%s69 + $0x18] sm:$0xff]
      %v5800 = vld [vmem:[%s69 + $0x20] sm:$0xff]
      %v5801 = vld [vmem:[%s69 + $0x28] sm:$0xff]
      %v5802 = vld [vmem:[%s69 + $0x30] sm:$0xff]
      %v5803 = vld [vmem:[%s69 + $0x38] sm:$0xff]
      %v5804 = vld [vmem:[%s69 + $0x40] sm:$0xff]
      %v5805 = vld [vmem:[%s69 + $0x48] sm:$0xff]
      %v5806 = vld [vmem:[%s69 + $0x50] sm:$0xff]
      %v5807 = vld [vmem:[%s69 + $0x58] sm:$0xff]
      %v5808 = vld [vmem:[%s69 + $0x60] sm:$0xff]
      %v5809 = vld [vmem:[%s69 + $0x68] sm:$0xff]
      %v5810 = vld [vmem:[%s69 + $0x70] sm:$0xff]
      %v5811 = vld [vmem:[%s69 + $0x78] sm:$0xff]
      %v5812 = vld [vmem:[%s69 + $0x80] sm:$0xff]
      %v5813 = vld [vmem:[%s69 + $0x88] sm:$0xff]
      %v5814 = vld [vmem:[%s69 + $0x90] sm:$0xff]
      %v5815 = vld [vmem:[%s69 + $0x98] sm:$0xff]
      %v5816 = vld [vmem:[%s69 + $0xa0] sm:$0xff]
      %v5817 = vld [vmem:[%s69 + $0xa8] sm:$0xff]
      %v5818 = vld [vmem:[%s69 + $0xb0] sm:$0xff]
      %v5819 = vld [vmem:[%s69 + $0xb8] sm:$0xff]
      %v5820 = vld [vmem:[%s69 + $0xc0] sm:$0xff]
      %v5821 = vld [vmem:[%s69 + $0xc8] sm:$0xff]
      %v5822 = vld [vmem:[%s69 + $0xd0] sm:$0xff]
      %v5823 = vld [vmem:[%s69 + $0xd8] sm:$0xff]
      %v5824 = vld [vmem:[%s69 + $0xe0] sm:$0xff]
      %v5825 = vld [vmem:[%s69 + $0xe8] sm:$0xff]
      %v5826 = vld [vmem:[%s69 + $0xf0] sm:$0xff]
      %v5827 = vld [vmem:[%s69 + $0xf8] sm:$0xff]
      %v5828 = vld [vmem:[%s69 + $0x100] sm:$0xff]
      %v5829 = vld [vmem:[%s69 + $0x108] sm:$0xff]
      %v5830 = vld [vmem:[%s69 + $0x110] sm:$0xff]
      %v5831 = vld [vmem:[%s69 + $0x118] sm:$0xff]
      %v5832 = vld [vmem:[%s69 + $0x120] sm:$0xff]
      %v5833 = vld [vmem:[%s69 + $0x128] sm:$0xff]
      %v5834 = vld [vmem:[%s69 + $0x130] sm:$0xff]
      %v5835 = vld [vmem:[%s69 + $0x138] sm:$0xff]
      %v5836 = vld [vmem:[%s69 + $0x140] sm:$0xff]
      %v5837 = vld [vmem:[%s69 + $0x148] sm:$0xff]
      %v5838 = vld [vmem:[%s69 + $0x150] sm:$0xff]
      %v5839 = vld [vmem:[%s69 + $0x158] sm:$0xff]
      %v5840 = vld [vmem:[%s69 + $0x160] sm:$0xff]
      %v5841 = vld [vmem:[%s69 + $0x168] sm:$0xff]
      %v5842 = vld [vmem:[%s69 + $0x170] sm:$0xff]
      %v5843 = vld [vmem:[%s69 + $0x178] sm:$0xff]
      %v5844 = vld [vmem:[%s69 + $0x180] sm:$0xff]
      %v5845 = vld [vmem:[%s69 + $0x188] sm:$0xff]
      %v5846 = vld [vmem:[%s69 + $0x190] sm:$0xff]
      %v5847 = vld [vmem:[%s69 + $0x198] sm:$0xff]
      %v5848 = vld [vmem:[%s69 + $0x1a0] sm:$0xff]
      %v5849 = vld [vmem:[%s69 + $0x1a8] sm:$0xff]
      %v5850 = vld [vmem:[%s69 + $0x1b0] sm:$0xff]
      %v5851 = vld [vmem:[%s69 + $0x1b8] sm:$0xff]
      %v5852 = vld [vmem:[%s69 + $0x1c0] sm:$0xff]
      %v5853 = vld [vmem:[%s69 + $0x1c8] sm:$0xff]
      %v5854 = vld [vmem:[%s69 + $0x1d0] sm:$0xff]
      %v5855 = vld [vmem:[%s69 + $0x1d8] sm:$0xff]
      %v5856 = vld [vmem:[%s69 + $0x1e0] sm:$0xff]
      %v5857 = vld [vmem:[%s69 + $0x1e8] sm:$0xff]
      %v5858 = vld [vmem:[%s69 + $0x1f0] sm:$0xff]
      %v5859 = vld [vmem:[%s69 + $0x1f8] sm:$0xff]
      %v5860 = vld [vmem:[%s69 + $0x200] sm:$0xff]
      %v5861 = vld [vmem:[%s69 + $0x208] sm:$0xff]
      %v5862 = vld [vmem:[%s69 + $0x210] sm:$0xff]
      %v5863 = vld [vmem:[%s69 + $0x218] sm:$0xff]
      %v5864 = vld [vmem:[%s69 + $0x220] sm:$0xff]
      %v5865 = vld [vmem:[%s69 + $0x228] sm:$0xff]
      %v5866 = vld [vmem:[%s69 + $0x230] sm:$0xff]
      %v5867 = vld [vmem:[%s69 + $0x238] sm:$0xff]
      %v5868 = vld [vmem:[%s69 + $0x240] sm:$0xff]
      %v5869 = vld [vmem:[%s69 + $0x248] sm:$0xff]
      %v5870 = vld [vmem:[%s69 + $0x250] sm:$0xff]
      %v5871 = vld [vmem:[%s69 + $0x258] sm:$0xff]
      %v5872 = vld [vmem:[%s69 + $0x260] sm:$0xff]
      %v5873 = vld [vmem:[%s69 + $0x268] sm:$0xff]
      %v5874 = vld [vmem:[%s69 + $0x270] sm:$0xff]
      %v5875 = vld [vmem:[%s69 + $0x278] sm:$0xff]
      %v5876 = vld [vmem:[%s69 + $0x280] sm:$0xff]
      %v5877 = vld [vmem:[%s69 + $0x288] sm:$0xff]
      %v5878 = vld [vmem:[%s69 + $0x290] sm:$0xff]
      %v5879 = vld [vmem:[%s69 + $0x298] sm:$0xff]
      %v5880 = vld [vmem:[%s69 + $0x2a0] sm:$0xff]
      %v5881 = vld [vmem:[%s69 + $0x2a8] sm:$0xff]
      %v5882 = vld [vmem:[%s69 + $0x2b0] sm:$0xff]
      %v5883 = vld [vmem:[%s69 + $0x2b8] sm:$0xff]
      %v5884 = vld [vmem:[%s69 + $0x2c0] sm:$0xff]
      %v5885 = vld [vmem:[%s69 + $0x2c8] sm:$0xff]
      %v5886 = vld [vmem:[%s69 + $0x2d0] sm:$0xff]
      %v5887 = vld [vmem:[%s69 + $0x2d8] sm:$0xff]
      %v5888 = vld [vmem:[%s69 + $0x2e0] sm:$0xff]
      %v5889 = vld [vmem:[%s69 + $0x2e8] sm:$0xff]
      %v5890 = vld [vmem:[%s69 + $0x2f0] sm:$0xff]
      %v5891 = vld [vmem:[%s69 + $0x2f8] sm:$0xff]
      %v5892 = vld [vmem:[%s69 + $0x300] sm:$0xff]
      %v5893 = vld [vmem:[%s69 + $0x308] sm:$0xff]
      %v5894 = vld [vmem:[%s69 + $0x310] sm:$0xff]
      %v5895 = vld [vmem:[%s69 + $0x318] sm:$0xff]
      %v5896 = vld [vmem:[%s69 + $0x320] sm:$0xff]
      %v5897 = vld [vmem:[%s69 + $0x328] sm:$0xff]
      %v5898 = vld [vmem:[%s69 + $0x330] sm:$0xff]
      %v5899 = vld [vmem:[%s69 + $0x338] sm:$0xff]
      %v5900 = vld [vmem:[%s69 + $0x340] sm:$0xff]
      %v5901 = vld [vmem:[%s69 + $0x348] sm:$0xff]
      %v5902 = vld [vmem:[%s69 + $0x350] sm:$0xff]
      %v5903 = vld [vmem:[%s69 + $0x358] sm:$0xff]
      %v5904 = vld [vmem:[%s69 + $0x360] sm:$0xff]
      %v5905 = vld [vmem:[%s69 + $0x368] sm:$0xff]
      %v5906 = vld [vmem:[%s69 + $0x370] sm:$0xff]
      %v5907 = vld [vmem:[%s69 + $0x378] sm:$0xff]
      %v5908 = vld [vmem:[%s69 + $0x380] sm:$0xff]
      %v5909 = vld [vmem:[%s69 + $0x388] sm:$0xff]
      %v5910 = vld [vmem:[%s69 + $0x390] sm:$0xff]
      %v5911 = vld [vmem:[%s69 + $0x398] sm:$0xff]
      %v5912 = vld [vmem:[%s69 + $0x3a0] sm:$0xff]
      %v5913 = vld [vmem:[%s69 + $0x3a8] sm:$0xff]
      %v5914 = vld [vmem:[%s69 + $0x3b0] sm:$0xff]
      %v5915 = vld [vmem:[%s69 + $0x3b8] sm:$0xff]
      %v5916 = vld [vmem:[%s69 + $0x3c0] sm:$0xff]
      %v5917 = vld [vmem:[%s69 + $0x3c8] sm:$0xff]
      %v5918 = vld [vmem:[%s69 + $0x3d0] sm:$0xff]
      %v5919 = vld [vmem:[%s69 + $0x3d8] sm:$0xff]
      %v5920 = vld [vmem:[%s69 + $0x3e0] sm:$0xff]
      %v5921 = vld [vmem:[%s69 + $0x3e8] sm:$0xff]
      %v5922 = vld [vmem:[%s69 + $0x3f0] sm:$0xff]
      %v5923 = vld [vmem:[%s69 + $0x3f8] sm:$0xff]
      %v5924 = vld [vmem:[%s69 + $0x400] sm:$0xff]
      %v5925 = vld [vmem:[%s69 + $0x408] sm:$0xff]
      %v5926 = vld [vmem:[%s69 + $0x410] sm:$0xff]
      %v5927 = vld [vmem:[%s69 + $0x418] sm:$0xff]
      %v5928 = vld [vmem:[%s69 + $0x420] sm:$0xff]
      %v5929 = vld [vmem:[%s69 + $0x428] sm:$0xff]
      %v5930 = vld [vmem:[%s69 + $0x430] sm:$0xff]
      %v5931 = vld [vmem:[%s69 + $0x438] sm:$0xff]
      %v5932 = vld [vmem:[%s69 + $0x440] sm:$0xff]
      %v5933 = vld [vmem:[%s69 + $0x448] sm:$0xff]
      %v5934 = vld [vmem:[%s69 + $0x450] sm:$0xff]
      %v5935 = vld [vmem:[%s69 + $0x458] sm:$0xff]
      %v5936 = vld [vmem:[%s69 + $0x460] sm:$0xff]
      %v5937 = vld [vmem:[%s69 + $0x468] sm:$0xff]
      %v5938 = vld [vmem:[%s69 + $0x470] sm:$0xff]
      %v5939 = vld [vmem:[%s69 + $0x478] sm:$0xff]
      %v5940 = vld [vmem:[%s69 + $0x480] sm:$0xff]
      %v5941 = vld [vmem:[%s69 + $0x488] sm:$0xff]
      %v5942 = vld [vmem:[%s69 + $0x490] sm:$0xff]
      %v5943 = vld [vmem:[%s69 + $0x498] sm:$0xff]
      %v5944 = vld [vmem:[%s69 + $0x4a0] sm:$0xff]
      %v5945 = vld [vmem:[%s69 + $0x4a8] sm:$0xff]
      %v5946 = vld [vmem:[%s69 + $0x4b0] sm:$0xff]
      %v5947 = vld [vmem:[%s69 + $0x4b8] sm:$0xff]
      %v5948 = vld [vmem:[%s69 + $0x4c0] sm:$0xff]
      %v5949 = vld [vmem:[%s69 + $0x4c8] sm:$0xff]
      %v5950 = vld [vmem:[%s69 + $0x4d0] sm:$0xff]
      %v5951 = vld [vmem:[%s69 + $0x4d8] sm:$0xff]
      %v5952 = vld [vmem:[%s69 + $0x4e0] sm:$0xff]
      %v5953 = vld [vmem:[%s69 + $0x4e8] sm:$0xff]
      %v5954 = vld [vmem:[%s69 + $0x4f0] sm:$0xff]
      %v5955 = vld [vmem:[%s69 + $0x4f8] sm:$0xff]
      %v5956 = vld [vmem:[%s69 + $0x500] sm:$0xff]
      %v5957 = vld [vmem:[%s69 + $0x508] sm:$0xff]
      %v5958 = vld [vmem:[%s69 + $0x510] sm:$0xff]
      %v5959 = vld [vmem:[%s69 + $0x518] sm:$0xff]
      %v5960 = vld [vmem:[%s69 + $0x520] sm:$0xff]
      %v5961 = vld [vmem:[%s69 + $0x528] sm:$0xff]
      %v5962 = vld [vmem:[%s69 + $0x530] sm:$0xff]
      %v5963 = vld [vmem:[%s69 + $0x538] sm:$0xff]
      %v5964 = vld [vmem:[%s69 + $0x540] sm:$0xff]
      %v5965 = vld [vmem:[%s69 + $0x548] sm:$0xff]
      %v5966 = vld [vmem:[%s69 + $0x550] sm:$0xff]
      %v5967 = vld [vmem:[%s69 + $0x558] sm:$0xff]
      %v5968 = vld [vmem:[%s69 + $0x560] sm:$0xff]
      %v5969 = vld [vmem:[%s69 + $0x568] sm:$0xff]
      %v5970 = vld [vmem:[%s69 + $0x570] sm:$0xff]
      %v5971 = vld [vmem:[%s69 + $0x578] sm:$0xff]
      %v5972 = vld [vmem:[%s69 + $0x580] sm:$0xff]
      %v5973 = vld [vmem:[%s69 + $0x588] sm:$0xff]
      %v5974 = vld [vmem:[%s69 + $0x590] sm:$0xff]
      %v5975 = vld [vmem:[%s69 + $0x598] sm:$0xff]
      %v5976 = vld [vmem:[%s69 + $0x5a0] sm:$0xff]
      %v5977 = vld [vmem:[%s69 + $0x5a8] sm:$0xff]
      %v5978 = vld [vmem:[%s69 + $0x5b0] sm:$0xff]
      %v5979 = vld [vmem:[%s69 + $0x5b8] sm:$0xff]
      %v5980 = vld [vmem:[%s69 + $0x5c0] sm:$0xff]
      %v5981 = vld [vmem:[%s69 + $0x5c8] sm:$0xff]
      %v5982 = vld [vmem:[%s69 + $0x5d0] sm:$0xff]
      %v5983 = vld [vmem:[%s69 + $0x5d8] sm:$0xff]
      %v5984 = vld [vmem:[%s69 + $0x5e0] sm:$0xff]
      %v5985 = vld [vmem:[%s69 + $0x5e8] sm:$0xff]
      %v5986 = vld [vmem:[%s69 + $0x5f0] sm:$0xff]
      %v5987 = vld [vmem:[%s69 + $0x5f8] sm:$0xff]
      %v5988 = vld [vmem:[%s69 + $0x600] sm:$0xff]
      %v5989 = vld [vmem:[%s69 + $0x608] sm:$0xff]
      %v5990 = vld [vmem:[%s69 + $0x610] sm:$0xff]
      %v5991 = vld [vmem:[%s69 + $0x618] sm:$0xff]
      %v5992 = vld [vmem:[%s69 + $0x620] sm:$0xff]
      %v5993 = vld [vmem:[%s69 + $0x628] sm:$0xff]
      %v5994 = vld [vmem:[%s69 + $0x630] sm:$0xff]
      %v5995 = vld [vmem:[%s69 + $0x638] sm:$0xff]
      %v5996 = vld [vmem:[%s69 + $0x640] sm:$0xff]
      %v5997 = vld [vmem:[%s69 + $0x648] sm:$0xff]
      %v5998 = vld [vmem:[%s69 + $0x650] sm:$0xff]
      %v5999 = vld [vmem:[%s69 + $0x658] sm:$0xff]
      %v6000 = vld [vmem:[%s69 + $0x660] sm:$0xff]
      %v6001 = vld [vmem:[%s69 + $0x668] sm:$0xff]
      %v6002 = vld [vmem:[%s69 + $0x670] sm:$0xff]
      %v6003 = vld [vmem:[%s69 + $0x678] sm:$0xff]
      %v6004 = vld [vmem:[%s69 + $0x680] sm:$0xff]
      %v6005 = vld [vmem:[%s69 + $0x688] sm:$0xff]
      %v6006 = vld [vmem:[%s69 + $0x690] sm:$0xff]
      %v6007 = vld [vmem:[%s69 + $0x698] sm:$0xff]
      %v6008 = vld [vmem:[%s69 + $0x6a0] sm:$0xff]
      %v6009 = vld [vmem:[%s69 + $0x6a8] sm:$0xff]
      %v6010 = vld [vmem:[%s69 + $0x6b0] sm:$0xff]
      %v6011 = vld [vmem:[%s69 + $0x6b8] sm:$0xff]
      %v6012 = vld [vmem:[%s69 + $0x6c0] sm:$0xff]
      %v6013 = vld [vmem:[%s69 + $0x6c8] sm:$0xff]
      %v6014 = vld [vmem:[%s69 + $0x6d0] sm:$0xff]
      %v6015 = vld [vmem:[%s69 + $0x6d8] sm:$0xff]
      %v6016 = vld [vmem:[%s69 + $0x6e0] sm:$0xff]
      %v6017 = vld [vmem:[%s69 + $0x6e8] sm:$0xff]
      %v6018 = vld [vmem:[%s69 + $0x6f0] sm:$0xff]
      %v6019 = vld [vmem:[%s69 + $0x6f8] sm:$0xff]
      %v6020 = vld [vmem:[%s69 + $0x700] sm:$0xff]
      %v6021 = vld [vmem:[%s69 + $0x708] sm:$0xff]
      %v6022 = vld [vmem:[%s69 + $0x710] sm:$0xff]
      %v6023 = vld [vmem:[%s69 + $0x718] sm:$0xff]
      %v6024 = vld [vmem:[%s69 + $0x720] sm:$0xff]
      %v6025 = vld [vmem:[%s69 + $0x728] sm:$0xff]
      %v6026 = vld [vmem:[%s69 + $0x730] sm:$0xff]
      %v6027 = vld [vmem:[%s69 + $0x738] sm:$0xff]
      %v6028 = vld [vmem:[%s69 + $0x740] sm:$0xff]
      %v6029 = vld [vmem:[%s69 + $0x748] sm:$0xff]
      %v6030 = vld [vmem:[%s69 + $0x750] sm:$0xff]
      %v6031 = vld [vmem:[%s69 + $0x758] sm:$0xff]
      %v6032 = vld [vmem:[%s69 + $0x760] sm:$0xff]
      %v6033 = vld [vmem:[%s69 + $0x768] sm:$0xff]
      %v6034 = vld [vmem:[%s69 + $0x770] sm:$0xff]
      %v6035 = vld [vmem:[%s69 + $0x778] sm:$0xff]
      %v6036 = vld [vmem:[%s69 + $0x780] sm:$0xff]
      %v6037 = vld [vmem:[%s69 + $0x788] sm:$0xff]
      %v6038 = vld [vmem:[%s69 + $0x790] sm:$0xff]
      %v6039 = vld [vmem:[%s69 + $0x798] sm:$0xff]
      %v6040 = vld [vmem:[%s69 + $0x7a0] sm:$0xff]
      %v6041 = vld [vmem:[%s69 + $0x7a8] sm:$0xff]
      %v6042 = vld [vmem:[%s69 + $0x7b0] sm:$0xff]
      %v6043 = vld [vmem:[%s69 + $0x7b8] sm:$0xff]
      %v6044 = vld [vmem:[%s69 + $0x7c0] sm:$0xff]
      %v6045 = vld [vmem:[%s69 + $0x7c8] sm:$0xff]
      %v6046 = vld [vmem:[%s69 + $0x7d0] sm:$0xff]
      %v6047 = vld [vmem:[%s69 + $0x7d8] sm:$0xff]
      %v6048 = vld [vmem:[%s69 + $0x7e0] sm:$0xff]
      %v6049 = vld [vmem:[%s69 + $0x7e8] sm:$0xff]
      %v6050 = vld [vmem:[%s69 + $0x7f0] sm:$0xff]
      %v6051 = vld [vmem:[%s69 + $0x7f8] sm:$0xff]
      %v6052 = vld [vmem:[%s69 + $0x800] sm:$0xff]
      %v6053 = vld [vmem:[%s69 + $0x808] sm:$0xff]
      %v6054 = vld [vmem:[%s69 + $0x810] sm:$0xff]
      %v6055 = vld [vmem:[%s69 + $0x818] sm:$0xff]
      %v6056 = vld [vmem:[%s69 + $0x820] sm:$0xff]
      %v6057 = vld [vmem:[%s69 + $0x828] sm:$0xff]
      %v6058 = vld [vmem:[%s69 + $0x830] sm:$0xff]
      %v6059 = vld [vmem:[%s69 + $0x838] sm:$0xff]
      %v6060 = vld [vmem:[%s69 + $0x840] sm:$0xff]
      %v6061 = vld [vmem:[%s69 + $0x848] sm:$0xff]
      %v6062 = vld [vmem:[%s69 + $0x850] sm:$0xff]
      %v6063 = vld [vmem:[%s69 + $0x858] sm:$0xff]
      %v6064 = vld [vmem:[%s69 + $0x860] sm:$0xff]
      %v6065 = vld [vmem:[%s69 + $0x868] sm:$0xff]
      %v6066 = vld [vmem:[%s69 + $0x870] sm:$0xff]
      %v6067 = vld [vmem:[%s69 + $0x878] sm:$0xff]
      %v6068 = vld [vmem:[%s69 + $0x880] sm:$0xff]
      %v6069 = vld [vmem:[%s69 + $0x888] sm:$0xff]
      %v6070 = vld [vmem:[%s69 + $0x890] sm:$0xff]
      %v6071 = vld [vmem:[%s69 + $0x898] sm:$0xff]
      %v6072 = vld [vmem:[%s69 + $0x8a0] sm:$0xff]
      %v6073 = vld [vmem:[%s69 + $0x8a8] sm:$0xff]
      %v6074 = vld [vmem:[%s69 + $0x8b0] sm:$0xff]
      %v6075 = vld [vmem:[%s69 + $0x8b8] sm:$0xff]
      %v6076 = vld [vmem:[%s69 + $0x8c0] sm:$0xff]
      %v6077 = vld [vmem:[%s69 + $0x8c8] sm:$0xff]
      %v6078 = vld [vmem:[%s69 + $0x8d0] sm:$0xff]
      %v6079 = vld [vmem:[%s69 + $0x8d8] sm:$0xff]
      %v6080 = vld [vmem:[%s69 + $0x8e0] sm:$0xff]
      %v6081 = vld [vmem:[%s69 + $0x8e8] sm:$0xff]
      %v6082 = vld [vmem:[%s69 + $0x8f0] sm:$0xff]
      %v6083 = vld [vmem:[%s69 + $0x8f8] sm:$0xff]
      %v6084 = vld [vmem:[%s69 + $0x900] sm:$0xff]
      %v6085 = vld [vmem:[%s69 + $0x908] sm:$0xff]
      %v6086 = vld [vmem:[%s69 + $0x910] sm:$0xff]
      %v6087 = vld [vmem:[%s69 + $0x918] sm:$0xff]
      %v6088 = vld [vmem:[%s69 + $0x920] sm:$0xff]
      %v6089 = vld [vmem:[%s69 + $0x928] sm:$0xff]
      %v6090 = vld [vmem:[%s69 + $0x930] sm:$0xff]
      %v6091 = vld [vmem:[%s69 + $0x938] sm:$0xff]
      %v6092 = vld [vmem:[%s69 + $0x940] sm:$0xff]
      %v6093 = vld [vmem:[%s69 + $0x948] sm:$0xff]
      %v6094 = vld [vmem:[%s69 + $0x950] sm:$0xff]
      %v6095 = vld [vmem:[%s69 + $0x958] sm:$0xff]
      %v6096 = vld [vmem:[%s69 + $0x960] sm:$0xff]
      %v6097 = vld [vmem:[%s69 + $0x968] sm:$0xff]
      %v6098 = vld [vmem:[%s69 + $0x970] sm:$0xff]
      %v6099 = vld [vmem:[%s69 + $0x978] sm:$0xff]
      %v6100 = vld [vmem:[%s69 + $0x980] sm:$0xff]
      %v6101 = vld [vmem:[%s69 + $0x988] sm:$0xff]
      %v6102 = vld [vmem:[%s69 + $0x990] sm:$0xff]
      %v6103 = vld [vmem:[%s69 + $0x998] sm:$0xff]
      %v6104 = vld [vmem:[%s69 + $0x9a0] sm:$0xff]
      %v6105 = vld [vmem:[%s69 + $0x9a8] sm:$0xff]
      %v6106 = vld [vmem:[%s69 + $0x9b0] sm:$0xff]
      %v6107 = vld [vmem:[%s69 + $0x9b8] sm:$0xff]
      %v6108 = vld [vmem:[%s69 + $0x9c0] sm:$0xff]
      %v6109 = vld [vmem:[%s69 + $0x9c8] sm:$0xff]
      %v6110 = vld [vmem:[%s69 + $0x9d0] sm:$0xff]
      %v6111 = vld [vmem:[%s69 + $0x9d8] sm:$0xff]
      %v6112 = vld [vmem:[%s69 + $0x9e0] sm:$0xff]
      %v6113 = vld [vmem:[%s69 + $0x9e8] sm:$0xff]
      %v6114 = vld [vmem:[%s69 + $0x9f0] sm:$0xff]
      %v6115 = vld [vmem:[%s69 + $0x9f8] sm:$0xff]
      %v6116 = vld [vmem:[%s69 + $0xa00] sm:$0xff]
      %v6117 = vld [vmem:[%s69 + $0xa08] sm:$0xff]
      %v6118 = vld [vmem:[%s69 + $0xa10] sm:$0xff]
      %v6119 = vld [vmem:[%s69 + $0xa18] sm:$0xff]
      %v6120 = vld [vmem:[%s69 + $0xa20] sm:$0xff]
      %v6121 = vld [vmem:[%s69 + $0xa28] sm:$0xff]
      %v6122 = vld [vmem:[%s69 + $0xa30] sm:$0xff]
      %v6123 = vld [vmem:[%s69 + $0xa38] sm:$0xff]
      %v6124 = vld [vmem:[%s69 + $0xa40] sm:$0xff]
      %v6125 = vld [vmem:[%s69 + $0xa48] sm:$0xff]
      %v6126 = vld [vmem:[%s69 + $0xa50] sm:$0xff]
      %v6127 = vld [vmem:[%s69 + $0xa58] sm:$0xff]
      %v6128 = vld [vmem:[%s69 + $0xa60] sm:$0xff]
      %v6129 = vld [vmem:[%s69 + $0xa68] sm:$0xff]
      %v6130 = vld [vmem:[%s69 + $0xa70] sm:$0xff]
      %v6131 = vld [vmem:[%s69 + $0xa78] sm:$0xff]
      %v6132 = vld [vmem:[%s69 + $0xa80] sm:$0xff]
      %v6133 = vld [vmem:[%s69 + $0xa88] sm:$0xff]
      %v6134 = vld [vmem:[%s69 + $0xa90] sm:$0xff]
      %v6135 = vld [vmem:[%s69 + $0xa98] sm:$0xff]
      %v6136 = vld [vmem:[%s69 + $0xaa0] sm:$0xff]
      %v6137 = vld [vmem:[%s69 + $0xaa8] sm:$0xff]
      %v6138 = vld [vmem:[%s69 + $0xab0] sm:$0xff]
      %v6139 = vld [vmem:[%s69 + $0xab8] sm:$0xff]
      %v6140 = vld [vmem:[%s69 + $0xac0] sm:$0xff]
      %v6141 = vld [vmem:[%s69 + $0xac8] sm:$0xff]
      %v6142 = vld [vmem:[%s69 + $0xad0] sm:$0xff]
      %v6143 = vld [vmem:[%s69 + $0xad8] sm:$0xff]
      %v6144 = vld [vmem:[%s69 + $0xae0] sm:$0xff]
      %v6145 = vld [vmem:[%s69 + $0xae8] sm:$0xff]
      %v6146 = vld [vmem:[%s69 + $0xaf0] sm:$0xff]
      %v6147 = vld [vmem:[%s69 + $0xaf8] sm:$0xff]
      %v6148 = vld [vmem:[%s69 + $0xb00] sm:$0xff]
      %v6149 = vld [vmem:[%s69 + $0xb08] sm:$0xff]
      %v6150 = vld [vmem:[%s69 + $0xb10] sm:$0xff]
      %v6151 = vld [vmem:[%s69 + $0xb18] sm:$0xff]
      %v6152 = vld [vmem:[%s69 + $0xb20] sm:$0xff]
      %v6153 = vld [vmem:[%s69 + $0xb28] sm:$0xff]
      %v6154 = vld [vmem:[%s69 + $0xb30] sm:$0xff]
      %v6155 = vld [vmem:[%s69 + $0xb38] sm:$0xff]
      %v6156 = vld [vmem:[%s69 + $0xb40] sm:$0xff]
      %v6157 = vld [vmem:[%s69 + $0xb48] sm:$0xff]
      %v6158 = vld [vmem:[%s69 + $0xb50] sm:$0xff]
      %v6159 = vld [vmem:[%s69 + $0xb58] sm:$0xff]
      %v6160 = vld [vmem:[%s69 + $0xb60] sm:$0xff]
      %v6161 = vld [vmem:[%s69 + $0xb68] sm:$0xff]
      %v6162 = vld [vmem:[%s69 + $0xb70] sm:$0xff]
      %v6163 = vld [vmem:[%s69 + $0xb78] sm:$0xff]
      %v6164 = vld [vmem:[%s69 + $0xb80] sm:$0xff]
      %v6165 = vld [vmem:[%s69 + $0xb88] sm:$0xff]
      %v6166 = vld [vmem:[%s69 + $0xb90] sm:$0xff]
      %v6167 = vld [vmem:[%s69 + $0xb98] sm:$0xff]
      %v6168 = vld [vmem:[%s69 + $0xba0] sm:$0xff]
      %v6169 = vld [vmem:[%s69 + $0xba8] sm:$0xff]
      %v6170 = vld [vmem:[%s69 + $0xbb0] sm:$0xff]
      %v6171 = vld [vmem:[%s69 + $0xbb8] sm:$0xff]
      %v6172 = vld [vmem:[%s69 + $0xbc0] sm:$0xff]
      %v6173 = vld [vmem:[%s69 + $0xbc8] sm:$0xff]
      %v6174 = vld [vmem:[%s69 + $0xbd0] sm:$0xff]
      %v6175 = vld [vmem:[%s69 + $0xbd8] sm:$0xff]
      %v6176 = vld [vmem:[%s69 + $0xbe0] sm:$0xff]
      %v6177 = vld [vmem:[%s69 + $0xbe8] sm:$0xff]
      %v6178 = vld [vmem:[%s69 + $0xbf0] sm:$0xff]
      %v6179 = vld [vmem:[%s69 + $0xbf8] sm:$0xff]
      %v6564 = vunpack.c.l.b16 %v5796
      %v6565 = vunpack.c.h.b16 %v5796
      %v6566 = vunpack.c.l.b16 %v5797
      %v6567 = vunpack.c.h.b16 %v5797
      %v6568 = vunpack.c.l.b16 %v5798
      %v6569 = vunpack.c.h.b16 %v5798
      %v6570 = vunpack.c.l.b16 %v5799
      %v6571 = vunpack.c.h.b16 %v5799
      %v6572 = vunpack.c.l.b16 %v5800
      %v6573 = vunpack.c.h.b16 %v5800
      %v6574 = vunpack.c.l.b16 %v5801
      %v6575 = vunpack.c.h.b16 %v5801
      %v6576 = vunpack.c.l.b16 %v5802
      %v6577 = vunpack.c.h.b16 %v5802
      %v6578 = vunpack.c.l.b16 %v5803
      %v6579 = vunpack.c.h.b16 %v5803
      %v6580 = vunpack.c.l.b16 %v5804
      %v6581 = vunpack.c.h.b16 %v5804
      %v6582 = vunpack.c.l.b16 %v5805
      %v6583 = vunpack.c.h.b16 %v5805
      %v6584 = vunpack.c.l.b16 %v5806
      %v6585 = vunpack.c.h.b16 %v5806
      %v6586 = vunpack.c.l.b16 %v5807
      %v6587 = vunpack.c.h.b16 %v5807
      %v6588 = vunpack.c.l.b16 %v5808
      %v6589 = vunpack.c.h.b16 %v5808
      %v6590 = vunpack.c.l.b16 %v5809
      %v6591 = vunpack.c.h.b16 %v5809
      %v6592 = vunpack.c.l.b16 %v5810
      %v6593 = vunpack.c.h.b16 %v5810
      %v6594 = vunpack.c.l.b16 %v5811
      %v6595 = vunpack.c.h.b16 %v5811
      %v6596 = vunpack.c.l.b16 %v5812
      %v6597 = vunpack.c.h.b16 %v5812
      %v6598 = vunpack.c.l.b16 %v5813
      %v6599 = vunpack.c.h.b16 %v5813
      %v6600 = vunpack.c.l.b16 %v5814
      %v6601 = vunpack.c.h.b16 %v5814
      %v6602 = vunpack.c.l.b16 %v5815
      %v6603 = vunpack.c.h.b16 %v5815
      %v6604 = vunpack.c.l.b16 %v5816
      %v6605 = vunpack.c.h.b16 %v5816
      %v6606 = vunpack.c.l.b16 %v5817
      %v6607 = vunpack.c.h.b16 %v5817
      %v6608 = vunpack.c.l.b16 %v5818
      %v6609 = vunpack.c.h.b16 %v5818
      %v6610 = vunpack.c.l.b16 %v5819
      %v6611 = vunpack.c.h.b16 %v5819
      %v6612 = vunpack.c.l.b16 %v5820
      %v6613 = vunpack.c.h.b16 %v5820
      %v6614 = vunpack.c.l.b16 %v5821
      %v6615 = vunpack.c.h.b16 %v5821
      %v6616 = vunpack.c.l.b16 %v5822
      %v6617 = vunpack.c.h.b16 %v5822
      %v6618 = vunpack.c.l.b16 %v5823
      %v6619 = vunpack.c.h.b16 %v5823
      %v6620 = vunpack.c.l.b16 %v5824
      %v6621 = vunpack.c.h.b16 %v5824
      %v6622 = vunpack.c.l.b16 %v5825
      %v6623 = vunpack.c.h.b16 %v5825
      %v6624 = vunpack.c.l.b16 %v5826
      %v6625 = vunpack.c.h.b16 %v5826
      %v6626 = vunpack.c.l.b16 %v5827
      %v6627 = vunpack.c.h.b16 %v5827
      %v6628 = vunpack.c.l.b16 %v5828
      %v6629 = vunpack.c.h.b16 %v5828
      %v6630 = vunpack.c.l.b16 %v5829
      %v6631 = vunpack.c.h.b16 %v5829
      %v6632 = vunpack.c.l.b16 %v5830
      %v6633 = vunpack.c.h.b16 %v5830
      %v6634 = vunpack.c.l.b16 %v5831
      %v6635 = vunpack.c.h.b16 %v5831
      %v6636 = vunpack.c.l.b16 %v5832
      %v6637 = vunpack.c.h.b16 %v5832
      %v6638 = vunpack.c.l.b16 %v5833
      %v6639 = vunpack.c.h.b16 %v5833
      %v6640 = vunpack.c.l.b16 %v5834
      %v6641 = vunpack.c.h.b16 %v5834
      %v6642 = vunpack.c.l.b16 %v5835
      %v6643 = vunpack.c.h.b16 %v5835
      %v6644 = vunpack.c.l.b16 %v5836
      %v6645 = vunpack.c.h.b16 %v5836
      %v6646 = vunpack.c.l.b16 %v5837
      %v6647 = vunpack.c.h.b16 %v5837
      %v6648 = vunpack.c.l.b16 %v5838
      %v6649 = vunpack.c.h.b16 %v5838
      %v6650 = vunpack.c.l.b16 %v5839
      %v6651 = vunpack.c.h.b16 %v5839
      %v6652 = vunpack.c.l.b16 %v5840
      %v6653 = vunpack.c.h.b16 %v5840
      %v6654 = vunpack.c.l.b16 %v5841
      %v6655 = vunpack.c.h.b16 %v5841
      %v6656 = vunpack.c.l.b16 %v5842
      %v6657 = vunpack.c.h.b16 %v5842
      %v6658 = vunpack.c.l.b16 %v5843
      %v6659 = vunpack.c.h.b16 %v5843
      %v6660 = vunpack.c.l.b16 %v5844
      %v6661 = vunpack.c.h.b16 %v5844
      %v6662 = vunpack.c.l.b16 %v5845
      %v6663 = vunpack.c.h.b16 %v5845
      %v6664 = vunpack.c.l.b16 %v5846
      %v6665 = vunpack.c.h.b16 %v5846
      %v6666 = vunpack.c.l.b16 %v5847
      %v6667 = vunpack.c.h.b16 %v5847
      %v6668 = vunpack.c.l.b16 %v5848
      %v6669 = vunpack.c.h.b16 %v5848
      %v6670 = vunpack.c.l.b16 %v5849
      %v6671 = vunpack.c.h.b16 %v5849
      %v6672 = vunpack.c.l.b16 %v5850
      %v6673 = vunpack.c.h.b16 %v5850
      %v6674 = vunpack.c.l.b16 %v5851
      %v6675 = vunpack.c.h.b16 %v5851
      %v6676 = vunpack.c.l.b16 %v5852
      %v6677 = vunpack.c.h.b16 %v5852
      %v6678 = vunpack.c.l.b16 %v5853
      %v6679 = vunpack.c.h.b16 %v5853
      %v6680 = vunpack.c.l.b16 %v5854
      %v6681 = vunpack.c.h.b16 %v5854
      %v6682 = vunpack.c.l.b16 %v5855
      %v6683 = vunpack.c.h.b16 %v5855
      %v6684 = vunpack.c.l.b16 %v5856
      %v6685 = vunpack.c.h.b16 %v5856
      %v6686 = vunpack.c.l.b16 %v5857
      %v6687 = vunpack.c.h.b16 %v5857
      %v6688 = vunpack.c.l.b16 %v5858
      %v6689 = vunpack.c.h.b16 %v5858
      %v6690 = vunpack.c.l.b16 %v5859
      %v6691 = vunpack.c.h.b16 %v5859
      %v6692 = vunpack.c.l.b16 %v5860
      %v6693 = vunpack.c.h.b16 %v5860
      %v6694 = vunpack.c.l.b16 %v5861
      %v6695 = vunpack.c.h.b16 %v5861
      %v6696 = vunpack.c.l.b16 %v5862
      %v6697 = vunpack.c.h.b16 %v5862
      %v6698 = vunpack.c.l.b16 %v5863
      %v6699 = vunpack.c.h.b16 %v5863
      %v6700 = vunpack.c.l.b16 %v5864
      %v6701 = vunpack.c.h.b16 %v5864
      %v6702 = vunpack.c.l.b16 %v5865
      %v6703 = vunpack.c.h.b16 %v5865
      %v6704 = vunpack.c.l.b16 %v5866
      %v6705 = vunpack.c.h.b16 %v5866
      %v6706 = vunpack.c.l.b16 %v5867
      %v6707 = vunpack.c.h.b16 %v5867
      %v6708 = vunpack.c.l.b16 %v5868
      %v6709 = vunpack.c.h.b16 %v5868
      %v6710 = vunpack.c.l.b16 %v5869
      %v6711 = vunpack.c.h.b16 %v5869
      %v6712 = vunpack.c.l.b16 %v5870
      %v6713 = vunpack.c.h.b16 %v5870
      %v6714 = vunpack.c.l.b16 %v5871
      %v6715 = vunpack.c.h.b16 %v5871
      %v6716 = vunpack.c.l.b16 %v5872
      %v6717 = vunpack.c.h.b16 %v5872
      %v6718 = vunpack.c.l.b16 %v5873
      %v6719 = vunpack.c.h.b16 %v5873
      %v6720 = vunpack.c.l.b16 %v5874
      %v6721 = vunpack.c.h.b16 %v5874
      %v6722 = vunpack.c.l.b16 %v5875
      %v6723 = vunpack.c.h.b16 %v5875
      %v6724 = vunpack.c.l.b16 %v5876
      %v6725 = vunpack.c.h.b16 %v5876
      %v6726 = vunpack.c.l.b16 %v5877
      %v6727 = vunpack.c.h.b16 %v5877
      %v6728 = vunpack.c.l.b16 %v5878
      %v6729 = vunpack.c.h.b16 %v5878
      %v6730 = vunpack.c.l.b16 %v5879
      %v6731 = vunpack.c.h.b16 %v5879
      %v6732 = vunpack.c.l.b16 %v5880
      %v6733 = vunpack.c.h.b16 %v5880
      %v6734 = vunpack.c.l.b16 %v5881
      %v6735 = vunpack.c.h.b16 %v5881
      %v6736 = vunpack.c.l.b16 %v5882
      %v6737 = vunpack.c.h.b16 %v5882
      %v6738 = vunpack.c.l.b16 %v5883
      %v6739 = vunpack.c.h.b16 %v5883
      %v6740 = vunpack.c.l.b16 %v5884
      %v6741 = vunpack.c.h.b16 %v5884
      %v6742 = vunpack.c.l.b16 %v5885
      %v6743 = vunpack.c.h.b16 %v5885
      %v6744 = vunpack.c.l.b16 %v5886
      %v6745 = vunpack.c.h.b16 %v5886
      %v6746 = vunpack.c.l.b16 %v5887
      %v6747 = vunpack.c.h.b16 %v5887
      %v6748 = vunpack.c.l.b16 %v5888
      %v6749 = vunpack.c.h.b16 %v5888
      %v6750 = vunpack.c.l.b16 %v5889
      %v6751 = vunpack.c.h.b16 %v5889
      %v6752 = vunpack.c.l.b16 %v5890
      %v6753 = vunpack.c.h.b16 %v5890
      %v6754 = vunpack.c.l.b16 %v5891
      %v6755 = vunpack.c.h.b16 %v5891
      %v6756 = vunpack.c.l.b16 %v5892
      %v6757 = vunpack.c.h.b16 %v5892
      %v6758 = vunpack.c.l.b16 %v5893
      %v6759 = vunpack.c.h.b16 %v5893
      %v6760 = vunpack.c.l.b16 %v5894
      %v6761 = vunpack.c.h.b16 %v5894
      %v6762 = vunpack.c.l.b16 %v5895
      %v6763 = vunpack.c.h.b16 %v5895
      %v6764 = vunpack.c.l.b16 %v5896
      %v6765 = vunpack.c.h.b16 %v5896
      %v6766 = vunpack.c.l.b16 %v5897
      %v6767 = vunpack.c.h.b16 %v5897
      %v6768 = vunpack.c.l.b16 %v5898
      %v6769 = vunpack.c.h.b16 %v5898
      %v6770 = vunpack.c.l.b16 %v5899
      %v6771 = vunpack.c.h.b16 %v5899
      %v6772 = vunpack.c.l.b16 %v5900
      %v6773 = vunpack.c.h.b16 %v5900
      %v6774 = vunpack.c.l.b16 %v5901
      %v6775 = vunpack.c.h.b16 %v5901
      %v6776 = vunpack.c.l.b16 %v5902
      %v6777 = vunpack.c.h.b16 %v5902
      %v6778 = vunpack.c.l.b16 %v5903
      %v6779 = vunpack.c.h.b16 %v5903
      %v6780 = vunpack.c.l.b16 %v5904
      %v6781 = vunpack.c.h.b16 %v5904
      %v6782 = vunpack.c.l.b16 %v5905
      %v6783 = vunpack.c.h.b16 %v5905
      %v6784 = vunpack.c.l.b16 %v5906
      %v6785 = vunpack.c.h.b16 %v5906
      %v6786 = vunpack.c.l.b16 %v5907
      %v6787 = vunpack.c.h.b16 %v5907
      %v6788 = vunpack.c.l.b16 %v5908
      %v6789 = vunpack.c.h.b16 %v5908
      %v6790 = vunpack.c.l.b16 %v5909
      %v6791 = vunpack.c.h.b16 %v5909
      %v6792 = vunpack.c.l.b16 %v5910
      %v6793 = vunpack.c.h.b16 %v5910
      %v6794 = vunpack.c.l.b16 %v5911
      %v6795 = vunpack.c.h.b16 %v5911
      %v6796 = vunpack.c.l.b16 %v5912
      %v6797 = vunpack.c.h.b16 %v5912
      %v6798 = vunpack.c.l.b16 %v5913
      %v6799 = vunpack.c.h.b16 %v5913
      %v6800 = vunpack.c.l.b16 %v5914
      %v6801 = vunpack.c.h.b16 %v5914
      %v6802 = vunpack.c.l.b16 %v5915
      %v6803 = vunpack.c.h.b16 %v5915
      %v6804 = vunpack.c.l.b16 %v5916
      %v6805 = vunpack.c.h.b16 %v5916
      %v6806 = vunpack.c.l.b16 %v5917
      %v6807 = vunpack.c.h.b16 %v5917
      %v6808 = vunpack.c.l.b16 %v5918
      %v6809 = vunpack.c.h.b16 %v5918
      %v6810 = vunpack.c.l.b16 %v5919
      %v6811 = vunpack.c.h.b16 %v5919
      %v6812 = vunpack.c.l.b16 %v5920
      %v6813 = vunpack.c.h.b16 %v5920
      %v6814 = vunpack.c.l.b16 %v5921
      %v6815 = vunpack.c.h.b16 %v5921
      %v6816 = vunpack.c.l.b16 %v5922
      %v6817 = vunpack.c.h.b16 %v5922
      %v6818 = vunpack.c.l.b16 %v5923
      %v6819 = vunpack.c.h.b16 %v5923
      %v6820 = vunpack.c.l.b16 %v5924
      %v6821 = vunpack.c.h.b16 %v5924
      %v6822 = vunpack.c.l.b16 %v5925
      %v6823 = vunpack.c.h.b16 %v5925
      %v6824 = vunpack.c.l.b16 %v5926
      %v6825 = vunpack.c.h.b16 %v5926
      %v6826 = vunpack.c.l.b16 %v5927
      %v6827 = vunpack.c.h.b16 %v5927
      %v6828 = vunpack.c.l.b16 %v5928
      %v6829 = vunpack.c.h.b16 %v5928
      %v6830 = vunpack.c.l.b16 %v5929
      %v6831 = vunpack.c.h.b16 %v5929
      %v6832 = vunpack.c.l.b16 %v5930
      %v6833 = vunpack.c.h.b16 %v5930
      %v6834 = vunpack.c.l.b16 %v5931
      %v6835 = vunpack.c.h.b16 %v5931
      %v6836 = vunpack.c.l.b16 %v5932
      %v6837 = vunpack.c.h.b16 %v5932
      %v6838 = vunpack.c.l.b16 %v5933
      %v6839 = vunpack.c.h.b16 %v5933
      %v6840 = vunpack.c.l.b16 %v5934
      %v6841 = vunpack.c.h.b16 %v5934
      %v6842 = vunpack.c.l.b16 %v5935
      %v6843 = vunpack.c.h.b16 %v5935
      %v6844 = vunpack.c.l.b16 %v5936
      %v6845 = vunpack.c.h.b16 %v5936
      %v6846 = vunpack.c.l.b16 %v5937
      %v6847 = vunpack.c.h.b16 %v5937
      %v6848 = vunpack.c.l.b16 %v5938
      %v6849 = vunpack.c.h.b16 %v5938
      %v6850 = vunpack.c.l.b16 %v5939
      %v6851 = vunpack.c.h.b16 %v5939
      %v6852 = vunpack.c.l.b16 %v5940
      %v6853 = vunpack.c.h.b16 %v5940
      %v6854 = vunpack.c.l.b16 %v5941
      %v6855 = vunpack.c.h.b16 %v5941
      %v6856 = vunpack.c.l.b16 %v5942
      %v6857 = vunpack.c.h.b16 %v5942
      %v6858 = vunpack.c.l.b16 %v5943
      %v6859 = vunpack.c.h.b16 %v5943
      %v6860 = vunpack.c.l.b16 %v5944
      %v6861 = vunpack.c.h.b16 %v5944
      %v6862 = vunpack.c.l.b16 %v5945
      %v6863 = vunpack.c.h.b16 %v5945
      %v6864 = vunpack.c.l.b16 %v5946
      %v6865 = vunpack.c.h.b16 %v5946
      %v6866 = vunpack.c.l.b16 %v5947
      %v6867 = vunpack.c.h.b16 %v5947
      %v6868 = vunpack.c.l.b16 %v5948
      %v6869 = vunpack.c.h.b16 %v5948
      %v6870 = vunpack.c.l.b16 %v5949
      %v6871 = vunpack.c.h.b16 %v5949
      %v6872 = vunpack.c.l.b16 %v5950
      %v6873 = vunpack.c.h.b16 %v5950
      %v6874 = vunpack.c.l.b16 %v5951
      %v6875 = vunpack.c.h.b16 %v5951
      %v6876 = vunpack.c.l.b16 %v5952
      %v6877 = vunpack.c.h.b16 %v5952
      %v6878 = vunpack.c.l.b16 %v5953
      %v6879 = vunpack.c.h.b16 %v5953
      %v6880 = vunpack.c.l.b16 %v5954
      %v6881 = vunpack.c.h.b16 %v5954
      %v6882 = vunpack.c.l.b16 %v5955
      %v6883 = vunpack.c.h.b16 %v5955
      %v6884 = vunpack.c.l.b16 %v5956
      %v6885 = vunpack.c.h.b16 %v5956
      %v6886 = vunpack.c.l.b16 %v5957
      %v6887 = vunpack.c.h.b16 %v5957
      %v6888 = vunpack.c.l.b16 %v5958
      %v6889 = vunpack.c.h.b16 %v5958
      %v6890 = vunpack.c.l.b16 %v5959
      %v6891 = vunpack.c.h.b16 %v5959
      %v6892 = vunpack.c.l.b16 %v5960
      %v6893 = vunpack.c.h.b16 %v5960
      %v6894 = vunpack.c.l.b16 %v5961
      %v6895 = vunpack.c.h.b16 %v5961
      %v6896 = vunpack.c.l.b16 %v5962
      %v6897 = vunpack.c.h.b16 %v5962
      %v6898 = vunpack.c.l.b16 %v5963
      %v6899 = vunpack.c.h.b16 %v5963
      %v6900 = vunpack.c.l.b16 %v5964
      %v6901 = vunpack.c.h.b16 %v5964
      %v6902 = vunpack.c.l.b16 %v5965
      %v6903 = vunpack.c.h.b16 %v5965
      %v6904 = vunpack.c.l.b16 %v5966
      %v6905 = vunpack.c.h.b16 %v5966
      %v6906 = vunpack.c.l.b16 %v5967
      %v6907 = vunpack.c.h.b16 %v5967
      %v6908 = vunpack.c.l.b16 %v5968
      %v6909 = vunpack.c.h.b16 %v5968
      %v6910 = vunpack.c.l.b16 %v5969
      %v6911 = vunpack.c.h.b16 %v5969
      %v6912 = vunpack.c.l.b16 %v5970
      %v6913 = vunpack.c.h.b16 %v5970
      %v6914 = vunpack.c.l.b16 %v5971
      %v6915 = vunpack.c.h.b16 %v5971
      %v6916 = vunpack.c.l.b16 %v5972
      %v6917 = vunpack.c.h.b16 %v5972
      %v6918 = vunpack.c.l.b16 %v5973
      %v6919 = vunpack.c.h.b16 %v5973
      %v6920 = vunpack.c.l.b16 %v5974
      %v6921 = vunpack.c.h.b16 %v5974
      %v6922 = vunpack.c.l.b16 %v5975
      %v6923 = vunpack.c.h.b16 %v5975
      %v6924 = vunpack.c.l.b16 %v5976
      %v6925 = vunpack.c.h.b16 %v5976
      %v6926 = vunpack.c.l.b16 %v5977
      %v6927 = vunpack.c.h.b16 %v5977
      %v6928 = vunpack.c.l.b16 %v5978
      %v6929 = vunpack.c.h.b16 %v5978
      %v6930 = vunpack.c.l.b16 %v5979
      %v6931 = vunpack.c.h.b16 %v5979
      %v6932 = vunpack.c.l.b16 %v5980
      %v6933 = vunpack.c.h.b16 %v5980
      %v6934 = vunpack.c.l.b16 %v5981
      %v6935 = vunpack.c.h.b16 %v5981
      %v6936 = vunpack.c.l.b16 %v5982
      %v6937 = vunpack.c.h.b16 %v5982
      %v6938 = vunpack.c.l.b16 %v5983
      %v6939 = vunpack.c.h.b16 %v5983
      %v6940 = vunpack.c.l.b16 %v5984
      %v6941 = vunpack.c.h.b16 %v5984
      %v6942 = vunpack.c.l.b16 %v5985
      %v6943 = vunpack.c.h.b16 %v5985
      %v6944 = vunpack.c.l.b16 %v5986
      %v6945 = vunpack.c.h.b16 %v5986
      %v6946 = vunpack.c.l.b16 %v5987
      %v6947 = vunpack.c.h.b16 %v5987
      %v6948 = vunpack.c.l.b16 %v5988
      %v6949 = vunpack.c.h.b16 %v5988
      %v6950 = vunpack.c.l.b16 %v5989
      %v6951 = vunpack.c.h.b16 %v5989
      %v6952 = vunpack.c.l.b16 %v5990
      %v6953 = vunpack.c.h.b16 %v5990
      %v6954 = vunpack.c.l.b16 %v5991
      %v6955 = vunpack.c.h.b16 %v5991
      %v6956 = vunpack.c.l.b16 %v5992
      %v6957 = vunpack.c.h.b16 %v5992
      %v6958 = vunpack.c.l.b16 %v5993
      %v6959 = vunpack.c.h.b16 %v5993
      %v6960 = vunpack.c.l.b16 %v5994
      %v6961 = vunpack.c.h.b16 %v5994
      %v6962 = vunpack.c.l.b16 %v5995
      %v6963 = vunpack.c.h.b16 %v5995
      %v6964 = vunpack.c.l.b16 %v5996
      %v6965 = vunpack.c.h.b16 %v5996
      %v6966 = vunpack.c.l.b16 %v5997
      %v6967 = vunpack.c.h.b16 %v5997
      %v6968 = vunpack.c.l.b16 %v5998
      %v6969 = vunpack.c.h.b16 %v5998
      %v6970 = vunpack.c.l.b16 %v5999
      %v6971 = vunpack.c.h.b16 %v5999
      %v6972 = vunpack.c.l.b16 %v6000
      %v6973 = vunpack.c.h.b16 %v6000
      %v6974 = vunpack.c.l.b16 %v6001
      %v6975 = vunpack.c.h.b16 %v6001
      %v6976 = vunpack.c.l.b16 %v6002
      %v6977 = vunpack.c.h.b16 %v6002
      %v6978 = vunpack.c.l.b16 %v6003
      %v6979 = vunpack.c.h.b16 %v6003
      %v6980 = vunpack.c.l.b16 %v6004
      %v6981 = vunpack.c.h.b16 %v6004
      %v6982 = vunpack.c.l.b16 %v6005
      %v6983 = vunpack.c.h.b16 %v6005
      %v6984 = vunpack.c.l.b16 %v6006
      %v6985 = vunpack.c.h.b16 %v6006
      %v6986 = vunpack.c.l.b16 %v6007
      %v6987 = vunpack.c.h.b16 %v6007
      %v6988 = vunpack.c.l.b16 %v6008
      %v6989 = vunpack.c.h.b16 %v6008
      %v6990 = vunpack.c.l.b16 %v6009
      %v6991 = vunpack.c.h.b16 %v6009
      %v6992 = vunpack.c.l.b16 %v6010
      %v6993 = vunpack.c.h.b16 %v6010
      %v6994 = vunpack.c.l.b16 %v6011
      %v6995 = vunpack.c.h.b16 %v6011
      %v6996 = vunpack.c.l.b16 %v6012
      %v6997 = vunpack.c.h.b16 %v6012
      %v6998 = vunpack.c.l.b16 %v6013
      %v6999 = vunpack.c.h.b16 %v6013
      %v7000 = vunpack.c.l.b16 %v6014
      %v7001 = vunpack.c.h.b16 %v6014
      %v7002 = vunpack.c.l.b16 %v6015
      %v7003 = vunpack.c.h.b16 %v6015
      %v7004 = vunpack.c.l.b16 %v6016
      %v7005 = vunpack.c.h.b16 %v6016
      %v7006 = vunpack.c.l.b16 %v6017
      %v7007 = vunpack.c.h.b16 %v6017
      %v7008 = vunpack.c.l.b16 %v6018
      %v7009 = vunpack.c.h.b16 %v6018
      %v7010 = vunpack.c.l.b16 %v6019
      %v7011 = vunpack.c.h.b16 %v6019
      %v7012 = vunpack.c.l.b16 %v6020
      %v7013 = vunpack.c.h.b16 %v6020
      %v7014 = vunpack.c.l.b16 %v6021
      %v7015 = vunpack.c.h.b16 %v6021
      %v7016 = vunpack.c.l.b16 %v6022
      %v7017 = vunpack.c.h.b16 %v6022
      %v7018 = vunpack.c.l.b16 %v6023
      %v7019 = vunpack.c.h.b16 %v6023
      %v7020 = vunpack.c.l.b16 %v6024
      %v7021 = vunpack.c.h.b16 %v6024
      %v7022 = vunpack.c.l.b16 %v6025
      %v7023 = vunpack.c.h.b16 %v6025
      %v7024 = vunpack.c.l.b16 %v6026
      %v7025 = vunpack.c.h.b16 %v6026
      %v7026 = vunpack.c.l.b16 %v6027
      %v7027 = vunpack.c.h.b16 %v6027
      %v7028 = vunpack.c.l.b16 %v6028
      %v7029 = vunpack.c.h.b16 %v6028
      %v7030 = vunpack.c.l.b16 %v6029
      %v7031 = vunpack.c.h.b16 %v6029
      %v7032 = vunpack.c.l.b16 %v6030
      %v7033 = vunpack.c.h.b16 %v6030
      %v7034 = vunpack.c.l.b16 %v6031
      %v7035 = vunpack.c.h.b16 %v6031
      %v7036 = vunpack.c.l.b16 %v6032
      %v7037 = vunpack.c.h.b16 %v6032
      %v7038 = vunpack.c.l.b16 %v6033
      %v7039 = vunpack.c.h.b16 %v6033
      %v7040 = vunpack.c.l.b16 %v6034
      %v7041 = vunpack.c.h.b16 %v6034
      %v7042 = vunpack.c.l.b16 %v6035
      %v7043 = vunpack.c.h.b16 %v6035
      %v7044 = vunpack.c.l.b16 %v6036
      %v7045 = vunpack.c.h.b16 %v6036
      %v7046 = vunpack.c.l.b16 %v6037
      %v7047 = vunpack.c.h.b16 %v6037
      %v7048 = vunpack.c.l.b16 %v6038
      %v7049 = vunpack.c.h.b16 %v6038
      %v7050 = vunpack.c.l.b16 %v6039
      %v7051 = vunpack.c.h.b16 %v6039
      %v7052 = vunpack.c.l.b16 %v6040
      %v7053 = vunpack.c.h.b16 %v6040
      %v7054 = vunpack.c.l.b16 %v6041
      %v7055 = vunpack.c.h.b16 %v6041
      %v7056 = vunpack.c.l.b16 %v6042
      %v7057 = vunpack.c.h.b16 %v6042
      %v7058 = vunpack.c.l.b16 %v6043
      %v7059 = vunpack.c.h.b16 %v6043
      %v7060 = vunpack.c.l.b16 %v6044
      %v7061 = vunpack.c.h.b16 %v6044
      %v7062 = vunpack.c.l.b16 %v6045
      %v7063 = vunpack.c.h.b16 %v6045
      %v7064 = vunpack.c.l.b16 %v6046
      %v7065 = vunpack.c.h.b16 %v6046
      %v7066 = vunpack.c.l.b16 %v6047
      %v7067 = vunpack.c.h.b16 %v6047
      %v7068 = vunpack.c.l.b16 %v6048
      %v7069 = vunpack.c.h.b16 %v6048
      %v7070 = vunpack.c.l.b16 %v6049
      %v7071 = vunpack.c.h.b16 %v6049
      %v7072 = vunpack.c.l.b16 %v6050
      %v7073 = vunpack.c.h.b16 %v6050
      %v7074 = vunpack.c.l.b16 %v6051
      %v7075 = vunpack.c.h.b16 %v6051
      %v7076 = vunpack.c.l.b16 %v6052
      %v7077 = vunpack.c.h.b16 %v6052
      %v7078 = vunpack.c.l.b16 %v6053
      %v7079 = vunpack.c.h.b16 %v6053
      %v7080 = vunpack.c.l.b16 %v6054
      %v7081 = vunpack.c.h.b16 %v6054
      %v7082 = vunpack.c.l.b16 %v6055
      %v7083 = vunpack.c.h.b16 %v6055
      %v7084 = vunpack.c.l.b16 %v6056
      %v7085 = vunpack.c.h.b16 %v6056
      %v7086 = vunpack.c.l.b16 %v6057
      %v7087 = vunpack.c.h.b16 %v6057
      %v7088 = vunpack.c.l.b16 %v6058
      %v7089 = vunpack.c.h.b16 %v6058
      %v7090 = vunpack.c.l.b16 %v6059
      %v7091 = vunpack.c.h.b16 %v6059
      %v7092 = vunpack.c.l.b16 %v6060
      %v7093 = vunpack.c.h.b16 %v6060
      %v7094 = vunpack.c.l.b16 %v6061
      %v7095 = vunpack.c.h.b16 %v6061
      %v7096 = vunpack.c.l.b16 %v6062
      %v7097 = vunpack.c.h.b16 %v6062
      %v7098 = vunpack.c.l.b16 %v6063
      %v7099 = vunpack.c.h.b16 %v6063
      %v7100 = vunpack.c.l.b16 %v6064
      %v7101 = vunpack.c.h.b16 %v6064
      %v7102 = vunpack.c.l.b16 %v6065
      %v7103 = vunpack.c.h.b16 %v6065
      %v7104 = vunpack.c.l.b16 %v6066
      %v7105 = vunpack.c.h.b16 %v6066
      %v7106 = vunpack.c.l.b16 %v6067
      %v7107 = vunpack.c.h.b16 %v6067
      %v7108 = vunpack.c.l.b16 %v6068
      %v7109 = vunpack.c.h.b16 %v6068
      %v7110 = vunpack.c.l.b16 %v6069
      %v7111 = vunpack.c.h.b16 %v6069
      %v7112 = vunpack.c.l.b16 %v6070
      %v7113 = vunpack.c.h.b16 %v6070
      %v7114 = vunpack.c.l.b16 %v6071
      %v7115 = vunpack.c.h.b16 %v6071
      %v7116 = vunpack.c.l.b16 %v6072
      %v7117 = vunpack.c.h.b16 %v6072
      %v7118 = vunpack.c.l.b16 %v6073
      %v7119 = vunpack.c.h.b16 %v6073
      %v7120 = vunpack.c.l.b16 %v6074
      %v7121 = vunpack.c.h.b16 %v6074
      %v7122 = vunpack.c.l.b16 %v6075
      %v7123 = vunpack.c.h.b16 %v6075
      %v7124 = vunpack.c.l.b16 %v6076
      %v7125 = vunpack.c.h.b16 %v6076
      %v7126 = vunpack.c.l.b16 %v6077
      %v7127 = vunpack.c.h.b16 %v6077
      %v7128 = vunpack.c.l.b16 %v6078
      %v7129 = vunpack.c.h.b16 %v6078
      %v7130 = vunpack.c.l.b16 %v6079
      %v7131 = vunpack.c.h.b16 %v6079
      %v7132 = vunpack.c.l.b16 %v6080
      %v7133 = vunpack.c.h.b16 %v6080
      %v7134 = vunpack.c.l.b16 %v6081
      %v7135 = vunpack.c.h.b16 %v6081
      %v7136 = vunpack.c.l.b16 %v6082
      %v7137 = vunpack.c.h.b16 %v6082
      %v7138 = vunpack.c.l.b16 %v6083
      %v7139 = vunpack.c.h.b16 %v6083
      %v7140 = vunpack.c.l.b16 %v6084
      %v7141 = vunpack.c.h.b16 %v6084
      %v7142 = vunpack.c.l.b16 %v6085
      %v7143 = vunpack.c.h.b16 %v6085
      %v7144 = vunpack.c.l.b16 %v6086
      %v7145 = vunpack.c.h.b16 %v6086
      %v7146 = vunpack.c.l.b16 %v6087
      %v7147 = vunpack.c.h.b16 %v6087
      %v7148 = vunpack.c.l.b16 %v6088
      %v7149 = vunpack.c.h.b16 %v6088
      %v7150 = vunpack.c.l.b16 %v6089
      %v7151 = vunpack.c.h.b16 %v6089
      %v7152 = vunpack.c.l.b16 %v6090
      %v7153 = vunpack.c.h.b16 %v6090
      %v7154 = vunpack.c.l.b16 %v6091
      %v7155 = vunpack.c.h.b16 %v6091
      %v7156 = vunpack.c.l.b16 %v6092
      %v7157 = vunpack.c.h.b16 %v6092
      %v7158 = vunpack.c.l.b16 %v6093
      %v7159 = vunpack.c.h.b16 %v6093
      %v7160 = vunpack.c.l.b16 %v6094
      %v7161 = vunpack.c.h.b16 %v6094
      %v7162 = vunpack.c.l.b16 %v6095
      %v7163 = vunpack.c.h.b16 %v6095
      %v7164 = vunpack.c.l.b16 %v6096
      %v7165 = vunpack.c.h.b16 %v6096
      %v7166 = vunpack.c.l.b16 %v6097
      %v7167 = vunpack.c.h.b16 %v6097
      %v7168 = vunpack.c.l.b16 %v6098
      %v7169 = vunpack.c.h.b16 %v6098
      %v7170 = vunpack.c.l.b16 %v6099
      %v7171 = vunpack.c.h.b16 %v6099
      %v7172 = vunpack.c.l.b16 %v6100
      %v7173 = vunpack.c.h.b16 %v6100
      %v7174 = vunpack.c.l.b16 %v6101
      %v7175 = vunpack.c.h.b16 %v6101
      %v7176 = vunpack.c.l.b16 %v6102
      %v7177 = vunpack.c.h.b16 %v6102
      %v7178 = vunpack.c.l.b16 %v6103
      %v7179 = vunpack.c.h.b16 %v6103
      %v7180 = vunpack.c.l.b16 %v6104
      %v7181 = vunpack.c.h.b16 %v6104
      %v7182 = vunpack.c.l.b16 %v6105
      %v7183 = vunpack.c.h.b16 %v6105
      %v7184 = vunpack.c.l.b16 %v6106
      %v7185 = vunpack.c.h.b16 %v6106
      %v7186 = vunpack.c.l.b16 %v6107
      %v7187 = vunpack.c.h.b16 %v6107
      %v7188 = vunpack.c.l.b16 %v6108
      %v7189 = vunpack.c.h.b16 %v6108
      %v7190 = vunpack.c.l.b16 %v6109
      %v7191 = vunpack.c.h.b16 %v6109
      %v7192 = vunpack.c.l.b16 %v6110
      %v7193 = vunpack.c.h.b16 %v6110
      %v7194 = vunpack.c.l.b16 %v6111
      %v7195 = vunpack.c.h.b16 %v6111
      %v7196 = vunpack.c.l.b16 %v6112
      %v7197 = vunpack.c.h.b16 %v6112
      %v7198 = vunpack.c.l.b16 %v6113
      %v7199 = vunpack.c.h.b16 %v6113
      %v7200 = vunpack.c.l.b16 %v6114
      %v7201 = vunpack.c.h.b16 %v6114
      %v7202 = vunpack.c.l.b16 %v6115
      %v7203 = vunpack.c.h.b16 %v6115
      %v7204 = vunpack.c.l.b16 %v6116
      %v7205 = vunpack.c.h.b16 %v6116
      %v7206 = vunpack.c.l.b16 %v6117
      %v7207 = vunpack.c.h.b16 %v6117
      %v7208 = vunpack.c.l.b16 %v6118
      %v7209 = vunpack.c.h.b16 %v6118
      %v7210 = vunpack.c.l.b16 %v6119
      %v7211 = vunpack.c.h.b16 %v6119
      %v7212 = vunpack.c.l.b16 %v6120
      %v7213 = vunpack.c.h.b16 %v6120
      %v7214 = vunpack.c.l.b16 %v6121
      %v7215 = vunpack.c.h.b16 %v6121
      %v7216 = vunpack.c.l.b16 %v6122
      %v7217 = vunpack.c.h.b16 %v6122
      %v7218 = vunpack.c.l.b16 %v6123
      %v7219 = vunpack.c.h.b16 %v6123
      %v7220 = vunpack.c.l.b16 %v6124
      %v7221 = vunpack.c.h.b16 %v6124
      %v7222 = vunpack.c.l.b16 %v6125
      %v7223 = vunpack.c.h.b16 %v6125
      %v7224 = vunpack.c.l.b16 %v6126
      %v7225 = vunpack.c.h.b16 %v6126
      %v7226 = vunpack.c.l.b16 %v6127
      %v7227 = vunpack.c.h.b16 %v6127
      %v7228 = vunpack.c.l.b16 %v6128
      %v7229 = vunpack.c.h.b16 %v6128
      %v7230 = vunpack.c.l.b16 %v6129
      %v7231 = vunpack.c.h.b16 %v6129
      %v7232 = vunpack.c.l.b16 %v6130
      %v7233 = vunpack.c.h.b16 %v6130
      %v7234 = vunpack.c.l.b16 %v6131
      %v7235 = vunpack.c.h.b16 %v6131
      %v7236 = vunpack.c.l.b16 %v6132
      %v7237 = vunpack.c.h.b16 %v6132
      %v7238 = vunpack.c.l.b16 %v6133
      %v7239 = vunpack.c.h.b16 %v6133
      %v7240 = vunpack.c.l.b16 %v6134
      %v7241 = vunpack.c.h.b16 %v6134
      %v7242 = vunpack.c.l.b16 %v6135
      %v7243 = vunpack.c.h.b16 %v6135
      %v7244 = vunpack.c.l.b16 %v6136
      %v7245 = vunpack.c.h.b16 %v6136
      %v7246 = vunpack.c.l.b16 %v6137
      %v7247 = vunpack.c.h.b16 %v6137
      %v7248 = vunpack.c.l.b16 %v6138
      %v7249 = vunpack.c.h.b16 %v6138
      %v7250 = vunpack.c.l.b16 %v6139
      %v7251 = vunpack.c.h.b16 %v6139
      %v7252 = vunpack.c.l.b16 %v6140
      %v7253 = vunpack.c.h.b16 %v6140
      %v7254 = vunpack.c.l.b16 %v6141
      %v7255 = vunpack.c.h.b16 %v6141
      %v7256 = vunpack.c.l.b16 %v6142
      %v7257 = vunpack.c.h.b16 %v6142
      %v7258 = vunpack.c.l.b16 %v6143
      %v7259 = vunpack.c.h.b16 %v6143
      %v7260 = vunpack.c.l.b16 %v6144
      %v7261 = vunpack.c.h.b16 %v6144
      %v7262 = vunpack.c.l.b16 %v6145
      %v7263 = vunpack.c.h.b16 %v6145
      %v7264 = vunpack.c.l.b16 %v6146
      %v7265 = vunpack.c.h.b16 %v6146
      %v7266 = vunpack.c.l.b16 %v6147
      %v7267 = vunpack.c.h.b16 %v6147
      %v7268 = vunpack.c.l.b16 %v6148
      %v7269 = vunpack.c.h.b16 %v6148
      %v7270 = vunpack.c.l.b16 %v6149
      %v7271 = vunpack.c.h.b16 %v6149
      %v7272 = vunpack.c.l.b16 %v6150
      %v7273 = vunpack.c.h.b16 %v6150
      %v7274 = vunpack.c.l.b16 %v6151
      %v7275 = vunpack.c.h.b16 %v6151
      %v7276 = vunpack.c.l.b16 %v6152
      %v7277 = vunpack.c.h.b16 %v6152
      %v7278 = vunpack.c.l.b16 %v6153
      %v7279 = vunpack.c.h.b16 %v6153
      %v7280 = vunpack.c.l.b16 %v6154
      %v7281 = vunpack.c.h.b16 %v6154
      %v7282 = vunpack.c.l.b16 %v6155
      %v7283 = vunpack.c.h.b16 %v6155
      %v7284 = vunpack.c.l.b16 %v6156
      %v7285 = vunpack.c.h.b16 %v6156
      %v7286 = vunpack.c.l.b16 %v6157
      %v7287 = vunpack.c.h.b16 %v6157
      %v7288 = vunpack.c.l.b16 %v6158
      %v7289 = vunpack.c.h.b16 %v6158
      %v7290 = vunpack.c.l.b16 %v6159
      %v7291 = vunpack.c.h.b16 %v6159
      %v7292 = vunpack.c.l.b16 %v6160
      %v7293 = vunpack.c.h.b16 %v6160
      %v7294 = vunpack.c.l.b16 %v6161
      %v7295 = vunpack.c.h.b16 %v6161
      %v7296 = vunpack.c.l.b16 %v6162
      %v7297 = vunpack.c.h.b16 %v6162
      %v7298 = vunpack.c.l.b16 %v6163
      %v7299 = vunpack.c.h.b16 %v6163
      %v7300 = vunpack.c.l.b16 %v6164
      %v7301 = vunpack.c.h.b16 %v6164
      %v7302 = vunpack.c.l.b16 %v6165
      %v7303 = vunpack.c.h.b16 %v6165
      %v7304 = vunpack.c.l.b16 %v6166
      %v7305 = vunpack.c.h.b16 %v6166
      %v7306 = vunpack.c.l.b16 %v6167
      %v7307 = vunpack.c.h.b16 %v6167
      %v7308 = vunpack.c.l.b16 %v6168
      %v7309 = vunpack.c.h.b16 %v6168
      %v7310 = vunpack.c.l.b16 %v6169
      %v7311 = vunpack.c.h.b16 %v6169
      %v7312 = vunpack.c.l.b16 %v6170
      %v7313 = vunpack.c.h.b16 %v6170
      %v7314 = vunpack.c.l.b16 %v6171
      %v7315 = vunpack.c.h.b16 %v6171
      %v7316 = vunpack.c.l.b16 %v6172
      %v7317 = vunpack.c.h.b16 %v6172
      %v7318 = vunpack.c.l.b16 %v6173
      %v7319 = vunpack.c.h.b16 %v6173
      %v7320 = vunpack.c.l.b16 %v6174
      %v7321 = vunpack.c.h.b16 %v6174
      %v7322 = vunpack.c.l.b16 %v6175
      %v7323 = vunpack.c.h.b16 %v6175
      %v7324 = vunpack.c.l.b16 %v6176
      %v7325 = vunpack.c.h.b16 %v6176
      %v7326 = vunpack.c.l.b16 %v6177
      %v7327 = vunpack.c.h.b16 %v6177
      %v7328 = vunpack.c.l.b16 %v6178
      %v7329 = vunpack.c.h.b16 %v6178
      %v7330 = vunpack.c.l.b16 %v6179
      %v7331 = vunpack.c.h.b16 %v6179
      %v7332 = vpack.c.b16 %v6568, %v6564
      %v7333 = vpack.c.b16 %v6569, %v6565
      %v7334 = vpack.c.b16 %v6570, %v6566
      %v7335 = vpack.c.b16 %v6571, %v6567
      %v7336 = vpack.c.b16 %v6576, %v6572
      %v7337 = vpack.c.b16 %v6577, %v6573
      %v7338 = vpack.c.b16 %v6578, %v6574
      %v7339 = vpack.c.b16 %v6579, %v6575
      %v7340 = vpack.c.b16 %v6584, %v6580
      %v7341 = vpack.c.b16 %v6585, %v6581
      %v7342 = vpack.c.b16 %v6586, %v6582
      %v7343 = vpack.c.b16 %v6587, %v6583
      %v7344 = vpack.c.b16 %v6592, %v6588
      %v7345 = vpack.c.b16 %v6593, %v6589
      %v7346 = vpack.c.b16 %v6594, %v6590
      %v7347 = vpack.c.b16 %v6595, %v6591
      %v7348 = vpack.c.b16 %v6600, %v6596
      %v7349 = vpack.c.b16 %v6601, %v6597
      %v7350 = vpack.c.b16 %v6602, %v6598
      %v7351 = vpack.c.b16 %v6603, %v6599
      %v7352 = vpack.c.b16 %v6608, %v6604
      %v7353 = vpack.c.b16 %v6609, %v6605
      %v7354 = vpack.c.b16 %v6610, %v6606
      %v7355 = vpack.c.b16 %v6611, %v6607
      %v7356 = vpack.c.b16 %v6616, %v6612
      %v7357 = vpack.c.b16 %v6617, %v6613
      %v7358 = vpack.c.b16 %v6618, %v6614
      %v7359 = vpack.c.b16 %v6619, %v6615
      %v7360 = vpack.c.b16 %v6624, %v6620
      %v7361 = vpack.c.b16 %v6625, %v6621
      %v7362 = vpack.c.b16 %v6626, %v6622
      %v7363 = vpack.c.b16 %v6627, %v6623
      %v7364 = vpack.c.b16 %v6632, %v6628
      %v7365 = vpack.c.b16 %v6633, %v6629
      %v7366 = vpack.c.b16 %v6634, %v6630
      %v7367 = vpack.c.b16 %v6635, %v6631
      %v7368 = vpack.c.b16 %v6640, %v6636
      %v7369 = vpack.c.b16 %v6641, %v6637
      %v7370 = vpack.c.b16 %v6642, %v6638
      %v7371 = vpack.c.b16 %v6643, %v6639
      %v7372 = vpack.c.b16 %v6648, %v6644
      %v7373 = vpack.c.b16 %v6649, %v6645
      %v7374 = vpack.c.b16 %v6650, %v6646
      %v7375 = vpack.c.b16 %v6651, %v6647
      %v7376 = vpack.c.b16 %v6656, %v6652
      %v7377 = vpack.c.b16 %v6657, %v6653
      %v7378 = vpack.c.b16 %v6658, %v6654
      %v7379 = vpack.c.b16 %v6659, %v6655
      %v7380 = vpack.c.b16 %v6664, %v6660
      %v7381 = vpack.c.b16 %v6665, %v6661
      %v7382 = vpack.c.b16 %v6666, %v6662
      %v7383 = vpack.c.b16 %v6667, %v6663
      %v7384 = vpack.c.b16 %v6672, %v6668
      %v7385 = vpack.c.b16 %v6673, %v6669
      %v7386 = vpack.c.b16 %v6674, %v6670
      %v7387 = vpack.c.b16 %v6675, %v6671
      %v7388 = vpack.c.b16 %v6680, %v6676
      %v7389 = vpack.c.b16 %v6681, %v6677
      %v7390 = vpack.c.b16 %v6682, %v6678
      %v7391 = vpack.c.b16 %v6683, %v6679
      %v7392 = vpack.c.b16 %v6688, %v6684
      %v7393 = vpack.c.b16 %v6689, %v6685
      %v7394 = vpack.c.b16 %v6690, %v6686
      %v7395 = vpack.c.b16 %v6691, %v6687
      %v7396 = vpack.c.b16 %v6696, %v6692
      %v7397 = vpack.c.b16 %v6697, %v6693
      %v7398 = vpack.c.b16 %v6698, %v6694
      %v7399 = vpack.c.b16 %v6699, %v6695
      %v7400 = vpack.c.b16 %v6704, %v6700
      %v7401 = vpack.c.b16 %v6705, %v6701
      %v7402 = vpack.c.b16 %v6706, %v6702
      %v7403 = vpack.c.b16 %v6707, %v6703
      %v7404 = vpack.c.b16 %v6712, %v6708
      %v7405 = vpack.c.b16 %v6713, %v6709
      %v7406 = vpack.c.b16 %v6714, %v6710
      %v7407 = vpack.c.b16 %v6715, %v6711
      %v7408 = vpack.c.b16 %v6720, %v6716
      %v7409 = vpack.c.b16 %v6721, %v6717
      %v7410 = vpack.c.b16 %v6722, %v6718
      %v7411 = vpack.c.b16 %v6723, %v6719
      %v7412 = vpack.c.b16 %v6728, %v6724
      %v7413 = vpack.c.b16 %v6729, %v6725
      %v7414 = vpack.c.b16 %v6730, %v6726
      %v7415 = vpack.c.b16 %v6731, %v6727
      %v7416 = vpack.c.b16 %v6736, %v6732
      %v7417 = vpack.c.b16 %v6737, %v6733
      %v7418 = vpack.c.b16 %v6738, %v6734
      %v7419 = vpack.c.b16 %v6739, %v6735
      %v7420 = vpack.c.b16 %v6744, %v6740
      %v7421 = vpack.c.b16 %v6745, %v6741
      %v7422 = vpack.c.b16 %v6746, %v6742
      %v7423 = vpack.c.b16 %v6747, %v6743
      %v7424 = vpack.c.b16 %v6752, %v6748
      %v7425 = vpack.c.b16 %v6753, %v6749
      %v7426 = vpack.c.b16 %v6754, %v6750
      %v7427 = vpack.c.b16 %v6755, %v6751
      %v7428 = vpack.c.b16 %v6760, %v6756
      %v7429 = vpack.c.b16 %v6761, %v6757
      %v7430 = vpack.c.b16 %v6762, %v6758
      %v7431 = vpack.c.b16 %v6763, %v6759
      %v7432 = vpack.c.b16 %v6768, %v6764
      %v7433 = vpack.c.b16 %v6769, %v6765
      %v7434 = vpack.c.b16 %v6770, %v6766
      %v7435 = vpack.c.b16 %v6771, %v6767
      %v7436 = vpack.c.b16 %v6776, %v6772
      %v7437 = vpack.c.b16 %v6777, %v6773
      %v7438 = vpack.c.b16 %v6778, %v6774
      %v7439 = vpack.c.b16 %v6779, %v6775
      %v7440 = vpack.c.b16 %v6784, %v6780
      %v7441 = vpack.c.b16 %v6785, %v6781
      %v7442 = vpack.c.b16 %v6786, %v6782
      %v7443 = vpack.c.b16 %v6787, %v6783
      %v7444 = vpack.c.b16 %v6792, %v6788
      %v7445 = vpack.c.b16 %v6793, %v6789
      %v7446 = vpack.c.b16 %v6794, %v6790
      %v7447 = vpack.c.b16 %v6795, %v6791
      %v7448 = vpack.c.b16 %v6800, %v6796
      %v7449 = vpack.c.b16 %v6801, %v6797
      %v7450 = vpack.c.b16 %v6802, %v6798
      %v7451 = vpack.c.b16 %v6803, %v6799
      %v7452 = vpack.c.b16 %v6808, %v6804
      %v7453 = vpack.c.b16 %v6809, %v6805
      %v7454 = vpack.c.b16 %v6810, %v6806
      %v7455 = vpack.c.b16 %v6811, %v6807
      %v7456 = vpack.c.b16 %v6816, %v6812
      %v7457 = vpack.c.b16 %v6817, %v6813
      %v7458 = vpack.c.b16 %v6818, %v6814
      %v7459 = vpack.c.b16 %v6819, %v6815
      %v7460 = vpack.c.b16 %v6824, %v6820
      %v7461 = vpack.c.b16 %v6825, %v6821
      %v7462 = vpack.c.b16 %v6826, %v6822
      %v7463 = vpack.c.b16 %v6827, %v6823
      %v7464 = vpack.c.b16 %v6832, %v6828
      %v7465 = vpack.c.b16 %v6833, %v6829
      %v7466 = vpack.c.b16 %v6834, %v6830
      %v7467 = vpack.c.b16 %v6835, %v6831
      %v7468 = vpack.c.b16 %v6840, %v6836
      %v7469 = vpack.c.b16 %v6841, %v6837
      %v7470 = vpack.c.b16 %v6842, %v6838
      %v7471 = vpack.c.b16 %v6843, %v6839
      %v7472 = vpack.c.b16 %v6848, %v6844
      %v7473 = vpack.c.b16 %v6849, %v6845
      %v7474 = vpack.c.b16 %v6850, %v6846
      %v7475 = vpack.c.b16 %v6851, %v6847
      %v7476 = vpack.c.b16 %v6856, %v6852
      %v7477 = vpack.c.b16 %v6857, %v6853
      %v7478 = vpack.c.b16 %v6858, %v6854
      %v7479 = vpack.c.b16 %v6859, %v6855
      %v7480 = vpack.c.b16 %v6864, %v6860
      %v7481 = vpack.c.b16 %v6865, %v6861
      %v7482 = vpack.c.b16 %v6866, %v6862
      %v7483 = vpack.c.b16 %v6867, %v6863
      %v7484 = vpack.c.b16 %v6872, %v6868
      %v7485 = vpack.c.b16 %v6873, %v6869
      %v7486 = vpack.c.b16 %v6874, %v6870
      %v7487 = vpack.c.b16 %v6875, %v6871
      %v7488 = vpack.c.b16 %v6880, %v6876
      %v7489 = vpack.c.b16 %v6881, %v6877
      %v7490 = vpack.c.b16 %v6882, %v6878
      %v7491 = vpack.c.b16 %v6883, %v6879
      %v7492 = vpack.c.b16 %v6888, %v6884
      %v7493 = vpack.c.b16 %v6889, %v6885
      %v7494 = vpack.c.b16 %v6890, %v6886
      %v7495 = vpack.c.b16 %v6891, %v6887
      %v7496 = vpack.c.b16 %v6896, %v6892
      %v7497 = vpack.c.b16 %v6897, %v6893
      %v7498 = vpack.c.b16 %v6898, %v6894
      %v7499 = vpack.c.b16 %v6899, %v6895
      %v7500 = vpack.c.b16 %v6904, %v6900
      %v7501 = vpack.c.b16 %v6905, %v6901
      %v7502 = vpack.c.b16 %v6906, %v6902
      %v7503 = vpack.c.b16 %v6907, %v6903
      %v7504 = vpack.c.b16 %v6912, %v6908
      %v7505 = vpack.c.b16 %v6913, %v6909
      %v7506 = vpack.c.b16 %v6914, %v6910
      %v7507 = vpack.c.b16 %v6915, %v6911
      %v7508 = vpack.c.b16 %v6920, %v6916
      %v7509 = vpack.c.b16 %v6921, %v6917
      %v7510 = vpack.c.b16 %v6922, %v6918
      %v7511 = vpack.c.b16 %v6923, %v6919
      %v7512 = vpack.c.b16 %v6928, %v6924
      %v7513 = vpack.c.b16 %v6929, %v6925
      %v7514 = vpack.c.b16 %v6930, %v6926
      %v7515 = vpack.c.b16 %v6931, %v6927
      %v7516 = vpack.c.b16 %v6936, %v6932
      %v7517 = vpack.c.b16 %v6937, %v6933
      %v7518 = vpack.c.b16 %v6938, %v6934
      %v7519 = vpack.c.b16 %v6939, %v6935
      %v7520 = vpack.c.b16 %v6944, %v6940
      %v7521 = vpack.c.b16 %v6945, %v6941
      %v7522 = vpack.c.b16 %v6946, %v6942
      %v7523 = vpack.c.b16 %v6947, %v6943
      %v7524 = vpack.c.b16 %v6952, %v6948
      %v7525 = vpack.c.b16 %v6953, %v6949
      %v7526 = vpack.c.b16 %v6954, %v6950
      %v7527 = vpack.c.b16 %v6955, %v6951
      %v7528 = vpack.c.b16 %v6960, %v6956
      %v7529 = vpack.c.b16 %v6961, %v6957
      %v7530 = vpack.c.b16 %v6962, %v6958
      %v7531 = vpack.c.b16 %v6963, %v6959
      %v7532 = vpack.c.b16 %v6968, %v6964
      %v7533 = vpack.c.b16 %v6969, %v6965
      %v7534 = vpack.c.b16 %v6970, %v6966
      %v7535 = vpack.c.b16 %v6971, %v6967
      %v7536 = vpack.c.b16 %v6976, %v6972
      %v7537 = vpack.c.b16 %v6977, %v6973
      %v7538 = vpack.c.b16 %v6978, %v6974
      %v7539 = vpack.c.b16 %v6979, %v6975
      %v7540 = vpack.c.b16 %v6984, %v6980
      %v7541 = vpack.c.b16 %v6985, %v6981
      %v7542 = vpack.c.b16 %v6986, %v6982
      %v7543 = vpack.c.b16 %v6987, %v6983
      %v7544 = vpack.c.b16 %v6992, %v6988
      %v7545 = vpack.c.b16 %v6993, %v6989
      %v7546 = vpack.c.b16 %v6994, %v6990
      %v7547 = vpack.c.b16 %v6995, %v6991
      %v7548 = vpack.c.b16 %v7000, %v6996
      %v7549 = vpack.c.b16 %v7001, %v6997
      %v7550 = vpack.c.b16 %v7002, %v6998
      %v7551 = vpack.c.b16 %v7003, %v6999
      %v7552 = vpack.c.b16 %v7008, %v7004
      %v7553 = vpack.c.b16 %v7009, %v7005
      %v7554 = vpack.c.b16 %v7010, %v7006
      %v7555 = vpack.c.b16 %v7011, %v7007
      %v7556 = vpack.c.b16 %v7016, %v7012
      %v7557 = vpack.c.b16 %v7017, %v7013
      %v7558 = vpack.c.b16 %v7018, %v7014
      %v7559 = vpack.c.b16 %v7019, %v7015
      %v7560 = vpack.c.b16 %v7024, %v7020
      %v7561 = vpack.c.b16 %v7025, %v7021
      %v7562 = vpack.c.b16 %v7026, %v7022
      %v7563 = vpack.c.b16 %v7027, %v7023
      %v7564 = vpack.c.b16 %v7032, %v7028
      %v7565 = vpack.c.b16 %v7033, %v7029
      %v7566 = vpack.c.b16 %v7034, %v7030
      %v7567 = vpack.c.b16 %v7035, %v7031
      %v7568 = vpack.c.b16 %v7040, %v7036
      %v7569 = vpack.c.b16 %v7041, %v7037
      %v7570 = vpack.c.b16 %v7042, %v7038
      %v7571 = vpack.c.b16 %v7043, %v7039
      %v7572 = vpack.c.b16 %v7048, %v7044
      %v7573 = vpack.c.b16 %v7049, %v7045
      %v7574 = vpack.c.b16 %v7050, %v7046
      %v7575 = vpack.c.b16 %v7051, %v7047
      %v7576 = vpack.c.b16 %v7056, %v7052
      %v7577 = vpack.c.b16 %v7057, %v7053
      %v7578 = vpack.c.b16 %v7058, %v7054
      %v7579 = vpack.c.b16 %v7059, %v7055
      %v7580 = vpack.c.b16 %v7064, %v7060
      %v7581 = vpack.c.b16 %v7065, %v7061
      %v7582 = vpack.c.b16 %v7066, %v7062
      %v7583 = vpack.c.b16 %v7067, %v7063
      %v7584 = vpack.c.b16 %v7072, %v7068
      %v7585 = vpack.c.b16 %v7073, %v7069
      %v7586 = vpack.c.b16 %v7074, %v7070
      %v7587 = vpack.c.b16 %v7075, %v7071
      %v7588 = vpack.c.b16 %v7080, %v7076
      %v7589 = vpack.c.b16 %v7081, %v7077
      %v7590 = vpack.c.b16 %v7082, %v7078
      %v7591 = vpack.c.b16 %v7083, %v7079
      %v7592 = vpack.c.b16 %v7088, %v7084
      %v7593 = vpack.c.b16 %v7089, %v7085
      %v7594 = vpack.c.b16 %v7090, %v7086
      %v7595 = vpack.c.b16 %v7091, %v7087
      %v7596 = vpack.c.b16 %v7096, %v7092
      %v7597 = vpack.c.b16 %v7097, %v7093
      %v7598 = vpack.c.b16 %v7098, %v7094
      %v7599 = vpack.c.b16 %v7099, %v7095
      %v7600 = vpack.c.b16 %v7104, %v7100
      %v7601 = vpack.c.b16 %v7105, %v7101
      %v7602 = vpack.c.b16 %v7106, %v7102
      %v7603 = vpack.c.b16 %v7107, %v7103
      %v7604 = vpack.c.b16 %v7112, %v7108
      %v7605 = vpack.c.b16 %v7113, %v7109
      %v7606 = vpack.c.b16 %v7114, %v7110
      %v7607 = vpack.c.b16 %v7115, %v7111
      %v7608 = vpack.c.b16 %v7120, %v7116
      %v7609 = vpack.c.b16 %v7121, %v7117
      %v7610 = vpack.c.b16 %v7122, %v7118
      %v7611 = vpack.c.b16 %v7123, %v7119
      %v7612 = vpack.c.b16 %v7128, %v7124
      %v7613 = vpack.c.b16 %v7129, %v7125
      %v7614 = vpack.c.b16 %v7130, %v7126
      %v7615 = vpack.c.b16 %v7131, %v7127
      %v7616 = vpack.c.b16 %v7136, %v7132
      %v7617 = vpack.c.b16 %v7137, %v7133
      %v7618 = vpack.c.b16 %v7138, %v7134
      %v7619 = vpack.c.b16 %v7139, %v7135
      %v7620 = vpack.c.b16 %v7144, %v7140
      %v7621 = vpack.c.b16 %v7145, %v7141
      %v7622 = vpack.c.b16 %v7146, %v7142
      %v7623 = vpack.c.b16 %v7147, %v7143
      %v7624 = vpack.c.b16 %v7152, %v7148
      %v7625 = vpack.c.b16 %v7153, %v7149
      %v7626 = vpack.c.b16 %v7154, %v7150
      %v7627 = vpack.c.b16 %v7155, %v7151
      %v7628 = vpack.c.b16 %v7160, %v7156
      %v7629 = vpack.c.b16 %v7161, %v7157
      %v7630 = vpack.c.b16 %v7162, %v7158
      %v7631 = vpack.c.b16 %v7163, %v7159
      %v7632 = vpack.c.b16 %v7168, %v7164
      %v7633 = vpack.c.b16 %v7169, %v7165
      %v7634 = vpack.c.b16 %v7170, %v7166
      %v7635 = vpack.c.b16 %v7171, %v7167
      %v7636 = vpack.c.b16 %v7176, %v7172
      %v7637 = vpack.c.b16 %v7177, %v7173
      %v7638 = vpack.c.b16 %v7178, %v7174
      %v7639 = vpack.c.b16 %v7179, %v7175
      %v7640 = vpack.c.b16 %v7184, %v7180
      %v7641 = vpack.c.b16 %v7185, %v7181
      %v7642 = vpack.c.b16 %v7186, %v7182
      %v7643 = vpack.c.b16 %v7187, %v7183
      %v7644 = vpack.c.b16 %v7192, %v7188
      %v7645 = vpack.c.b16 %v7193, %v7189
      %v7646 = vpack.c.b16 %v7194, %v7190
      %v7647 = vpack.c.b16 %v7195, %v7191
      %v7648 = vpack.c.b16 %v7200, %v7196
      %v7649 = vpack.c.b16 %v7201, %v7197
      %v7650 = vpack.c.b16 %v7202, %v7198
      %v7651 = vpack.c.b16 %v7203, %v7199
      %v7652 = vpack.c.b16 %v7208, %v7204
      %v7653 = vpack.c.b16 %v7209, %v7205
      %v7654 = vpack.c.b16 %v7210, %v7206
      %v7655 = vpack.c.b16 %v7211, %v7207
      %v7656 = vpack.c.b16 %v7216, %v7212
      %v7657 = vpack.c.b16 %v7217, %v7213
      %v7658 = vpack.c.b16 %v7218, %v7214
      %v7659 = vpack.c.b16 %v7219, %v7215
      %v7660 = vpack.c.b16 %v7224, %v7220
      %v7661 = vpack.c.b16 %v7225, %v7221
      %v7662 = vpack.c.b16 %v7226, %v7222
      %v7663 = vpack.c.b16 %v7227, %v7223
      %v7664 = vpack.c.b16 %v7232, %v7228
      %v7665 = vpack.c.b16 %v7233, %v7229
      %v7666 = vpack.c.b16 %v7234, %v7230
      %v7667 = vpack.c.b16 %v7235, %v7231
      %v7668 = vpack.c.b16 %v7240, %v7236
      %v7669 = vpack.c.b16 %v7241, %v7237
      %v7670 = vpack.c.b16 %v7242, %v7238
      %v7671 = vpack.c.b16 %v7243, %v7239
      %v7672 = vpack.c.b16 %v7248, %v7244
      %v7673 = vpack.c.b16 %v7249, %v7245
      %v7674 = vpack.c.b16 %v7250, %v7246
      %v7675 = vpack.c.b16 %v7251, %v7247
      %v7676 = vpack.c.b16 %v7256, %v7252
      %v7677 = vpack.c.b16 %v7257, %v7253
      %v7678 = vpack.c.b16 %v7258, %v7254
      %v7679 = vpack.c.b16 %v7259, %v7255
      %v7680 = vpack.c.b16 %v7264, %v7260
      %v7681 = vpack.c.b16 %v7265, %v7261
      %v7682 = vpack.c.b16 %v7266, %v7262
      %v7683 = vpack.c.b16 %v7267, %v7263
      %v7684 = vpack.c.b16 %v7272, %v7268
      %v7685 = vpack.c.b16 %v7273, %v7269
      %v7686 = vpack.c.b16 %v7274, %v7270
      %v7687 = vpack.c.b16 %v7275, %v7271
      %v7688 = vpack.c.b16 %v7280, %v7276
      %v7689 = vpack.c.b16 %v7281, %v7277
      %v7690 = vpack.c.b16 %v7282, %v7278
      %v7691 = vpack.c.b16 %v7283, %v7279
      %v7692 = vpack.c.b16 %v7288, %v7284
      %v7693 = vpack.c.b16 %v7289, %v7285
      %v7694 = vpack.c.b16 %v7290, %v7286
      %v7695 = vpack.c.b16 %v7291, %v7287
      %v7696 = vpack.c.b16 %v7296, %v7292
      %v7697 = vpack.c.b16 %v7297, %v7293
      %v7698 = vpack.c.b16 %v7298, %v7294
      %v7699 = vpack.c.b16 %v7299, %v7295
      %v7700 = vpack.c.b16 %v7304, %v7300
      %v7701 = vpack.c.b16 %v7305, %v7301
      %v7702 = vpack.c.b16 %v7306, %v7302
      %v7703 = vpack.c.b16 %v7307, %v7303
      %v7704 = vpack.c.b16 %v7312, %v7308
      %v7705 = vpack.c.b16 %v7313, %v7309
      %v7706 = vpack.c.b16 %v7314, %v7310
      %v7707 = vpack.c.b16 %v7315, %v7311
      %v7708 = vpack.c.b16 %v7320, %v7316
      %v7709 = vpack.c.b16 %v7321, %v7317
      %v7710 = vpack.c.b16 %v7322, %v7318
      %v7711 = vpack.c.b16 %v7323, %v7319
      %v7712 = vpack.c.b16 %v7328, %v7324
      %v7713 = vpack.c.b16 %v7329, %v7325
      %v7714 = vpack.c.b16 %v7330, %v7326
      %v7715 = vpack.c.b16 %v7331, %v7327
      %8100 = vmatpush.bf16.msra.mxu0 %v7360
      %8101 = vmatpush.bf16.msra.mxu0 %v7356
      %8102 = vmatpush.bf16.msra.mxu0 %v7352
      %8103 = vmatpush.bf16.msra.mxu0 %v7348
      %8104 = vmatpush.bf16.msra.mxu0 %v7344
      %8105 = vmatpush.bf16.msra.mxu0 %v7340
      %8106 = vmatpush.bf16.msra.mxu0 %v7336
      %8107 = vmatpush.bf16.msra.mxu0 %v7332
      %8108 = vmatmul.bf16.gmra.mxu0 %v5710
      %v8109 = vpop.f32.mrf.mxu0
      %v8110 = vadd.f32 0.0, %v8109
      %v8111 = vpop.f32.mrf.mxu0
      %v8112 = vadd.f32 0.0, %v8111
      %8113 = vdwg.mxu0
      %8114 = vmatpush.bf16.msra.mxu0 %v7392
      %8115 = vmatpush.bf16.msra.mxu0 %v7388
      %8116 = vmatpush.bf16.msra.mxu0 %v7384
      %8117 = vmatpush.bf16.msra.mxu0 %v7380
      %8118 = vmatpush.bf16.msra.mxu0 %v7376
      %8119 = vmatpush.bf16.msra.mxu0 %v7372
      %8120 = vmatpush.bf16.msra.mxu0 %v7368
      %8121 = vmatpush.bf16.msra.mxu0 %v7364
      %8122 = vmatmul.bf16.gmra.mxu0 %v5711
      %v8123 = vpop.f32.mrf.mxu0
      %v8124 = vadd.f32 %v8110, %v8123
      %v8125 = vpop.f32.mrf.mxu0
      %v8126 = vadd.f32 %v8112, %v8125
      %8127 = vdwg.mxu0
      %8128 = vmatpush.bf16.msra.mxu0 %v7424
      %8129 = vmatpush.bf16.msra.mxu0 %v7420
      %8130 = vmatpush.bf16.msra.mxu0 %v7416
      %8131 = vmatpush.bf16.msra.mxu0 %v7412
      %8132 = vmatpush.bf16.msra.mxu0 %v7408
      %8133 = vmatpush.bf16.msra.mxu0 %v7404
      %8134 = vmatpush.bf16.msra.mxu0 %v7400
      %8135 = vmatpush.bf16.msra.mxu0 %v7396
      %8136 = vmatmul.bf16.gmra.mxu0 %v5712
      %v8137 = vpop.f32.mrf.mxu0
      %v8138 = vadd.f32 %v8124, %v8137
      %v8139 = vpop.f32.mrf.mxu0
      %v8140 = vadd.f32 %v8126, %v8139
      %8141 = vdwg.mxu0
      %8142 = vmatpush.bf16.msra.mxu0 %v7456
      %8143 = vmatpush.bf16.msra.mxu0 %v7452
      %8144 = vmatpush.bf16.msra.mxu0 %v7448
      %8145 = vmatpush.bf16.msra.mxu0 %v7444
      %8146 = vmatpush.bf16.msra.mxu0 %v7440
      %8147 = vmatpush.bf16.msra.mxu0 %v7436
      %8148 = vmatpush.bf16.msra.mxu0 %v7432
      %8149 = vmatpush.bf16.msra.mxu0 %v7428
      %8150 = vmatmul.bf16.gmra.mxu0 %v5713
      %v8151 = vpop.f32.mrf.mxu0
      %v8152 = vadd.f32 %v8138, %v8151
      %v8153 = vpop.f32.mrf.mxu0
      %v8154 = vadd.f32 %v8140, %v8153
      %8155 = vdwg.mxu0
      %8156 = vmatpush.bf16.msra.mxu0 %v7488
      %8157 = vmatpush.bf16.msra.mxu0 %v7484
      %8158 = vmatpush.bf16.msra.mxu0 %v7480
      %8159 = vmatpush.bf16.msra.mxu0 %v7476
      %8160 = vmatpush.bf16.msra.mxu0 %v7472
      %8161 = vmatpush.bf16.msra.mxu0 %v7468
      %8162 = vmatpush.bf16.msra.mxu0 %v7464
      %8163 = vmatpush.bf16.msra.mxu0 %v7460
      %8164 = vmatmul.bf16.gmra.mxu0 %v5739
      %v8165 = vpop.f32.mrf.mxu0
      %v8166 = vadd.f32 %v8152, %v8165
      %v8167 = vpop.f32.mrf.mxu0
      %v8168 = vadd.f32 %v8154, %v8167
      %8169 = vdwg.mxu0
      %8170 = vmatpush.bf16.msra.mxu0 %v7520
      %8171 = vmatpush.bf16.msra.mxu0 %v7516
      %8172 = vmatpush.bf16.msra.mxu0 %v7512
      %8173 = vmatpush.bf16.msra.mxu0 %v7508
      %8174 = vmatpush.bf16.msra.mxu0 %v7504
      %8175 = vmatpush.bf16.msra.mxu0 %v7500
      %8176 = vmatpush.bf16.msra.mxu0 %v7496
      %8177 = vmatpush.bf16.msra.mxu0 %v7492
      %8178 = vmatmul.bf16.gmra.mxu0 %v5751
      %v8179 = vpop.f32.mrf.mxu0
      %v8180 = vadd.f32 %v8166, %v8179
      %v8181 = vpop.f32.mrf.mxu0
      %v8182 = vadd.f32 %v8168, %v8181
      %8183 = vdwg.mxu0
      %8184 = vmatpush.bf16.msra.mxu0 %v7552
      %8185 = vmatpush.bf16.msra.mxu0 %v7548
      %8186 = vmatpush.bf16.msra.mxu0 %v7544
      %8187 = vmatpush.bf16.msra.mxu0 %v7540
      %8188 = vmatpush.bf16.msra.mxu0 %v7536
      %8189 = vmatpush.bf16.msra.mxu0 %v7532
      %8190 = vmatpush.bf16.msra.mxu0 %v7528
      %8191 = vmatpush.bf16.msra.mxu0 %v7524
      %8192 = vmatmul.bf16.gmra.mxu0 %v5763
      %v8193 = vpop.f32.mrf.mxu0
      %v8194 = vadd.f32 %v8180, %v8193
      %v8195 = vpop.f32.mrf.mxu0
      %v8196 = vadd.f32 %v8182, %v8195
      %8197 = vdwg.mxu0
      %8198 = vmatpush.bf16.msra.mxu0 %v7584
      %8199 = vmatpush.bf16.msra.mxu0 %v7580
      %8200 = vmatpush.bf16.msra.mxu0 %v7576
      %8201 = vmatpush.bf16.msra.mxu0 %v7572
      %8202 = vmatpush.bf16.msra.mxu0 %v7568
      %8203 = vmatpush.bf16.msra.mxu0 %v7564
      %8204 = vmatpush.bf16.msra.mxu0 %v7560
      %8205 = vmatpush.bf16.msra.mxu0 %v7556
      %8206 = vmatmul.bf16.gmra.mxu0 %v5775
      %v8207 = vpop.f32.mrf.mxu0
      %v8208 = vadd.f32 %v8194, %v8207
      %v8209 = vpop.f32.mrf.mxu0
      %v8210 = vadd.f32 %v8196, %v8209
      %8211 = vdwg.mxu0
      %8212 = vmatpush.bf16.msra.mxu0 %v7616
      %8213 = vmatpush.bf16.msra.mxu0 %v7612
      %8214 = vmatpush.bf16.msra.mxu0 %v7608
      %8215 = vmatpush.bf16.msra.mxu0 %v7604
      %8216 = vmatpush.bf16.msra.mxu0 %v7600
      %8217 = vmatpush.bf16.msra.mxu0 %v7596
      %8218 = vmatpush.bf16.msra.mxu0 %v7592
      %8219 = vmatpush.bf16.msra.mxu0 %v7588
      %8220 = vmatmul.bf16.gmra.mxu0 %v5782
      %v8221 = vpop.f32.mrf.mxu0
      %v8222 = vadd.f32 %v8208, %v8221
      %v8223 = vpop.f32.mrf.mxu0
      %v8224 = vadd.f32 %v8210, %v8223
      %8225 = vdwg.mxu0
      %8226 = vmatpush.bf16.msra.mxu0 %v7648
      %8227 = vmatpush.bf16.msra.mxu0 %v7644
      %8228 = vmatpush.bf16.msra.mxu0 %v7640
      %8229 = vmatpush.bf16.msra.mxu0 %v7636
      %8230 = vmatpush.bf16.msra.mxu0 %v7632
      %8231 = vmatpush.bf16.msra.mxu0 %v7628
      %8232 = vmatpush.bf16.msra.mxu0 %v7624
      %8233 = vmatpush.bf16.msra.mxu0 %v7620
      %8234 = vmatmul.bf16.gmra.mxu0 %v5785
      %v8235 = vpop.f32.mrf.mxu0
      %v8236 = vadd.f32 %v8222, %v8235
      %v8237 = vpop.f32.mrf.mxu0
      %v8238 = vadd.f32 %v8224, %v8237
      %8239 = vdwg.mxu0
      %8240 = vmatpush.bf16.msra.mxu0 %v7680
      %8241 = vmatpush.bf16.msra.mxu0 %v7676
      %8242 = vmatpush.bf16.msra.mxu0 %v7672
      %8243 = vmatpush.bf16.msra.mxu0 %v7668
      %8244 = vmatpush.bf16.msra.mxu0 %v7664
      %8245 = vmatpush.bf16.msra.mxu0 %v7660
      %8246 = vmatpush.bf16.msra.mxu0 %v7656
      %8247 = vmatpush.bf16.msra.mxu0 %v7652
      %8248 = vmatmul.bf16.gmra.mxu0 %v5788
      %v8249 = vpop.f32.mrf.mxu0
      %v8250 = vadd.f32 %v8236, %v8249
      %v8251 = vpop.f32.mrf.mxu0
      %v8252 = vadd.f32 %v8238, %v8251
      %8253 = vdwg.mxu0
      %8254 = vmatpush.bf16.msra.mxu0 %v7712
      %8255 = vmatpush.bf16.msra.mxu0 %v7708
      %8256 = vmatpush.bf16.msra.mxu0 %v7704
      %8257 = vmatpush.bf16.msra.mxu0 %v7700
      %8258 = vmatpush.bf16.msra.mxu0 %v7696
      %8259 = vmatpush.bf16.msra.mxu0 %v7692
      %8260 = vmatpush.bf16.msra.mxu0 %v7688
      %8261 = vmatpush.bf16.msra.mxu0 %v7684
      %8262 = vmatmul.bf16.gmra.mxu0 %v5791
      %v8263 = vpop.f32.mrf.mxu0
      %v8264 = vadd.f32 %v8250, %v8263
      %v8265 = vpop.f32.mrf.mxu0
      %v8266 = vadd.f32 %v8252, %v8265
      %8267 = vdwg.mxu0
      %8268 = vmatpush.bf16.msra.mxu0 %v7361
      %8269 = vmatpush.bf16.msra.mxu0 %v7357
      %8270 = vmatpush.bf16.msra.mxu0 %v7353
      %8271 = vmatpush.bf16.msra.mxu0 %v7349
      %8272 = vmatpush.bf16.msra.mxu0 %v7345
      %8273 = vmatpush.bf16.msra.mxu0 %v7341
      %8274 = vmatpush.bf16.msra.mxu0 %v7337
      %8275 = vmatpush.bf16.msra.mxu0 %v7333
      %8276 = vmatmul.bf16.gmra.mxu0 %v5710
      %v8277 = vpop.f32.mrf.mxu0
      %v8278 = vadd.f32 0.0, %v8277
      %v8279 = vpop.f32.mrf.mxu0
      %v8280 = vadd.f32 0.0, %v8279
      %8281 = vdwg.mxu0
      %8282 = vmatpush.bf16.msra.mxu0 %v7393
      %8283 = vmatpush.bf16.msra.mxu0 %v7389
      %8284 = vmatpush.bf16.msra.mxu0 %v7385
      %8285 = vmatpush.bf16.msra.mxu0 %v7381
      %8286 = vmatpush.bf16.msra.mxu0 %v7377
      %8287 = vmatpush.bf16.msra.mxu0 %v7373
      %8288 = vmatpush.bf16.msra.mxu0 %v7369
      %8289 = vmatpush.bf16.msra.mxu0 %v7365
      %8290 = vmatmul.bf16.gmra.mxu0 %v5711
      %v8291 = vpop.f32.mrf.mxu0
      %v8292 = vadd.f32 %v8278, %v8291
      %v8293 = vpop.f32.mrf.mxu0
      %v8294 = vadd.f32 %v8280, %v8293
      %8295 = vdwg.mxu0
      %8296 = vmatpush.bf16.msra.mxu0 %v7425
      %8297 = vmatpush.bf16.msra.mxu0 %v7421
      %8298 = vmatpush.bf16.msra.mxu0 %v7417
      %8299 = vmatpush.bf16.msra.mxu0 %v7413
      %8300 = vmatpush.bf16.msra.mxu0 %v7409
      %8301 = vmatpush.bf16.msra.mxu0 %v7405
      %8302 = vmatpush.bf16.msra.mxu0 %v7401
      %8303 = vmatpush.bf16.msra.mxu0 %v7397
      %8304 = vmatmul.bf16.gmra.mxu0 %v5712
      %v8305 = vpop.f32.mrf.mxu0
      %v8306 = vadd.f32 %v8292, %v8305
      %v8307 = vpop.f32.mrf.mxu0
      %v8308 = vadd.f32 %v8294, %v8307
      %8309 = vdwg.mxu0
      %8310 = vmatpush.bf16.msra.mxu0 %v7457
      %8311 = vmatpush.bf16.msra.mxu0 %v7453
      %8312 = vmatpush.bf16.msra.mxu0 %v7449
      %8313 = vmatpush.bf16.msra.mxu0 %v7445
      %8314 = vmatpush.bf16.msra.mxu0 %v7441
      %8315 = vmatpush.bf16.msra.mxu0 %v7437
      %8316 = vmatpush.bf16.msra.mxu0 %v7433
      %8317 = vmatpush.bf16.msra.mxu0 %v7429
      %8318 = vmatmul.bf16.gmra.mxu0 %v5713
      %v8319 = vpop.f32.mrf.mxu0
      %v8320 = vadd.f32 %v8306, %v8319
      %v8321 = vpop.f32.mrf.mxu0
      %v8322 = vadd.f32 %v8308, %v8321
      %8323 = vdwg.mxu0
      %8324 = vmatpush.bf16.msra.mxu0 %v7489
      %8325 = vmatpush.bf16.msra.mxu0 %v7485
      %8326 = vmatpush.bf16.msra.mxu0 %v7481
      %8327 = vmatpush.bf16.msra.mxu0 %v7477
      %8328 = vmatpush.bf16.msra.mxu0 %v7473
      %8329 = vmatpush.bf16.msra.mxu0 %v7469
      %8330 = vmatpush.bf16.msra.mxu0 %v7465
      %8331 = vmatpush.bf16.msra.mxu0 %v7461
      %8332 = vmatmul.bf16.gmra.mxu0 %v5739
      %v8333 = vpop.f32.mrf.mxu0
      %v8334 = vadd.f32 %v8320, %v8333
      %v8335 = vpop.f32.mrf.mxu0
      %v8336 = vadd.f32 %v8322, %v8335
      %8337 = vdwg.mxu0
      %8338 = vmatpush.bf16.msra.mxu0 %v7521
      %8339 = vmatpush.bf16.msra.mxu0 %v7517
      %8340 = vmatpush.bf16.msra.mxu0 %v7513
      %8341 = vmatpush.bf16.msra.mxu0 %v7509
      %8342 = vmatpush.bf16.msra.mxu0 %v7505
      %8343 = vmatpush.bf16.msra.mxu0 %v7501
      %8344 = vmatpush.bf16.msra.mxu0 %v7497
      %8345 = vmatpush.bf16.msra.mxu0 %v7493
      %8346 = vmatmul.bf16.gmra.mxu0 %v5751
      %v8347 = vpop.f32.mrf.mxu0
      %v8348 = vadd.f32 %v8334, %v8347
      %v8349 = vpop.f32.mrf.mxu0
      %v8350 = vadd.f32 %v8336, %v8349
      %8351 = vdwg.mxu0
      %8352 = vmatpush.bf16.msra.mxu0 %v7553
      %8353 = vmatpush.bf16.msra.mxu0 %v7549
      %8354 = vmatpush.bf16.msra.mxu0 %v7545
      %8355 = vmatpush.bf16.msra.mxu0 %v7541
      %8356 = vmatpush.bf16.msra.mxu0 %v7537
      %8357 = vmatpush.bf16.msra.mxu0 %v7533
      %8358 = vmatpush.bf16.msra.mxu0 %v7529
      %8359 = vmatpush.bf16.msra.mxu0 %v7525
      %8360 = vmatmul.bf16.gmra.mxu0 %v5763
      %v8361 = vpop.f32.mrf.mxu0
      %v8362 = vadd.f32 %v8348, %v8361
      %v8363 = vpop.f32.mrf.mxu0
      %v8364 = vadd.f32 %v8350, %v8363
      %8365 = vdwg.mxu0
      %8366 = vmatpush.bf16.msra.mxu0 %v7585
      %8367 = vmatpush.bf16.msra.mxu0 %v7581
      %8368 = vmatpush.bf16.msra.mxu0 %v7577
      %8369 = vmatpush.bf16.msra.mxu0 %v7573
      %8370 = vmatpush.bf16.msra.mxu0 %v7569
      %8371 = vmatpush.bf16.msra.mxu0 %v7565
      %8372 = vmatpush.bf16.msra.mxu0 %v7561
      %8373 = vmatpush.bf16.msra.mxu0 %v7557
      %8374 = vmatmul.bf16.gmra.mxu0 %v5775
      %v8375 = vpop.f32.mrf.mxu0
      %v8376 = vadd.f32 %v8362, %v8375
      %v8377 = vpop.f32.mrf.mxu0
      %v8378 = vadd.f32 %v8364, %v8377
      %8379 = vdwg.mxu0
      %8380 = vmatpush.bf16.msra.mxu0 %v7617
      %8381 = vmatpush.bf16.msra.mxu0 %v7613
      %8382 = vmatpush.bf16.msra.mxu0 %v7609
      %8383 = vmatpush.bf16.msra.mxu0 %v7605
      %8384 = vmatpush.bf16.msra.mxu0 %v7601
      %8385 = vmatpush.bf16.msra.mxu0 %v7597
      %8386 = vmatpush.bf16.msra.mxu0 %v7593
      %8387 = vmatpush.bf16.msra.mxu0 %v7589
      %8388 = vmatmul.bf16.gmra.mxu0 %v5782
      %v8389 = vpop.f32.mrf.mxu0
      %v8390 = vadd.f32 %v8376, %v8389
      %v8391 = vpop.f32.mrf.mxu0
      %v8392 = vadd.f32 %v8378, %v8391
      %8393 = vdwg.mxu0
      %8394 = vmatpush.bf16.msra.mxu0 %v7649
      %8395 = vmatpush.bf16.msra.mxu0 %v7645
      %8396 = vmatpush.bf16.msra.mxu0 %v7641
      %8397 = vmatpush.bf16.msra.mxu0 %v7637
      %8398 = vmatpush.bf16.msra.mxu0 %v7633
      %8399 = vmatpush.bf16.msra.mxu0 %v7629
      %8400 = vmatpush.bf16.msra.mxu0 %v7625
      %8401 = vmatpush.bf16.msra.mxu0 %v7621
      %8402 = vmatmul.bf16.gmra.mxu0 %v5785
      %v8403 = vpop.f32.mrf.mxu0
      %v8404 = vadd.f32 %v8390, %v8403
      %v8405 = vpop.f32.mrf.mxu0
      %v8406 = vadd.f32 %v8392, %v8405
      %8407 = vdwg.mxu0
      %8408 = vmatpush.bf16.msra.mxu0 %v7681
      %8409 = vmatpush.bf16.msra.mxu0 %v7677
      %8410 = vmatpush.bf16.msra.mxu0 %v7673
      %8411 = vmatpush.bf16.msra.mxu0 %v7669
      %8412 = vmatpush.bf16.msra.mxu0 %v7665
      %8413 = vmatpush.bf16.msra.mxu0 %v7661
      %8414 = vmatpush.bf16.msra.mxu0 %v7657
      %8415 = vmatpush.bf16.msra.mxu0 %v7653
      %8416 = vmatmul.bf16.gmra.mxu0 %v5788
      %v8417 = vpop.f32.mrf.mxu0
      %v8418 = vadd.f32 %v8404, %v8417
      %v8419 = vpop.f32.mrf.mxu0
      %v8420 = vadd.f32 %v8406, %v8419
      %8421 = vdwg.mxu0
      %8422 = vmatpush.bf16.msra.mxu0 %v7713
      %8423 = vmatpush.bf16.msra.mxu0 %v7709
      %8424 = vmatpush.bf16.msra.mxu0 %v7705
      %8425 = vmatpush.bf16.msra.mxu0 %v7701
      %8426 = vmatpush.bf16.msra.mxu0 %v7697
      %8427 = vmatpush.bf16.msra.mxu0 %v7693
      %8428 = vmatpush.bf16.msra.mxu0 %v7689
      %8429 = vmatpush.bf16.msra.mxu0 %v7685
      %8430 = vmatmul.bf16.gmra.mxu0 %v5791
      %v8431 = vpop.f32.mrf.mxu0
      %v8432 = vadd.f32 %v8418, %v8431
      %v8433 = vpop.f32.mrf.mxu0
      %v8434 = vadd.f32 %v8420, %v8433
      %8435 = vdwg.mxu0
      %8436 = vmatpush.bf16.msra.mxu0 %v7362
      %8437 = vmatpush.bf16.msra.mxu0 %v7358
      %8438 = vmatpush.bf16.msra.mxu0 %v7354
      %8439 = vmatpush.bf16.msra.mxu0 %v7350
      %8440 = vmatpush.bf16.msra.mxu0 %v7346
      %8441 = vmatpush.bf16.msra.mxu0 %v7342
      %8442 = vmatpush.bf16.msra.mxu0 %v7338
      %8443 = vmatpush.bf16.msra.mxu0 %v7334
      %8444 = vmatmul.bf16.gmra.mxu0 %v5710
      %v8445 = vpop.f32.mrf.mxu0
      %v8446 = vadd.f32 0.0, %v8445
      %v8447 = vpop.f32.mrf.mxu0
      %v8448 = vadd.f32 0.0, %v8447
      %8449 = vdwg.mxu0
      %8450 = vmatpush.bf16.msra.mxu0 %v7394
      %8451 = vmatpush.bf16.msra.mxu0 %v7390
      %8452 = vmatpush.bf16.msra.mxu0 %v7386
      %8453 = vmatpush.bf16.msra.mxu0 %v7382
      %8454 = vmatpush.bf16.msra.mxu0 %v7378
      %8455 = vmatpush.bf16.msra.mxu0 %v7374
      %8456 = vmatpush.bf16.msra.mxu0 %v7370
      %8457 = vmatpush.bf16.msra.mxu0 %v7366
      %8458 = vmatmul.bf16.gmra.mxu0 %v5711
      %v8459 = vpop.f32.mrf.mxu0
      %v8460 = vadd.f32 %v8446, %v8459
      %v8461 = vpop.f32.mrf.mxu0
      %v8462 = vadd.f32 %v8448, %v8461
      %8463 = vdwg.mxu0
      %8464 = vmatpush.bf16.msra.mxu0 %v7426
      %8465 = vmatpush.bf16.msra.mxu0 %v7422
      %8466 = vmatpush.bf16.msra.mxu0 %v7418
      %8467 = vmatpush.bf16.msra.mxu0 %v7414
      %8468 = vmatpush.bf16.msra.mxu0 %v7410
      %8469 = vmatpush.bf16.msra.mxu0 %v7406
      %8470 = vmatpush.bf16.msra.mxu0 %v7402
      %8471 = vmatpush.bf16.msra.mxu0 %v7398
      %8472 = vmatmul.bf16.gmra.mxu0 %v5712
      %v8473 = vpop.f32.mrf.mxu0
      %v8474 = vadd.f32 %v8460, %v8473
      %v8475 = vpop.f32.mrf.mxu0
      %v8476 = vadd.f32 %v8462, %v8475
      %8477 = vdwg.mxu0
      %8478 = vmatpush.bf16.msra.mxu0 %v7458
      %8479 = vmatpush.bf16.msra.mxu0 %v7454
      %8480 = vmatpush.bf16.msra.mxu0 %v7450
      %8481 = vmatpush.bf16.msra.mxu0 %v7446
      %8482 = vmatpush.bf16.msra.mxu0 %v7442
      %8483 = vmatpush.bf16.msra.mxu0 %v7438
      %8484 = vmatpush.bf16.msra.mxu0 %v7434
      %8485 = vmatpush.bf16.msra.mxu0 %v7430
      %8486 = vmatmul.bf16.gmra.mxu0 %v5713
      %v8487 = vpop.f32.mrf.mxu0
      %v8488 = vadd.f32 %v8474, %v8487
      %v8489 = vpop.f32.mrf.mxu0
      %v8490 = vadd.f32 %v8476, %v8489
      %8491 = vdwg.mxu0
      %8492 = vmatpush.bf16.msra.mxu0 %v7490
      %8493 = vmatpush.bf16.msra.mxu0 %v7486
      %8494 = vmatpush.bf16.msra.mxu0 %v7482
      %8495 = vmatpush.bf16.msra.mxu0 %v7478
      %8496 = vmatpush.bf16.msra.mxu0 %v7474
      %8497 = vmatpush.bf16.msra.mxu0 %v7470
      %8498 = vmatpush.bf16.msra.mxu0 %v7466
      %8499 = vmatpush.bf16.msra.mxu0 %v7462
      %8500 = vmatmul.bf16.gmra.mxu0 %v5739
      %v8501 = vpop.f32.mrf.mxu0
      %v8502 = vadd.f32 %v8488, %v8501
      %v8503 = vpop.f32.mrf.mxu0
      %v8504 = vadd.f32 %v8490, %v8503
      %8505 = vdwg.mxu0
      %8506 = vmatpush.bf16.msra.mxu0 %v7522
      %8507 = vmatpush.bf16.msra.mxu0 %v7518
      %8508 = vmatpush.bf16.msra.mxu0 %v7514
      %8509 = vmatpush.bf16.msra.mxu0 %v7510
      %8510 = vmatpush.bf16.msra.mxu0 %v7506
      %8511 = vmatpush.bf16.msra.mxu0 %v7502
      %8512 = vmatpush.bf16.msra.mxu0 %v7498
      %8513 = vmatpush.bf16.msra.mxu0 %v7494
      %8514 = vmatmul.bf16.gmra.mxu0 %v5751
      %v8515 = vpop.f32.mrf.mxu0
      %v8516 = vadd.f32 %v8502, %v8515
      %v8517 = vpop.f32.mrf.mxu0
      %v8518 = vadd.f32 %v8504, %v8517
      %8519 = vdwg.mxu0
      %8520 = vmatpush.bf16.msra.mxu0 %v7554
      %8521 = vmatpush.bf16.msra.mxu0 %v7550
      %8522 = vmatpush.bf16.msra.mxu0 %v7546
      %8523 = vmatpush.bf16.msra.mxu0 %v7542
      %8524 = vmatpush.bf16.msra.mxu0 %v7538
      %8525 = vmatpush.bf16.msra.mxu0 %v7534
      %8526 = vmatpush.bf16.msra.mxu0 %v7530
      %8527 = vmatpush.bf16.msra.mxu0 %v7526
      %8528 = vmatmul.bf16.gmra.mxu0 %v5763
      %v8529 = vpop.f32.mrf.mxu0
      %v8530 = vadd.f32 %v8516, %v8529
      %v8531 = vpop.f32.mrf.mxu0
      %v8532 = vadd.f32 %v8518, %v8531
      %8533 = vdwg.mxu0
      %8534 = vmatpush.bf16.msra.mxu0 %v7586
      %8535 = vmatpush.bf16.msra.mxu0 %v7582
      %8536 = vmatpush.bf16.msra.mxu0 %v7578
      %8537 = vmatpush.bf16.msra.mxu0 %v7574
      %8538 = vmatpush.bf16.msra.mxu0 %v7570
      %8539 = vmatpush.bf16.msra.mxu0 %v7566
      %8540 = vmatpush.bf16.msra.mxu0 %v7562
      %8541 = vmatpush.bf16.msra.mxu0 %v7558
      %8542 = vmatmul.bf16.gmra.mxu0 %v5775
      %v8543 = vpop.f32.mrf.mxu0
      %v8544 = vadd.f32 %v8530, %v8543
      %v8545 = vpop.f32.mrf.mxu0
      %v8546 = vadd.f32 %v8532, %v8545
      %8547 = vdwg.mxu0
      %8548 = vmatpush.bf16.msra.mxu0 %v7618
      %8549 = vmatpush.bf16.msra.mxu0 %v7614
      %8550 = vmatpush.bf16.msra.mxu0 %v7610
      %8551 = vmatpush.bf16.msra.mxu0 %v7606
      %8552 = vmatpush.bf16.msra.mxu0 %v7602
      %8553 = vmatpush.bf16.msra.mxu0 %v7598
      %8554 = vmatpush.bf16.msra.mxu0 %v7594
      %8555 = vmatpush.bf16.msra.mxu0 %v7590
      %8556 = vmatmul.bf16.gmra.mxu0 %v5782
      %v8557 = vpop.f32.mrf.mxu0
      %v8558 = vadd.f32 %v8544, %v8557
      %v8559 = vpop.f32.mrf.mxu0
      %v8560 = vadd.f32 %v8546, %v8559
      %8561 = vdwg.mxu0
      %8562 = vmatpush.bf16.msra.mxu0 %v7650
      %8563 = vmatpush.bf16.msra.mxu0 %v7646
      %8564 = vmatpush.bf16.msra.mxu0 %v7642
      %8565 = vmatpush.bf16.msra.mxu0 %v7638
      %8566 = vmatpush.bf16.msra.mxu0 %v7634
      %8567 = vmatpush.bf16.msra.mxu0 %v7630
      %8568 = vmatpush.bf16.msra.mxu0 %v7626
      %8569 = vmatpush.bf16.msra.mxu0 %v7622
      %8570 = vmatmul.bf16.gmra.mxu0 %v5785
      %v8571 = vpop.f32.mrf.mxu0
      %v8572 = vadd.f32 %v8558, %v8571
      %v8573 = vpop.f32.mrf.mxu0
      %v8574 = vadd.f32 %v8560, %v8573
      %8575 = vdwg.mxu0
      %8576 = vmatpush.bf16.msra.mxu0 %v7682
      %8577 = vmatpush.bf16.msra.mxu0 %v7678
      %8578 = vmatpush.bf16.msra.mxu0 %v7674
      %8579 = vmatpush.bf16.msra.mxu0 %v7670
      %8580 = vmatpush.bf16.msra.mxu0 %v7666
      %8581 = vmatpush.bf16.msra.mxu0 %v7662
      %8582 = vmatpush.bf16.msra.mxu0 %v7658
      %8583 = vmatpush.bf16.msra.mxu0 %v7654
      %8584 = vmatmul.bf16.gmra.mxu0 %v5788
      %v8585 = vpop.f32.mrf.mxu0
      %v8586 = vadd.f32 %v8572, %v8585
      %v8587 = vpop.f32.mrf.mxu0
      %v8588 = vadd.f32 %v8574, %v8587
      %8589 = vdwg.mxu0
      %8590 = vmatpush.bf16.msra.mxu0 %v7714
      %8591 = vmatpush.bf16.msra.mxu0 %v7710
      %8592 = vmatpush.bf16.msra.mxu0 %v7706
      %8593 = vmatpush.bf16.msra.mxu0 %v7702
      %8594 = vmatpush.bf16.msra.mxu0 %v7698
      %8595 = vmatpush.bf16.msra.mxu0 %v7694
      %8596 = vmatpush.bf16.msra.mxu0 %v7690
      %8597 = vmatpush.bf16.msra.mxu0 %v7686
      %8598 = vmatmul.bf16.gmra.mxu0 %v5791
      %v8599 = vpop.f32.mrf.mxu0
      %v8600 = vadd.f32 %v8586, %v8599
      %v8601 = vpop.f32.mrf.mxu0
      %v8602 = vadd.f32 %v8588, %v8601
      %8603 = vdwg.mxu0
      %8604 = vmatpush.bf16.msra.mxu0 %v7363
      %8605 = vmatpush.bf16.msra.mxu0 %v7359
      %8606 = vmatpush.bf16.msra.mxu0 %v7355
      %8607 = vmatpush.bf16.msra.mxu0 %v7351
      %8608 = vmatpush.bf16.msra.mxu0 %v7347
      %8609 = vmatpush.bf16.msra.mxu0 %v7343
      %8610 = vmatpush.bf16.msra.mxu0 %v7339
      %8611 = vmatpush.bf16.msra.mxu0 %v7335
      %8612 = vmatmul.bf16.gmra.mxu0 %v5710
      %v8613 = vpop.f32.mrf.mxu0
      %v8614 = vadd.f32 0.0, %v8613
      %v8615 = vpop.f32.mrf.mxu0
      %v8616 = vadd.f32 0.0, %v8615
      %8617 = vdwg.mxu0
      %8618 = vmatpush.bf16.msra.mxu0 %v7395
      %8619 = vmatpush.bf16.msra.mxu0 %v7391
      %8620 = vmatpush.bf16.msra.mxu0 %v7387
      %8621 = vmatpush.bf16.msra.mxu0 %v7383
      %8622 = vmatpush.bf16.msra.mxu0 %v7379
      %8623 = vmatpush.bf16.msra.mxu0 %v7375
      %8624 = vmatpush.bf16.msra.mxu0 %v7371
      %8625 = vmatpush.bf16.msra.mxu0 %v7367
      %8626 = vmatmul.bf16.gmra.mxu0 %v5711
      %v8627 = vpop.f32.mrf.mxu0
      %v8628 = vadd.f32 %v8614, %v8627
      %v8629 = vpop.f32.mrf.mxu0
      %v8630 = vadd.f32 %v8616, %v8629
      %8631 = vdwg.mxu0
      %8632 = vmatpush.bf16.msra.mxu0 %v7427
      %8633 = vmatpush.bf16.msra.mxu0 %v7423
      %8634 = vmatpush.bf16.msra.mxu0 %v7419
      %8635 = vmatpush.bf16.msra.mxu0 %v7415
      %8636 = vmatpush.bf16.msra.mxu0 %v7411
      %8637 = vmatpush.bf16.msra.mxu0 %v7407
      %8638 = vmatpush.bf16.msra.mxu0 %v7403
      %8639 = vmatpush.bf16.msra.mxu0 %v7399
      %8640 = vmatmul.bf16.gmra.mxu0 %v5712
      %v8641 = vpop.f32.mrf.mxu0
      %v8642 = vadd.f32 %v8628, %v8641
      %v8643 = vpop.f32.mrf.mxu0
      %v8644 = vadd.f32 %v8630, %v8643
      %8645 = vdwg.mxu0
      %8646 = vmatpush.bf16.msra.mxu0 %v7459
      %8647 = vmatpush.bf16.msra.mxu0 %v7455
      %8648 = vmatpush.bf16.msra.mxu0 %v7451
      %8649 = vmatpush.bf16.msra.mxu0 %v7447
      %8650 = vmatpush.bf16.msra.mxu0 %v7443
      %8651 = vmatpush.bf16.msra.mxu0 %v7439
      %8652 = vmatpush.bf16.msra.mxu0 %v7435
      %8653 = vmatpush.bf16.msra.mxu0 %v7431
      %8654 = vmatmul.bf16.gmra.mxu0 %v5713
      %v8655 = vpop.f32.mrf.mxu0
      %v8656 = vadd.f32 %v8642, %v8655
      %v8657 = vpop.f32.mrf.mxu0
      %v8658 = vadd.f32 %v8644, %v8657
      %8659 = vdwg.mxu0
      %8660 = vmatpush.bf16.msra.mxu0 %v7491
      %8661 = vmatpush.bf16.msra.mxu0 %v7487
      %8662 = vmatpush.bf16.msra.mxu0 %v7483
      %8663 = vmatpush.bf16.msra.mxu0 %v7479
      %8664 = vmatpush.bf16.msra.mxu0 %v7475
      %8665 = vmatpush.bf16.msra.mxu0 %v7471
      %8666 = vmatpush.bf16.msra.mxu0 %v7467
      %8667 = vmatpush.bf16.msra.mxu0 %v7463
      %8668 = vmatmul.bf16.gmra.mxu0 %v5739
      %v8669 = vpop.f32.mrf.mxu0
      %v8670 = vadd.f32 %v8656, %v8669
      %v8671 = vpop.f32.mrf.mxu0
      %v8672 = vadd.f32 %v8658, %v8671
      %8673 = vdwg.mxu0
      %8674 = vmatpush.bf16.msra.mxu0 %v7523
      %8675 = vmatpush.bf16.msra.mxu0 %v7519
      %8676 = vmatpush.bf16.msra.mxu0 %v7515
      %8677 = vmatpush.bf16.msra.mxu0 %v7511
      %8678 = vmatpush.bf16.msra.mxu0 %v7507
      %8679 = vmatpush.bf16.msra.mxu0 %v7503
      %8680 = vmatpush.bf16.msra.mxu0 %v7499
      %8681 = vmatpush.bf16.msra.mxu0 %v7495
      %8682 = vmatmul.bf16.gmra.mxu0 %v5751
      %v8683 = vpop.f32.mrf.mxu0
      %v8684 = vadd.f32 %v8670, %v8683
      %v8685 = vpop.f32.mrf.mxu0
      %v8686 = vadd.f32 %v8672, %v8685
      %8687 = vdwg.mxu0
      %8688 = vmatpush.bf16.msra.mxu0 %v7555
      %8689 = vmatpush.bf16.msra.mxu0 %v7551
      %8690 = vmatpush.bf16.msra.mxu0 %v7547
      %8691 = vmatpush.bf16.msra.mxu0 %v7543
      %8692 = vmatpush.bf16.msra.mxu0 %v7539
      %8693 = vmatpush.bf16.msra.mxu0 %v7535
      %8694 = vmatpush.bf16.msra.mxu0 %v7531
      %8695 = vmatpush.bf16.msra.mxu0 %v7527
      %8696 = vmatmul.bf16.gmra.mxu0 %v5763
      %v8697 = vpop.f32.mrf.mxu0
      %v8698 = vadd.f32 %v8684, %v8697
      %v8699 = vpop.f32.mrf.mxu0
      %v8700 = vadd.f32 %v8686, %v8699
      %8701 = vdwg.mxu0
      %8702 = vmatpush.bf16.msra.mxu0 %v7587
      %8703 = vmatpush.bf16.msra.mxu0 %v7583
      %8704 = vmatpush.bf16.msra.mxu0 %v7579
      %8705 = vmatpush.bf16.msra.mxu0 %v7575
      %8706 = vmatpush.bf16.msra.mxu0 %v7571
      %8707 = vmatpush.bf16.msra.mxu0 %v7567
      %8708 = vmatpush.bf16.msra.mxu0 %v7563
      %8709 = vmatpush.bf16.msra.mxu0 %v7559
      %8710 = vmatmul.bf16.gmra.mxu0 %v5775
      %v8711 = vpop.f32.mrf.mxu0
      %v8712 = vadd.f32 %v8698, %v8711
      %v8713 = vpop.f32.mrf.mxu0
      %v8714 = vadd.f32 %v8700, %v8713
      %8715 = vdwg.mxu0
      %8716 = vmatpush.bf16.msra.mxu0 %v7619
      %8717 = vmatpush.bf16.msra.mxu0 %v7615
      %8718 = vmatpush.bf16.msra.mxu0 %v7611
      %8719 = vmatpush.bf16.msra.mxu0 %v7607
      %8720 = vmatpush.bf16.msra.mxu0 %v7603
      %8721 = vmatpush.bf16.msra.mxu0 %v7599
      %8722 = vmatpush.bf16.msra.mxu0 %v7595
      %8723 = vmatpush.bf16.msra.mxu0 %v7591
      %8724 = vmatmul.bf16.gmra.mxu0 %v5782
      %v8725 = vpop.f32.mrf.mxu0
      %v8726 = vadd.f32 %v8712, %v8725
      %v8727 = vpop.f32.mrf.mxu0
      %v8728 = vadd.f32 %v8714, %v8727
      %8729 = vdwg.mxu0
      %8730 = vmatpush.bf16.msra.mxu0 %v7651
      %8731 = vmatpush.bf16.msra.mxu0 %v7647
      %8732 = vmatpush.bf16.msra.mxu0 %v7643
      %8733 = vmatpush.bf16.msra.mxu0 %v7639
      %8734 = vmatpush.bf16.msra.mxu0 %v7635
      %8735 = vmatpush.bf16.msra.mxu0 %v7631
      %8736 = vmatpush.bf16.msra.mxu0 %v7627
      %8737 = vmatpush.bf16.msra.mxu0 %v7623
      %8738 = vmatmul.bf16.gmra.mxu0 %v5785
      %v8739 = vpop.f32.mrf.mxu0
      %v8740 = vadd.f32 %v8726, %v8739
      %v8741 = vpop.f32.mrf.mxu0
      %v8742 = vadd.f32 %v8728, %v8741
      %8743 = vdwg.mxu0
      %8744 = vmatpush.bf16.msra.mxu0 %v7683
      %8745 = vmatpush.bf16.msra.mxu0 %v7679
      %8746 = vmatpush.bf16.msra.mxu0 %v7675
      %8747 = vmatpush.bf16.msra.mxu0 %v7671
      %8748 = vmatpush.bf16.msra.mxu0 %v7667
      %8749 = vmatpush.bf16.msra.mxu0 %v7663
      %8750 = vmatpush.bf16.msra.mxu0 %v7659
      %8751 = vmatpush.bf16.msra.mxu0 %v7655
      %8752 = vmatmul.bf16.gmra.mxu0 %v5788
      %v8753 = vpop.f32.mrf.mxu0
      %v8754 = vadd.f32 %v8740, %v8753
      %v8755 = vpop.f32.mrf.mxu0
      %v8756 = vadd.f32 %v8742, %v8755
      %8757 = vdwg.mxu0
      %8758 = vmatpush.bf16.msra.mxu0 %v7715
      %8759 = vmatpush.bf16.msra.mxu0 %v7711
      %8760 = vmatpush.bf16.msra.mxu0 %v7707
      %8761 = vmatpush.bf16.msra.mxu0 %v7703
      %8762 = vmatpush.bf16.msra.mxu0 %v7699
      %8763 = vmatpush.bf16.msra.mxu0 %v7695
      %8764 = vmatpush.bf16.msra.mxu0 %v7691
      %8765 = vmatpush.bf16.msra.mxu0 %v7687
      %8766 = vmatmul.bf16.gmra.mxu0 %v5791
      %v8767 = vpop.f32.mrf.mxu0
      %v8768 = vadd.f32 %v8754, %v8767
      %v8769 = vpop.f32.mrf.mxu0
      %v8770 = vadd.f32 %v8756, %v8769
      %8771 = vdwg.mxu0
      %v8772 = vld [vmem:[%s71] sm:$0xf]
      %v8774 = vperm.slane %v8772, 0
      %v8775 = vperm.slane %v8772, 1
      %v8776 = vperm.slane %v8772, 2
      %v8777 = vperm.slane %v8772, 3
      %v8782 = vmul.f32 %v8264, %v8774
      %v8783 = vmul.f32 %v8432, %v8775
      %v8784 = vmul.f32 %v8600, %v8776
      %v8785 = vmul.f32 %v8768, %v8777
      %v8786 = vmul.f32 %v8266, %v8774
      %v8787 = vmul.f32 %v8434, %v8775
      %v8788 = vmul.f32 %v8602, %v8776
      %v8789 = vmul.f32 %v8770, %v8777
      %v8790 = vld [vmem:[%s73] sm:$0xf]
      %v8792 = vperm.slane %v8790, 0
      %v8793 = vperm.slane %v8790, 1
      %v8794 = vperm.slane %v8790, 2
      %v8795 = vperm.slane %v8790, 3
      %v8800 = vadd.f32 %v8782, %v8792
      %v8801 = vadd.f32 %v8783, %v8793
      %v8802 = vadd.f32 %v8784, %v8794
      %v8803 = vadd.f32 %v8785, %v8795
      %v8804 = vadd.f32 %v8786, %v8792
      %v8805 = vadd.f32 %v8787, %v8793
      %v8806 = vadd.f32 %v8788, %v8794
      %v8807 = vadd.f32 %v8789, %v8795
      %v8808 = vld [vmem:[%s57] sm:$0xff]
      %v8809 = vld [vmem:[%s57 + $0x8] sm:$0xff]
      %v8810 = vld [vmem:[%s57 + $0x10] sm:$0xff]
      %v8811 = vld [vmem:[%s57 + $0x18] sm:$0xff]
      %v8812 = vld [vmem:[%s57 + $0x20] sm:$0xff]
      %v8813 = vld [vmem:[%s57 + $0x28] sm:$0xff]
      %v8814 = vld [vmem:[%s57 + $0x30] sm:$0xff]
      %v8815 = vld [vmem:[%s57 + $0x38] sm:$0xff]
      %v8816 = vld [vmem:[%s57 + $0x40] sm:$0xff]
      %v8817 = vld [vmem:[%s57 + $0x48] sm:$0xff]
      %v8818 = vld [vmem:[%s57 + $0x50] sm:$0xff]
      %v8819 = vld [vmem:[%s57 + $0x58] sm:$0xff]
      %v8820 = vld [vmem:[%s57 + $0x60] sm:$0xff]
      %v8821 = vld [vmem:[%s57 + $0x68] sm:$0xff]
      %v8822 = vld [vmem:[%s57 + $0x70] sm:$0xff]
      %v8823 = vld [vmem:[%s57 + $0x78] sm:$0xff]
      %v8824 = vld [vmem:[%s57 + $0x80] sm:$0xff]
      %v8825 = vld [vmem:[%s57 + $0x88] sm:$0xff]
      %v8826 = vld [vmem:[%s57 + $0x90] sm:$0xff]
      %v8827 = vld [vmem:[%s57 + $0x98] sm:$0xff]
      %v8828 = vld [vmem:[%s57 + $0xa0] sm:$0xff]
      %v8829 = vld [vmem:[%s57 + $0xa8] sm:$0xff]
      %v8830 = vld [vmem:[%s57 + $0xb0] sm:$0xff]
      %v8831 = vld [vmem:[%s57 + $0xb8] sm:$0xff]
      %v8832 = vld [vmem:[%s57 + $0xc0] sm:$0xff]
      %v8833 = vld [vmem:[%s57 + $0xc8] sm:$0xff]
      %v8834 = vld [vmem:[%s57 + $0xd0] sm:$0xff]
      %v8835 = vld [vmem:[%s57 + $0xd8] sm:$0xff]
      %v8836 = vld [vmem:[%s57 + $0xe0] sm:$0xff]
      %v8837 = vld [vmem:[%s57 + $0xe8] sm:$0xff]
      %v8838 = vld [vmem:[%s57 + $0xf0] sm:$0xff]
      %v8839 = vld [vmem:[%s57 + $0xf8] sm:$0xff]
      %v8840 = vld [vmem:[%s57 + $0x100] sm:$0xff]
      %v8841 = vld [vmem:[%s57 + $0x108] sm:$0xff]
      %v8842 = vld [vmem:[%s57 + $0x110] sm:$0xff]
      %v8843 = vld [vmem:[%s57 + $0x118] sm:$0xff]
      %v8844 = vld [vmem:[%s57 + $0x120] sm:$0xff]
      %v8845 = vld [vmem:[%s57 + $0x128] sm:$0xff]
      %v8846 = vld [vmem:[%s57 + $0x130] sm:$0xff]
      %v8847 = vld [vmem:[%s57 + $0x138] sm:$0xff]
      %v8848 = vld [vmem:[%s57 + $0x140] sm:$0xff]
      %v8849 = vld [vmem:[%s57 + $0x148] sm:$0xff]
      %v8850 = vld [vmem:[%s57 + $0x150] sm:$0xff]
      %v8851 = vld [vmem:[%s57 + $0x158] sm:$0xff]
      %v8852 = vld [vmem:[%s57 + $0x160] sm:$0xff]
      %v8853 = vld [vmem:[%s57 + $0x168] sm:$0xff]
      %v8854 = vld [vmem:[%s57 + $0x170] sm:$0xff]
      %v8855 = vld [vmem:[%s57 + $0x178] sm:$0xff]
      %v8856 = vld [vmem:[%s57 + $0x180] sm:$0xff]
      %v8857 = vld [vmem:[%s57 + $0x188] sm:$0xff]
      %v8858 = vld [vmem:[%s57 + $0x190] sm:$0xff]
      %v8859 = vld [vmem:[%s57 + $0x198] sm:$0xff]
      %v8860 = vld [vmem:[%s57 + $0x1a0] sm:$0xff]
      %v8861 = vld [vmem:[%s57 + $0x1a8] sm:$0xff]
      %v8862 = vld [vmem:[%s57 + $0x1b0] sm:$0xff]
      %v8863 = vld [vmem:[%s57 + $0x1b8] sm:$0xff]
      %v8864 = vld [vmem:[%s57 + $0x1c0] sm:$0xff]
      %v8865 = vld [vmem:[%s57 + $0x1c8] sm:$0xff]
      %v8866 = vld [vmem:[%s57 + $0x1d0] sm:$0xff]
      %v8867 = vld [vmem:[%s57 + $0x1d8] sm:$0xff]
      %v8868 = vld [vmem:[%s57 + $0x1e0] sm:$0xff]
      %v8869 = vld [vmem:[%s57 + $0x1e8] sm:$0xff]
      %v8870 = vld [vmem:[%s57 + $0x1f0] sm:$0xff]
      %v8871 = vld [vmem:[%s57 + $0x1f8] sm:$0xff]
      %v8936 = vunpack.c.l.b16 %v8808
      %v8937 = vunpack.c.h.b16 %v8808
      %v8938 = vunpack.c.l.b16 %v8809
      %v8939 = vunpack.c.h.b16 %v8809
      %v8940 = vunpack.c.l.b16 %v8810
      %v8941 = vunpack.c.h.b16 %v8810
      %v8942 = vunpack.c.l.b16 %v8811
      %v8943 = vunpack.c.h.b16 %v8811
      %v8944 = vunpack.c.l.b16 %v8812
      %v8945 = vunpack.c.h.b16 %v8812
      %v8946 = vunpack.c.l.b16 %v8813
      %v8947 = vunpack.c.h.b16 %v8813
      %v8948 = vunpack.c.l.b16 %v8814
      %v8949 = vunpack.c.h.b16 %v8814
      %v8950 = vunpack.c.l.b16 %v8815
      %v8951 = vunpack.c.h.b16 %v8815
      %v8952 = vunpack.c.l.b16 %v8816
      %v8953 = vunpack.c.h.b16 %v8816
      %v8954 = vunpack.c.l.b16 %v8817
      %v8955 = vunpack.c.h.b16 %v8817
      %v8956 = vunpack.c.l.b16 %v8818
      %v8957 = vunpack.c.h.b16 %v8818
      %v8958 = vunpack.c.l.b16 %v8819
      %v8959 = vunpack.c.h.b16 %v8819
      %v8960 = vunpack.c.l.b16 %v8820
      %v8961 = vunpack.c.h.b16 %v8820
      %v8962 = vunpack.c.l.b16 %v8821
      %v8963 = vunpack.c.h.b16 %v8821
      %v8964 = vunpack.c.l.b16 %v8822
      %v8965 = vunpack.c.h.b16 %v8822
      %v8966 = vunpack.c.l.b16 %v8823
      %v8967 = vunpack.c.h.b16 %v8823
      %v8968 = vunpack.c.l.b16 %v8824
      %v8969 = vunpack.c.h.b16 %v8824
      %v8970 = vunpack.c.l.b16 %v8825
      %v8971 = vunpack.c.h.b16 %v8825
      %v8972 = vunpack.c.l.b16 %v8826
      %v8973 = vunpack.c.h.b16 %v8826
      %v8974 = vunpack.c.l.b16 %v8827
      %v8975 = vunpack.c.h.b16 %v8827
      %v8976 = vunpack.c.l.b16 %v8828
      %v8977 = vunpack.c.h.b16 %v8828
      %v8978 = vunpack.c.l.b16 %v8829
      %v8979 = vunpack.c.h.b16 %v8829
      %v8980 = vunpack.c.l.b16 %v8830
      %v8981 = vunpack.c.h.b16 %v8830
      %v8982 = vunpack.c.l.b16 %v8831
      %v8983 = vunpack.c.h.b16 %v8831
      %v8984 = vunpack.c.l.b16 %v8832
      %v8985 = vunpack.c.h.b16 %v8832
      %v8986 = vunpack.c.l.b16 %v8833
      %v8987 = vunpack.c.h.b16 %v8833
      %v8988 = vunpack.c.l.b16 %v8834
      %v8989 = vunpack.c.h.b16 %v8834
      %v8990 = vunpack.c.l.b16 %v8835
      %v8991 = vunpack.c.h.b16 %v8835
      %v8992 = vunpack.c.l.b16 %v8836
      %v8993 = vunpack.c.h.b16 %v8836
      %v8994 = vunpack.c.l.b16 %v8837
      %v8995 = vunpack.c.h.b16 %v8837
      %v8996 = vunpack.c.l.b16 %v8838
      %v8997 = vunpack.c.h.b16 %v8838
      %v8998 = vunpack.c.l.b16 %v8839
      %v8999 = vunpack.c.h.b16 %v8839
      %v9000 = vunpack.c.l.b16 %v8840
      %v9001 = vunpack.c.h.b16 %v8840
      %v9002 = vunpack.c.l.b16 %v8841
      %v9003 = vunpack.c.h.b16 %v8841
      %v9004 = vunpack.c.l.b16 %v8842
      %v9005 = vunpack.c.h.b16 %v8842
      %v9006 = vunpack.c.l.b16 %v8843
      %v9007 = vunpack.c.h.b16 %v8843
      %v9008 = vunpack.c.l.b16 %v8844
      %v9009 = vunpack.c.h.b16 %v8844
      %v9010 = vunpack.c.l.b16 %v8845
      %v9011 = vunpack.c.h.b16 %v8845
      %v9012 = vunpack.c.l.b16 %v8846
      %v9013 = vunpack.c.h.b16 %v8846
      %v9014 = vunpack.c.l.b16 %v8847
      %v9015 = vunpack.c.h.b16 %v8847
      %v9016 = vunpack.c.l.b16 %v8848
      %v9017 = vunpack.c.h.b16 %v8848
      %v9018 = vunpack.c.l.b16 %v8849
      %v9019 = vunpack.c.h.b16 %v8849
      %v9020 = vunpack.c.l.b16 %v8850
      %v9021 = vunpack.c.h.b16 %v8850
      %v9022 = vunpack.c.l.b16 %v8851
      %v9023 = vunpack.c.h.b16 %v8851
      %v9024 = vunpack.c.l.b16 %v8852
      %v9025 = vunpack.c.h.b16 %v8852
      %v9026 = vunpack.c.l.b16 %v8853
      %v9027 = vunpack.c.h.b16 %v8853
      %v9028 = vunpack.c.l.b16 %v8854
      %v9029 = vunpack.c.h.b16 %v8854
      %v9030 = vunpack.c.l.b16 %v8855
      %v9031 = vunpack.c.h.b16 %v8855
      %v9032 = vunpack.c.l.b16 %v8856
      %v9033 = vunpack.c.h.b16 %v8856
      %v9034 = vunpack.c.l.b16 %v8857
      %v9035 = vunpack.c.h.b16 %v8857
      %v9036 = vunpack.c.l.b16 %v8858
      %v9037 = vunpack.c.h.b16 %v8858
      %v9038 = vunpack.c.l.b16 %v8859
      %v9039 = vunpack.c.h.b16 %v8859
      %v9040 = vunpack.c.l.b16 %v8860
      %v9041 = vunpack.c.h.b16 %v8860
      %v9042 = vunpack.c.l.b16 %v8861
      %v9043 = vunpack.c.h.b16 %v8861
      %v9044 = vunpack.c.l.b16 %v8862
      %v9045 = vunpack.c.h.b16 %v8862
      %v9046 = vunpack.c.l.b16 %v8863
      %v9047 = vunpack.c.h.b16 %v8863
      %v9048 = vunpack.c.l.b16 %v8864
      %v9049 = vunpack.c.h.b16 %v8864
      %v9050 = vunpack.c.l.b16 %v8865
      %v9051 = vunpack.c.h.b16 %v8865
      %v9052 = vunpack.c.l.b16 %v8866
      %v9053 = vunpack.c.h.b16 %v8866
      %v9054 = vunpack.c.l.b16 %v8867
      %v9055 = vunpack.c.h.b16 %v8867
      %v9056 = vunpack.c.l.b16 %v8868
      %v9057 = vunpack.c.h.b16 %v8868
      %v9058 = vunpack.c.l.b16 %v8869
      %v9059 = vunpack.c.h.b16 %v8869
      %v9060 = vunpack.c.l.b16 %v8870
      %v9061 = vunpack.c.h.b16 %v8870
      %v9062 = vunpack.c.l.b16 %v8871
      %v9063 = vunpack.c.h.b16 %v8871
      %v9064 = vpack.c.b16 %v8940, %v8936
      %v9065 = vpack.c.b16 %v8941, %v8937
      %v9066 = vpack.c.b16 %v8942, %v8938
      %v9067 = vpack.c.b16 %v8943, %v8939
      %v9068 = vpack.c.b16 %v8948, %v8944
      %v9069 = vpack.c.b16 %v8949, %v8945
      %v9070 = vpack.c.b16 %v8950, %v8946
      %v9071 = vpack.c.b16 %v8951, %v8947
      %v9072 = vpack.c.b16 %v8956, %v8952
      %v9073 = vpack.c.b16 %v8957, %v8953
      %v9074 = vpack.c.b16 %v8958, %v8954
      %v9075 = vpack.c.b16 %v8959, %v8955
      %v9076 = vpack.c.b16 %v8964, %v8960
      %v9077 = vpack.c.b16 %v8965, %v8961
      %v9078 = vpack.c.b16 %v8966, %v8962
      %v9079 = vpack.c.b16 %v8967, %v8963
      %v9080 = vpack.c.b16 %v8972, %v8968
      %v9081 = vpack.c.b16 %v8973, %v8969
      %v9082 = vpack.c.b16 %v8974, %v8970
      %v9083 = vpack.c.b16 %v8975, %v8971
      %v9084 = vpack.c.b16 %v8980, %v8976
      %v9085 = vpack.c.b16 %v8981, %v8977
      %v9086 = vpack.c.b16 %v8982, %v8978
      %v9087 = vpack.c.b16 %v8983, %v8979
      %v9088 = vpack.c.b16 %v8988, %v8984
      %v9089 = vpack.c.b16 %v8989, %v8985
      %v9090 = vpack.c.b16 %v8990, %v8986
      %v9091 = vpack.c.b16 %v8991, %v8987
      %v9092 = vpack.c.b16 %v8996, %v8992
      %v9093 = vpack.c.b16 %v8997, %v8993
      %v9094 = vpack.c.b16 %v8998, %v8994
      %v9095 = vpack.c.b16 %v8999, %v8995
      %v9096 = vpack.c.b16 %v9004, %v9000
      %v9097 = vpack.c.b16 %v9005, %v9001
      %v9098 = vpack.c.b16 %v9006, %v9002
      %v9099 = vpack.c.b16 %v9007, %v9003
      %v9100 = vpack.c.b16 %v9012, %v9008
      %v9101 = vpack.c.b16 %v9013, %v9009
      %v9102 = vpack.c.b16 %v9014, %v9010
      %v9103 = vpack.c.b16 %v9015, %v9011
      %v9104 = vpack.c.b16 %v9020, %v9016
      %v9105 = vpack.c.b16 %v9021, %v9017
      %v9106 = vpack.c.b16 %v9022, %v9018
      %v9107 = vpack.c.b16 %v9023, %v9019
      %v9108 = vpack.c.b16 %v9028, %v9024
      %v9109 = vpack.c.b16 %v9029, %v9025
      %v9110 = vpack.c.b16 %v9030, %v9026
      %v9111 = vpack.c.b16 %v9031, %v9027
      %v9112 = vpack.c.b16 %v9036, %v9032
      %v9113 = vpack.c.b16 %v9037, %v9033
      %v9114 = vpack.c.b16 %v9038, %v9034
      %v9115 = vpack.c.b16 %v9039, %v9035
      %v9116 = vpack.c.b16 %v9044, %v9040
      %v9117 = vpack.c.b16 %v9045, %v9041
      %v9118 = vpack.c.b16 %v9046, %v9042
      %v9119 = vpack.c.b16 %v9047, %v9043
      %v9120 = vpack.c.b16 %v9052, %v9048
      %v9121 = vpack.c.b16 %v9053, %v9049
      %v9122 = vpack.c.b16 %v9054, %v9050
      %v9123 = vpack.c.b16 %v9055, %v9051
      %v9124 = vpack.c.b16 %v9060, %v9056
      %v9125 = vpack.c.b16 %v9061, %v9057
      %v9126 = vpack.c.b16 %v9062, %v9058
      %v9127 = vpack.c.b16 %v9063, %v9059
      %9192 = vmatpush.bf16.msra.mxu0 %v9092
      %9193 = vmatpush.bf16.msra.mxu0 %v9088
      %9194 = vmatpush.bf16.msra.mxu0 %v9084
      %9195 = vmatpush.bf16.msra.mxu0 %v9080
      %9196 = vmatpush.bf16.msra.mxu0 %v9076
      %9197 = vmatpush.bf16.msra.mxu0 %v9072
      %9198 = vmatpush.bf16.msra.mxu0 %v9068
      %9199 = vmatpush.bf16.msra.mxu0 %v9064
      %9200 = vmatmul.bf16.gmra.mxu0 %v4012
      %v9201 = vpop.f32.mrf.mxu0
      %v9202 = vadd.f32 0.0, %v9201
      %v9203 = vpop.f32.mrf.mxu0
      %v9204 = vadd.f32 0.0, %v9203
      %9205 = vdwg.mxu0
      %9206 = vmatpush.bf16.msra.mxu0 %v9124
      %9207 = vmatpush.bf16.msra.mxu0 %v9120
      %9208 = vmatpush.bf16.msra.mxu0 %v9116
      %9209 = vmatpush.bf16.msra.mxu0 %v9112
      %9210 = vmatpush.bf16.msra.mxu0 %v9108
      %9211 = vmatpush.bf16.msra.mxu0 %v9104
      %9212 = vmatpush.bf16.msra.mxu0 %v9100
      %9213 = vmatpush.bf16.msra.mxu0 %v9096
      %9214 = vmatmul.bf16.gmra.mxu0 %v4015
      %v9215 = vpop.f32.mrf.mxu0
      %v9216 = vadd.f32 %v9202, %v9215
      %v9217 = vpop.f32.mrf.mxu0
      %v9218 = vadd.f32 %v9204, %v9217
      %9219 = vdwg.mxu0
      %9220 = vmatpush.bf16.msra.mxu0 %v9093
      %9221 = vmatpush.bf16.msra.mxu0 %v9089
      %9222 = vmatpush.bf16.msra.mxu0 %v9085
      %9223 = vmatpush.bf16.msra.mxu0 %v9081
      %9224 = vmatpush.bf16.msra.mxu0 %v9077
      %9225 = vmatpush.bf16.msra.mxu0 %v9073
      %9226 = vmatpush.bf16.msra.mxu0 %v9069
      %9227 = vmatpush.bf16.msra.mxu0 %v9065
      %9228 = vmatmul.bf16.gmra.mxu0 %v4012
      %v9229 = vpop.f32.mrf.mxu0
      %v9230 = vadd.f32 0.0, %v9229
      %v9231 = vpop.f32.mrf.mxu0
      %v9232 = vadd.f32 0.0, %v9231
      %9233 = vdwg.mxu0
      %9234 = vmatpush.bf16.msra.mxu0 %v9125
      %9235 = vmatpush.bf16.msra.mxu0 %v9121
      %9236 = vmatpush.bf16.msra.mxu0 %v9117
      %9237 = vmatpush.bf16.msra.mxu0 %v9113
      %9238 = vmatpush.bf16.msra.mxu0 %v9109
      %9239 = vmatpush.bf16.msra.mxu0 %v9105
      %9240 = vmatpush.bf16.msra.mxu0 %v9101
      %9241 = vmatpush.bf16.msra.mxu0 %v9097
      %9242 = vmatmul.bf16.gmra.mxu0 %v4015
      %v9243 = vpop.f32.mrf.mxu0
      %v9244 = vadd.f32 %v9230, %v9243
      %v9245 = vpop.f32.mrf.mxu0
      %v9246 = vadd.f32 %v9232, %v9245
      %9247 = vdwg.mxu0
      %9248 = vmatpush.bf16.msra.mxu0 %v9094
      %9249 = vmatpush.bf16.msra.mxu0 %v9090
      %9250 = vmatpush.bf16.msra.mxu0 %v9086
      %9251 = vmatpush.bf16.msra.mxu0 %v9082
      %9252 = vmatpush.bf16.msra.mxu0 %v9078
      %9253 = vmatpush.bf16.msra.mxu0 %v9074
      %9254 = vmatpush.bf16.msra.mxu0 %v9070
      %9255 = vmatpush.bf16.msra.mxu0 %v9066
      %9256 = vmatmul.bf16.gmra.mxu0 %v4012
      %v9257 = vpop.f32.mrf.mxu0
      %v9258 = vadd.f32 0.0, %v9257
      %v9259 = vpop.f32.mrf.mxu0
      %v9260 = vadd.f32 0.0, %v9259
      %9261 = vdwg.mxu0
      %9262 = vmatpush.bf16.msra.mxu0 %v9126
      %9263 = vmatpush.bf16.msra.mxu0 %v9122
      %9264 = vmatpush.bf16.msra.mxu0 %v9118
      %9265 = vmatpush.bf16.msra.mxu0 %v9114
      %9266 = vmatpush.bf16.msra.mxu0 %v9110
      %9267 = vmatpush.bf16.msra.mxu0 %v9106
      %9268 = vmatpush.bf16.msra.mxu0 %v9102
      %9269 = vmatpush.bf16.msra.mxu0 %v9098
      %9270 = vmatmul.bf16.gmra.mxu0 %v4015
      %v9271 = vpop.f32.mrf.mxu0
      %v9272 = vadd.f32 %v9258, %v9271
      %v9273 = vpop.f32.mrf.mxu0
      %v9274 = vadd.f32 %v9260, %v9273
      %9275 = vdwg.mxu0
      %9276 = vmatpush.bf16.msra.mxu0 %v9095
      %9277 = vmatpush.bf16.msra.mxu0 %v9091
      %9278 = vmatpush.bf16.msra.mxu0 %v9087
      %9279 = vmatpush.bf16.msra.mxu0 %v9083
      %9280 = vmatpush.bf16.msra.mxu0 %v9079
      %9281 = vmatpush.bf16.msra.mxu0 %v9075
      %9282 = vmatpush.bf16.msra.mxu0 %v9071
      %9283 = vmatpush.bf16.msra.mxu0 %v9067
      %9284 = vmatmul.bf16.gmra.mxu0 %v4012
      %v9285 = vpop.f32.mrf.mxu0
      %v9286 = vadd.f32 0.0, %v9285
      %v9287 = vpop.f32.mrf.mxu0
      %v9288 = vadd.f32 0.0, %v9287
      %9289 = vdwg.mxu0
      %9290 = vmatpush.bf16.msra.mxu0 %v9127
      %9291 = vmatpush.bf16.msra.mxu0 %v9123
      %9292 = vmatpush.bf16.msra.mxu0 %v9119
      %9293 = vmatpush.bf16.msra.mxu0 %v9115
      %9294 = vmatpush.bf16.msra.mxu0 %v9111
      %9295 = vmatpush.bf16.msra.mxu0 %v9107
      %9296 = vmatpush.bf16.msra.mxu0 %v9103
      %9297 = vmatpush.bf16.msra.mxu0 %v9099
      %9298 = vmatmul.bf16.gmra.mxu0 %v4015
      %v9299 = vpop.f32.mrf.mxu0
      %v9300 = vadd.f32 %v9286, %v9299
      %v9301 = vpop.f32.mrf.mxu0
      %v9302 = vadd.f32 %v9288, %v9301
      %9303 = vdwg.mxu0
      %v9304 = vld [vmem:[%s59] sm:$0xf]
      %v9306 = vperm.slane %v9304, 0
      %v9307 = vperm.slane %v9304, 1
      %v9308 = vperm.slane %v9304, 2
      %v9309 = vperm.slane %v9304, 3
      %v9314 = vmul.f32 %v9216, %v9306
      %v9315 = vmul.f32 %v9244, %v9307
      %v9316 = vmul.f32 %v9272, %v9308
      %v9317 = vmul.f32 %v9300, %v9309
      %v9318 = vmul.f32 %v9218, %v9306
      %v9319 = vmul.f32 %v9246, %v9307
      %v9320 = vmul.f32 %v9274, %v9308
      %v9321 = vmul.f32 %v9302, %v9309
      %v9322 = vld [vmem:[%s61] sm:$0xf]
      %v9324 = vperm.slane %v9322, 0
      %v9325 = vperm.slane %v9322, 1
      %v9326 = vperm.slane %v9322, 2
      %v9327 = vperm.slane %v9322, 3
      %v9332 = vadd.f32 %v9314, %v9324
      %v9333 = vadd.f32 %v9315, %v9325
      %v9334 = vadd.f32 %v9316, %v9326
      %v9335 = vadd.f32 %v9317, %v9327
      %v9336 = vadd.f32 %v9318, %v9324
      %v9337 = vadd.f32 %v9319, %v9325
      %v9338 = vadd.f32 %v9320, %v9326
      %v9339 = vadd.f32 %v9321, %v9327
      %v9340 = vadd.f32 %v8800, %v9332
      %v9341 = vadd.f32 %v8801, %v9333
      %v9342 = vadd.f32 %v8802, %v9334
      %v9343 = vadd.f32 %v8803, %v9335
      %v9344 = vadd.f32 %v8804, %v9336
      %v9345 = vadd.f32 %v8805, %v9337
      %v9346 = vadd.f32 %v8806, %v9338
      %v9347 = vadd.f32 %v8807, %v9339
      %v9348 = vmax.f32 %v9340, 0.0
      %v9349 = vmax.f32 %v9341, 0.0
      %v9350 = vmax.f32 %v9342, 0.0
      %v9351 = vmax.f32 %v9343, 0.0
      %v9352 = vmax.f32 %v9344, 0.0
      %v9353 = vmax.f32 %v9345, 0.0
      %v9354 = vmax.f32 %v9346, 0.0
      %v9355 = vmax.f32 %v9347, 0.0
      %v9356 = vld [vmem:[%s75] sm:$0xff]
      %vm9357 = vcmask 130048
      %v9359 = vsel %vm9357, %v9356, 0
      %9361 = vmatpush.msra.mxu0 0.0
      %9362 = vmatpush.msra.mxu0 0.0
      %9363 = vmatpush.msra.mxu0 0.0
      %9364 = vmatpush.msra.mxu0 0.0
      %9365 = vmatpush.msra.mxu0 0.0
      %9366 = vmatpush.msra.mxu0 0.0
      %9367 = vmatpush.msra.mxu0 0.0
      %9368 = vmatpush.msra.mxu0 0.0
      %9369 = vmatpush.msra.mxu0 0.0
      %9370 = vmatpush.msra.mxu0 0.0
      %9371 = vmatpush.msra.mxu0 0.0
      %9372 = vmatpush.msra.mxu0 0.0
      %9373 = vmatpush.msra.mxu0 0.0
      %9374 = vmatpush.msra.mxu0 0.0
      %9375 = vmatpush.msra.mxu0 %v9352
      %9376 = vmatpush.msra.mxu0 %v9348
      %9377 = vmatmul.f32.gmra.mxu0 %v9359
      %v9378 = vpop.f32.mrf.mxu0
      %v9379 = vadd.f32 0.0, %v9378
      %9380 = vdwg.mxu0
      %9381 = vmatpush.msra.mxu0 0.0
      %9382 = vmatpush.msra.mxu0 0.0
      %9383 = vmatpush.msra.mxu0 0.0
      %9384 = vmatpush.msra.mxu0 0.0
      %9385 = vmatpush.msra.mxu0 0.0
      %9386 = vmatpush.msra.mxu0 0.0
      %9387 = vmatpush.msra.mxu0 0.0
      %9388 = vmatpush.msra.mxu0 0.0
      %9389 = vmatpush.msra.mxu0 0.0
      %9390 = vmatpush.msra.mxu0 0.0
      %9391 = vmatpush.msra.mxu0 0.0
      %9392 = vmatpush.msra.mxu0 0.0
      %9393 = vmatpush.msra.mxu0 0.0
      %9394 = vmatpush.msra.mxu0 0.0
      %9395 = vmatpush.msra.mxu0 %v9353
      %9396 = vmatpush.msra.mxu0 %v9349
      %9397 = vmatmul.f32.gmra.mxu0 %v9359
      %v9398 = vpop.f32.mrf.mxu0
      %v9399 = vadd.f32 0.0, %v9398
      %9400 = vdwg.mxu0
      %9401 = vmatpush.msra.mxu0 0.0
      %9402 = vmatpush.msra.mxu0 0.0
      %9403 = vmatpush.msra.mxu0 0.0
      %9404 = vmatpush.msra.mxu0 0.0
      %9405 = vmatpush.msra.mxu0 0.0
      %9406 = vmatpush.msra.mxu0 0.0
      %9407 = vmatpush.msra.mxu0 0.0
      %9408 = vmatpush.msra.mxu0 0.0
      %9409 = vmatpush.msra.mxu0 0.0
      %9410 = vmatpush.msra.mxu0 0.0
      %9411 = vmatpush.msra.mxu0 0.0
      %9412 = vmatpush.msra.mxu0 0.0
      %9413 = vmatpush.msra.mxu0 0.0
      %9414 = vmatpush.msra.mxu0 0.0
      %9415 = vmatpush.msra.mxu0 %v9354
      %9416 = vmatpush.msra.mxu0 %v9350
      %9417 = vmatmul.f32.gmra.mxu0 %v9359
      %v9418 = vpop.f32.mrf.mxu0
      %v9419 = vadd.f32 0.0, %v9418
      %9420 = vdwg.mxu0
      %9421 = vmatpush.msra.mxu0 0.0
      %9422 = vmatpush.msra.mxu0 0.0
      %9423 = vmatpush.msra.mxu0 0.0
      %9424 = vmatpush.msra.mxu0 0.0
      %9425 = vmatpush.msra.mxu0 0.0
      %9426 = vmatpush.msra.mxu0 0.0
      %9427 = vmatpush.msra.mxu0 0.0
      %9428 = vmatpush.msra.mxu0 0.0
      %9429 = vmatpush.msra.mxu0 0.0
      %9430 = vmatpush.msra.mxu0 0.0
      %9431 = vmatpush.msra.mxu0 0.0
      %9432 = vmatpush.msra.mxu0 0.0
      %9433 = vmatpush.msra.mxu0 0.0
      %9434 = vmatpush.msra.mxu0 0.0
      %9435 = vmatpush.msra.mxu0 %v9355
      %9436 = vmatpush.msra.mxu0 %v9351
      %9437 = vmatmul.f32.gmra.mxu0 %v9359
      %v9438 = vpop.f32.mrf.mxu0
      %v9439 = vadd.f32 0.0, %v9438
      %9440 = vdwg.mxu0
      %9441 = vst [vmem:[%s1190] sm:$0xff] %v9379
      %9442 = vst [vmem:[%s1190 + $0x8] sm:$0xff] %v9399
      %9443 = vst [vmem:[%s1190 + $0x10] sm:$0xff] %v9419
      %9444 = vst [vmem:[%s1190 + $0x18] sm:$0xff] %v9439
      %p9445 = scmp.lt.s32.totalorder %s92, 1
      %s9446 = scalar_select %p9445, %s92, 1
      %p9447 = scmp.lt.s32.totalorder %s93, 0
      %s9448 = scalar_select %p9447, %s93, 0
      %s9449 = smul.addr %s9448, 4
      %s9450 = smul.addr %s9446, 4
      %s9451 = sadd.s32 %s9449, %s9450
      %s9452 = smul.addr %s9451, 8
      %s9453 = scalar_lea.vmem %s77, %s9452
      // Predicated region
      $region173: #{resnet_forward.1} parent=171 // pred_check
        %p9454 = pneg %p925
      $region174: #{resnet_forward.1} parent=171 // pred_check_branch
        %9456 = sbr.rel (%p9454) target = $region176
      $region175: #{resnet_forward.1} parent=171 // pred_region
        _
      $region176: #{resnet_forward.1} parent=171 // pred_fallthru
        _
    $region172: #{resnet_forward.1} parent=5 // pred_fallthru
      _
    %p9457 = scmp.le.s32.totalorder 2, %s83
    // Predicated region
    $region177: #{resnet_forward.1} parent=5 // pred_check
      %p9458 = pneg %p9457
    $region178: #{resnet_forward.1} parent=5 // pred_check_branch
      %9460 = sbr.rel (%p9458) target = $region180
    $region179: #{resnet_forward.1} parent=5 // pred_region
      %s9461 = ssub.s32 %s83, 2
      // Predicated region
      $region181: #{resnet_forward.1} parent=179 // pred_check
        %p9462 = pneg %p931
      $region182: #{resnet_forward.1} parent=179 // pred_check_branch
        %9464 = sbr.rel (%p9462) target = $region184
      $region183: #{resnet_forward.1} parent=179 // pred_region
        %p9465 = scmp.lt.s32.totalorder %s94, 1
        %s9466 = scalar_select %p9465, %s94, 1
        %p9467 = scmp.lt.s32.totalorder %s95, 0
        %s9468 = scalar_select %p9467, %s95, 0
        %s9469 = smul.addr %s9468, 4
        %s9470 = smul.addr %s9466, 4
        %s9471 = sadd.s32 %s9469, %s9470
        %s9472 = smul.addr %s9471, 8
        %s9473 = scalar_lea.vmem %s77, %s9472
      $region184: #{resnet_forward.1} parent=179 // pred_fallthru
        _
    $region180: #{resnet_forward.1} parent=5 // pred_fallthru
      _
  $region6: #{resnet_forward.1} parent=0 // loop_footer
    %s87 = sadd.s32 1, %s83
  $region7: #{resnet_forward.1} parent=0 // loop_footer_branch
    %82 = sbr.rel target = $region3
  $region8: #{resnet_forward.1} parent=0 // loop_exit
    _

</llo_original>
